<compile_context>
chip_gen: v5e
topology: v5e:2x2
jax: 0.10.0
libtpu: 0.0.40
codegen_flags: <defaults>
</compile_context>

<pallas_src>
import functools

import jax
import jax.numpy as jnp
import numpy as np
from jax.experimental import pallas as pl
from jax.experimental.pallas import tpu as pltpu


def _round_up(x, m):
    return ((x + m - 1) // m) * m


# --------------------------------------------------------------------------------------
# Constant operators (built host-side with numpy; they are tiny and constant-folded).
# --------------------------------------------------------------------------------------
def _tap_mask(k, H, W):
    """(k*k, H*W) validity mask for SAME padding: 1 where the tap reads inside the image."""
    pad = k // 2
    hh = np.repeat(np.arange(H), W)          # row index of each flat output position
    ww = np.tile(np.arange(W), H)            # col index of each flat output position
    masks = []
    for dy in range(k):
        for dx in range(k):
            h_src = hh + dy - pad
            w_src = ww + dx - pad
            valid = (h_src >= 0) & (h_src < H) & (w_src >= 0) & (w_src < W)
            masks.append(valid)
    return jnp.asarray(np.stack(masks).astype(np.float32))


def _nearest_upsample_matrix(in_hw, out_hw):
    """0/1 operator U (Hin*Win, Hout*Wout): legacy-nearest upsample as a right-matmul."""
    Hin, Win = in_hw
    Hout, Wout = out_hw
    hi = np.floor(np.arange(Hout) * (Hin / Hout)).astype(np.int64)
    wi = np.floor(np.arange(Wout) * (Win / Wout)).astype(np.int64)
    src = (hi[:, None] * Win + wi[None, :]).reshape(-1)
    U = np.zeros((Hin * Win, Hout * Wout), np.float32)
    U[src, np.arange(Hout * Wout)] = 1.0
    return jnp.asarray(U)


# --------------------------------------------------------------------------------------
# Fused (upsample + concat + KxK SAME conv + bias + ReLU) Pallas kernel.
# --------------------------------------------------------------------------------------
def _make_fused_conv_kernel(input_cfg, k, Hout, Wout, Cout, front, compute_dtype):
    pad = k // 2
    HW = Hout * Wout

    def kernel(*refs):
        it = iter(refs)
        per_input = []
        for (Ci, has_up) in input_cfg:
            x_ref = next(it)
            u_ref = next(it) if has_up else None
            w_ref = next(it)
            per_input.append((Ci, x_ref, u_ref, w_ref))
        m_ref = next(it)                     # (k*k, HW) tap-validity masks
        b_ref = next(it)                     # (Cout, 1)
        o_ref = next(it)                     # (Cout, HW)  -> lane-dense for HW >= 128
        xb_ref = next(it)                    # VMEM scratch (Cmax, L)

        # Zero the scratch once per pallas_call (scratch persists across grid
        # steps; the halo region is never written afterwards, the image region
        # is fully overwritten before every read).  Needed so halo reads see
        # exact zeros rather than stale/NaN VMEM.
        @pl.when(pl.program_id(0) == 0)
        def _():
            xb_ref[...] = jnp.zeros_like(xb_ref)

        # Bias folded into the accumulator init (single hoisted lane broadcast).
        acc = jnp.broadcast_to(b_ref[...], (Cout, HW)).astype(jnp.float32)
        m_all = m_ref[...]                   # loaded once, sliced as a value per tap

        for (Ci, x_ref, u_ref, w_ref) in per_input:
            x_val = x_ref[...]               # (Ci, HWin)
            if u_ref is not None:
                # Fused nearest-neighbour upsample: one 0/1 matmul on the MXU.
                x_val = jnp.dot(x_val, u_ref[...],
                                preferred_element_type=jnp.float32)   # (Ci, HW)

            # Stage the (unpadded) image into the zero-padded scratch row.
            xb_ref[0:Ci, front:front + HW] = x_val.astype(xb_ref.dtype)

            w_all = w_ref[...].astype(compute_dtype)   # (k*k, Cout, Ci), loaded once
            for t in range(k * k):                     # fully unrolled tap loop
                dy, dx = divmod(t, k)
                start = front + (dy - pad) * Wout + (dx - pad)
                patch = xb_ref[0:Ci, start:start + HW].astype(compute_dtype)
                # Taps with dx == pad only wrap vertically, i.e. into the
                # zero-initialized halo -> the mask multiply can be skipped.
                if dx != pad:
                    patch = patch * m_all[t:t + 1, :].astype(compute_dtype)
                # (Cout, Ci) x (Ci, HW): spatial on lanes -> lane-dense accumulate.
                acc = acc + jnp.dot(w_all[t], patch,
                                    preferred_element_type=jnp.float32)

        o_ref[...] = jnp.maximum(acc, 0.0).astype(o_ref.dtype)

    return kernel


def fused_conv_relu(inputs, weights, bias, mask, out_hw, cout, k, compute_dtype=None):
    """One pyramid level: optional fused nearest-upsample + fused channel-concat +
    SAME KxK conv + bias + ReLU, all in a single pallas_call.

    inputs : list of (x, U) pairs; x is (N, Ci, Hin*Win) channel-major flat, U is a
             (Hin*Win, Hout*Wout) nearest-upsample operator or None.
    weights: list of (k*k, Cout, Ci) tap-major weight slices (concat is fused).
    bias   : (Cout, 1);  mask: (k*k, Hout*Wout).
    compute_dtype: set to jnp.bfloat16 on v6e/v7x to halve matmul operand bytes
             (accumulation stays f32); default keeps exact f32 semantics.
    """
    N = inputs[0][0].shape[0]
    Hout, Wout = out_hw
    HW = Hout * Wout
    pad = k // 2
    dtype = inputs[0][0].dtype
    cdt = compute_dtype or dtype

    # Scratch geometry: lane-aligned front halo + image + back halo.
    padf = pad * Wout + pad
    front = _round_up(max(padf, 128), 128)
    L = front + _round_up(HW + padf, 128)
    cmax = max(x.shape[1] for x, _ in inputs)

    input_cfg = []
    call_args = []
    in_specs = []
    for (x, U), w in zip(inputs, weights):
        ci, hwin = x.shape[1], x.shape[2]
        input_cfg.append((ci, U is not None))
        call_args.append(x)
        in_specs.append(pl.BlockSpec((None, ci, hwin), lambda n: (n, 0, 0)))
        if U is not None:
            call_args.append(U)
            in_specs.append(pl.BlockSpec((hwin, HW), lambda n: (0, 0)))
        call_args.append(w)
        in_specs.append(pl.BlockSpec((k * k, cout, ci), lambda n: (0, 0, 0)))
    call_args.append(mask)
    in_specs.append(pl.BlockSpec((k * k, HW), lambda n: (0, 0)))
    call_args.append(bias)
    in_specs.append(pl.BlockSpec((cout, 1), lambda n: (0, 0)))

    kernel = _make_fused_conv_kernel(tuple(input_cfg), k, Hout, Wout, cout, front, cdt)

    return pl.pallas_call(
        kernel,
        out_shape=jax.ShapeDtypeStruct((N, cout, HW), dtype),
        grid=(N,),
        in_specs=in_specs,
        out_specs=pl.BlockSpec((None, cout, HW), lambda n: (n, 0, 0)),
        scratch_shapes=[pltpu.VMEM((cmax, L), cdt)],
        compiler_params=pltpu.CompilerParams(
            dimension_semantics=("parallel",)),
    )(*call_args)


# --------------------------------------------------------------------------------------
# Neck module (parameters + forward)
# --------------------------------------------------------------------------------------
def init_neck_params(key, input_image_dimension, layer_channels, out_channels, kernel_size):
    num_layers = len(layer_channels)
    k = kernel_size

    def conv_init(rng, cin, cout):
        kw, kb = jax.random.split(rng)
        # Kernel-native weight layout (k*k, Cout, Cin).  To port torch weights:
        #   w_kernel = w_torch.permute(2, 3, 0, 1).reshape(k*k, Cout, Cin)
        w = 0.1 * jax.random.normal(kw, (k * k, cout, cin), jnp.float32)
        b = 0.1 * jax.random.normal(kb, (cout, 1), jnp.float32)
        return {"w": w, "b": b}

    params = {"dim_reduction": {}, "feat_concat": {}}
    keys = jax.random.split(key, 2 * num_layers + 1)
    ki = 0
    for i, cin in enumerate(layer_channels):
        params["dim_reduction"][f"c{i}"] = conv_init(keys[ki], cin, out_channels)
        ki += 1
    for i in range(num_layers):
        cin = out_channels if i == num_layers - 1 else 2 * out_channels
        params["feat_concat"][f"c{i}"] = conv_init(keys[ki], cin, out_channels)
        ki += 1
    params["feat_image_data"] = conv_init(
        keys[ki], out_channels + input_image_dimension, out_channels)
    return params


def neck_forward(params, x_nchw, image_nchw, kernel_size):
    k = kernel_size
    assert k % 2 == 1, "maintain_resolution SAME conv requires odd kernel_size"

    # Sort explicitly (do not rely on dict insertion order): c0 .. c{L-1}.
    keys = sorted(x_nchw.keys(), key=lambda s: int(s[1:]))
    num_layers = len(keys)
    keys_reversed = keys[::-1]

    out_channels = params["feat_image_data"]["b"].shape[0]
    N = image_nchw.shape[0]
    H_img, W_img = image_nchw.shape[2], image_nchw.shape[3]

    # NCHW kept end-to-end; (N,C,H,W) -> (N,C,H*W) is a free row-major collapse.
    shapes = {key: x_nchw[key].shape for key in keys}
    res = {key: (shapes[key][2], shapes[key][3]) for key in keys}
    flat = {key: x_nchw[key].reshape(shapes[key][0], shapes[key][1],
                                     shapes[key][2] * shapes[key][3]) for key in keys}
    image_flat = image_nchw.reshape(N, image_nchw.shape[1], H_img * W_img)

    # 1) dim reduction convs (single input, no upsample), each at its own resolution.
    x_temp = {}
    for key in keys:
        H, W = res[key]
        p = params["dim_reduction"][key]
        x_temp[key] = fused_conv_relu([(flat[key], None)], [p["w"]], p["b"],
                                      _tap_mask(k, H, W), (H, W), out_channels, k)

    # 2) top-down path: (concat) -> nearest upsample -> conv, fused per level.
    key_curr = keys_reversed[0]
    key_next = keys_reversed[1]
    Ht, Wt = res[key_next]
    U = _nearest_upsample_matrix(res[key_curr], (Ht, Wt))
    p = params["feat_concat"][key_curr]
    x_out = fused_conv_relu([(x_temp[key_curr], U)], [p["w"]], p["b"],
                            _tap_mask(k, Ht, Wt), (Ht, Wt), out_channels, k)
    cur_res = (Ht, Wt)

    for i in range(1, num_layers - 1):
        key_curr = keys_reversed[i]
        key_next = keys_reversed[i + 1]
        Ht, Wt = res[key_next]
        U = _nearest_upsample_matrix(cur_res, (Ht, Wt))
        p = params["feat_concat"][key_curr]
        w_a = p["w"][:, :, :out_channels]       # slice matching concat((x_out, x_temp))
        w_b = p["w"][:, :, out_channels:]
        x_out = fused_conv_relu([(x_out, U), (x_temp[key_curr], U)], [w_a, w_b],
                                p["b"], _tap_mask(k, Ht, Wt), (Ht, Wt), out_channels, k)
        cur_res = (Ht, Wt)

    key_curr = keys_reversed[-1]
    Ht, Wt = H_img, W_img
    U = _nearest_upsample_matrix(cur_res, (Ht, Wt))
    p = params["feat_concat"][key_curr]
    w_a = p["w"][:, :, :out_channels]
    w_b = p["w"][:, :, out_channels:]
    x_out = fused_conv_relu([(x_out, U), (x_temp[key_curr], U)], [w_a, w_b],
                            p["b"], _tap_mask(k, Ht, Wt), (Ht, Wt), out_channels, k)

    # 3) final: concat(x_out, image) -> conv, no upsample (fused concat again).
    p = params["feat_image_data"]
    w_a = p["w"][:, :, :out_channels]
    w_b = p["w"][:, :, out_channels:]
    x_out = fused_conv_relu([(x_out, None), (image_flat, None)], [w_a, w_b],
                            p["b"], _tap_mask(k, H_img, W_img),
                            (H_img, W_img), out_channels, k)

    # Output is already channel-major flat == NCHW; free reshape back to 4-D.
    return x_out.reshape(N, out_channels, H_img, W_img)


# --------------------------------------------------------------------------------------
if __name__ == "__main__":
    batch = 2
    input_image_dimension = 3          # RGB image
    layer_channels = [4, 8, 16]        # c0 (highest res) .. c2 (lowest res)
    out_channels = 8
    kernel_size = 3

    H_img, W_img = 16, 16
    feat_spatial = {"c0": 8, "c1": 4, "c2": 2}     # pyramid resolutions

    root = jax.random.PRNGKey(0)
    k_params, k_img, k0, k1, k2 = jax.random.split(root, 5)

    params = init_neck_params(
        k_params, input_image_dimension, layer_channels, out_channels, kernel_size)

    # PyTorch-style NCHW inputs (kept NCHW end-to-end inside the kernels).
    image = jax.random.normal(
        k_img, (batch, input_image_dimension, H_img, W_img), jnp.float32)
    x = {
        "c0": jax.random.normal(k0, (batch, layer_channels[0],
                                     feat_spatial["c0"], feat_spatial["c0"]), jnp.float32),
        "c1": jax.random.normal(k1, (batch, layer_channels[1],
                                     feat_spatial["c1"], feat_spatial["c1"]), jnp.float32),
        "c2": jax.random.normal(k2, (batch, layer_channels[2],
                                     feat_spatial["c2"], feat_spatial["c2"]), jnp.float32),
    }

    fwd = jax.jit(functools.partial(neck_forward, kernel_size=kernel_size))
    out = fwd(params, x, image)
    out = jax.block_until_ready(out)

    assert out.shape == (batch, out_channels, H_img, W_img), out.shape
    assert bool(jnp.all(jnp.isfinite(out)))
    print("KERNEL_OK")
</pallas_src>

<mosaic_0001>
module attributes {stable_mosaic.version = 11 : i64} {
  func.func @kernel(%arg0: i32, %arg1: memref<1x16x4xf32, #tpu.memory_space<vmem>>, %arg2: memref<9x8x16xf32, #tpu.memory_space<vmem>>, %arg3: memref<9x4xf32, #tpu.memory_space<vmem>>, %arg4: memref<8x1xf32, #tpu.memory_space<vmem>>, %arg5: memref<1x8x4xf32, #tpu.memory_space<vmem>>, %arg6: memref<16x256xf32, #tpu.memory_space<vmem>>) attributes {dimension_semantics = [#tpu.dimension_semantics<parallel>], iteration_bounds = array<i64: 2>, scalar_prefetch = 0 : i64, scratch_operands = 1 : i64, tpu.core_type = #tpu.core_type<tc>, window_params = [{transform_indices = @transform_0, window_bounds = array<i64: 1, 16, 4>}, {pipeline_mode = #tpu.pipeline_mode<synchronous>, transform_indices = @transform_1, window_bounds = array<i64: 9, 8, 16>}, {pipeline_mode = #tpu.pipeline_mode<synchronous>, transform_indices = @transform_2, window_bounds = array<i64: 9, 4>}, {pipeline_mode = #tpu.pipeline_mode<synchronous>, transform_indices = @transform_3, window_bounds = array<i64: 8, 1>}, {transform_indices = @transform_4, window_bounds = array<i64: 1, 8, 4>}]} {
    %c0_i32 = arith.constant 0 : i32
    %0 = arith.cmpi eq, %arg0, %c0_i32 : i32
    %1 = arith.extui %0 : i1 to i32
    %c0_i32_0 = arith.constant 0 : i32
    %2 = arith.cmpi ne, %1, %c0_i32_0 : i32
    scf.if %2 {
      %cst_35 = arith.constant 0.000000e+00 : f32
      %79 = vector.broadcast %cst_35 : f32 to vector<16x256xf32>
      %c0_36 = arith.constant 0 : index
      %c0_37 = arith.constant 0 : index
      %80 = vector.load %arg6[%c0_36, %c0_37] : memref<16x256xf32, #tpu.memory_space<vmem>>, vector<16x256xf32>
      tpu.vector_store %arg6[%c0_36, %c0_37], %79 {strides = array<i32>} : memref<16x256xf32, #tpu.memory_space<vmem>>, vector<16x256xf32>,
    } else {
    }
    %c0 = arith.constant 0 : index
    %c0_1 = arith.constant 0 : index
    %3 = vector.load %arg4[%c0, %c0_1] : memref<8x1xf32, #tpu.memory_space<vmem>>, vector<8x1xf32>
    %4 = vector.shape_cast %3 : vector<8x1xf32> to vector<8x1xf32>
    %5 = vector.broadcast %4 : vector<8x1xf32> to vector<8x4xf32>
    %c0_2 = arith.constant 0 : index
    %c0_3 = arith.constant 0 : index
    %6 = vector.load %arg3[%c0_2, %c0_3] : memref<9x4xf32, #tpu.memory_space<vmem>>, vector<9x4xf32>
    %c0_4 = arith.constant 0 : index
    %c0_5 = arith.constant 0 : index
    %c0_6 = arith.constant 0 : index
    %7 = vector.load %arg1[%c0_4, %c0_5, %c0_6] : memref<1x16x4xf32, #tpu.memory_space<vmem>>, vector<1x16x4xf32>
    %8 = vector.shape_cast %7 : vector<1x16x4xf32> to vector<16x4xf32>
    %c0_7 = arith.constant 0 : index
    %c128 = arith.constant 128 : index
    %9 = vector.load %arg6[%c0_7, %c128] : memref<16x256xf32, #tpu.memory_space<vmem>>, vector<16x4xf32>
    tpu.vector_store %arg6[%c0_7, %c128], %8 {strides = array<i32>} : memref<16x256xf32, #tpu.memory_space<vmem>>, vector<16x4xf32>,
    %c0_8 = arith.constant 0 : index
    %c0_9 = arith.constant 0 : index
    %c0_10 = arith.constant 0 : index
    %10 = vector.load %arg2[%c0_8, %c0_9, %c0_10] : memref<9x8x16xf32, #tpu.memory_space<vmem>>, vector<9x8x16xf32>
    %c0_11 = arith.constant 0 : index
    %c125 = arith.constant 125 : index
    %11 = vector.load %arg6[%c0_11, %c125] : memref<16x256xf32, #tpu.memory_space<vmem>>, vector<16x4xf32>
    %12 = vector.extract_strided_slice %6 {offsets = [0, 0], sizes = [1, 4], strides = [1, 1]} : vector<9x4xf32> to vector<1x4xf32>
    %13 = vector.broadcast %12 : vector<1x4xf32> to vector<16x4xf32>
    %14 = arith.mulf %11, %13 : vector<16x4xf32>
    %15 = vector.extract_strided_slice %10 {offsets = [0, 0, 0], sizes = [1, 8, 16], strides = [1, 1, 1]} : vector<9x8x16xf32> to vector<1x8x16xf32>
    %16 = vector.shape_cast %15 : vector<1x8x16xf32> to vector<8x16xf32>
    %cst = arith.constant dense<0.000000e+00> : vector<8x4xf32>
    %17 = tpu.matmul %16, %14, %cst {dimension_numbers = #tpu.dot_dimension_numbers<[1], [0], [0], [1], [0, 0, 1, 1], [], []>} : vector<8x16xf32>, vector<16x4xf32>, vector<8x4xf32> -> vector<8x4xf32>
    %18 = arith.addf %5, %17 : vector<8x4xf32>
    %c0_12 = arith.constant 0 : index
    %c126 = arith.constant 126 : index
    %19 = vector.load %arg6[%c0_12, %c126] : memref<16x256xf32, #tpu.memory_space<vmem>>, vector<16x4xf32>
    %20 = vector.extract_strided_slice %10 {offsets = [1, 0, 0], sizes = [1, 8, 16], strides = [1, 1, 1]} : vector<9x8x16xf32> to vector<1x8x16xf32>
    %21 = vector.shape_cast %20 : vector<1x8x16xf32> to vector<8x16xf32>
    %cst_13 = arith.constant dense<0.000000e+00> : vector<8x4xf32>
    %22 = tpu.matmul %21, %19, %cst_13 {dimension_numbers = #tpu.dot_dimension_numbers<[1], [0], [0], [1], [0, 0, 1, 1], [], []>} : vector<8x16xf32>, vector<16x4xf32>, vector<8x4xf32> -> vector<8x4xf32>
    %23 = arith.addf %18, %22 : vector<8x4xf32>
    %c0_14 = arith.constant 0 : index
    %c127 = arith.constant 127 : index
    %24 = vector.load %arg6[%c0_14, %c127] : memref<16x256xf32, #tpu.memory_space<vmem>>, vector<16x4xf32>
    %25 = vector.extract_strided_slice %6 {offsets = [2, 0], sizes = [1, 4], strides = [1, 1]} : vector<9x4xf32> to vector<1x4xf32>
    %26 = vector.broadcast %25 : vector<1x4xf32> to vector<16x4xf32>
    %27 = arith.mulf %24, %26 : vector<16x4xf32>
    %28 = vector.extract_strided_slice %10 {offsets = [2, 0, 0], sizes = [1, 8, 16], strides = [1, 1, 1]} : vector<9x8x16xf32> to vector<1x8x16xf32>
    %29 = vector.shape_cast %28 : vector<1x8x16xf32> to vector<8x16xf32>
    %cst_15 = arith.constant dense<0.000000e+00> : vector<8x4xf32>
    %30 = tpu.matmul %29, %27, %cst_15 {dimension_numbers = #tpu.dot_dimension_numbers<[1], [0], [0], [1], [0, 0, 1, 1], [], []>} : vector<8x16xf32>, vector<16x4xf32>, vector<8x4xf32> -> vector<8x4xf32>
    %31 = arith.addf %23, %30 : vector<8x4xf32>
    %c0_16 = arith.constant 0 : index
    %c127_17 = arith.constant 127 : index
    %32 = vector.load %arg6[%c0_16, %c127_17] : memref<16x256xf32, #tpu.memory_space<vmem>>, vector<16x4xf32>
    %33 = vector.extract_strided_slice %6 {offsets = [3, 0], sizes = [1, 4], strides = [1, 1]} : vector<9x4xf32> to vector<1x4xf32>
    %34 = vector.broadcast %33 : vector<1x4xf32> to vector<16x4xf32>
    %35 = arith.mulf %32, %34 : vector<16x4xf32>
    %36 = vector.extract_strided_slice %10 {offsets = [3, 0, 0], sizes = [1, 8, 16], strides = [1, 1, 1]} : vector<9x8x16xf32> to vector<1x8x16xf32>
    %37 = vector.shape_cast %36 : vector<1x8x16xf32> to vector<8x16xf32>
    %cst_18 = arith.constant dense<0.000000e+00> : vector<8x4xf32>
    %38 = tpu.matmul %37, %35, %cst_18 {dimension_numbers = #tpu.dot_dimension_numbers<[1], [0], [0], [1], [0, 0, 1, 1], [], []>} : vector<8x16xf32>, vector<16x4xf32>, vector<8x4xf32> -> vector<8x4xf32>
    %39 = arith.addf %31, %38 : vector<8x4xf32>
    %c0_19 = arith.constant 0 : index
    %c128_20 = arith.constant 128 : index
    %40 = vector.load %arg6[%c0_19, %c128_20] : memref<16x256xf32, #tpu.memory_space<vmem>>, vector<16x4xf32>
    %41 = vector.extract_strided_slice %10 {offsets = [4, 0, 0], sizes = [1, 8, 16], strides = [1, 1, 1]} : vector<9x8x16xf32> to vector<1x8x16xf32>
    %42 = vector.shape_cast %41 : vector<1x8x16xf32> to vector<8x16xf32>
    %cst_21 = arith.constant dense<0.000000e+00> : vector<8x4xf32>
    %43 = tpu.matmul %42, %40, %cst_21 {dimension_numbers = #tpu.dot_dimension_numbers<[1], [0], [0], [1], [0, 0, 1, 1], [], []>} : vector<8x16xf32>, vector<16x4xf32>, vector<8x4xf32> -> vector<8x4xf32>
    %44 = arith.addf %39, %43 : vector<8x4xf32>
    %c0_22 = arith.constant 0 : index
    %c129 = arith.constant 129 : index
    %45 = vector.load %arg6[%c0_22, %c129] : memref<16x256xf32, #tpu.memory_space<vmem>>, vector<16x4xf32>
    %46 = vector.extract_strided_slice %6 {offsets = [5, 0], sizes = [1, 4], strides = [1, 1]} : vector<9x4xf32> to vector<1x4xf32>
    %47 = vector.broadcast %46 : vector<1x4xf32> to vector<16x4xf32>
    %48 = arith.mulf %45, %47 : vector<16x4xf32>
    %49 = vector.extract_strided_slice %10 {offsets = [5, 0, 0], sizes = [1, 8, 16], strides = [1, 1, 1]} : vector<9x8x16xf32> to vector<1x8x16xf32>
    %50 = vector.shape_cast %49 : vector<1x8x16xf32> to vector<8x16xf32>
    %cst_23 = arith.constant dense<0.000000e+00> : vector<8x4xf32>
    %51 = tpu.matmul %50, %48, %cst_23 {dimension_numbers = #tpu.dot_dimension_numbers<[1], [0], [0], [1], [0, 0, 1, 1], [], []>} : vector<8x16xf32>, vector<16x4xf32>, vector<8x4xf32> -> vector<8x4xf32>
    %52 = arith.addf %44, %51 : vector<8x4xf32>
    %c0_24 = arith.constant 0 : index
    %c129_25 = arith.constant 129 : index
    %53 = vector.load %arg6[%c0_24, %c129_25] : memref<16x256xf32, #tpu.memory_space<vmem>>, vector<16x4xf32>
    %54 = vector.extract_strided_slice %6 {offsets = [6, 0], sizes = [1, 4], strides = [1, 1]} : vector<9x4xf32> to vector<1x4xf32>
    %55 = vector.broadcast %54 : vector<1x4xf32> to vector<16x4xf32>
    %56 = arith.mulf %53, %55 : vector<16x4xf32>
    %57 = vector.extract_strided_slice %10 {offsets = [6, 0, 0], sizes = [1, 8, 16], strides = [1, 1, 1]} : vector<9x8x16xf32> to vector<1x8x16xf32>
    %58 = vector.shape_cast %57 : vector<1x8x16xf32> to vector<8x16xf32>
    %cst_26 = arith.constant dense<0.000000e+00> : vector<8x4xf32>
    %59 = tpu.matmul %58, %56, %cst_26 {dimension_numbers = #tpu.dot_dimension_numbers<[1], [0], [0], [1], [0, 0, 1, 1], [], []>} : vector<8x16xf32>, vector<16x4xf32>, vector<8x4xf32> -> vector<8x4xf32>
    %60 = arith.addf %52, %59 : vector<8x4xf32>
    %c0_27 = arith.constant 0 : index
    %c130 = arith.constant 130 : index
    %61 = vector.load %arg6[%c0_27, %c130] : memref<16x256xf32, #tpu.memory_space<vmem>>, vector<16x4xf32>
    %62 = vector.extract_strided_slice %10 {offsets = [7, 0, 0], sizes = [1, 8, 16], strides = [1, 1, 1]} : vector<9x8x16xf32> to vector<1x8x16xf32>
    %63 = vector.shape_cast %62 : vector<1x8x16xf32> to vector<8x16xf32>
    %cst_28 = arith.constant dense<0.000000e+00> : vector<8x4xf32>
    %64 = tpu.matmul %63, %61, %cst_28 {dimension_numbers = #tpu.dot_dimension_numbers<[1], [0], [0], [1], [0, 0, 1, 1], [], []>} : vector<8x16xf32>, vector<16x4xf32>, vector<8x4xf32> -> vector<8x4xf32>
    %65 = arith.addf %60, %64 : vector<8x4xf32>
    %c0_29 = arith.constant 0 : index
    %c131 = arith.constant 131 : index
    %66 = vector.load %arg6[%c0_29, %c131] : memref<16x256xf32, #tpu.memory_space<vmem>>, vector<16x4xf32>
    %67 = vector.extract_strided_slice %6 {offsets = [8, 0], sizes = [1, 4], strides = [1, 1]} : vector<9x4xf32> to vector<1x4xf32>
    %68 = vector.broadcast %67 : vector<1x4xf32> to vector<16x4xf32>
    %69 = arith.mulf %66, %68 : vector<16x4xf32>
    %70 = vector.extract_strided_slice %10 {offsets = [8, 0, 0], sizes = [1, 8, 16], strides = [1, 1, 1]} : vector<9x8x16xf32> to vector<1x8x16xf32>
    %71 = vector.shape_cast %70 : vector<1x8x16xf32> to vector<8x16xf32>
    %cst_30 = arith.constant dense<0.000000e+00> : vector<8x4xf32>
    %72 = tpu.matmul %71, %69, %cst_30 {dimension_numbers = #tpu.dot_dimension_numbers<[1], [0], [0], [1], [0, 0, 1, 1], [], []>} : vector<8x16xf32>, vector<16x4xf32>, vector<8x4xf32> -> vector<8x4xf32>
    %73 = arith.addf %65, %72 : vector<8x4xf32>
    %cst_31 = arith.constant 0.000000e+00 : f32
    %74 = vector.broadcast %cst_31 : f32 to vector<8x4xf32>
    %75 = arith.maximumf %73, %74 : vector<8x4xf32>
    %c0_32 = arith.constant 0 : index
    %c0_33 = arith.constant 0 : index
    %c0_34 = arith.constant 0 : index
    %76 = vector.load %arg5[%c0_32, %c0_33, %c0_34] : memref<1x8x4xf32, #tpu.memory_space<vmem>>, vector<1x8x4xf32>
    %77 = vector.shape_cast %76 : vector<1x8x4xf32> to vector<8x4xf32>
    %78 = vector.shape_cast %75 : vector<8x4xf32> to vector<1x8x4xf32>
    tpu.vector_store %arg5[%c0_32, %c0_33, %c0_34], %78 {strides = array<i32>} : memref<1x8x4xf32, #tpu.memory_space<vmem>>, vector<1x8x4xf32>,
    return
  }
  func.func @transform_0(%arg0: i32) -> (i32, i32, i32) {
    %c0_i32 = arith.constant 0 : i32
    %c0_i32_0 = arith.constant 0 : i32
    %c0_i32_1 = arith.constant 0 : i32
    return %arg0, %c0_i32, %c0_i32_0 : i32, i32, i32
  }
  func.func @transform_1(%arg0: i32) -> (i32, i32, i32) {
    %c0_i32 = arith.constant 0 : i32
    %c0_i32_0 = arith.constant 0 : i32
    %c0_i32_1 = arith.constant 0 : i32
    %c0_i32_2 = arith.constant 0 : i32
    return %c0_i32, %c0_i32_0, %c0_i32_1 : i32, i32, i32
  }
  func.func @transform_2(%arg0: i32) -> (i32, i32) {
    %c0_i32 = arith.constant 0 : i32
    %c0_i32_0 = arith.constant 0 : i32
    %c0_i32_1 = arith.constant 0 : i32
    return %c0_i32, %c0_i32_0 : i32, i32
  }
  func.func @transform_3(%arg0: i32) -> (i32, i32) {
    %c0_i32 = arith.constant 0 : i32
    %c0_i32_0 = arith.constant 0 : i32
    %c0_i32_1 = arith.constant 0 : i32
    return %c0_i32, %c0_i32_0 : i32, i32
  }
  func.func @transform_4(%arg0: i32) -> (i32, i32, i32) {
    %c0_i32 = arith.constant 0 : i32
    %c0_i32_0 = arith.constant 0 : i32
    %c0_i32_1 = arith.constant 0 : i32
    return %arg0, %c0_i32, %c0_i32_0 : i32, i32, i32
  }
}

module attributes {stable_mosaic.version = 11 : i64} {
  func.func @kernel(%arg0: i32, %arg1: memref<1x8x16xf32, #tpu.memory_space<vmem>>, %arg2: memref<9x8x8xf32, #tpu.memory_space<vmem>>, %arg3: memref<9x16xf32, #tpu.memory_space<vmem>>, %arg4: memref<8x1xf32, #tpu.memory_space<vmem>>, %arg5: memref<1x8x16xf32, #tpu.memory_space<vmem>>, %arg6: memref<8x256xf32, #tpu.memory_space<vmem>>) attributes {dimension_semantics = [#tpu.dimension_semantics<parallel>], iteration_bounds = array<i64: 2>, scalar_prefetch = 0 : i64, scratch_operands = 1 : i64, tpu.core_type = #tpu.core_type<tc>, window_params = [{transform_indices = @transform_0, window_bounds = array<i64: 1, 8, 16>}, {pipeline_mode = #tpu.pipeline_mode<synchronous>, transform_indices = @transform_1, window_bounds = array<i64: 9, 8, 8>}, {pipeline_mode = #tpu.pipeline_mode<synchronous>, transform_indices = @transform_2, window_bounds = array<i64: 9, 16>}, {pipeline_mode = #tpu.pipeline_mode<synchronous>, transform_indices = @transform_3, window_bounds = array<i64: 8, 1>}, {transform_indices = @transform_4, window_bounds = array<i64: 1, 8, 16>}]} {
    %c0_i32 = arith.constant 0 : i32
    %0 = arith.cmpi eq, %arg0, %c0_i32 : i32
    %1 = arith.extui %0 : i1 to i32
    %c0_i32_0 = arith.constant 0 : i32
    %2 = arith.cmpi ne, %1, %c0_i32_0 : i32
    scf.if %2 {
      %cst_33 = arith.constant 0.000000e+00 : f32
      %79 = vector.broadcast %cst_33 : f32 to vector<8x256xf32>
      %c0_34 = arith.constant 0 : index
      %c0_35 = arith.constant 0 : index
      %80 = vector.load %arg6[%c0_34, %c0_35] : memref<8x256xf32, #tpu.memory_space<vmem>>, vector<8x256xf32>
      tpu.vector_store %arg6[%c0_34, %c0_35], %79 {strides = array<i32>} : memref<8x256xf32, #tpu.memory_space<vmem>>, vector<8x256xf32>,
    } else {
    }
    %c0 = arith.constant 0 : index
    %c0_1 = arith.constant 0 : index
    %3 = vector.load %arg4[%c0, %c0_1] : memref<8x1xf32, #tpu.memory_space<vmem>>, vector<8x1xf32>
    %4 = vector.shape_cast %3 : vector<8x1xf32> to vector<8x1xf32>
    %5 = vector.broadcast %4 : vector<8x1xf32> to vector<8x16xf32>
    %c0_2 = arith.constant 0 : index
    %c0_3 = arith.constant 0 : index
    %6 = vector.load %arg3[%c0_2, %c0_3] : memref<9x16xf32, #tpu.memory_space<vmem>>, vector<9x16xf32>
    %c0_4 = arith.constant 0 : index
    %c0_5 = arith.constant 0 : index
    %c0_6 = arith.constant 0 : index
    %7 = vector.load %arg1[%c0_4, %c0_5, %c0_6] : memref<1x8x16xf32, #tpu.memory_space<vmem>>, vector<1x8x16xf32>
    %8 = vector.shape_cast %7 : vector<1x8x16xf32> to vector<8x16xf32>
    %c0_7 = arith.constant 0 : index
    %c128 = arith.constant 128 : index
    %9 = vector.load %arg6[%c0_7, %c128] : memref<8x256xf32, #tpu.memory_space<vmem>>, vector<8x16xf32>
    tpu.vector_store %arg6[%c0_7, %c128], %8 {strides = array<i32>} : memref<8x256xf32, #tpu.memory_space<vmem>>, vector<8x16xf32>,
    %c0_8 = arith.constant 0 : index
    %c0_9 = arith.constant 0 : index
    %c0_10 = arith.constant 0 : index
    %10 = vector.load %arg2[%c0_8, %c0_9, %c0_10] : memref<9x8x8xf32, #tpu.memory_space<vmem>>, vector<9x8x8xf32>
    %c0_11 = arith.constant 0 : index
    %c123 = arith.constant 123 : index
    %11 = vector.load %arg6[%c0_11, %c123] : memref<8x256xf32, #tpu.memory_space<vmem>>, vector<8x16xf32>
    %12 = vector.extract_strided_slice %6 {offsets = [0, 0], sizes = [1, 16], strides = [1, 1]} : vector<9x16xf32> to vector<1x16xf32>
    %13 = vector.broadcast %12 : vector<1x16xf32> to vector<8x16xf32>
    %14 = arith.mulf %11, %13 : vector<8x16xf32>
    %15 = vector.extract_strided_slice %10 {offsets = [0, 0, 0], sizes = [1, 8, 8], strides = [1, 1, 1]} : vector<9x8x8xf32> to vector<1x8x8xf32>
    %16 = vector.shape_cast %15 : vector<1x8x8xf32> to vector<8x8xf32>
    %cst = arith.constant dense<0.000000e+00> : vector<8x16xf32>
    %17 = tpu.matmul %16, %14, %cst {dimension_numbers = #tpu.dot_dimension_numbers<[1], [0], [0], [1], [0, 0, 1, 1], [], []>} : vector<8x8xf32>, vector<8x16xf32>, vector<8x16xf32> -> vector<8x16xf32>
    %18 = arith.addf %5, %17 : vector<8x16xf32>
    %c0_12 = arith.constant 0 : index
    %c124 = arith.constant 124 : index
    %19 = vector.load %arg6[%c0_12, %c124] : memref<8x256xf32, #tpu.memory_space<vmem>>, vector<8x16xf32>
    %20 = vector.extract_strided_slice %10 {offsets = [1, 0, 0], sizes = [1, 8, 8], strides = [1, 1, 1]} : vector<9x8x8xf32> to vector<1x8x8xf32>
    %21 = vector.shape_cast %20 : vector<1x8x8xf32> to vector<8x8xf32>
    %cst_13 = arith.constant dense<0.000000e+00> : vector<8x16xf32>
    %22 = tpu.matmul %21, %19, %cst_13 {dimension_numbers = #tpu.dot_dimension_numbers<[1], [0], [0], [1], [0, 0, 1, 1], [], []>} : vector<8x8xf32>, vector<8x16xf32>, vector<8x16xf32> -> vector<8x16xf32>
    %23 = arith.addf %18, %22 : vector<8x16xf32>
    %c0_14 = arith.constant 0 : index
    %c125 = arith.constant 125 : index
    %24 = vector.load %arg6[%c0_14, %c125] : memref<8x256xf32, #tpu.memory_space<vmem>>, vector<8x16xf32>
    %25 = vector.extract_strided_slice %6 {offsets = [2, 0], sizes = [1, 16], strides = [1, 1]} : vector<9x16xf32> to vector<1x16xf32>
    %26 = vector.broadcast %25 : vector<1x16xf32> to vector<8x16xf32>
    %27 = arith.mulf %24, %26 : vector<8x16xf32>
    %28 = vector.extract_strided_slice %10 {offsets = [2, 0, 0], sizes = [1, 8, 8], strides = [1, 1, 1]} : vector<9x8x8xf32> to vector<1x8x8xf32>
    %29 = vector.shape_cast %28 : vector<1x8x8xf32> to vector<8x8xf32>
    %cst_15 = arith.constant dense<0.000000e+00> : vector<8x16xf32>
    %30 = tpu.matmul %29, %27, %cst_15 {dimension_numbers = #tpu.dot_dimension_numbers<[1], [0], [0], [1], [0, 0, 1, 1], [], []>} : vector<8x8xf32>, vector<8x16xf32>, vector<8x16xf32> -> vector<8x16xf32>
    %31 = arith.addf %23, %30 : vector<8x16xf32>
    %c0_16 = arith.constant 0 : index
    %c127 = arith.constant 127 : index
    %32 = vector.load %arg6[%c0_16, %c127] : memref<8x256xf32, #tpu.memory_space<vmem>>, vector<8x16xf32>
    %33 = vector.extract_strided_slice %6 {offsets = [3, 0], sizes = [1, 16], strides = [1, 1]} : vector<9x16xf32> to vector<1x16xf32>
    %34 = vector.broadcast %33 : vector<1x16xf32> to vector<8x16xf32>
    %35 = arith.mulf %32, %34 : vector<8x16xf32>
    %36 = vector.extract_strided_slice %10 {offsets = [3, 0, 0], sizes = [1, 8, 8], strides = [1, 1, 1]} : vector<9x8x8xf32> to vector<1x8x8xf32>
    %37 = vector.shape_cast %36 : vector<1x8x8xf32> to vector<8x8xf32>
    %cst_17 = arith.constant dense<0.000000e+00> : vector<8x16xf32>
    %38 = tpu.matmul %37, %35, %cst_17 {dimension_numbers = #tpu.dot_dimension_numbers<[1], [0], [0], [1], [0, 0, 1, 1], [], []>} : vector<8x8xf32>, vector<8x16xf32>, vector<8x16xf32> -> vector<8x16xf32>
    %39 = arith.addf %31, %38 : vector<8x16xf32>
    %c0_18 = arith.constant 0 : index
    %c128_19 = arith.constant 128 : index
    %40 = vector.load %arg6[%c0_18, %c128_19] : memref<8x256xf32, #tpu.memory_space<vmem>>, vector<8x16xf32>
    %41 = vector.extract_strided_slice %10 {offsets = [4, 0, 0], sizes = [1, 8, 8], strides = [1, 1, 1]} : vector<9x8x8xf32> to vector<1x8x8xf32>
    %42 = vector.shape_cast %41 : vector<1x8x8xf32> to vector<8x8xf32>
    %cst_20 = arith.constant dense<0.000000e+00> : vector<8x16xf32>
    %43 = tpu.matmul %42, %40, %cst_20 {dimension_numbers = #tpu.dot_dimension_numbers<[1], [0], [0], [1], [0, 0, 1, 1], [], []>} : vector<8x8xf32>, vector<8x16xf32>, vector<8x16xf32> -> vector<8x16xf32>
    %44 = arith.addf %39, %43 : vector<8x16xf32>
    %c0_21 = arith.constant 0 : index
    %c129 = arith.constant 129 : index
    %45 = vector.load %arg6[%c0_21, %c129] : memref<8x256xf32, #tpu.memory_space<vmem>>, vector<8x16xf32>
    %46 = vector.extract_strided_slice %6 {offsets = [5, 0], sizes = [1, 16], strides = [1, 1]} : vector<9x16xf32> to vector<1x16xf32>
    %47 = vector.broadcast %46 : vector<1x16xf32> to vector<8x16xf32>
    %48 = arith.mulf %45, %47 : vector<8x16xf32>
    %49 = vector.extract_strided_slice %10 {offsets = [5, 0, 0], sizes = [1, 8, 8], strides = [1, 1, 1]} : vector<9x8x8xf32> to vector<1x8x8xf32>
    %50 = vector.shape_cast %49 : vector<1x8x8xf32> to vector<8x8xf32>
    %cst_22 = arith.constant dense<0.000000e+00> : vector<8x16xf32>
    %51 = tpu.matmul %50, %48, %cst_22 {dimension_numbers = #tpu.dot_dimension_numbers<[1], [0], [0], [1], [0, 0, 1, 1], [], []>} : vector<8x8xf32>, vector<8x16xf32>, vector<8x16xf32> -> vector<8x16xf32>
    %52 = arith.addf %44, %51 : vector<8x16xf32>
    %c0_23 = arith.constant 0 : index
    %c131 = arith.constant 131 : index
    %53 = vector.load %arg6[%c0_23, %c131] : memref<8x256xf32, #tpu.memory_space<vmem>>, vector<8x16xf32>
    %54 = vector.extract_strided_slice %6 {offsets = [6, 0], sizes = [1, 16], strides = [1, 1]} : vector<9x16xf32> to vector<1x16xf32>
    %55 = vector.broadcast %54 : vector<1x16xf32> to vector<8x16xf32>
    %56 = arith.mulf %53, %55 : vector<8x16xf32>
    %57 = vector.extract_strided_slice %10 {offsets = [6, 0, 0], sizes = [1, 8, 8], strides = [1, 1, 1]} : vector<9x8x8xf32> to vector<1x8x8xf32>
    %58 = vector.shape_cast %57 : vector<1x8x8xf32> to vector<8x8xf32>
    %cst_24 = arith.constant dense<0.000000e+00> : vector<8x16xf32>
    %59 = tpu.matmul %58, %56, %cst_24 {dimension_numbers = #tpu.dot_dimension_numbers<[1], [0], [0], [1], [0, 0, 1, 1], [], []>} : vector<8x8xf32>, vector<8x16xf32>, vector<8x16xf32> -> vector<8x16xf32>
    %60 = arith.addf %52, %59 : vector<8x16xf32>
    %c0_25 = arith.constant 0 : index
    %c132 = arith.constant 132 : index
    %61 = vector.load %arg6[%c0_25, %c132] : memref<8x256xf32, #tpu.memory_space<vmem>>, vector<8x16xf32>
    %62 = vector.extract_strided_slice %10 {offsets = [7, 0, 0], sizes = [1, 8, 8], strides = [1, 1, 1]} : vector<9x8x8xf32> to vector<1x8x8xf32>
    %63 = vector.shape_cast %62 : vector<1x8x8xf32> to vector<8x8xf32>
    %cst_26 = arith.constant dense<0.000000e+00> : vector<8x16xf32>
    %64 = tpu.matmul %63, %61, %cst_26 {dimension_numbers = #tpu.dot_dimension_numbers<[1], [0], [0], [1], [0, 0, 1, 1], [], []>} : vector<8x8xf32>, vector<8x16xf32>, vector<8x16xf32> -> vector<8x16xf32>
    %65 = arith.addf %60, %64 : vector<8x16xf32>
    %c0_27 = arith.constant 0 : index
    %c133 = arith.constant 133 : index
    %66 = vector.load %arg6[%c0_27, %c133] : memref<8x256xf32, #tpu.memory_space<vmem>>, vector<8x16xf32>
    %67 = vector.extract_strided_slice %6 {offsets = [8, 0], sizes = [1, 16], strides = [1, 1]} : vector<9x16xf32> to vector<1x16xf32>
    %68 = vector.broadcast %67 : vector<1x16xf32> to vector<8x16xf32>
    %69 = arith.mulf %66, %68 : vector<8x16xf32>
    %70 = vector.extract_strided_slice %10 {offsets = [8, 0, 0], sizes = [1, 8, 8], strides = [1, 1, 1]} : vector<9x8x8xf32> to vector<1x8x8xf32>
    %71 = vector.shape_cast %70 : vector<1x8x8xf32> to vector<8x8xf32>
    %cst_28 = arith.constant dense<0.000000e+00> : vector<8x16xf32>
    %72 = tpu.matmul %71, %69, %cst_28 {dimension_numbers = #tpu.dot_dimension_numbers<[1], [0], [0], [1], [0, 0, 1, 1], [], []>} : vector<8x8xf32>, vector<8x16xf32>, vector<8x16xf32> -> vector<8x16xf32>
    %73 = arith.addf %65, %72 : vector<8x16xf32>
    %cst_29 = arith.constant 0.000000e+00 : f32
    %74 = vector.broadcast %cst_29 : f32 to vector<8x16xf32>
    %75 = arith.maximumf %73, %74 : vector<8x16xf32>
    %c0_30 = arith.constant 0 : index
    %c0_31 = arith.constant 0 : index
    %c0_32 = arith.constant 0 : index
    %76 = vector.load %arg5[%c0_30, %c0_31, %c0_32] : memref<1x8x16xf32, #tpu.memory_space<vmem>>, vector<1x8x16xf32>
    %77 = vector.shape_cast %76 : vector<1x8x16xf32> to vector<8x16xf32>
    %78 = vector.shape_cast %75 : vector<8x16xf32> to vector<1x8x16xf32>
    tpu.vector_store %arg5[%c0_30, %c0_31, %c0_32], %78 {strides = array<i32>} : memref<1x8x16xf32, #tpu.memory_space<vmem>>, vector<1x8x16xf32>,
    return
  }
  func.func @transform_0(%arg0: i32) -> (i32, i32, i32) {
    %c0_i32 = arith.constant 0 : i32
    %c0_i32_0 = arith.constant 0 : i32
    %c0_i32_1 = arith.constant 0 : i32
    return %arg0, %c0_i32, %c0_i32_0 : i32, i32, i32
  }
  func.func @transform_1(%arg0: i32) -> (i32, i32, i32) {
    %c0_i32 = arith.constant 0 : i32
    %c0_i32_0 = arith.constant 0 : i32
    %c0_i32_1 = arith.constant 0 : i32
    %c0_i32_2 = arith.constant 0 : i32
    return %c0_i32, %c0_i32_0, %c0_i32_1 : i32, i32, i32
  }
  func.func @transform_2(%arg0: i32) -> (i32, i32) {
    %c0_i32 = arith.constant 0 : i32
    %c0_i32_0 = arith.constant 0 : i32
    %c0_i32_1 = arith.constant 0 : i32
    return %c0_i32, %c0_i32_0 : i32, i32
  }
  func.func @transform_3(%arg0: i32) -> (i32, i32) {
    %c0_i32 = arith.constant 0 : i32
    %c0_i32_0 = arith.constant 0 : i32
    %c0_i32_1 = arith.constant 0 : i32
    return %c0_i32, %c0_i32_0 : i32, i32
  }
  func.func @transform_4(%arg0: i32) -> (i32, i32, i32) {
    %c0_i32 = arith.constant 0 : i32
    %c0_i32_0 = arith.constant 0 : i32
    %c0_i32_1 = arith.constant 0 : i32
    return %arg0, %c0_i32, %c0_i32_0 : i32, i32, i32
  }
}

module attributes {stable_mosaic.version = 11 : i64} {
  func.func @kernel(%arg0: i32, %arg1: memref<1x8x16xf32, #tpu.memory_space<vmem>>, %arg2: memref<16x64xf32, #tpu.memory_space<vmem>>, %arg3: memref<9x8x8xf32, #tpu.memory_space<vmem>>, %arg4: memref<1x8x16xf32, #tpu.memory_space<vmem>>, %arg5: memref<16x64xf32, #tpu.memory_space<vmem>>, %arg6: memref<9x8x8xf32, #tpu.memory_space<vmem>>, %arg7: memref<9x64xf32, #tpu.memory_space<vmem>>, %arg8: memref<8x1xf32, #tpu.memory_space<vmem>>, %arg9: memref<1x8x64xf32, #tpu.memory_space<vmem>>, %arg10: memref<8x256xf32, #tpu.memory_space<vmem>>) attributes {dimension_semantics = [#tpu.dimension_semantics<parallel>], iteration_bounds = array<i64: 2>, scalar_prefetch = 0 : i64, scratch_operands = 1 : i64, tpu.core_type = #tpu.core_type<tc>, window_params = [{transform_indices = @transform_0, window_bounds = array<i64: 1, 8, 16>}, {pipeline_mode = #tpu.pipeline_mode<synchronous>, transform_indices = @transform_1, window_bounds = array<i64: 16, 64>}, {pipeline_mode = #tpu.pipeline_mode<synchronous>, transform_indices = @transform_2, window_bounds = array<i64: 9, 8, 8>}, {transform_indices = @transform_3, window_bounds = array<i64: 1, 8, 16>}, {pipeline_mode = #tpu.pipeline_mode<synchronous>, transform_indices = @transform_4, window_bounds = array<i64: 16, 64>}, {pipeline_mode = #tpu.pipeline_mode<synchronous>, transform_indices = @transform_5, window_bounds = array<i64: 9, 8, 8>}, {pipeline_mode = #tpu.pipeline_mode<synchronous>, transform_indices = @transform_6, window_bounds = array<i64: 9, 64>}, {pipeline_mode = #tpu.pipeline_mode<synchronous>, transform_indices = @transform_7, window_bounds = array<i64: 8, 1>}, {transform_indices = @transform_8, window_bounds = array<i64: 1, 8, 64>}]} {
    %c0_i32 = arith.constant 0 : i32
    %0 = arith.cmpi eq, %arg0, %c0_i32 : i32
    %1 = arith.extui %0 : i1 to i32
    %c0_i32_0 = arith.constant 0 : i32
    %2 = arith.cmpi ne, %1, %c0_i32_0 : i32
    scf.if %2 {
      %cst_74 = arith.constant 0.000000e+00 : f32
      %150 = vector.broadcast %cst_74 : f32 to vector<8x256xf32>
      %c0_75 = arith.constant 0 : index
      %c0_76 = arith.constant 0 : index
      %151 = vector.load %arg10[%c0_75, %c0_76] : memref<8x256xf32, #tpu.memory_space<vmem>>, vector<8x256xf32>
      tpu.vector_store %arg10[%c0_75, %c0_76], %150 {strides = array<i32>} : memref<8x256xf32, #tpu.memory_space<vmem>>, vector<8x256xf32>,
    } else {
    }
    %c0 = arith.constant 0 : index
    %c0_1 = arith.constant 0 : index
    %3 = vector.load %arg8[%c0, %c0_1] : memref<8x1xf32, #tpu.memory_space<vmem>>, vector<8x1xf32>
    %4 = vector.shape_cast %3 : vector<8x1xf32> to vector<8x1xf32>
    %5 = vector.broadcast %4 : vector<8x1xf32> to vector<8x64xf32>
    %c0_2 = arith.constant 0 : index
    %c0_3 = arith.constant 0 : index
    %6 = vector.load %arg7[%c0_2, %c0_3] : memref<9x64xf32, #tpu.memory_space<vmem>>, vector<9x64xf32>
    %c0_4 = arith.constant 0 : index
    %c0_5 = arith.constant 0 : index
    %c0_6 = arith.constant 0 : index
    %7 = vector.load %arg1[%c0_4, %c0_5, %c0_6] : memref<1x8x16xf32, #tpu.memory_space<vmem>>, vector<1x8x16xf32>
    %8 = vector.shape_cast %7 : vector<1x8x16xf32> to vector<8x16xf32>
    %c0_7 = arith.constant 0 : index
    %c0_8 = arith.constant 0 : index
    %9 = vector.load %arg2[%c0_7, %c0_8] : memref<16x64xf32, #tpu.memory_space<vmem>>, vector<16x64xf32>
    %cst = arith.constant dense<0.000000e+00> : vector<8x64xf32>
    %10 = tpu.matmul %8, %9, %cst {dimension_numbers = #tpu.dot_dimension_numbers<[1], [0], [0], [1], [0, 0, 1, 1], [], []>} : vector<8x16xf32>, vector<16x64xf32>, vector<8x64xf32> -> vector<8x64xf32>
    %c0_9 = arith.constant 0 : index
    %c128 = arith.constant 128 : index
    %11 = vector.load %arg10[%c0_9, %c128] : memref<8x256xf32, #tpu.memory_space<vmem>>, vector<8x64xf32>
    tpu.vector_store %arg10[%c0_9, %c128], %10 {strides = array<i32>} : memref<8x256xf32, #tpu.memory_space<vmem>>, vector<8x64xf32>,
    %c0_10 = arith.constant 0 : index
    %c0_11 = arith.constant 0 : index
    %c0_12 = arith.constant 0 : index
    %12 = vector.load %arg3[%c0_10, %c0_11, %c0_12] : memref<9x8x8xf32, #tpu.memory_space<vmem>>, vector<9x8x8xf32>
    %c0_13 = arith.constant 0 : index
    %c119 = arith.constant 119 : index
    %13 = vector.load %arg10[%c0_13, %c119] : memref<8x256xf32, #tpu.memory_space<vmem>>, vector<8x64xf32>
    %14 = vector.extract_strided_slice %6 {offsets = [0, 0], sizes = [1, 64], strides = [1, 1]} : vector<9x64xf32> to vector<1x64xf32>
    %15 = vector.broadcast %14 : vector<1x64xf32> to vector<8x64xf32>
    %16 = arith.mulf %13, %15 : vector<8x64xf32>
    %17 = vector.extract_strided_slice %12 {offsets = [0, 0, 0], sizes = [1, 8, 8], strides = [1, 1, 1]} : vector<9x8x8xf32> to vector<1x8x8xf32>
    %18 = vector.shape_cast %17 : vector<1x8x8xf32> to vector<8x8xf32>
    %cst_14 = arith.constant dense<0.000000e+00> : vector<8x64xf32>
    %19 = tpu.matmul %18, %16, %cst_14 {dimension_numbers = #tpu.dot_dimension_numbers<[1], [0], [0], [1], [0, 0, 1, 1], [], []>} : vector<8x8xf32>, vector<8x64xf32>, vector<8x64xf32> -> vector<8x64xf32>
    %20 = arith.addf %5, %19 : vector<8x64xf32>
    %c0_15 = arith.constant 0 : index
    %c120 = arith.constant 120 : index
    %21 = vector.load %arg10[%c0_15, %c120] : memref<8x256xf32, #tpu.memory_space<vmem>>, vector<8x64xf32>
    %22 = vector.extract_strided_slice %12 {offsets = [1, 0, 0], sizes = [1, 8, 8], strides = [1, 1, 1]} : vector<9x8x8xf32> to vector<1x8x8xf32>
    %23 = vector.shape_cast %22 : vector<1x8x8xf32> to vector<8x8xf32>
    %cst_16 = arith.constant dense<0.000000e+00> : vector<8x64xf32>
    %24 = tpu.matmul %23, %21, %cst_16 {dimension_numbers = #tpu.dot_dimension_numbers<[1], [0], [0], [1], [0, 0, 1, 1], [], []>} : vector<8x8xf32>, vector<8x64xf32>, vector<8x64xf32> -> vector<8x64xf32>
    %25 = arith.addf %20, %24 : vector<8x64xf32>
    %c0_17 = arith.constant 0 : index
    %c121 = arith.constant 121 : index
    %26 = vector.load %arg10[%c0_17, %c121] : memref<8x256xf32, #tpu.memory_space<vmem>>, vector<8x64xf32>
    %27 = vector.extract_strided_slice %6 {offsets = [2, 0], sizes = [1, 64], strides = [1, 1]} : vector<9x64xf32> to vector<1x64xf32>
    %28 = vector.broadcast %27 : vector<1x64xf32> to vector<8x64xf32>
    %29 = arith.mulf %26, %28 : vector<8x64xf32>
    %30 = vector.extract_strided_slice %12 {offsets = [2, 0, 0], sizes = [1, 8, 8], strides = [1, 1, 1]} : vector<9x8x8xf32> to vector<1x8x8xf32>
    %31 = vector.shape_cast %30 : vector<1x8x8xf32> to vector<8x8xf32>
    %cst_18 = arith.constant dense<0.000000e+00> : vector<8x64xf32>
    %32 = tpu.matmul %31, %29, %cst_18 {dimension_numbers = #tpu.dot_dimension_numbers<[1], [0], [0], [1], [0, 0, 1, 1], [], []>} : vector<8x8xf32>, vector<8x64xf32>, vector<8x64xf32> -> vector<8x64xf32>
    %33 = arith.addf %25, %32 : vector<8x64xf32>
    %c0_19 = arith.constant 0 : index
    %c127 = arith.constant 127 : index
    %34 = vector.load %arg10[%c0_19, %c127] : memref<8x256xf32, #tpu.memory_space<vmem>>, vector<8x64xf32>
    %35 = vector.extract_strided_slice %6 {offsets = [3, 0], sizes = [1, 64], strides = [1, 1]} : vector<9x64xf32> to vector<1x64xf32>
    %36 = vector.broadcast %35 : vector<1x64xf32> to vector<8x64xf32>
    %37 = arith.mulf %34, %36 : vector<8x64xf32>
    %38 = vector.extract_strided_slice %12 {offsets = [3, 0, 0], sizes = [1, 8, 8], strides = [1, 1, 1]} : vector<9x8x8xf32> to vector<1x8x8xf32>
    %39 = vector.shape_cast %38 : vector<1x8x8xf32> to vector<8x8xf32>
    %cst_20 = arith.constant dense<0.000000e+00> : vector<8x64xf32>
    %40 = tpu.matmul %39, %37, %cst_20 {dimension_numbers = #tpu.dot_dimension_numbers<[1], [0], [0], [1], [0, 0, 1, 1], [], []>} : vector<8x8xf32>, vector<8x64xf32>, vector<8x64xf32> -> vector<8x64xf32>
    %41 = arith.addf %33, %40 : vector<8x64xf32>
    %c0_21 = arith.constant 0 : index
    %c128_22 = arith.constant 128 : index
    %42 = vector.load %arg10[%c0_21, %c128_22] : memref<8x256xf32, #tpu.memory_space<vmem>>, vector<8x64xf32>
    %43 = vector.extract_strided_slice %12 {offsets = [4, 0, 0], sizes = [1, 8, 8], strides = [1, 1, 1]} : vector<9x8x8xf32> to vector<1x8x8xf32>
    %44 = vector.shape_cast %43 : vector<1x8x8xf32> to vector<8x8xf32>
    %cst_23 = arith.constant dense<0.000000e+00> : vector<8x64xf32>
    %45 = tpu.matmul %44, %42, %cst_23 {dimension_numbers = #tpu.dot_dimension_numbers<[1], [0], [0], [1], [0, 0, 1, 1], [], []>} : vector<8x8xf32>, vector<8x64xf32>, vector<8x64xf32> -> vector<8x64xf32>
    %46 = arith.addf %41, %45 : vector<8x64xf32>
    %c0_24 = arith.constant 0 : index
    %c129 = arith.constant 129 : index
    %47 = vector.load %arg10[%c0_24, %c129] : memref<8x256xf32, #tpu.memory_space<vmem>>, vector<8x64xf32>
    %48 = vector.extract_strided_slice %6 {offsets = [5, 0], sizes = [1, 64], strides = [1, 1]} : vector<9x64xf32> to vector<1x64xf32>
    %49 = vector.broadcast %48 : vector<1x64xf32> to vector<8x64xf32>
    %50 = arith.mulf %47, %49 : vector<8x64xf32>
    %51 = vector.extract_strided_slice %12 {offsets = [5, 0, 0], sizes = [1, 8, 8], strides = [1, 1, 1]} : vector<9x8x8xf32> to vector<1x8x8xf32>
    %52 = vector.shape_cast %51 : vector<1x8x8xf32> to vector<8x8xf32>
    %cst_25 = arith.constant dense<0.000000e+00> : vector<8x64xf32>
    %53 = tpu.matmul %52, %50, %cst_25 {dimension_numbers = #tpu.dot_dimension_numbers<[1], [0], [0], [1], [0, 0, 1, 1], [], []>} : vector<8x8xf32>, vector<8x64xf32>, vector<8x64xf32> -> vector<8x64xf32>
    %54 = arith.addf %46, %53 : vector<8x64xf32>
    %c0_26 = arith.constant 0 : index
    %c135 = arith.constant 135 : index
    %55 = vector.load %arg10[%c0_26, %c135] : memref<8x256xf32, #tpu.memory_space<vmem>>, vector<8x64xf32>
    %56 = vector.extract_strided_slice %6 {offsets = [6, 0], sizes = [1, 64], strides = [1, 1]} : vector<9x64xf32> to vector<1x64xf32>
    %57 = vector.broadcast %56 : vector<1x64xf32> to vector<8x64xf32>
    %58 = arith.mulf %55, %57 : vector<8x64xf32>
    %59 = vector.extract_strided_slice %12 {offsets = [6, 0, 0], sizes = [1, 8, 8], strides = [1, 1, 1]} : vector<9x8x8xf32> to vector<1x8x8xf32>
    %60 = vector.shape_cast %59 : vector<1x8x8xf32> to vector<8x8xf32>
    %cst_27 = arith.constant dense<0.000000e+00> : vector<8x64xf32>
    %61 = tpu.matmul %60, %58, %cst_27 {dimension_numbers = #tpu.dot_dimension_numbers<[1], [0], [0], [1], [0, 0, 1, 1], [], []>} : vector<8x8xf32>, vector<8x64xf32>, vector<8x64xf32> -> vector<8x64xf32>
    %62 = arith.addf %54, %61 : vector<8x64xf32>
    %c0_28 = arith.constant 0 : index
    %c136 = arith.constant 136 : index
    %63 = vector.load %arg10[%c0_28, %c136] : memref<8x256xf32, #tpu.memory_space<vmem>>, vector<8x64xf32>
    %64 = vector.extract_strided_slice %12 {offsets = [7, 0, 0], sizes = [1, 8, 8], strides = [1, 1, 1]} : vector<9x8x8xf32> to vector<1x8x8xf32>
    %65 = vector.shape_cast %64 : vector<1x8x8xf32> to vector<8x8xf32>
    %cst_29 = arith.constant dense<0.000000e+00> : vector<8x64xf32>
    %66 = tpu.matmul %65, %63, %cst_29 {dimension_numbers = #tpu.dot_dimension_numbers<[1], [0], [0], [1], [0, 0, 1, 1], [], []>} : vector<8x8xf32>, vector<8x64xf32>, vector<8x64xf32> -> vector<8x64xf32>
    %67 = arith.addf %62, %66 : vector<8x64xf32>
    %c0_30 = arith.constant 0 : index
    %c137 = arith.constant 137 : index
    %68 = vector.load %arg10[%c0_30, %c137] : memref<8x256xf32, #tpu.memory_space<vmem>>, vector<8x64xf32>
    %69 = vector.extract_strided_slice %6 {offsets = [8, 0], sizes = [1, 64], strides = [1, 1]} : vector<9x64xf32> to vector<1x64xf32>
    %70 = vector.broadcast %69 : vector<1x64xf32> to vector<8x64xf32>
    %71 = arith.mulf %68, %70 : vector<8x64xf32>
    %72 = vector.extract_strided_slice %12 {offsets = [8, 0, 0], sizes = [1, 8, 8], strides = [1, 1, 1]} : vector<9x8x8xf32> to vector<1x8x8xf32>
    %73 = vector.shape_cast %72 : vector<1x8x8xf32> to vector<8x8xf32>
    %cst_31 = arith.constant dense<0.000000e+00> : vector<8x64xf32>
    %74 = tpu.matmul %73, %71, %cst_31 {dimension_numbers = #tpu.dot_dimension_numbers<[1], [0], [0], [1], [0, 0, 1, 1], [], []>} : vector<8x8xf32>, vector<8x64xf32>, vector<8x64xf32> -> vector<8x64xf32>
    %75 = arith.addf %67, %74 : vector<8x64xf32>
    %c0_32 = arith.constant 0 : index
    %c0_33 = arith.constant 0 : index
    %c0_34 = arith.constant 0 : index
    %76 = vector.load %arg4[%c0_32, %c0_33, %c0_34] : memref<1x8x16xf32, #tpu.memory_space<vmem>>, vector<1x8x16xf32>
    %77 = vector.shape_cast %76 : vector<1x8x16xf32> to vector<8x16xf32>
    %c0_35 = arith.constant 0 : index
    %c0_36 = arith.constant 0 : index
    %78 = vector.load %arg5[%c0_35, %c0_36] : memref<16x64xf32, #tpu.memory_space<vmem>>, vector<16x64xf32>
    %cst_37 = arith.constant dense<0.000000e+00> : vector<8x64xf32>
    %79 = tpu.matmul %77, %78, %cst_37 {dimension_numbers = #tpu.dot_dimension_numbers<[1], [0], [0], [1], [0, 0, 1, 1], [], []>} : vector<8x16xf32>, vector<16x64xf32>, vector<8x64xf32> -> vector<8x64xf32>
    %c0_38 = arith.constant 0 : index
    %c128_39 = arith.constant 128 : index
    %80 = vector.load %arg10[%c0_38, %c128_39] : memref<8x256xf32, #tpu.memory_space<vmem>>, vector<8x64xf32>
    tpu.vector_store %arg10[%c0_38, %c128_39], %79 {strides = array<i32>} : memref<8x256xf32, #tpu.memory_space<vmem>>, vector<8x64xf32>,
    %c0_40 = arith.constant 0 : index
    %c0_41 = arith.constant 0 : index
    %c0_42 = arith.constant 0 : index
    %81 = vector.load %arg6[%c0_40, %c0_41, %c0_42] : memref<9x8x8xf32, #tpu.memory_space<vmem>>, vector<9x8x8xf32>
    %c0_43 = arith.constant 0 : index
    %c119_44 = arith.constant 119 : index
    %82 = vector.load %arg10[%c0_43, %c119_44] : memref<8x256xf32, #tpu.memory_space<vmem>>, vector<8x64xf32>
    %83 = vector.extract_strided_slice %6 {offsets = [0, 0], sizes = [1, 64], strides = [1, 1]} : vector<9x64xf32> to vector<1x64xf32>
    %84 = vector.broadcast %83 : vector<1x64xf32> to vector<8x64xf32>
    %85 = arith.mulf %82, %84 : vector<8x64xf32>
    %86 = vector.extract_strided_slice %81 {offsets = [0, 0, 0], sizes = [1, 8, 8], strides = [1, 1, 1]} : vector<9x8x8xf32> to vector<1x8x8xf32>
    %87 = vector.shape_cast %86 : vector<1x8x8xf32> to vector<8x8xf32>
    %cst_45 = arith.constant dense<0.000000e+00> : vector<8x64xf32>
    %88 = tpu.matmul %87, %85, %cst_45 {dimension_numbers = #tpu.dot_dimension_numbers<[1], [0], [0], [1], [0, 0, 1, 1], [], []>} : vector<8x8xf32>, vector<8x64xf32>, vector<8x64xf32> -> vector<8x64xf32>
    %89 = arith.addf %75, %88 : vector<8x64xf32>
    %c0_46 = arith.constant 0 : index
    %c120_47 = arith.constant 120 : index
    %90 = vector.load %arg10[%c0_46, %c120_47] : memref<8x256xf32, #tpu.memory_space<vmem>>, vector<8x64xf32>
    %91 = vector.extract_strided_slice %81 {offsets = [1, 0, 0], sizes = [1, 8, 8], strides = [1, 1, 1]} : vector<9x8x8xf32> to vector<1x8x8xf32>
    %92 = vector.shape_cast %91 : vector<1x8x8xf32> to vector<8x8xf32>
    %cst_48 = arith.constant dense<0.000000e+00> : vector<8x64xf32>
    %93 = tpu.matmul %92, %90, %cst_48 {dimension_numbers = #tpu.dot_dimension_numbers<[1], [0], [0], [1], [0, 0, 1, 1], [], []>} : vector<8x8xf32>, vector<8x64xf32>, vector<8x64xf32> -> vector<8x64xf32>
    %94 = arith.addf %89, %93 : vector<8x64xf32>
    %c0_49 = arith.constant 0 : index
    %c121_50 = arith.constant 121 : index
    %95 = vector.load %arg10[%c0_49, %c121_50] : memref<8x256xf32, #tpu.memory_space<vmem>>, vector<8x64xf32>
    %96 = vector.extract_strided_slice %6 {offsets = [2, 0], sizes = [1, 64], strides = [1, 1]} : vector<9x64xf32> to vector<1x64xf32>
    %97 = vector.broadcast %96 : vector<1x64xf32> to vector<8x64xf32>
    %98 = arith.mulf %95, %97 : vector<8x64xf32>
    %99 = vector.extract_strided_slice %81 {offsets = [2, 0, 0], sizes = [1, 8, 8], strides = [1, 1, 1]} : vector<9x8x8xf32> to vector<1x8x8xf32>
    %100 = vector.shape_cast %99 : vector<1x8x8xf32> to vector<8x8xf32>
    %cst_51 = arith.constant dense<0.000000e+00> : vector<8x64xf32>
    %101 = tpu.matmul %100, %98, %cst_51 {dimension_numbers = #tpu.dot_dimension_numbers<[1], [0], [0], [1], [0, 0, 1, 1], [], []>} : vector<8x8xf32>, vector<8x64xf32>, vector<8x64xf32> -> vector<8x64xf32>
    %102 = arith.addf %94, %101 : vector<8x64xf32>
    %c0_52 = arith.constant 0 : index
    %c127_53 = arith.constant 127 : index
    %103 = vector.load %arg10[%c0_52, %c127_53] : memref<8x256xf32, #tpu.memory_space<vmem>>, vector<8x64xf32>
    %104 = vector.extract_strided_slice %6 {offsets = [3, 0], sizes = [1, 64], strides = [1, 1]} : vector<9x64xf32> to vector<1x64xf32>
    %105 = vector.broadcast %104 : vector<1x64xf32> to vector<8x64xf32>
    %106 = arith.mulf %103, %105 : vector<8x64xf32>
    %107 = vector.extract_strided_slice %81 {offsets = [3, 0, 0], sizes = [1, 8, 8], strides = [1, 1, 1]} : vector<9x8x8xf32> to vector<1x8x8xf32>
    %108 = vector.shape_cast %107 : vector<1x8x8xf32> to vector<8x8xf32>
    %cst_54 = arith.constant dense<0.000000e+00> : vector<8x64xf32>
    %109 = tpu.matmul %108, %106, %cst_54 {dimension_numbers = #tpu.dot_dimension_numbers<[1], [0], [0], [1], [0, 0, 1, 1], [], []>} : vector<8x8xf32>, vector<8x64xf32>, vector<8x64xf32> -> vector<8x64xf32>
    %110 = arith.addf %102, %109 : vector<8x64xf32>
    %c0_55 = arith.constant 0 : index
    %c128_56 = arith.constant 128 : index
    %111 = vector.load %arg10[%c0_55, %c128_56] : memref<8x256xf32, #tpu.memory_space<vmem>>, vector<8x64xf32>
    %112 = vector.extract_strided_slice %81 {offsets = [4, 0, 0], sizes = [1, 8, 8], strides = [1, 1, 1]} : vector<9x8x8xf32> to vector<1x8x8xf32>
    %113 = vector.shape_cast %112 : vector<1x8x8xf32> to vector<8x8xf32>
    %cst_57 = arith.constant dense<0.000000e+00> : vector<8x64xf32>
    %114 = tpu.matmul %113, %111, %cst_57 {dimension_numbers = #tpu.dot_dimension_numbers<[1], [0], [0], [1], [0, 0, 1, 1], [], []>} : vector<8x8xf32>, vector<8x64xf32>, vector<8x64xf32> -> vector<8x64xf32>
    %115 = arith.addf %110, %114 : vector<8x64xf32>
    %c0_58 = arith.constant 0 : index
    %c129_59 = arith.constant 129 : index
    %116 = vector.load %arg10[%c0_58, %c129_59] : memref<8x256xf32, #tpu.memory_space<vmem>>, vector<8x64xf32>
    %117 = vector.extract_strided_slice %6 {offsets = [5, 0], sizes = [1, 64], strides = [1, 1]} : vector<9x64xf32> to vector<1x64xf32>
    %118 = vector.broadcast %117 : vector<1x64xf32> to vector<8x64xf32>
    %119 = arith.mulf %116, %118 : vector<8x64xf32>
    %120 = vector.extract_strided_slice %81 {offsets = [5, 0, 0], sizes = [1, 8, 8], strides = [1, 1, 1]} : vector<9x8x8xf32> to vector<1x8x8xf32>
    %121 = vector.shape_cast %120 : vector<1x8x8xf32> to vector<8x8xf32>
    %cst_60 = arith.constant dense<0.000000e+00> : vector<8x64xf32>
    %122 = tpu.matmul %121, %119, %cst_60 {dimension_numbers = #tpu.dot_dimension_numbers<[1], [0], [0], [1], [0, 0, 1, 1], [], []>} : vector<8x8xf32>, vector<8x64xf32>, vector<8x64xf32> -> vector<8x64xf32>
    %123 = arith.addf %115, %122 : vector<8x64xf32>
    %c0_61 = arith.constant 0 : index
    %c135_62 = arith.constant 135 : index
    %124 = vector.load %arg10[%c0_61, %c135_62] : memref<8x256xf32, #tpu.memory_space<vmem>>, vector<8x64xf32>
    %125 = vector.extract_strided_slice %6 {offsets = [6, 0], sizes = [1, 64], strides = [1, 1]} : vector<9x64xf32> to vector<1x64xf32>
    %126 = vector.broadcast %125 : vector<1x64xf32> to vector<8x64xf32>
    %127 = arith.mulf %124, %126 : vector<8x64xf32>
    %128 = vector.extract_strided_slice %81 {offsets = [6, 0, 0], sizes = [1, 8, 8], strides = [1, 1, 1]} : vector<9x8x8xf32> to vector<1x8x8xf32>
    %129 = vector.shape_cast %128 : vector<1x8x8xf32> to vector<8x8xf32>
    %cst_63 = arith.constant dense<0.000000e+00> : vector<8x64xf32>
    %130 = tpu.matmul %129, %127, %cst_63 {dimension_numbers = #tpu.dot_dimension_numbers<[1], [0], [0], [1], [0, 0, 1, 1], [], []>} : vector<8x8xf32>, vector<8x64xf32>, vector<8x64xf32> -> vector<8x64xf32>
    %131 = arith.addf %123, %130 : vector<8x64xf32>
    %c0_64 = arith.constant 0 : index
    %c136_65 = arith.constant 136 : index
    %132 = vector.load %arg10[%c0_64, %c136_65] : memref<8x256xf32, #tpu.memory_space<vmem>>, vector<8x64xf32>
    %133 = vector.extract_strided_slice %81 {offsets = [7, 0, 0], sizes = [1, 8, 8], strides = [1, 1, 1]} : vector<9x8x8xf32> to vector<1x8x8xf32>
    %134 = vector.shape_cast %133 : vector<1x8x8xf32> to vector<8x8xf32>
    %cst_66 = arith.constant dense<0.000000e+00> : vector<8x64xf32>
    %135 = tpu.matmul %134, %132, %cst_66 {dimension_numbers = #tpu.dot_dimension_numbers<[1], [0], [0], [1], [0, 0, 1, 1], [], []>} : vector<8x8xf32>, vector<8x64xf32>, vector<8x64xf32> -> vector<8x64xf32>
    %136 = arith.addf %131, %135 : vector<8x64xf32>
    %c0_67 = arith.constant 0 : index
    %c137_68 = arith.constant 137 : index
    %137 = vector.load %arg10[%c0_67, %c137_68] : memref<8x256xf32, #tpu.memory_space<vmem>>, vector<8x64xf32>
    %138 = vector.extract_strided_slice %6 {offsets = [8, 0], sizes = [1, 64], strides = [1, 1]} : vector<9x64xf32> to vector<1x64xf32>
    %139 = vector.broadcast %138 : vector<1x64xf32> to vector<8x64xf32>
    %140 = arith.mulf %137, %139 : vector<8x64xf32>
    %141 = vector.extract_strided_slice %81 {offsets = [8, 0, 0], sizes = [1, 8, 8], strides = [1, 1, 1]} : vector<9x8x8xf32> to vector<1x8x8xf32>
    %142 = vector.shape_cast %141 : vector<1x8x8xf32> to vector<8x8xf32>
    %cst_69 = arith.constant dense<0.000000e+00> : vector<8x64xf32>
    %143 = tpu.matmul %142, %140, %cst_69 {dimension_numbers = #tpu.dot_dimension_numbers<[1], [0], [0], [1], [0, 0, 1, 1], [], []>} : vector<8x8xf32>, vector<8x64xf32>, vector<8x64xf32> -> vector<8x64xf32>
    %144 = arith.addf %136, %143 : vector<8x64xf32>
    %cst_70 = arith.constant 0.000000e+00 : f32
    %145 = vector.broadcast %cst_70 : f32 to vector<8x64xf32>
    %146 = arith.maximumf %144, %145 : vector<8x64xf32>
    %c0_71 = arith.constant 0 : index
    %c0_72 = arith.constant 0 : index
    %c0_73 = arith.constant 0 : index
    %147 = vector.load %arg9[%c0_71, %c0_72, %c0_73] : memref<1x8x64xf32, #tpu.memory_space<vmem>>, vector<1x8x64xf32>
    %148 = vector.shape_cast %147 : vector<1x8x64xf32> to vector<8x64xf32>
    %149 = vector.shape_cast %146 : vector<8x64xf32> to vector<1x8x64xf32>
    tpu.vector_store %arg9[%c0_71, %c0_72, %c0_73], %149 {strides = array<i32>} : memref<1x8x64xf32, #tpu.memory_space<vmem>>, vector<1x8x64xf32>,
    return
  }
  func.func @transform_0(%arg0: i32) -> (i32, i32, i32) {
    %c0_i32 = arith.constant 0 : i32
    %c0_i32_0 = arith.constant 0 : i32
    %c0_i32_1 = arith.constant 0 : i32
    return %arg0, %c0_i32, %c0_i32_0 : i32, i32, i32
  }
  func.func @transform_1(%arg0: i32) -> (i32, i32) {
    %c0_i32 = arith.constant 0 : i32
    %c0_i32_0 = arith.constant 0 : i32
    %c0_i32_1 = arith.constant 0 : i32
    return %c0_i32, %c0_i32_0 : i32, i32
  }
  func.func @transform_2(%arg0: i32) -> (i32, i32, i32) {
    %c0_i32 = arith.constant 0 : i32
    %c0_i32_0 = arith.constant 0 : i32
    %c0_i32_1 = arith.constant 0 : i32
    %c0_i32_2 = arith.constant 0 : i32
    return %c0_i32, %c0_i32_0, %c0_i32_1 : i32, i32, i32
  }
  func.func @transform_3(%arg0: i32) -> (i32, i32, i32) {
    %c0_i32 = arith.constant 0 : i32
    %c0_i32_0 = arith.constant 0 : i32
    %c0_i32_1 = arith.constant 0 : i32
    return %arg0, %c0_i32, %c0_i32_0 : i32, i32, i32
  }
  func.func @transform_4(%arg0: i32) -> (i32, i32) {
    %c0_i32 = arith.constant 0 : i32
    %c0_i32_0 = arith.constant 0 : i32
    %c0_i32_1 = arith.constant 0 : i32
    return %c0_i32, %c0_i32_0 : i32, i32
  }
  func.func @transform_5(%arg0: i32) -> (i32, i32, i32) {
    %c0_i32 = arith.constant 0 : i32
    %c0_i32_0 = arith.constant 0 : i32
    %c0_i32_1 = arith.constant 0 : i32
    %c0_i32_2 = arith.constant 0 : i32
    return %c0_i32, %c0_i32_0, %c0_i32_1 : i32, i32, i32
  }
  func.func @transform_6(%arg0: i32) -> (i32, i32) {
    %c0_i32 = arith.constant 0 : i32
    %c0_i32_0 = arith.constant 0 : i32
    %c0_i32_1 = arith.constant 0 : i32
    return %c0_i32, %c0_i32_0 : i32, i32
  }
  func.func @transform_7(%arg0: i32) -> (i32, i32) {
    %c0_i32 = arith.constant 0 : i32
    %c0_i32_0 = arith.constant 0 : i32
    %c0_i32_1 = arith.constant 0 : i32
    return %c0_i32, %c0_i32_0 : i32, i32
  }
  func.func @transform_8(%arg0: i32) -> (i32, i32, i32) {
    %c0_i32 = arith.constant 0 : i32
    %c0_i32_0 = arith.constant 0 : i32
    %c0_i32_1 = arith.constant 0 : i32
    return %arg0, %c0_i32, %c0_i32_0 : i32, i32, i32
  }
}

module attributes {stable_mosaic.version = 11 : i64} {
  func.func @kernel(%arg0: i32, %arg1: memref<1x8x4xf32, #tpu.memory_space<vmem>>, %arg2: memref<4x16xf32, #tpu.memory_space<vmem>>, %arg3: memref<9x8x8xf32, #tpu.memory_space<vmem>>, %arg4: memref<9x16xf32, #tpu.memory_space<vmem>>, %arg5: memref<8x1xf32, #tpu.memory_space<vmem>>, %arg6: memref<1x8x16xf32, #tpu.memory_space<vmem>>, %arg7: memref<8x256xf32, #tpu.memory_space<vmem>>) attributes {dimension_semantics = [#tpu.dimension_semantics<parallel>], iteration_bounds = array<i64: 2>, scalar_prefetch = 0 : i64, scratch_operands = 1 : i64, tpu.core_type = #tpu.core_type<tc>, window_params = [{transform_indices = @transform_0, window_bounds = array<i64: 1, 8, 4>}, {pipeline_mode = #tpu.pipeline_mode<synchronous>, transform_indices = @transform_1, window_bounds = array<i64: 4, 16>}, {pipeline_mode = #tpu.pipeline_mode<synchronous>, transform_indices = @transform_2, window_bounds = array<i64: 9, 8, 8>}, {pipeline_mode = #tpu.pipeline_mode<synchronous>, transform_indices = @transform_3, window_bounds = array<i64: 9, 16>}, {pipeline_mode = #tpu.pipeline_mode<synchronous>, transform_indices = @transform_4, window_bounds = array<i64: 8, 1>}, {transform_indices = @transform_5, window_bounds = array<i64: 1, 8, 16>}]} {
    %c0_i32 = arith.constant 0 : i32
    %0 = arith.cmpi eq, %arg0, %c0_i32 : i32
    %1 = arith.extui %0 : i1 to i32
    %c0_i32_0 = arith.constant 0 : i32
    %2 = arith.cmpi ne, %1, %c0_i32_0 : i32
    scf.if %2 {
      %cst_36 = arith.constant 0.000000e+00 : f32
      %81 = vector.broadcast %cst_36 : f32 to vector<8x256xf32>
      %c0_37 = arith.constant 0 : index
      %c0_38 = arith.constant 0 : index
      %82 = vector.load %arg7[%c0_37, %c0_38] : memref<8x256xf32, #tpu.memory_space<vmem>>, vector<8x256xf32>
      tpu.vector_store %arg7[%c0_37, %c0_38], %81 {strides = array<i32>} : memref<8x256xf32, #tpu.memory_space<vmem>>, vector<8x256xf32>,
    } else {
    }
    %c0 = arith.constant 0 : index
    %c0_1 = arith.constant 0 : index
    %3 = vector.load %arg5[%c0, %c0_1] : memref<8x1xf32, #tpu.memory_space<vmem>>, vector<8x1xf32>
    %4 = vector.shape_cast %3 : vector<8x1xf32> to vector<8x1xf32>
    %5 = vector.broadcast %4 : vector<8x1xf32> to vector<8x16xf32>
    %c0_2 = arith.constant 0 : index
    %c0_3 = arith.constant 0 : index
    %6 = vector.load %arg4[%c0_2, %c0_3] : memref<9x16xf32, #tpu.memory_space<vmem>>, vector<9x16xf32>
    %c0_4 = arith.constant 0 : index
    %c0_5 = arith.constant 0 : index
    %c0_6 = arith.constant 0 : index
    %7 = vector.load %arg1[%c0_4, %c0_5, %c0_6] : memref<1x8x4xf32, #tpu.memory_space<vmem>>, vector<1x8x4xf32>
    %8 = vector.shape_cast %7 : vector<1x8x4xf32> to vector<8x4xf32>
    %c0_7 = arith.constant 0 : index
    %c0_8 = arith.constant 0 : index
    %9 = vector.load %arg2[%c0_7, %c0_8] : memref<4x16xf32, #tpu.memory_space<vmem>>, vector<4x16xf32>
    %cst = arith.constant dense<0.000000e+00> : vector<8x16xf32>
    %10 = tpu.matmul %8, %9, %cst {dimension_numbers = #tpu.dot_dimension_numbers<[1], [0], [0], [1], [0, 0, 1, 1], [], []>} : vector<8x4xf32>, vector<4x16xf32>, vector<8x16xf32> -> vector<8x16xf32>
    %c0_9 = arith.constant 0 : index
    %c128 = arith.constant 128 : index
    %11 = vector.load %arg7[%c0_9, %c128] : memref<8x256xf32, #tpu.memory_space<vmem>>, vector<8x16xf32>
    tpu.vector_store %arg7[%c0_9, %c128], %10 {strides = array<i32>} : memref<8x256xf32, #tpu.memory_space<vmem>>, vector<8x16xf32>,
    %c0_10 = arith.constant 0 : index
    %c0_11 = arith.constant 0 : index
    %c0_12 = arith.constant 0 : index
    %12 = vector.load %arg3[%c0_10, %c0_11, %c0_12] : memref<9x8x8xf32, #tpu.memory_space<vmem>>, vector<9x8x8xf32>
    %c0_13 = arith.constant 0 : index
    %c123 = arith.constant 123 : index
    %13 = vector.load %arg7[%c0_13, %c123] : memref<8x256xf32, #tpu.memory_space<vmem>>, vector<8x16xf32>
    %14 = vector.extract_strided_slice %6 {offsets = [0, 0], sizes = [1, 16], strides = [1, 1]} : vector<9x16xf32> to vector<1x16xf32>
    %15 = vector.broadcast %14 : vector<1x16xf32> to vector<8x16xf32>
    %16 = arith.mulf %13, %15 : vector<8x16xf32>
    %17 = vector.extract_strided_slice %12 {offsets = [0, 0, 0], sizes = [1, 8, 8], strides = [1, 1, 1]} : vector<9x8x8xf32> to vector<1x8x8xf32>
    %18 = vector.shape_cast %17 : vector<1x8x8xf32> to vector<8x8xf32>
    %cst_14 = arith.constant dense<0.000000e+00> : vector<8x16xf32>
    %19 = tpu.matmul %18, %16, %cst_14 {dimension_numbers = #tpu.dot_dimension_numbers<[1], [0], [0], [1], [0, 0, 1, 1], [], []>} : vector<8x8xf32>, vector<8x16xf32>, vector<8x16xf32> -> vector<8x16xf32>
    %20 = arith.addf %5, %19 : vector<8x16xf32>
    %c0_15 = arith.constant 0 : index
    %c124 = arith.constant 124 : index
    %21 = vector.load %arg7[%c0_15, %c124] : memref<8x256xf32, #tpu.memory_space<vmem>>, vector<8x16xf32>
    %22 = vector.extract_strided_slice %12 {offsets = [1, 0, 0], sizes = [1, 8, 8], strides = [1, 1, 1]} : vector<9x8x8xf32> to vector<1x8x8xf32>
    %23 = vector.shape_cast %22 : vector<1x8x8xf32> to vector<8x8xf32>
    %cst_16 = arith.constant dense<0.000000e+00> : vector<8x16xf32>
    %24 = tpu.matmul %23, %21, %cst_16 {dimension_numbers = #tpu.dot_dimension_numbers<[1], [0], [0], [1], [0, 0, 1, 1], [], []>} : vector<8x8xf32>, vector<8x16xf32>, vector<8x16xf32> -> vector<8x16xf32>
    %25 = arith.addf %20, %24 : vector<8x16xf32>
    %c0_17 = arith.constant 0 : index
    %c125 = arith.constant 125 : index
    %26 = vector.load %arg7[%c0_17, %c125] : memref<8x256xf32, #tpu.memory_space<vmem>>, vector<8x16xf32>
    %27 = vector.extract_strided_slice %6 {offsets = [2, 0], sizes = [1, 16], strides = [1, 1]} : vector<9x16xf32> to vector<1x16xf32>
    %28 = vector.broadcast %27 : vector<1x16xf32> to vector<8x16xf32>
    %29 = arith.mulf %26, %28 : vector<8x16xf32>
    %30 = vector.extract_strided_slice %12 {offsets = [2, 0, 0], sizes = [1, 8, 8], strides = [1, 1, 1]} : vector<9x8x8xf32> to vector<1x8x8xf32>
    %31 = vector.shape_cast %30 : vector<1x8x8xf32> to vector<8x8xf32>
    %cst_18 = arith.constant dense<0.000000e+00> : vector<8x16xf32>
    %32 = tpu.matmul %31, %29, %cst_18 {dimension_numbers = #tpu.dot_dimension_numbers<[1], [0], [0], [1], [0, 0, 1, 1], [], []>} : vector<8x8xf32>, vector<8x16xf32>, vector<8x16xf32> -> vector<8x16xf32>
    %33 = arith.addf %25, %32 : vector<8x16xf32>
    %c0_19 = arith.constant 0 : index
    %c127 = arith.constant 127 : index
    %34 = vector.load %arg7[%c0_19, %c127] : memref<8x256xf32, #tpu.memory_space<vmem>>, vector<8x16xf32>
    %35 = vector.extract_strided_slice %6 {offsets = [3, 0], sizes = [1, 16], strides = [1, 1]} : vector<9x16xf32> to vector<1x16xf32>
    %36 = vector.broadcast %35 : vector<1x16xf32> to vector<8x16xf32>
    %37 = arith.mulf %34, %36 : vector<8x16xf32>
    %38 = vector.extract_strided_slice %12 {offsets = [3, 0, 0], sizes = [1, 8, 8], strides = [1, 1, 1]} : vector<9x8x8xf32> to vector<1x8x8xf32>
    %39 = vector.shape_cast %38 : vector<1x8x8xf32> to vector<8x8xf32>
    %cst_20 = arith.constant dense<0.000000e+00> : vector<8x16xf32>
    %40 = tpu.matmul %39, %37, %cst_20 {dimension_numbers = #tpu.dot_dimension_numbers<[1], [0], [0], [1], [0, 0, 1, 1], [], []>} : vector<8x8xf32>, vector<8x16xf32>, vector<8x16xf32> -> vector<8x16xf32>
    %41 = arith.addf %33, %40 : vector<8x16xf32>
    %c0_21 = arith.constant 0 : index
    %c128_22 = arith.constant 128 : index
    %42 = vector.load %arg7[%c0_21, %c128_22] : memref<8x256xf32, #tpu.memory_space<vmem>>, vector<8x16xf32>
    %43 = vector.extract_strided_slice %12 {offsets = [4, 0, 0], sizes = [1, 8, 8], strides = [1, 1, 1]} : vector<9x8x8xf32> to vector<1x8x8xf32>
    %44 = vector.shape_cast %43 : vector<1x8x8xf32> to vector<8x8xf32>
    %cst_23 = arith.constant dense<0.000000e+00> : vector<8x16xf32>
    %45 = tpu.matmul %44, %42, %cst_23 {dimension_numbers = #tpu.dot_dimension_numbers<[1], [0], [0], [1], [0, 0, 1, 1], [], []>} : vector<8x8xf32>, vector<8x16xf32>, vector<8x16xf32> -> vector<8x16xf32>
    %46 = arith.addf %41, %45 : vector<8x16xf32>
    %c0_24 = arith.constant 0 : index
    %c129 = arith.constant 129 : index
    %47 = vector.load %arg7[%c0_24, %c129] : memref<8x256xf32, #tpu.memory_space<vmem>>, vector<8x16xf32>
    %48 = vector.extract_strided_slice %6 {offsets = [5, 0], sizes = [1, 16], strides = [1, 1]} : vector<9x16xf32> to vector<1x16xf32>
    %49 = vector.broadcast %48 : vector<1x16xf32> to vector<8x16xf32>
    %50 = arith.mulf %47, %49 : vector<8x16xf32>
    %51 = vector.extract_strided_slice %12 {offsets = [5, 0, 0], sizes = [1, 8, 8], strides = [1, 1, 1]} : vector<9x8x8xf32> to vector<1x8x8xf32>
    %52 = vector.shape_cast %51 : vector<1x8x8xf32> to vector<8x8xf32>
    %cst_25 = arith.constant dense<0.000000e+00> : vector<8x16xf32>
    %53 = tpu.matmul %52, %50, %cst_25 {dimension_numbers = #tpu.dot_dimension_numbers<[1], [0], [0], [1], [0, 0, 1, 1], [], []>} : vector<8x8xf32>, vector<8x16xf32>, vector<8x16xf32> -> vector<8x16xf32>
    %54 = arith.addf %46, %53 : vector<8x16xf32>
    %c0_26 = arith.constant 0 : index
    %c131 = arith.constant 131 : index
    %55 = vector.load %arg7[%c0_26, %c131] : memref<8x256xf32, #tpu.memory_space<vmem>>, vector<8x16xf32>
    %56 = vector.extract_strided_slice %6 {offsets = [6, 0], sizes = [1, 16], strides = [1, 1]} : vector<9x16xf32> to vector<1x16xf32>
    %57 = vector.broadcast %56 : vector<1x16xf32> to vector<8x16xf32>
    %58 = arith.mulf %55, %57 : vector<8x16xf32>
    %59 = vector.extract_strided_slice %12 {offsets = [6, 0, 0], sizes = [1, 8, 8], strides = [1, 1, 1]} : vector<9x8x8xf32> to vector<1x8x8xf32>
    %60 = vector.shape_cast %59 : vector<1x8x8xf32> to vector<8x8xf32>
    %cst_27 = arith.constant dense<0.000000e+00> : vector<8x16xf32>
    %61 = tpu.matmul %60, %58, %cst_27 {dimension_numbers = #tpu.dot_dimension_numbers<[1], [0], [0], [1], [0, 0, 1, 1], [], []>} : vector<8x8xf32>, vector<8x16xf32>, vector<8x16xf32> -> vector<8x16xf32>
    %62 = arith.addf %54, %61 : vector<8x16xf32>
    %c0_28 = arith.constant 0 : index
    %c132 = arith.constant 132 : index
    %63 = vector.load %arg7[%c0_28, %c132] : memref<8x256xf32, #tpu.memory_space<vmem>>, vector<8x16xf32>
    %64 = vector.extract_strided_slice %12 {offsets = [7, 0, 0], sizes = [1, 8, 8], strides = [1, 1, 1]} : vector<9x8x8xf32> to vector<1x8x8xf32>
    %65 = vector.shape_cast %64 : vector<1x8x8xf32> to vector<8x8xf32>
    %cst_29 = arith.constant dense<0.000000e+00> : vector<8x16xf32>
    %66 = tpu.matmul %65, %63, %cst_29 {dimension_numbers = #tpu.dot_dimension_numbers<[1], [0], [0], [1], [0, 0, 1, 1], [], []>} : vector<8x8xf32>, vector<8x16xf32>, vector<8x16xf32> -> vector<8x16xf32>
    %67 = arith.addf %62, %66 : vector<8x16xf32>
    %c0_30 = arith.constant 0 : index
    %c133 = arith.constant 133 : index
    %68 = vector.load %arg7[%c0_30, %c133] : memref<8x256xf32, #tpu.memory_space<vmem>>, vector<8x16xf32>
    %69 = vector.extract_strided_slice %6 {offsets = [8, 0], sizes = [1, 16], strides = [1, 1]} : vector<9x16xf32> to vector<1x16xf32>
    %70 = vector.broadcast %69 : vector<1x16xf32> to vector<8x16xf32>
    %71 = arith.mulf %68, %70 : vector<8x16xf32>
    %72 = vector.extract_strided_slice %12 {offsets = [8, 0, 0], sizes = [1, 8, 8], strides = [1, 1, 1]} : vector<9x8x8xf32> to vector<1x8x8xf32>
    %73 = vector.shape_cast %72 : vector<1x8x8xf32> to vector<8x8xf32>
    %cst_31 = arith.constant dense<0.000000e+00> : vector<8x16xf32>
    %74 = tpu.matmul %73, %71, %cst_31 {dimension_numbers = #tpu.dot_dimension_numbers<[1], [0], [0], [1], [0, 0, 1, 1], [], []>} : vector<8x8xf32>, vector<8x16xf32>, vector<8x16xf32> -> vector<8x16xf32>
    %75 = arith.addf %67, %74 : vector<8x16xf32>
    %cst_32 = arith.constant 0.000000e+00 : f32
    %76 = vector.broadcast %cst_32 : f32 to vector<8x16xf32>
    %77 = arith.maximumf %75, %76 : vector<8x16xf32>
    %c0_33 = arith.constant 0 : index
    %c0_34 = arith.constant 0 : index
    %c0_35 = arith.constant 0 : index
    %78 = vector.load %arg6[%c0_33, %c0_34, %c0_35] : memref<1x8x16xf32, #tpu.memory_space<vmem>>, vector<1x8x16xf32>
    %79 = vector.shape_cast %78 : vector<1x8x16xf32> to vector<8x16xf32>
    %80 = vector.shape_cast %77 : vector<8x16xf32> to vector<1x8x16xf32>
    tpu.vector_store %arg6[%c0_33, %c0_34, %c0_35], %80 {strides = array<i32>} : memref<1x8x16xf32, #tpu.memory_space<vmem>>, vector<1x8x16xf32>,
    return
  }
  func.func @transform_0(%arg0: i32) -> (i32, i32, i32) {
    %c0_i32 = arith.constant 0 : i32
    %c0_i32_0 = arith.constant 0 : i32
    %c0_i32_1 = arith.constant 0 : i32
    return %arg0, %c0_i32, %c0_i32_0 : i32, i32, i32
  }
  func.func @transform_1(%arg0: i32) -> (i32, i32) {
    %c0_i32 = arith.constant 0 : i32
    %c0_i32_0 = arith.constant 0 : i32
    %c0_i32_1 = arith.constant 0 : i32
    return %c0_i32, %c0_i32_0 : i32, i32
  }
  func.func @transform_2(%arg0: i32) -> (i32, i32, i32) {
    %c0_i32 = arith.constant 0 : i32
    %c0_i32_0 = arith.constant 0 : i32
    %c0_i32_1 = arith.constant 0 : i32
    %c0_i32_2 = arith.constant 0 : i32
    return %c0_i32, %c0_i32_0, %c0_i32_1 : i32, i32, i32
  }
  func.func @transform_3(%arg0: i32) -> (i32, i32) {
    %c0_i32 = arith.constant 0 : i32
    %c0_i32_0 = arith.constant 0 : i32
    %c0_i32_1 = arith.constant 0 : i32
    return %c0_i32, %c0_i32_0 : i32, i32
  }
  func.func @transform_4(%arg0: i32) -> (i32, i32) {
    %c0_i32 = arith.constant 0 : i32
    %c0_i32_0 = arith.constant 0 : i32
    %c0_i32_1 = arith.constant 0 : i32
    return %c0_i32, %c0_i32_0 : i32, i32
  }
  func.func @transform_5(%arg0: i32) -> (i32, i32, i32) {
    %c0_i32 = arith.constant 0 : i32
    %c0_i32_0 = arith.constant 0 : i32
    %c0_i32_1 = arith.constant 0 : i32
    return %arg0, %c0_i32, %c0_i32_0 : i32, i32, i32
  }
}

module attributes {stable_mosaic.version = 11 : i64} {
  func.func @kernel(%arg0: i32, %arg1: memref<1x4x64xf32, #tpu.memory_space<vmem>>, %arg2: memref<9x8x4xf32, #tpu.memory_space<vmem>>, %arg3: memref<9x64xf32, #tpu.memory_space<vmem>>, %arg4: memref<8x1xf32, #tpu.memory_space<vmem>>, %arg5: memref<1x8x64xf32, #tpu.memory_space<vmem>>, %arg6: memref<4x256xf32, #tpu.memory_space<vmem>>) attributes {dimension_semantics = [#tpu.dimension_semantics<parallel>], iteration_bounds = array<i64: 2>, scalar_prefetch = 0 : i64, scratch_operands = 1 : i64, tpu.core_type = #tpu.core_type<tc>, window_params = [{transform_indices = @transform_0, window_bounds = array<i64: 1, 4, 64>}, {pipeline_mode = #tpu.pipeline_mode<synchronous>, transform_indices = @transform_1, window_bounds = array<i64: 9, 8, 4>}, {pipeline_mode = #tpu.pipeline_mode<synchronous>, transform_indices = @transform_2, window_bounds = array<i64: 9, 64>}, {pipeline_mode = #tpu.pipeline_mode<synchronous>, transform_indices = @transform_3, window_bounds = array<i64: 8, 1>}, {transform_indices = @transform_4, window_bounds = array<i64: 1, 8, 64>}]} {
    %c0_i32 = arith.constant 0 : i32
    %0 = arith.cmpi eq, %arg0, %c0_i32 : i32
    %1 = arith.extui %0 : i1 to i32
    %c0_i32_0 = arith.constant 0 : i32
    %2 = arith.cmpi ne, %1, %c0_i32_0 : i32
    scf.if %2 {
      %cst_33 = arith.constant 0.000000e+00 : f32
      %79 = vector.broadcast %cst_33 : f32 to vector<4x256xf32>
      %c0_34 = arith.constant 0 : index
      %c0_35 = arith.constant 0 : index
      %80 = vector.load %arg6[%c0_34, %c0_35] : memref<4x256xf32, #tpu.memory_space<vmem>>, vector<4x256xf32>
      tpu.vector_store %arg6[%c0_34, %c0_35], %79 {strides = array<i32>} : memref<4x256xf32, #tpu.memory_space<vmem>>, vector<4x256xf32>,
    } else {
    }
    %c0 = arith.constant 0 : index
    %c0_1 = arith.constant 0 : index
    %3 = vector.load %arg4[%c0, %c0_1] : memref<8x1xf32, #tpu.memory_space<vmem>>, vector<8x1xf32>
    %4 = vector.shape_cast %3 : vector<8x1xf32> to vector<8x1xf32>
    %5 = vector.broadcast %4 : vector<8x1xf32> to vector<8x64xf32>
    %c0_2 = arith.constant 0 : index
    %c0_3 = arith.constant 0 : index
    %6 = vector.load %arg3[%c0_2, %c0_3] : memref<9x64xf32, #tpu.memory_space<vmem>>, vector<9x64xf32>
    %c0_4 = arith.constant 0 : index
    %c0_5 = arith.constant 0 : index
    %c0_6 = arith.constant 0 : index
    %7 = vector.load %arg1[%c0_4, %c0_5, %c0_6] : memref<1x4x64xf32, #tpu.memory_space<vmem>>, vector<1x4x64xf32>
    %8 = vector.shape_cast %7 : vector<1x4x64xf32> to vector<4x64xf32>
    %c0_7 = arith.constant 0 : index
    %c128 = arith.constant 128 : index
    %9 = vector.load %arg6[%c0_7, %c128] : memref<4x256xf32, #tpu.memory_space<vmem>>, vector<4x64xf32>
    tpu.vector_store %arg6[%c0_7, %c128], %8 {strides = array<i32>} : memref<4x256xf32, #tpu.memory_space<vmem>>, vector<4x64xf32>,
    %c0_8 = arith.constant 0 : index
    %c0_9 = arith.constant 0 : index
    %c0_10 = arith.constant 0 : index
    %10 = vector.load %arg2[%c0_8, %c0_9, %c0_10] : memref<9x8x4xf32, #tpu.memory_space<vmem>>, vector<9x8x4xf32>
    %c0_11 = arith.constant 0 : index
    %c119 = arith.constant 119 : index
    %11 = vector.load %arg6[%c0_11, %c119] : memref<4x256xf32, #tpu.memory_space<vmem>>, vector<4x64xf32>
    %12 = vector.extract_strided_slice %6 {offsets = [0, 0], sizes = [1, 64], strides = [1, 1]} : vector<9x64xf32> to vector<1x64xf32>
    %13 = vector.broadcast %12 : vector<1x64xf32> to vector<4x64xf32>
    %14 = arith.mulf %11, %13 : vector<4x64xf32>
    %15 = vector.extract_strided_slice %10 {offsets = [0, 0, 0], sizes = [1, 8, 4], strides = [1, 1, 1]} : vector<9x8x4xf32> to vector<1x8x4xf32>
    %16 = vector.shape_cast %15 : vector<1x8x4xf32> to vector<8x4xf32>
    %cst = arith.constant dense<0.000000e+00> : vector<8x64xf32>
    %17 = tpu.matmul %16, %14, %cst {dimension_numbers = #tpu.dot_dimension_numbers<[1], [0], [0], [1], [0, 0, 1, 1], [], []>} : vector<8x4xf32>, vector<4x64xf32>, vector<8x64xf32> -> vector<8x64xf32>
    %18 = arith.addf %5, %17 : vector<8x64xf32>
    %c0_12 = arith.constant 0 : index
    %c120 = arith.constant 120 : index
    %19 = vector.load %arg6[%c0_12, %c120] : memref<4x256xf32, #tpu.memory_space<vmem>>, vector<4x64xf32>
    %20 = vector.extract_strided_slice %10 {offsets = [1, 0, 0], sizes = [1, 8, 4], strides = [1, 1, 1]} : vector<9x8x4xf32> to vector<1x8x4xf32>
    %21 = vector.shape_cast %20 : vector<1x8x4xf32> to vector<8x4xf32>
    %cst_13 = arith.constant dense<0.000000e+00> : vector<8x64xf32>
    %22 = tpu.matmul %21, %19, %cst_13 {dimension_numbers = #tpu.dot_dimension_numbers<[1], [0], [0], [1], [0, 0, 1, 1], [], []>} : vector<8x4xf32>, vector<4x64xf32>, vector<8x64xf32> -> vector<8x64xf32>
    %23 = arith.addf %18, %22 : vector<8x64xf32>
    %c0_14 = arith.constant 0 : index
    %c121 = arith.constant 121 : index
    %24 = vector.load %arg6[%c0_14, %c121] : memref<4x256xf32, #tpu.memory_space<vmem>>, vector<4x64xf32>
    %25 = vector.extract_strided_slice %6 {offsets = [2, 0], sizes = [1, 64], strides = [1, 1]} : vector<9x64xf32> to vector<1x64xf32>
    %26 = vector.broadcast %25 : vector<1x64xf32> to vector<4x64xf32>
    %27 = arith.mulf %24, %26 : vector<4x64xf32>
    %28 = vector.extract_strided_slice %10 {offsets = [2, 0, 0], sizes = [1, 8, 4], strides = [1, 1, 1]} : vector<9x8x4xf32> to vector<1x8x4xf32>
    %29 = vector.shape_cast %28 : vector<1x8x4xf32> to vector<8x4xf32>
    %cst_15 = arith.constant dense<0.000000e+00> : vector<8x64xf32>
    %30 = tpu.matmul %29, %27, %cst_15 {dimension_numbers = #tpu.dot_dimension_numbers<[1], [0], [0], [1], [0, 0, 1, 1], [], []>} : vector<8x4xf32>, vector<4x64xf32>, vector<8x64xf32> -> vector<8x64xf32>
    %31 = arith.addf %23, %30 : vector<8x64xf32>
    %c0_16 = arith.constant 0 : index
    %c127 = arith.constant 127 : index
    %32 = vector.load %arg6[%c0_16, %c127] : memref<4x256xf32, #tpu.memory_space<vmem>>, vector<4x64xf32>
    %33 = vector.extract_strided_slice %6 {offsets = [3, 0], sizes = [1, 64], strides = [1, 1]} : vector<9x64xf32> to vector<1x64xf32>
    %34 = vector.broadcast %33 : vector<1x64xf32> to vector<4x64xf32>
    %35 = arith.mulf %32, %34 : vector<4x64xf32>
    %36 = vector.extract_strided_slice %10 {offsets = [3, 0, 0], sizes = [1, 8, 4], strides = [1, 1, 1]} : vector<9x8x4xf32> to vector<1x8x4xf32>
    %37 = vector.shape_cast %36 : vector<1x8x4xf32> to vector<8x4xf32>
    %cst_17 = arith.constant dense<0.000000e+00> : vector<8x64xf32>
    %38 = tpu.matmul %37, %35, %cst_17 {dimension_numbers = #tpu.dot_dimension_numbers<[1], [0], [0], [1], [0, 0, 1, 1], [], []>} : vector<8x4xf32>, vector<4x64xf32>, vector<8x64xf32> -> vector<8x64xf32>
    %39 = arith.addf %31, %38 : vector<8x64xf32>
    %c0_18 = arith.constant 0 : index
    %c128_19 = arith.constant 128 : index
    %40 = vector.load %arg6[%c0_18, %c128_19] : memref<4x256xf32, #tpu.memory_space<vmem>>, vector<4x64xf32>
    %41 = vector.extract_strided_slice %10 {offsets = [4, 0, 0], sizes = [1, 8, 4], strides = [1, 1, 1]} : vector<9x8x4xf32> to vector<1x8x4xf32>
    %42 = vector.shape_cast %41 : vector<1x8x4xf32> to vector<8x4xf32>
    %cst_20 = arith.constant dense<0.000000e+00> : vector<8x64xf32>
    %43 = tpu.matmul %42, %40, %cst_20 {dimension_numbers = #tpu.dot_dimension_numbers<[1], [0], [0], [1], [0, 0, 1, 1], [], []>} : vector<8x4xf32>, vector<4x64xf32>, vector<8x64xf32> -> vector<8x64xf32>
    %44 = arith.addf %39, %43 : vector<8x64xf32>
    %c0_21 = arith.constant 0 : index
    %c129 = arith.constant 129 : index
    %45 = vector.load %arg6[%c0_21, %c129] : memref<4x256xf32, #tpu.memory_space<vmem>>, vector<4x64xf32>
    %46 = vector.extract_strided_slice %6 {offsets = [5, 0], sizes = [1, 64], strides = [1, 1]} : vector<9x64xf32> to vector<1x64xf32>
    %47 = vector.broadcast %46 : vector<1x64xf32> to vector<4x64xf32>
    %48 = arith.mulf %45, %47 : vector<4x64xf32>
    %49 = vector.extract_strided_slice %10 {offsets = [5, 0, 0], sizes = [1, 8, 4], strides = [1, 1, 1]} : vector<9x8x4xf32> to vector<1x8x4xf32>
    %50 = vector.shape_cast %49 : vector<1x8x4xf32> to vector<8x4xf32>
    %cst_22 = arith.constant dense<0.000000e+00> : vector<8x64xf32>
    %51 = tpu.matmul %50, %48, %cst_22 {dimension_numbers = #tpu.dot_dimension_numbers<[1], [0], [0], [1], [0, 0, 1, 1], [], []>} : vector<8x4xf32>, vector<4x64xf32>, vector<8x64xf32> -> vector<8x64xf32>
    %52 = arith.addf %44, %51 : vector<8x64xf32>
    %c0_23 = arith.constant 0 : index
    %c135 = arith.constant 135 : index
    %53 = vector.load %arg6[%c0_23, %c135] : memref<4x256xf32, #tpu.memory_space<vmem>>, vector<4x64xf32>
    %54 = vector.extract_strided_slice %6 {offsets = [6, 0], sizes = [1, 64], strides = [1, 1]} : vector<9x64xf32> to vector<1x64xf32>
    %55 = vector.broadcast %54 : vector<1x64xf32> to vector<4x64xf32>
    %56 = arith.mulf %53, %55 : vector<4x64xf32>
    %57 = vector.extract_strided_slice %10 {offsets = [6, 0, 0], sizes = [1, 8, 4], strides = [1, 1, 1]} : vector<9x8x4xf32> to vector<1x8x4xf32>
    %58 = vector.shape_cast %57 : vector<1x8x4xf32> to vector<8x4xf32>
    %cst_24 = arith.constant dense<0.000000e+00> : vector<8x64xf32>
    %59 = tpu.matmul %58, %56, %cst_24 {dimension_numbers = #tpu.dot_dimension_numbers<[1], [0], [0], [1], [0, 0, 1, 1], [], []>} : vector<8x4xf32>, vector<4x64xf32>, vector<8x64xf32> -> vector<8x64xf32>
    %60 = arith.addf %52, %59 : vector<8x64xf32>
    %c0_25 = arith.constant 0 : index
    %c136 = arith.constant 136 : index
    %61 = vector.load %arg6[%c0_25, %c136] : memref<4x256xf32, #tpu.memory_space<vmem>>, vector<4x64xf32>
    %62 = vector.extract_strided_slice %10 {offsets = [7, 0, 0], sizes = [1, 8, 4], strides = [1, 1, 1]} : vector<9x8x4xf32> to vector<1x8x4xf32>
    %63 = vector.shape_cast %62 : vector<1x8x4xf32> to vector<8x4xf32>
    %cst_26 = arith.constant dense<0.000000e+00> : vector<8x64xf32>
    %64 = tpu.matmul %63, %61, %cst_26 {dimension_numbers = #tpu.dot_dimension_numbers<[1], [0], [0], [1], [0, 0, 1, 1], [], []>} : vector<8x4xf32>, vector<4x64xf32>, vector<8x64xf32> -> vector<8x64xf32>
    %65 = arith.addf %60, %64 : vector<8x64xf32>
    %c0_27 = arith.constant 0 : index
    %c137 = arith.constant 137 : index
    %66 = vector.load %arg6[%c0_27, %c137] : memref<4x256xf32, #tpu.memory_space<vmem>>, vector<4x64xf32>
    %67 = vector.extract_strided_slice %6 {offsets = [8, 0], sizes = [1, 64], strides = [1, 1]} : vector<9x64xf32> to vector<1x64xf32>
    %68 = vector.broadcast %67 : vector<1x64xf32> to vector<4x64xf32>
    %69 = arith.mulf %66, %68 : vector<4x64xf32>
    %70 = vector.extract_strided_slice %10 {offsets = [8, 0, 0], sizes = [1, 8, 4], strides = [1, 1, 1]} : vector<9x8x4xf32> to vector<1x8x4xf32>
    %71 = vector.shape_cast %70 : vector<1x8x4xf32> to vector<8x4xf32>
    %cst_28 = arith.constant dense<0.000000e+00> : vector<8x64xf32>
    %72 = tpu.matmul %71, %69, %cst_28 {dimension_numbers = #tpu.dot_dimension_numbers<[1], [0], [0], [1], [0, 0, 1, 1], [], []>} : vector<8x4xf32>, vector<4x64xf32>, vector<8x64xf32> -> vector<8x64xf32>
    %73 = arith.addf %65, %72 : vector<8x64xf32>
    %cst_29 = arith.constant 0.000000e+00 : f32
    %74 = vector.broadcast %cst_29 : f32 to vector<8x64xf32>
    %75 = arith.maximumf %73, %74 : vector<8x64xf32>
    %c0_30 = arith.constant 0 : index
    %c0_31 = arith.constant 0 : index
    %c0_32 = arith.constant 0 : index
    %76 = vector.load %arg5[%c0_30, %c0_31, %c0_32] : memref<1x8x64xf32, #tpu.memory_space<vmem>>, vector<1x8x64xf32>
    %77 = vector.shape_cast %76 : vector<1x8x64xf32> to vector<8x64xf32>
    %78 = vector.shape_cast %75 : vector<8x64xf32> to vector<1x8x64xf32>
    tpu.vector_store %arg5[%c0_30, %c0_31, %c0_32], %78 {strides = array<i32>} : memref<1x8x64xf32, #tpu.memory_space<vmem>>, vector<1x8x64xf32>,
    return
  }
  func.func @transform_0(%arg0: i32) -> (i32, i32, i32) {
    %c0_i32 = arith.constant 0 : i32
    %c0_i32_0 = arith.constant 0 : i32
    %c0_i32_1 = arith.constant 0 : i32
    return %arg0, %c0_i32, %c0_i32_0 : i32, i32, i32
  }
  func.func @transform_1(%arg0: i32) -> (i32, i32, i32) {
    %c0_i32 = arith.constant 0 : i32
    %c0_i32_0 = arith.constant 0 : i32
    %c0_i32_1 = arith.constant 0 : i32
    %c0_i32_2 = arith.constant 0 : i32
    return %c0_i32, %c0_i32_0, %c0_i32_1 : i32, i32, i32
  }
  func.func @transform_2(%arg0: i32) -> (i32, i32) {
    %c0_i32 = arith.constant 0 : i32
    %c0_i32_0 = arith.constant 0 : i32
    %c0_i32_1 = arith.constant 0 : i32
    return %c0_i32, %c0_i32_0 : i32, i32
  }
  func.func @transform_3(%arg0: i32) -> (i32, i32) {
    %c0_i32 = arith.constant 0 : i32
    %c0_i32_0 = arith.constant 0 : i32
    %c0_i32_1 = arith.constant 0 : i32
    return %c0_i32, %c0_i32_0 : i32, i32
  }
  func.func @transform_4(%arg0: i32) -> (i32, i32, i32) {
    %c0_i32 = arith.constant 0 : i32
    %c0_i32_0 = arith.constant 0 : i32
    %c0_i32_1 = arith.constant 0 : i32
    return %arg0, %c0_i32, %c0_i32_0 : i32, i32, i32
  }
}

module attributes {stable_mosaic.version = 11 : i64} {
  func.func @kernel(%arg0: i32, %arg1: memref<1x8x64xf32, #tpu.memory_space<vmem>>, %arg2: memref<64x256xf32, #tpu.memory_space<vmem>>, %arg3: memref<9x8x8xf32, #tpu.memory_space<vmem>>, %arg4: memref<1x8x64xf32, #tpu.memory_space<vmem>>, %arg5: memref<64x256xf32, #tpu.memory_space<vmem>>, %arg6: memref<9x8x8xf32, #tpu.memory_space<vmem>>, %arg7: memref<9x256xf32, #tpu.memory_space<vmem>>, %arg8: memref<8x1xf32, #tpu.memory_space<vmem>>, %arg9: memref<1x8x256xf32, #tpu.memory_space<vmem>>, %arg10: memref<8x512xf32, #tpu.memory_space<vmem>>) attributes {dimension_semantics = [#tpu.dimension_semantics<parallel>], iteration_bounds = array<i64: 2>, scalar_prefetch = 0 : i64, scratch_operands = 1 : i64, tpu.core_type = #tpu.core_type<tc>, window_params = [{transform_indices = @transform_0, window_bounds = array<i64: 1, 8, 64>}, {pipeline_mode = #tpu.pipeline_mode<synchronous>, transform_indices = @transform_1, window_bounds = array<i64: 64, 256>}, {pipeline_mode = #tpu.pipeline_mode<synchronous>, transform_indices = @transform_2, window_bounds = array<i64: 9, 8, 8>}, {transform_indices = @transform_3, window_bounds = array<i64: 1, 8, 64>}, {pipeline_mode = #tpu.pipeline_mode<synchronous>, transform_indices = @transform_4, window_bounds = array<i64: 64, 256>}, {pipeline_mode = #tpu.pipeline_mode<synchronous>, transform_indices = @transform_5, window_bounds = array<i64: 9, 8, 8>}, {pipeline_mode = #tpu.pipeline_mode<synchronous>, transform_indices = @transform_6, window_bounds = array<i64: 9, 256>}, {pipeline_mode = #tpu.pipeline_mode<synchronous>, transform_indices = @transform_7, window_bounds = array<i64: 8, 1>}, {transform_indices = @transform_8, window_bounds = array<i64: 1, 8, 256>}]} {
    %c0_i32 = arith.constant 0 : i32
    %0 = arith.cmpi eq, %arg0, %c0_i32 : i32
    %1 = arith.extui %0 : i1 to i32
    %c0_i32_0 = arith.constant 0 : i32
    %2 = arith.cmpi ne, %1, %c0_i32_0 : i32
    scf.if %2 {
      %cst_74 = arith.constant 0.000000e+00 : f32
      %150 = vector.broadcast %cst_74 : f32 to vector<8x512xf32>
      %c0_75 = arith.constant 0 : index
      %c0_76 = arith.constant 0 : index
      %151 = vector.load %arg10[%c0_75, %c0_76] : memref<8x512xf32, #tpu.memory_space<vmem>>, vector<8x512xf32>
      tpu.vector_store %arg10[%c0_75, %c0_76], %150 {strides = array<i32>} : memref<8x512xf32, #tpu.memory_space<vmem>>, vector<8x512xf32>,
    } else {
    }
    %c0 = arith.constant 0 : index
    %c0_1 = arith.constant 0 : index
    %3 = vector.load %arg8[%c0, %c0_1] : memref<8x1xf32, #tpu.memory_space<vmem>>, vector<8x1xf32>
    %4 = vector.shape_cast %3 : vector<8x1xf32> to vector<8x1xf32>
    %5 = vector.broadcast %4 : vector<8x1xf32> to vector<8x256xf32>
    %c0_2 = arith.constant 0 : index
    %c0_3 = arith.constant 0 : index
    %6 = vector.load %arg7[%c0_2, %c0_3] : memref<9x256xf32, #tpu.memory_space<vmem>>, vector<9x256xf32>
    %c0_4 = arith.constant 0 : index
    %c0_5 = arith.constant 0 : index
    %c0_6 = arith.constant 0 : index
    %7 = vector.load %arg1[%c0_4, %c0_5, %c0_6] : memref<1x8x64xf32, #tpu.memory_space<vmem>>, vector<1x8x64xf32>
    %8 = vector.shape_cast %7 : vector<1x8x64xf32> to vector<8x64xf32>
    %c0_7 = arith.constant 0 : index
    %c0_8 = arith.constant 0 : index
    %9 = vector.load %arg2[%c0_7, %c0_8] : memref<64x256xf32, #tpu.memory_space<vmem>>, vector<64x256xf32>
    %cst = arith.constant dense<0.000000e+00> : vector<8x256xf32>
    %10 = tpu.matmul %8, %9, %cst {dimension_numbers = #tpu.dot_dimension_numbers<[1], [0], [0], [1], [0, 0, 1, 1], [], []>} : vector<8x64xf32>, vector<64x256xf32>, vector<8x256xf32> -> vector<8x256xf32>
    %c0_9 = arith.constant 0 : index
    %c128 = arith.constant 128 : index
    %11 = vector.load %arg10[%c0_9, %c128] : memref<8x512xf32, #tpu.memory_space<vmem>>, vector<8x256xf32>
    tpu.vector_store %arg10[%c0_9, %c128], %10 {strides = array<i32>} : memref<8x512xf32, #tpu.memory_space<vmem>>, vector<8x256xf32>,
    %c0_10 = arith.constant 0 : index
    %c0_11 = arith.constant 0 : index
    %c0_12 = arith.constant 0 : index
    %12 = vector.load %arg3[%c0_10, %c0_11, %c0_12] : memref<9x8x8xf32, #tpu.memory_space<vmem>>, vector<9x8x8xf32>
    %c0_13 = arith.constant 0 : index
    %c111 = arith.constant 111 : index
    %13 = vector.load %arg10[%c0_13, %c111] : memref<8x512xf32, #tpu.memory_space<vmem>>, vector<8x256xf32>
    %14 = vector.extract_strided_slice %6 {offsets = [0, 0], sizes = [1, 256], strides = [1, 1]} : vector<9x256xf32> to vector<1x256xf32>
    %15 = vector.broadcast %14 : vector<1x256xf32> to vector<8x256xf32>
    %16 = arith.mulf %13, %15 : vector<8x256xf32>
    %17 = vector.extract_strided_slice %12 {offsets = [0, 0, 0], sizes = [1, 8, 8], strides = [1, 1, 1]} : vector<9x8x8xf32> to vector<1x8x8xf32>
    %18 = vector.shape_cast %17 : vector<1x8x8xf32> to vector<8x8xf32>
    %cst_14 = arith.constant dense<0.000000e+00> : vector<8x256xf32>
    %19 = tpu.matmul %18, %16, %cst_14 {dimension_numbers = #tpu.dot_dimension_numbers<[1], [0], [0], [1], [0, 0, 1, 1], [], []>} : vector<8x8xf32>, vector<8x256xf32>, vector<8x256xf32> -> vector<8x256xf32>
    %20 = arith.addf %5, %19 : vector<8x256xf32>
    %c0_15 = arith.constant 0 : index
    %c112 = arith.constant 112 : index
    %21 = vector.load %arg10[%c0_15, %c112] : memref<8x512xf32, #tpu.memory_space<vmem>>, vector<8x256xf32>
    %22 = vector.extract_strided_slice %12 {offsets = [1, 0, 0], sizes = [1, 8, 8], strides = [1, 1, 1]} : vector<9x8x8xf32> to vector<1x8x8xf32>
    %23 = vector.shape_cast %22 : vector<1x8x8xf32> to vector<8x8xf32>
    %cst_16 = arith.constant dense<0.000000e+00> : vector<8x256xf32>
    %24 = tpu.matmul %23, %21, %cst_16 {dimension_numbers = #tpu.dot_dimension_numbers<[1], [0], [0], [1], [0, 0, 1, 1], [], []>} : vector<8x8xf32>, vector<8x256xf32>, vector<8x256xf32> -> vector<8x256xf32>
    %25 = arith.addf %20, %24 : vector<8x256xf32>
    %c0_17 = arith.constant 0 : index
    %c113 = arith.constant 113 : index
    %26 = vector.load %arg10[%c0_17, %c113] : memref<8x512xf32, #tpu.memory_space<vmem>>, vector<8x256xf32>
    %27 = vector.extract_strided_slice %6 {offsets = [2, 0], sizes = [1, 256], strides = [1, 1]} : vector<9x256xf32> to vector<1x256xf32>
    %28 = vector.broadcast %27 : vector<1x256xf32> to vector<8x256xf32>
    %29 = arith.mulf %26, %28 : vector<8x256xf32>
    %30 = vector.extract_strided_slice %12 {offsets = [2, 0, 0], sizes = [1, 8, 8], strides = [1, 1, 1]} : vector<9x8x8xf32> to vector<1x8x8xf32>
    %31 = vector.shape_cast %30 : vector<1x8x8xf32> to vector<8x8xf32>
    %cst_18 = arith.constant dense<0.000000e+00> : vector<8x256xf32>
    %32 = tpu.matmul %31, %29, %cst_18 {dimension_numbers = #tpu.dot_dimension_numbers<[1], [0], [0], [1], [0, 0, 1, 1], [], []>} : vector<8x8xf32>, vector<8x256xf32>, vector<8x256xf32> -> vector<8x256xf32>
    %33 = arith.addf %25, %32 : vector<8x256xf32>
    %c0_19 = arith.constant 0 : index
    %c127 = arith.constant 127 : index
    %34 = vector.load %arg10[%c0_19, %c127] : memref<8x512xf32, #tpu.memory_space<vmem>>, vector<8x256xf32>
    %35 = vector.extract_strided_slice %6 {offsets = [3, 0], sizes = [1, 256], strides = [1, 1]} : vector<9x256xf32> to vector<1x256xf32>
    %36 = vector.broadcast %35 : vector<1x256xf32> to vector<8x256xf32>
    %37 = arith.mulf %34, %36 : vector<8x256xf32>
    %38 = vector.extract_strided_slice %12 {offsets = [3, 0, 0], sizes = [1, 8, 8], strides = [1, 1, 1]} : vector<9x8x8xf32> to vector<1x8x8xf32>
    %39 = vector.shape_cast %38 : vector<1x8x8xf32> to vector<8x8xf32>
    %cst_20 = arith.constant dense<0.000000e+00> : vector<8x256xf32>
    %40 = tpu.matmul %39, %37, %cst_20 {dimension_numbers = #tpu.dot_dimension_numbers<[1], [0], [0], [1], [0, 0, 1, 1], [], []>} : vector<8x8xf32>, vector<8x256xf32>, vector<8x256xf32> -> vector<8x256xf32>
    %41 = arith.addf %33, %40 : vector<8x256xf32>
    %c0_21 = arith.constant 0 : index
    %c128_22 = arith.constant 128 : index
    %42 = vector.load %arg10[%c0_21, %c128_22] : memref<8x512xf32, #tpu.memory_space<vmem>>, vector<8x256xf32>
    %43 = vector.extract_strided_slice %12 {offsets = [4, 0, 0], sizes = [1, 8, 8], strides = [1, 1, 1]} : vector<9x8x8xf32> to vector<1x8x8xf32>
    %44 = vector.shape_cast %43 : vector<1x8x8xf32> to vector<8x8xf32>
    %cst_23 = arith.constant dense<0.000000e+00> : vector<8x256xf32>
    %45 = tpu.matmul %44, %42, %cst_23 {dimension_numbers = #tpu.dot_dimension_numbers<[1], [0], [0], [1], [0, 0, 1, 1], [], []>} : vector<8x8xf32>, vector<8x256xf32>, vector<8x256xf32> -> vector<8x256xf32>
    %46 = arith.addf %41, %45 : vector<8x256xf32>
    %c0_24 = arith.constant 0 : index
    %c129 = arith.constant 129 : index
    %47 = vector.load %arg10[%c0_24, %c129] : memref<8x512xf32, #tpu.memory_space<vmem>>, vector<8x256xf32>
    %48 = vector.extract_strided_slice %6 {offsets = [5, 0], sizes = [1, 256], strides = [1, 1]} : vector<9x256xf32> to vector<1x256xf32>
    %49 = vector.broadcast %48 : vector<1x256xf32> to vector<8x256xf32>
    %50 = arith.mulf %47, %49 : vector<8x256xf32>
    %51 = vector.extract_strided_slice %12 {offsets = [5, 0, 0], sizes = [1, 8, 8], strides = [1, 1, 1]} : vector<9x8x8xf32> to vector<1x8x8xf32>
    %52 = vector.shape_cast %51 : vector<1x8x8xf32> to vector<8x8xf32>
    %cst_25 = arith.constant dense<0.000000e+00> : vector<8x256xf32>
    %53 = tpu.matmul %52, %50, %cst_25 {dimension_numbers = #tpu.dot_dimension_numbers<[1], [0], [0], [1], [0, 0, 1, 1], [], []>} : vector<8x8xf32>, vector<8x256xf32>, vector<8x256xf32> -> vector<8x256xf32>
    %54 = arith.addf %46, %53 : vector<8x256xf32>
    %c0_26 = arith.constant 0 : index
    %c143 = arith.constant 143 : index
    %55 = vector.load %arg10[%c0_26, %c143] : memref<8x512xf32, #tpu.memory_space<vmem>>, vector<8x256xf32>
    %56 = vector.extract_strided_slice %6 {offsets = [6, 0], sizes = [1, 256], strides = [1, 1]} : vector<9x256xf32> to vector<1x256xf32>
    %57 = vector.broadcast %56 : vector<1x256xf32> to vector<8x256xf32>
    %58 = arith.mulf %55, %57 : vector<8x256xf32>
    %59 = vector.extract_strided_slice %12 {offsets = [6, 0, 0], sizes = [1, 8, 8], strides = [1, 1, 1]} : vector<9x8x8xf32> to vector<1x8x8xf32>
    %60 = vector.shape_cast %59 : vector<1x8x8xf32> to vector<8x8xf32>
    %cst_27 = arith.constant dense<0.000000e+00> : vector<8x256xf32>
    %61 = tpu.matmul %60, %58, %cst_27 {dimension_numbers = #tpu.dot_dimension_numbers<[1], [0], [0], [1], [0, 0, 1, 1], [], []>} : vector<8x8xf32>, vector<8x256xf32>, vector<8x256xf32> -> vector<8x256xf32>
    %62 = arith.addf %54, %61 : vector<8x256xf32>
    %c0_28 = arith.constant 0 : index
    %c144 = arith.constant 144 : index
    %63 = vector.load %arg10[%c0_28, %c144] : memref<8x512xf32, #tpu.memory_space<vmem>>, vector<8x256xf32>
    %64 = vector.extract_strided_slice %12 {offsets = [7, 0, 0], sizes = [1, 8, 8], strides = [1, 1, 1]} : vector<9x8x8xf32> to vector<1x8x8xf32>
    %65 = vector.shape_cast %64 : vector<1x8x8xf32> to vector<8x8xf32>
    %cst_29 = arith.constant dense<0.000000e+00> : vector<8x256xf32>
    %66 = tpu.matmul %65, %63, %cst_29 {dimension_numbers = #tpu.dot_dimension_numbers<[1], [0], [0], [1], [0, 0, 1, 1], [], []>} : vector<8x8xf32>, vector<8x256xf32>, vector<8x256xf32> -> vector<8x256xf32>
    %67 = arith.addf %62, %66 : vector<8x256xf32>
    %c0_30 = arith.constant 0 : index
    %c145 = arith.constant 145 : index
    %68 = vector.load %arg10[%c0_30, %c145] : memref<8x512xf32, #tpu.memory_space<vmem>>, vector<8x256xf32>
    %69 = vector.extract_strided_slice %6 {offsets = [8, 0], sizes = [1, 256], strides = [1, 1]} : vector<9x256xf32> to vector<1x256xf32>
    %70 = vector.broadcast %69 : vector<1x256xf32> to vector<8x256xf32>
    %71 = arith.mulf %68, %70 : vector<8x256xf32>
    %72 = vector.extract_strided_slice %12 {offsets = [8, 0, 0], sizes = [1, 8, 8], strides = [1, 1, 1]} : vector<9x8x8xf32> to vector<1x8x8xf32>
    %73 = vector.shape_cast %72 : vector<1x8x8xf32> to vector<8x8xf32>
    %cst_31 = arith.constant dense<0.000000e+00> : vector<8x256xf32>
    %74 = tpu.matmul %73, %71, %cst_31 {dimension_numbers = #tpu.dot_dimension_numbers<[1], [0], [0], [1], [0, 0, 1, 1], [], []>} : vector<8x8xf32>, vector<8x256xf32>, vector<8x256xf32> -> vector<8x256xf32>
    %75 = arith.addf %67, %74 : vector<8x256xf32>
    %c0_32 = arith.constant 0 : index
    %c0_33 = arith.constant 0 : index
    %c0_34 = arith.constant 0 : index
    %76 = vector.load %arg4[%c0_32, %c0_33, %c0_34] : memref<1x8x64xf32, #tpu.memory_space<vmem>>, vector<1x8x64xf32>
    %77 = vector.shape_cast %76 : vector<1x8x64xf32> to vector<8x64xf32>
    %c0_35 = arith.constant 0 : index
    %c0_36 = arith.constant 0 : index
    %78 = vector.load %arg5[%c0_35, %c0_36] : memref<64x256xf32, #tpu.memory_space<vmem>>, vector<64x256xf32>
    %cst_37 = arith.constant dense<0.000000e+00> : vector<8x256xf32>
    %79 = tpu.matmul %77, %78, %cst_37 {dimension_numbers = #tpu.dot_dimension_numbers<[1], [0], [0], [1], [0, 0, 1, 1], [], []>} : vector<8x64xf32>, vector<64x256xf32>, vector<8x256xf32> -> vector<8x256xf32>
    %c0_38 = arith.constant 0 : index
    %c128_39 = arith.constant 128 : index
    %80 = vector.load %arg10[%c0_38, %c128_39] : memref<8x512xf32, #tpu.memory_space<vmem>>, vector<8x256xf32>
    tpu.vector_store %arg10[%c0_38, %c128_39], %79 {strides = array<i32>} : memref<8x512xf32, #tpu.memory_space<vmem>>, vector<8x256xf32>,
    %c0_40 = arith.constant 0 : index
    %c0_41 = arith.constant 0 : index
    %c0_42 = arith.constant 0 : index
    %81 = vector.load %arg6[%c0_40, %c0_41, %c0_42] : memref<9x8x8xf32, #tpu.memory_space<vmem>>, vector<9x8x8xf32>
    %c0_43 = arith.constant 0 : index
    %c111_44 = arith.constant 111 : index
    %82 = vector.load %arg10[%c0_43, %c111_44] : memref<8x512xf32, #tpu.memory_space<vmem>>, vector<8x256xf32>
    %83 = vector.extract_strided_slice %6 {offsets = [0, 0], sizes = [1, 256], strides = [1, 1]} : vector<9x256xf32> to vector<1x256xf32>
    %84 = vector.broadcast %83 : vector<1x256xf32> to vector<8x256xf32>
    %85 = arith.mulf %82, %84 : vector<8x256xf32>
    %86 = vector.extract_strided_slice %81 {offsets = [0, 0, 0], sizes = [1, 8, 8], strides = [1, 1, 1]} : vector<9x8x8xf32> to vector<1x8x8xf32>
    %87 = vector.shape_cast %86 : vector<1x8x8xf32> to vector<8x8xf32>
    %cst_45 = arith.constant dense<0.000000e+00> : vector<8x256xf32>
    %88 = tpu.matmul %87, %85, %cst_45 {dimension_numbers = #tpu.dot_dimension_numbers<[1], [0], [0], [1], [0, 0, 1, 1], [], []>} : vector<8x8xf32>, vector<8x256xf32>, vector<8x256xf32> -> vector<8x256xf32>
    %89 = arith.addf %75, %88 : vector<8x256xf32>
    %c0_46 = arith.constant 0 : index
    %c112_47 = arith.constant 112 : index
    %90 = vector.load %arg10[%c0_46, %c112_47] : memref<8x512xf32, #tpu.memory_space<vmem>>, vector<8x256xf32>
    %91 = vector.extract_strided_slice %81 {offsets = [1, 0, 0], sizes = [1, 8, 8], strides = [1, 1, 1]} : vector<9x8x8xf32> to vector<1x8x8xf32>
    %92 = vector.shape_cast %91 : vector<1x8x8xf32> to vector<8x8xf32>
    %cst_48 = arith.constant dense<0.000000e+00> : vector<8x256xf32>
    %93 = tpu.matmul %92, %90, %cst_48 {dimension_numbers = #tpu.dot_dimension_numbers<[1], [0], [0], [1], [0, 0, 1, 1], [], []>} : vector<8x8xf32>, vector<8x256xf32>, vector<8x256xf32> -> vector<8x256xf32>
    %94 = arith.addf %89, %93 : vector<8x256xf32>
    %c0_49 = arith.constant 0 : index
    %c113_50 = arith.constant 113 : index
    %95 = vector.load %arg10[%c0_49, %c113_50] : memref<8x512xf32, #tpu.memory_space<vmem>>, vector<8x256xf32>
    %96 = vector.extract_strided_slice %6 {offsets = [2, 0], sizes = [1, 256], strides = [1, 1]} : vector<9x256xf32> to vector<1x256xf32>
    %97 = vector.broadcast %96 : vector<1x256xf32> to vector<8x256xf32>
    %98 = arith.mulf %95, %97 : vector<8x256xf32>
    %99 = vector.extract_strided_slice %81 {offsets = [2, 0, 0], sizes = [1, 8, 8], strides = [1, 1, 1]} : vector<9x8x8xf32> to vector<1x8x8xf32>
    %100 = vector.shape_cast %99 : vector<1x8x8xf32> to vector<8x8xf32>
    %cst_51 = arith.constant dense<0.000000e+00> : vector<8x256xf32>
    %101 = tpu.matmul %100, %98, %cst_51 {dimension_numbers = #tpu.dot_dimension_numbers<[1], [0], [0], [1], [0, 0, 1, 1], [], []>} : vector<8x8xf32>, vector<8x256xf32>, vector<8x256xf32> -> vector<8x256xf32>
    %102 = arith.addf %94, %101 : vector<8x256xf32>
    %c0_52 = arith.constant 0 : index
    %c127_53 = arith.constant 127 : index
    %103 = vector.load %arg10[%c0_52, %c127_53] : memref<8x512xf32, #tpu.memory_space<vmem>>, vector<8x256xf32>
    %104 = vector.extract_strided_slice %6 {offsets = [3, 0], sizes = [1, 256], strides = [1, 1]} : vector<9x256xf32> to vector<1x256xf32>
    %105 = vector.broadcast %104 : vector<1x256xf32> to vector<8x256xf32>
    %106 = arith.mulf %103, %105 : vector<8x256xf32>
    %107 = vector.extract_strided_slice %81 {offsets = [3, 0, 0], sizes = [1, 8, 8], strides = [1, 1, 1]} : vector<9x8x8xf32> to vector<1x8x8xf32>
    %108 = vector.shape_cast %107 : vector<1x8x8xf32> to vector<8x8xf32>
    %cst_54 = arith.constant dense<0.000000e+00> : vector<8x256xf32>
    %109 = tpu.matmul %108, %106, %cst_54 {dimension_numbers = #tpu.dot_dimension_numbers<[1], [0], [0], [1], [0, 0, 1, 1], [], []>} : vector<8x8xf32>, vector<8x256xf32>, vector<8x256xf32> -> vector<8x256xf32>
    %110 = arith.addf %102, %109 : vector<8x256xf32>
    %c0_55 = arith.constant 0 : index
    %c128_56 = arith.constant 128 : index
    %111 = vector.load %arg10[%c0_55, %c128_56] : memref<8x512xf32, #tpu.memory_space<vmem>>, vector<8x256xf32>
    %112 = vector.extract_strided_slice %81 {offsets = [4, 0, 0], sizes = [1, 8, 8], strides = [1, 1, 1]} : vector<9x8x8xf32> to vector<1x8x8xf32>
    %113 = vector.shape_cast %112 : vector<1x8x8xf32> to vector<8x8xf32>
    %cst_57 = arith.constant dense<0.000000e+00> : vector<8x256xf32>
    %114 = tpu.matmul %113, %111, %cst_57 {dimension_numbers = #tpu.dot_dimension_numbers<[1], [0], [0], [1], [0, 0, 1, 1], [], []>} : vector<8x8xf32>, vector<8x256xf32>, vector<8x256xf32> -> vector<8x256xf32>
    %115 = arith.addf %110, %114 : vector<8x256xf32>
    %c0_58 = arith.constant 0 : index
    %c129_59 = arith.constant 129 : index
    %116 = vector.load %arg10[%c0_58, %c129_59] : memref<8x512xf32, #tpu.memory_space<vmem>>, vector<8x256xf32>
    %117 = vector.extract_strided_slice %6 {offsets = [5, 0], sizes = [1, 256], strides = [1, 1]} : vector<9x256xf32> to vector<1x256xf32>
    %118 = vector.broadcast %117 : vector<1x256xf32> to vector<8x256xf32>
    %119 = arith.mulf %116, %118 : vector<8x256xf32>
    %120 = vector.extract_strided_slice %81 {offsets = [5, 0, 0], sizes = [1, 8, 8], strides = [1, 1, 1]} : vector<9x8x8xf32> to vector<1x8x8xf32>
    %121 = vector.shape_cast %120 : vector<1x8x8xf32> to vector<8x8xf32>
    %cst_60 = arith.constant dense<0.000000e+00> : vector<8x256xf32>
    %122 = tpu.matmul %121, %119, %cst_60 {dimension_numbers = #tpu.dot_dimension_numbers<[1], [0], [0], [1], [0, 0, 1, 1], [], []>} : vector<8x8xf32>, vector<8x256xf32>, vector<8x256xf32> -> vector<8x256xf32>
    %123 = arith.addf %115, %122 : vector<8x256xf32>
    %c0_61 = arith.constant 0 : index
    %c143_62 = arith.constant 143 : index
    %124 = vector.load %arg10[%c0_61, %c143_62] : memref<8x512xf32, #tpu.memory_space<vmem>>, vector<8x256xf32>
    %125 = vector.extract_strided_slice %6 {offsets = [6, 0], sizes = [1, 256], strides = [1, 1]} : vector<9x256xf32> to vector<1x256xf32>
    %126 = vector.broadcast %125 : vector<1x256xf32> to vector<8x256xf32>
    %127 = arith.mulf %124, %126 : vector<8x256xf32>
    %128 = vector.extract_strided_slice %81 {offsets = [6, 0, 0], sizes = [1, 8, 8], strides = [1, 1, 1]} : vector<9x8x8xf32> to vector<1x8x8xf32>
    %129 = vector.shape_cast %128 : vector<1x8x8xf32> to vector<8x8xf32>
    %cst_63 = arith.constant dense<0.000000e+00> : vector<8x256xf32>
    %130 = tpu.matmul %129, %127, %cst_63 {dimension_numbers = #tpu.dot_dimension_numbers<[1], [0], [0], [1], [0, 0, 1, 1], [], []>} : vector<8x8xf32>, vector<8x256xf32>, vector<8x256xf32> -> vector<8x256xf32>
    %131 = arith.addf %123, %130 : vector<8x256xf32>
    %c0_64 = arith.constant 0 : index
    %c144_65 = arith.constant 144 : index
    %132 = vector.load %arg10[%c0_64, %c144_65] : memref<8x512xf32, #tpu.memory_space<vmem>>, vector<8x256xf32>
    %133 = vector.extract_strided_slice %81 {offsets = [7, 0, 0], sizes = [1, 8, 8], strides = [1, 1, 1]} : vector<9x8x8xf32> to vector<1x8x8xf32>
    %134 = vector.shape_cast %133 : vector<1x8x8xf32> to vector<8x8xf32>
    %cst_66 = arith.constant dense<0.000000e+00> : vector<8x256xf32>
    %135 = tpu.matmul %134, %132, %cst_66 {dimension_numbers = #tpu.dot_dimension_numbers<[1], [0], [0], [1], [0, 0, 1, 1], [], []>} : vector<8x8xf32>, vector<8x256xf32>, vector<8x256xf32> -> vector<8x256xf32>
    %136 = arith.addf %131, %135 : vector<8x256xf32>
    %c0_67 = arith.constant 0 : index
    %c145_68 = arith.constant 145 : index
    %137 = vector.load %arg10[%c0_67, %c145_68] : memref<8x512xf32, #tpu.memory_space<vmem>>, vector<8x256xf32>
    %138 = vector.extract_strided_slice %6 {offsets = [8, 0], sizes = [1, 256], strides = [1, 1]} : vector<9x256xf32> to vector<1x256xf32>
    %139 = vector.broadcast %138 : vector<1x256xf32> to vector<8x256xf32>
    %140 = arith.mulf %137, %139 : vector<8x256xf32>
    %141 = vector.extract_strided_slice %81 {offsets = [8, 0, 0], sizes = [1, 8, 8], strides = [1, 1, 1]} : vector<9x8x8xf32> to vector<1x8x8xf32>
    %142 = vector.shape_cast %141 : vector<1x8x8xf32> to vector<8x8xf32>
    %cst_69 = arith.constant dense<0.000000e+00> : vector<8x256xf32>
    %143 = tpu.matmul %142, %140, %cst_69 {dimension_numbers = #tpu.dot_dimension_numbers<[1], [0], [0], [1], [0, 0, 1, 1], [], []>} : vector<8x8xf32>, vector<8x256xf32>, vector<8x256xf32> -> vector<8x256xf32>
    %144 = arith.addf %136, %143 : vector<8x256xf32>
    %cst_70 = arith.constant 0.000000e+00 : f32
    %145 = vector.broadcast %cst_70 : f32 to vector<8x256xf32>
    %146 = arith.maximumf %144, %145 : vector<8x256xf32>
    %c0_71 = arith.constant 0 : index
    %c0_72 = arith.constant 0 : index
    %c0_73 = arith.constant 0 : index
    %147 = vector.load %arg9[%c0_71, %c0_72, %c0_73] : memref<1x8x256xf32, #tpu.memory_space<vmem>>, vector<1x8x256xf32>
    %148 = vector.shape_cast %147 : vector<1x8x256xf32> to vector<8x256xf32>
    %149 = vector.shape_cast %146 : vector<8x256xf32> to vector<1x8x256xf32>
    tpu.vector_store %arg9[%c0_71, %c0_72, %c0_73], %149 {strides = array<i32>} : memref<1x8x256xf32, #tpu.memory_space<vmem>>, vector<1x8x256xf32>,
    return
  }
  func.func @transform_0(%arg0: i32) -> (i32, i32, i32) {
    %c0_i32 = arith.constant 0 : i32
    %c0_i32_0 = arith.constant 0 : i32
    %c0_i32_1 = arith.constant 0 : i32
    return %arg0, %c0_i32, %c0_i32_0 : i32, i32, i32
  }
  func.func @transform_1(%arg0: i32) -> (i32, i32) {
    %c0_i32 = arith.constant 0 : i32
    %c0_i32_0 = arith.constant 0 : i32
    %c0_i32_1 = arith.constant 0 : i32
    return %c0_i32, %c0_i32_0 : i32, i32
  }
  func.func @transform_2(%arg0: i32) -> (i32, i32, i32) {
    %c0_i32 = arith.constant 0 : i32
    %c0_i32_0 = arith.constant 0 : i32
    %c0_i32_1 = arith.constant 0 : i32
    %c0_i32_2 = arith.constant 0 : i32
    return %c0_i32, %c0_i32_0, %c0_i32_1 : i32, i32, i32
  }
  func.func @transform_3(%arg0: i32) -> (i32, i32, i32) {
    %c0_i32 = arith.constant 0 : i32
    %c0_i32_0 = arith.constant 0 : i32
    %c0_i32_1 = arith.constant 0 : i32
    return %arg0, %c0_i32, %c0_i32_0 : i32, i32, i32
  }
  func.func @transform_4(%arg0: i32) -> (i32, i32) {
    %c0_i32 = arith.constant 0 : i32
    %c0_i32_0 = arith.constant 0 : i32
    %c0_i32_1 = arith.constant 0 : i32
    return %c0_i32, %c0_i32_0 : i32, i32
  }
  func.func @transform_5(%arg0: i32) -> (i32, i32, i32) {
    %c0_i32 = arith.constant 0 : i32
    %c0_i32_0 = arith.constant 0 : i32
    %c0_i32_1 = arith.constant 0 : i32
    %c0_i32_2 = arith.constant 0 : i32
    return %c0_i32, %c0_i32_0, %c0_i32_1 : i32, i32, i32
  }
  func.func @transform_6(%arg0: i32) -> (i32, i32) {
    %c0_i32 = arith.constant 0 : i32
    %c0_i32_0 = arith.constant 0 : i32
    %c0_i32_1 = arith.constant 0 : i32
    return %c0_i32, %c0_i32_0 : i32, i32
  }
  func.func @transform_7(%arg0: i32) -> (i32, i32) {
    %c0_i32 = arith.constant 0 : i32
    %c0_i32_0 = arith.constant 0 : i32
    %c0_i32_1 = arith.constant 0 : i32
    return %c0_i32, %c0_i32_0 : i32, i32
  }
  func.func @transform_8(%arg0: i32) -> (i32, i32, i32) {
    %c0_i32 = arith.constant 0 : i32
    %c0_i32_0 = arith.constant 0 : i32
    %c0_i32_1 = arith.constant 0 : i32
    return %arg0, %c0_i32, %c0_i32_0 : i32, i32, i32
  }
}

module attributes {stable_mosaic.version = 11 : i64} {
  func.func @kernel(%arg0: i32, %arg1: memref<1x8x256xf32, #tpu.memory_space<vmem>>, %arg2: memref<9x8x8xf32, #tpu.memory_space<vmem>>, %arg3: memref<1x3x256xf32, #tpu.memory_space<vmem>>, %arg4: memref<9x8x3xf32, #tpu.memory_space<vmem>>, %arg5: memref<9x256xf32, #tpu.memory_space<vmem>>, %arg6: memref<8x1xf32, #tpu.memory_space<vmem>>, %arg7: memref<1x8x256xf32, #tpu.memory_space<vmem>>, %arg8: memref<8x512xf32, #tpu.memory_space<vmem>>) attributes {dimension_semantics = [#tpu.dimension_semantics<parallel>], iteration_bounds = array<i64: 2>, scalar_prefetch = 0 : i64, scratch_operands = 1 : i64, tpu.core_type = #tpu.core_type<tc>, window_params = [{transform_indices = @transform_0, window_bounds = array<i64: 1, 8, 256>}, {pipeline_mode = #tpu.pipeline_mode<synchronous>, transform_indices = @transform_1, window_bounds = array<i64: 9, 8, 8>}, {transform_indices = @transform_2, window_bounds = array<i64: 1, 3, 256>}, {pipeline_mode = #tpu.pipeline_mode<synchronous>, transform_indices = @transform_3, window_bounds = array<i64: 9, 8, 3>}, {pipeline_mode = #tpu.pipeline_mode<synchronous>, transform_indices = @transform_4, window_bounds = array<i64: 9, 256>}, {pipeline_mode = #tpu.pipeline_mode<synchronous>, transform_indices = @transform_5, window_bounds = array<i64: 8, 1>}, {transform_indices = @transform_6, window_bounds = array<i64: 1, 8, 256>}]} {
    %c0_i32 = arith.constant 0 : i32
    %0 = arith.cmpi eq, %arg0, %c0_i32 : i32
    %1 = arith.extui %0 : i1 to i32
    %c0_i32_0 = arith.constant 0 : i32
    %2 = arith.cmpi ne, %1, %c0_i32_0 : i32
    scf.if %2 {
      %cst_68 = arith.constant 0.000000e+00 : f32
      %146 = vector.broadcast %cst_68 : f32 to vector<8x512xf32>
      %c0_69 = arith.constant 0 : index
      %c0_70 = arith.constant 0 : index
      %147 = vector.load %arg8[%c0_69, %c0_70] : memref<8x512xf32, #tpu.memory_space<vmem>>, vector<8x512xf32>
      tpu.vector_store %arg8[%c0_69, %c0_70], %146 {strides = array<i32>} : memref<8x512xf32, #tpu.memory_space<vmem>>, vector<8x512xf32>,
    } else {
    }
    %c0 = arith.constant 0 : index
    %c0_1 = arith.constant 0 : index
    %3 = vector.load %arg6[%c0, %c0_1] : memref<8x1xf32, #tpu.memory_space<vmem>>, vector<8x1xf32>
    %4 = vector.shape_cast %3 : vector<8x1xf32> to vector<8x1xf32>
    %5 = vector.broadcast %4 : vector<8x1xf32> to vector<8x256xf32>
    %c0_2 = arith.constant 0 : index
    %c0_3 = arith.constant 0 : index
    %6 = vector.load %arg5[%c0_2, %c0_3] : memref<9x256xf32, #tpu.memory_space<vmem>>, vector<9x256xf32>
    %c0_4 = arith.constant 0 : index
    %c0_5 = arith.constant 0 : index
    %c0_6 = arith.constant 0 : index
    %7 = vector.load %arg1[%c0_4, %c0_5, %c0_6] : memref<1x8x256xf32, #tpu.memory_space<vmem>>, vector<1x8x256xf32>
    %8 = vector.shape_cast %7 : vector<1x8x256xf32> to vector<8x256xf32>
    %c0_7 = arith.constant 0 : index
    %c128 = arith.constant 128 : index
    %9 = vector.load %arg8[%c0_7, %c128] : memref<8x512xf32, #tpu.memory_space<vmem>>, vector<8x256xf32>
    tpu.vector_store %arg8[%c0_7, %c128], %8 {strides = array<i32>} : memref<8x512xf32, #tpu.memory_space<vmem>>, vector<8x256xf32>,
    %c0_8 = arith.constant 0 : index
    %c0_9 = arith.constant 0 : index
    %c0_10 = arith.constant 0 : index
    %10 = vector.load %arg2[%c0_8, %c0_9, %c0_10] : memref<9x8x8xf32, #tpu.memory_space<vmem>>, vector<9x8x8xf32>
    %c0_11 = arith.constant 0 : index
    %c111 = arith.constant 111 : index
    %11 = vector.load %arg8[%c0_11, %c111] : memref<8x512xf32, #tpu.memory_space<vmem>>, vector<8x256xf32>
    %12 = vector.extract_strided_slice %6 {offsets = [0, 0], sizes = [1, 256], strides = [1, 1]} : vector<9x256xf32> to vector<1x256xf32>
    %13 = vector.broadcast %12 : vector<1x256xf32> to vector<8x256xf32>
    %14 = arith.mulf %11, %13 : vector<8x256xf32>
    %15 = vector.extract_strided_slice %10 {offsets = [0, 0, 0], sizes = [1, 8, 8], strides = [1, 1, 1]} : vector<9x8x8xf32> to vector<1x8x8xf32>
    %16 = vector.shape_cast %15 : vector<1x8x8xf32> to vector<8x8xf32>
    %cst = arith.constant dense<0.000000e+00> : vector<8x256xf32>
    %17 = tpu.matmul %16, %14, %cst {dimension_numbers = #tpu.dot_dimension_numbers<[1], [0], [0], [1], [0, 0, 1, 1], [], []>} : vector<8x8xf32>, vector<8x256xf32>, vector<8x256xf32> -> vector<8x256xf32>
    %18 = arith.addf %5, %17 : vector<8x256xf32>
    %c0_12 = arith.constant 0 : index
    %c112 = arith.constant 112 : index
    %19 = vector.load %arg8[%c0_12, %c112] : memref<8x512xf32, #tpu.memory_space<vmem>>, vector<8x256xf32>
    %20 = vector.extract_strided_slice %10 {offsets = [1, 0, 0], sizes = [1, 8, 8], strides = [1, 1, 1]} : vector<9x8x8xf32> to vector<1x8x8xf32>
    %21 = vector.shape_cast %20 : vector<1x8x8xf32> to vector<8x8xf32>
    %cst_13 = arith.constant dense<0.000000e+00> : vector<8x256xf32>
    %22 = tpu.matmul %21, %19, %cst_13 {dimension_numbers = #tpu.dot_dimension_numbers<[1], [0], [0], [1], [0, 0, 1, 1], [], []>} : vector<8x8xf32>, vector<8x256xf32>, vector<8x256xf32> -> vector<8x256xf32>
    %23 = arith.addf %18, %22 : vector<8x256xf32>
    %c0_14 = arith.constant 0 : index
    %c113 = arith.constant 113 : index
    %24 = vector.load %arg8[%c0_14, %c113] : memref<8x512xf32, #tpu.memory_space<vmem>>, vector<8x256xf32>
    %25 = vector.extract_strided_slice %6 {offsets = [2, 0], sizes = [1, 256], strides = [1, 1]} : vector<9x256xf32> to vector<1x256xf32>
    %26 = vector.broadcast %25 : vector<1x256xf32> to vector<8x256xf32>
    %27 = arith.mulf %24, %26 : vector<8x256xf32>
    %28 = vector.extract_strided_slice %10 {offsets = [2, 0, 0], sizes = [1, 8, 8], strides = [1, 1, 1]} : vector<9x8x8xf32> to vector<1x8x8xf32>
    %29 = vector.shape_cast %28 : vector<1x8x8xf32> to vector<8x8xf32>
    %cst_15 = arith.constant dense<0.000000e+00> : vector<8x256xf32>
    %30 = tpu.matmul %29, %27, %cst_15 {dimension_numbers = #tpu.dot_dimension_numbers<[1], [0], [0], [1], [0, 0, 1, 1], [], []>} : vector<8x8xf32>, vector<8x256xf32>, vector<8x256xf32> -> vector<8x256xf32>
    %31 = arith.addf %23, %30 : vector<8x256xf32>
    %c0_16 = arith.constant 0 : index
    %c127 = arith.constant 127 : index
    %32 = vector.load %arg8[%c0_16, %c127] : memref<8x512xf32, #tpu.memory_space<vmem>>, vector<8x256xf32>
    %33 = vector.extract_strided_slice %6 {offsets = [3, 0], sizes = [1, 256], strides = [1, 1]} : vector<9x256xf32> to vector<1x256xf32>
    %34 = vector.broadcast %33 : vector<1x256xf32> to vector<8x256xf32>
    %35 = arith.mulf %32, %34 : vector<8x256xf32>
    %36 = vector.extract_strided_slice %10 {offsets = [3, 0, 0], sizes = [1, 8, 8], strides = [1, 1, 1]} : vector<9x8x8xf32> to vector<1x8x8xf32>
    %37 = vector.shape_cast %36 : vector<1x8x8xf32> to vector<8x8xf32>
    %cst_17 = arith.constant dense<0.000000e+00> : vector<8x256xf32>
    %38 = tpu.matmul %37, %35, %cst_17 {dimension_numbers = #tpu.dot_dimension_numbers<[1], [0], [0], [1], [0, 0, 1, 1], [], []>} : vector<8x8xf32>, vector<8x256xf32>, vector<8x256xf32> -> vector<8x256xf32>
    %39 = arith.addf %31, %38 : vector<8x256xf32>
    %c0_18 = arith.constant 0 : index
    %c128_19 = arith.constant 128 : index
    %40 = vector.load %arg8[%c0_18, %c128_19] : memref<8x512xf32, #tpu.memory_space<vmem>>, vector<8x256xf32>
    %41 = vector.extract_strided_slice %10 {offsets = [4, 0, 0], sizes = [1, 8, 8], strides = [1, 1, 1]} : vector<9x8x8xf32> to vector<1x8x8xf32>
    %42 = vector.shape_cast %41 : vector<1x8x8xf32> to vector<8x8xf32>
    %cst_20 = arith.constant dense<0.000000e+00> : vector<8x256xf32>
    %43 = tpu.matmul %42, %40, %cst_20 {dimension_numbers = #tpu.dot_dimension_numbers<[1], [0], [0], [1], [0, 0, 1, 1], [], []>} : vector<8x8xf32>, vector<8x256xf32>, vector<8x256xf32> -> vector<8x256xf32>
    %44 = arith.addf %39, %43 : vector<8x256xf32>
    %c0_21 = arith.constant 0 : index
    %c129 = arith.constant 129 : index
    %45 = vector.load %arg8[%c0_21, %c129] : memref<8x512xf32, #tpu.memory_space<vmem>>, vector<8x256xf32>
    %46 = vector.extract_strided_slice %6 {offsets = [5, 0], sizes = [1, 256], strides = [1, 1]} : vector<9x256xf32> to vector<1x256xf32>
    %47 = vector.broadcast %46 : vector<1x256xf32> to vector<8x256xf32>
    %48 = arith.mulf %45, %47 : vector<8x256xf32>
    %49 = vector.extract_strided_slice %10 {offsets = [5, 0, 0], sizes = [1, 8, 8], strides = [1, 1, 1]} : vector<9x8x8xf32> to vector<1x8x8xf32>
    %50 = vector.shape_cast %49 : vector<1x8x8xf32> to vector<8x8xf32>
    %cst_22 = arith.constant dense<0.000000e+00> : vector<8x256xf32>
    %51 = tpu.matmul %50, %48, %cst_22 {dimension_numbers = #tpu.dot_dimension_numbers<[1], [0], [0], [1], [0, 0, 1, 1], [], []>} : vector<8x8xf32>, vector<8x256xf32>, vector<8x256xf32> -> vector<8x256xf32>
    %52 = arith.addf %44, %51 : vector<8x256xf32>
    %c0_23 = arith.constant 0 : index
    %c143 = arith.constant 143 : index
    %53 = vector.load %arg8[%c0_23, %c143] : memref<8x512xf32, #tpu.memory_space<vmem>>, vector<8x256xf32>
    %54 = vector.extract_strided_slice %6 {offsets = [6, 0], sizes = [1, 256], strides = [1, 1]} : vector<9x256xf32> to vector<1x256xf32>
    %55 = vector.broadcast %54 : vector<1x256xf32> to vector<8x256xf32>
    %56 = arith.mulf %53, %55 : vector<8x256xf32>
    %57 = vector.extract_strided_slice %10 {offsets = [6, 0, 0], sizes = [1, 8, 8], strides = [1, 1, 1]} : vector<9x8x8xf32> to vector<1x8x8xf32>
    %58 = vector.shape_cast %57 : vector<1x8x8xf32> to vector<8x8xf32>
    %cst_24 = arith.constant dense<0.000000e+00> : vector<8x256xf32>
    %59 = tpu.matmul %58, %56, %cst_24 {dimension_numbers = #tpu.dot_dimension_numbers<[1], [0], [0], [1], [0, 0, 1, 1], [], []>} : vector<8x8xf32>, vector<8x256xf32>, vector<8x256xf32> -> vector<8x256xf32>
    %60 = arith.addf %52, %59 : vector<8x256xf32>
    %c0_25 = arith.constant 0 : index
    %c144 = arith.constant 144 : index
    %61 = vector.load %arg8[%c0_25, %c144] : memref<8x512xf32, #tpu.memory_space<vmem>>, vector<8x256xf32>
    %62 = vector.extract_strided_slice %10 {offsets = [7, 0, 0], sizes = [1, 8, 8], strides = [1, 1, 1]} : vector<9x8x8xf32> to vector<1x8x8xf32>
    %63 = vector.shape_cast %62 : vector<1x8x8xf32> to vector<8x8xf32>
    %cst_26 = arith.constant dense<0.000000e+00> : vector<8x256xf32>
    %64 = tpu.matmul %63, %61, %cst_26 {dimension_numbers = #tpu.dot_dimension_numbers<[1], [0], [0], [1], [0, 0, 1, 1], [], []>} : vector<8x8xf32>, vector<8x256xf32>, vector<8x256xf32> -> vector<8x256xf32>
    %65 = arith.addf %60, %64 : vector<8x256xf32>
    %c0_27 = arith.constant 0 : index
    %c145 = arith.constant 145 : index
    %66 = vector.load %arg8[%c0_27, %c145] : memref<8x512xf32, #tpu.memory_space<vmem>>, vector<8x256xf32>
    %67 = vector.extract_strided_slice %6 {offsets = [8, 0], sizes = [1, 256], strides = [1, 1]} : vector<9x256xf32> to vector<1x256xf32>
    %68 = vector.broadcast %67 : vector<1x256xf32> to vector<8x256xf32>
    %69 = arith.mulf %66, %68 : vector<8x256xf32>
    %70 = vector.extract_strided_slice %10 {offsets = [8, 0, 0], sizes = [1, 8, 8], strides = [1, 1, 1]} : vector<9x8x8xf32> to vector<1x8x8xf32>
    %71 = vector.shape_cast %70 : vector<1x8x8xf32> to vector<8x8xf32>
    %cst_28 = arith.constant dense<0.000000e+00> : vector<8x256xf32>
    %72 = tpu.matmul %71, %69, %cst_28 {dimension_numbers = #tpu.dot_dimension_numbers<[1], [0], [0], [1], [0, 0, 1, 1], [], []>} : vector<8x8xf32>, vector<8x256xf32>, vector<8x256xf32> -> vector<8x256xf32>
    %73 = arith.addf %65, %72 : vector<8x256xf32>
    %c0_29 = arith.constant 0 : index
    %c0_30 = arith.constant 0 : index
    %c0_31 = arith.constant 0 : index
    %74 = vector.load %arg3[%c0_29, %c0_30, %c0_31] : memref<1x3x256xf32, #tpu.memory_space<vmem>>, vector<1x3x256xf32>
    %75 = vector.shape_cast %74 : vector<1x3x256xf32> to vector<3x256xf32>
    %c0_32 = arith.constant 0 : index
    %c128_33 = arith.constant 128 : index
    %76 = vector.load %arg8[%c0_32, %c128_33] : memref<8x512xf32, #tpu.memory_space<vmem>>, vector<3x256xf32>
    tpu.vector_store %arg8[%c0_32, %c128_33], %75 {strides = array<i32>} : memref<8x512xf32, #tpu.memory_space<vmem>>, vector<3x256xf32>,
    %c0_34 = arith.constant 0 : index
    %c0_35 = arith.constant 0 : index
    %c0_36 = arith.constant 0 : index
    %77 = vector.load %arg4[%c0_34, %c0_35, %c0_36] : memref<9x8x3xf32, #tpu.memory_space<vmem>>, vector<9x8x3xf32>
    %c0_37 = arith.constant 0 : index
    %c111_38 = arith.constant 111 : index
    %78 = vector.load %arg8[%c0_37, %c111_38] : memref<8x512xf32, #tpu.memory_space<vmem>>, vector<3x256xf32>
    %79 = vector.extract_strided_slice %6 {offsets = [0, 0], sizes = [1, 256], strides = [1, 1]} : vector<9x256xf32> to vector<1x256xf32>
    %80 = vector.broadcast %79 : vector<1x256xf32> to vector<3x256xf32>
    %81 = arith.mulf %78, %80 : vector<3x256xf32>
    %82 = vector.extract_strided_slice %77 {offsets = [0, 0, 0], sizes = [1, 8, 3], strides = [1, 1, 1]} : vector<9x8x3xf32> to vector<1x8x3xf32>
    %83 = vector.shape_cast %82 : vector<1x8x3xf32> to vector<8x3xf32>
    %cst_39 = arith.constant dense<0.000000e+00> : vector<8x256xf32>
    %84 = tpu.matmul %83, %81, %cst_39 {dimension_numbers = #tpu.dot_dimension_numbers<[1], [0], [0], [1], [0, 0, 1, 1], [], []>} : vector<8x3xf32>, vector<3x256xf32>, vector<8x256xf32> -> vector<8x256xf32>
    %85 = arith.addf %73, %84 : vector<8x256xf32>
    %c0_40 = arith.constant 0 : index
    %c112_41 = arith.constant 112 : index
    %86 = vector.load %arg8[%c0_40, %c112_41] : memref<8x512xf32, #tpu.memory_space<vmem>>, vector<3x256xf32>
    %87 = vector.extract_strided_slice %77 {offsets = [1, 0, 0], sizes = [1, 8, 3], strides = [1, 1, 1]} : vector<9x8x3xf32> to vector<1x8x3xf32>
    %88 = vector.shape_cast %87 : vector<1x8x3xf32> to vector<8x3xf32>
    %cst_42 = arith.constant dense<0.000000e+00> : vector<8x256xf32>
    %89 = tpu.matmul %88, %86, %cst_42 {dimension_numbers = #tpu.dot_dimension_numbers<[1], [0], [0], [1], [0, 0, 1, 1], [], []>} : vector<8x3xf32>, vector<3x256xf32>, vector<8x256xf32> -> vector<8x256xf32>
    %90 = arith.addf %85, %89 : vector<8x256xf32>
    %c0_43 = arith.constant 0 : index
    %c113_44 = arith.constant 113 : index
    %91 = vector.load %arg8[%c0_43, %c113_44] : memref<8x512xf32, #tpu.memory_space<vmem>>, vector<3x256xf32>
    %92 = vector.extract_strided_slice %6 {offsets = [2, 0], sizes = [1, 256], strides = [1, 1]} : vector<9x256xf32> to vector<1x256xf32>
    %93 = vector.broadcast %92 : vector<1x256xf32> to vector<3x256xf32>
    %94 = arith.mulf %91, %93 : vector<3x256xf32>
    %95 = vector.extract_strided_slice %77 {offsets = [2, 0, 0], sizes = [1, 8, 3], strides = [1, 1, 1]} : vector<9x8x3xf32> to vector<1x8x3xf32>
    %96 = vector.shape_cast %95 : vector<1x8x3xf32> to vector<8x3xf32>
    %cst_45 = arith.constant dense<0.000000e+00> : vector<8x256xf32>
    %97 = tpu.matmul %96, %94, %cst_45 {dimension_numbers = #tpu.dot_dimension_numbers<[1], [0], [0], [1], [0, 0, 1, 1], [], []>} : vector<8x3xf32>, vector<3x256xf32>, vector<8x256xf32> -> vector<8x256xf32>
    %98 = arith.addf %90, %97 : vector<8x256xf32>
    %c0_46 = arith.constant 0 : index
    %c127_47 = arith.constant 127 : index
    %99 = vector.load %arg8[%c0_46, %c127_47] : memref<8x512xf32, #tpu.memory_space<vmem>>, vector<3x256xf32>
    %100 = vector.extract_strided_slice %6 {offsets = [3, 0], sizes = [1, 256], strides = [1, 1]} : vector<9x256xf32> to vector<1x256xf32>
    %101 = vector.broadcast %100 : vector<1x256xf32> to vector<3x256xf32>
    %102 = arith.mulf %99, %101 : vector<3x256xf32>
    %103 = vector.extract_strided_slice %77 {offsets = [3, 0, 0], sizes = [1, 8, 3], strides = [1, 1, 1]} : vector<9x8x3xf32> to vector<1x8x3xf32>
    %104 = vector.shape_cast %103 : vector<1x8x3xf32> to vector<8x3xf32>
    %cst_48 = arith.constant dense<0.000000e+00> : vector<8x256xf32>
    %105 = tpu.matmul %104, %102, %cst_48 {dimension_numbers = #tpu.dot_dimension_numbers<[1], [0], [0], [1], [0, 0, 1, 1], [], []>} : vector<8x3xf32>, vector<3x256xf32>, vector<8x256xf32> -> vector<8x256xf32>
    %106 = arith.addf %98, %105 : vector<8x256xf32>
    %c0_49 = arith.constant 0 : index
    %c128_50 = arith.constant 128 : index
    %107 = vector.load %arg8[%c0_49, %c128_50] : memref<8x512xf32, #tpu.memory_space<vmem>>, vector<3x256xf32>
    %108 = vector.extract_strided_slice %77 {offsets = [4, 0, 0], sizes = [1, 8, 3], strides = [1, 1, 1]} : vector<9x8x3xf32> to vector<1x8x3xf32>
    %109 = vector.shape_cast %108 : vector<1x8x3xf32> to vector<8x3xf32>
    %cst_51 = arith.constant dense<0.000000e+00> : vector<8x256xf32>
    %110 = tpu.matmul %109, %107, %cst_51 {dimension_numbers = #tpu.dot_dimension_numbers<[1], [0], [0], [1], [0, 0, 1, 1], [], []>} : vector<8x3xf32>, vector<3x256xf32>, vector<8x256xf32> -> vector<8x256xf32>
    %111 = arith.addf %106, %110 : vector<8x256xf32>
    %c0_52 = arith.constant 0 : index
    %c129_53 = arith.constant 129 : index
    %112 = vector.load %arg8[%c0_52, %c129_53] : memref<8x512xf32, #tpu.memory_space<vmem>>, vector<3x256xf32>
    %113 = vector.extract_strided_slice %6 {offsets = [5, 0], sizes = [1, 256], strides = [1, 1]} : vector<9x256xf32> to vector<1x256xf32>
    %114 = vector.broadcast %113 : vector<1x256xf32> to vector<3x256xf32>
    %115 = arith.mulf %112, %114 : vector<3x256xf32>
    %116 = vector.extract_strided_slice %77 {offsets = [5, 0, 0], sizes = [1, 8, 3], strides = [1, 1, 1]} : vector<9x8x3xf32> to vector<1x8x3xf32>
    %117 = vector.shape_cast %116 : vector<1x8x3xf32> to vector<8x3xf32>
    %cst_54 = arith.constant dense<0.000000e+00> : vector<8x256xf32>
    %118 = tpu.matmul %117, %115, %cst_54 {dimension_numbers = #tpu.dot_dimension_numbers<[1], [0], [0], [1], [0, 0, 1, 1], [], []>} : vector<8x3xf32>, vector<3x256xf32>, vector<8x256xf32> -> vector<8x256xf32>
    %119 = arith.addf %111, %118 : vector<8x256xf32>
    %c0_55 = arith.constant 0 : index
    %c143_56 = arith.constant 143 : index
    %120 = vector.load %arg8[%c0_55, %c143_56] : memref<8x512xf32, #tpu.memory_space<vmem>>, vector<3x256xf32>
    %121 = vector.extract_strided_slice %6 {offsets = [6, 0], sizes = [1, 256], strides = [1, 1]} : vector<9x256xf32> to vector<1x256xf32>
    %122 = vector.broadcast %121 : vector<1x256xf32> to vector<3x256xf32>
    %123 = arith.mulf %120, %122 : vector<3x256xf32>
    %124 = vector.extract_strided_slice %77 {offsets = [6, 0, 0], sizes = [1, 8, 3], strides = [1, 1, 1]} : vector<9x8x3xf32> to vector<1x8x3xf32>
    %125 = vector.shape_cast %124 : vector<1x8x3xf32> to vector<8x3xf32>
    %cst_57 = arith.constant dense<0.000000e+00> : vector<8x256xf32>
    %126 = tpu.matmul %125, %123, %cst_57 {dimension_numbers = #tpu.dot_dimension_numbers<[1], [0], [0], [1], [0, 0, 1, 1], [], []>} : vector<8x3xf32>, vector<3x256xf32>, vector<8x256xf32> -> vector<8x256xf32>
    %127 = arith.addf %119, %126 : vector<8x256xf32>
    %c0_58 = arith.constant 0 : index
    %c144_59 = arith.constant 144 : index
    %128 = vector.load %arg8[%c0_58, %c144_59] : memref<8x512xf32, #tpu.memory_space<vmem>>, vector<3x256xf32>
    %129 = vector.extract_strided_slice %77 {offsets = [7, 0, 0], sizes = [1, 8, 3], strides = [1, 1, 1]} : vector<9x8x3xf32> to vector<1x8x3xf32>
    %130 = vector.shape_cast %129 : vector<1x8x3xf32> to vector<8x3xf32>
    %cst_60 = arith.constant dense<0.000000e+00> : vector<8x256xf32>
    %131 = tpu.matmul %130, %128, %cst_60 {dimension_numbers = #tpu.dot_dimension_numbers<[1], [0], [0], [1], [0, 0, 1, 1], [], []>} : vector<8x3xf32>, vector<3x256xf32>, vector<8x256xf32> -> vector<8x256xf32>
    %132 = arith.addf %127, %131 : vector<8x256xf32>
    %c0_61 = arith.constant 0 : index
    %c145_62 = arith.constant 145 : index
    %133 = vector.load %arg8[%c0_61, %c145_62] : memref<8x512xf32, #tpu.memory_space<vmem>>, vector<3x256xf32>
    %134 = vector.extract_strided_slice %6 {offsets = [8, 0], sizes = [1, 256], strides = [1, 1]} : vector<9x256xf32> to vector<1x256xf32>
    %135 = vector.broadcast %134 : vector<1x256xf32> to vector<3x256xf32>
    %136 = arith.mulf %133, %135 : vector<3x256xf32>
    %137 = vector.extract_strided_slice %77 {offsets = [8, 0, 0], sizes = [1, 8, 3], strides = [1, 1, 1]} : vector<9x8x3xf32> to vector<1x8x3xf32>
    %138 = vector.shape_cast %137 : vector<1x8x3xf32> to vector<8x3xf32>
    %cst_63 = arith.constant dense<0.000000e+00> : vector<8x256xf32>
    %139 = tpu.matmul %138, %136, %cst_63 {dimension_numbers = #tpu.dot_dimension_numbers<[1], [0], [0], [1], [0, 0, 1, 1], [], []>} : vector<8x3xf32>, vector<3x256xf32>, vector<8x256xf32> -> vector<8x256xf32>
    %140 = arith.addf %132, %139 : vector<8x256xf32>
    %cst_64 = arith.constant 0.000000e+00 : f32
    %141 = vector.broadcast %cst_64 : f32 to vector<8x256xf32>
    %142 = arith.maximumf %140, %141 : vector<8x256xf32>
    %c0_65 = arith.constant 0 : index
    %c0_66 = arith.constant 0 : index
    %c0_67 = arith.constant 0 : index
    %143 = vector.load %arg7[%c0_65, %c0_66, %c0_67] : memref<1x8x256xf32, #tpu.memory_space<vmem>>, vector<1x8x256xf32>
    %144 = vector.shape_cast %143 : vector<1x8x256xf32> to vector<8x256xf32>
    %145 = vector.shape_cast %142 : vector<8x256xf32> to vector<1x8x256xf32>
    tpu.vector_store %arg7[%c0_65, %c0_66, %c0_67], %145 {strides = array<i32>} : memref<1x8x256xf32, #tpu.memory_space<vmem>>, vector<1x8x256xf32>,
    return
  }
  func.func @transform_0(%arg0: i32) -> (i32, i32, i32) {
    %c0_i32 = arith.constant 0 : i32
    %c0_i32_0 = arith.constant 0 : i32
    %c0_i32_1 = arith.constant 0 : i32
    return %arg0, %c0_i32, %c0_i32_0 : i32, i32, i32
  }
  func.func @transform_1(%arg0: i32) -> (i32, i32, i32) {
    %c0_i32 = arith.constant 0 : i32
    %c0_i32_0 = arith.constant 0 : i32
    %c0_i32_1 = arith.constant 0 : i32
    %c0_i32_2 = arith.constant 0 : i32
    return %c0_i32, %c0_i32_0, %c0_i32_1 : i32, i32, i32
  }
  func.func @transform_2(%arg0: i32) -> (i32, i32, i32) {
    %c0_i32 = arith.constant 0 : i32
    %c0_i32_0 = arith.constant 0 : i32
    %c0_i32_1 = arith.constant 0 : i32
    return %arg0, %c0_i32, %c0_i32_0 : i32, i32, i32
  }
  func.func @transform_3(%arg0: i32) -> (i32, i32, i32) {
    %c0_i32 = arith.constant 0 : i32
    %c0_i32_0 = arith.constant 0 : i32
    %c0_i32_1 = arith.constant 0 : i32
    %c0_i32_2 = arith.constant 0 : i32
    return %c0_i32, %c0_i32_0, %c0_i32_1 : i32, i32, i32
  }
  func.func @transform_4(%arg0: i32) -> (i32, i32) {
    %c0_i32 = arith.constant 0 : i32
    %c0_i32_0 = arith.constant 0 : i32
    %c0_i32_1 = arith.constant 0 : i32
    return %c0_i32, %c0_i32_0 : i32, i32
  }
  func.func @transform_5(%arg0: i32) -> (i32, i32) {
    %c0_i32 = arith.constant 0 : i32
    %c0_i32_0 = arith.constant 0 : i32
    %c0_i32_1 = arith.constant 0 : i32
    return %c0_i32, %c0_i32_0 : i32, i32
  }
  func.func @transform_6(%arg0: i32) -> (i32, i32, i32) {
    %c0_i32 = arith.constant 0 : i32
    %c0_i32_0 = arith.constant 0 : i32
    %c0_i32_1 = arith.constant 0 : i32
    return %arg0, %c0_i32, %c0_i32_0 : i32, i32, i32
  }
}

</mosaic_0001>

<llo_original>
// kernel: neck_forward.8
$region0: #{neck_forward.8}
  #allocation0 [shape = 'u32[]', space=smem, size = 0x4, offset = 0x4, fixed_abs, tag = 'smem constant byte address 0x4 - core index']
  #allocation1 [shape = 'u32[72,128]{1,0:T(1,128)}', space=vmem, size = 0x9000, scoped, tag = 'internal scratch']
  #allocation2 [shape = 'f32[8,256]{1,0:T(8,128)}', space=vmem, size = 0x2000, scoped, tag = 'scratch operand']
  %s0 = inlined_call_operand.vmem [shape: f32[2,8,16], index: 0, kind: input, shape index: {}]
  %s1 = inlined_call_operand.vmem [shape: f32[9,8,8], index: 1, kind: input, shape index: {}]
  %s2 = inlined_call_operand.vmem [shape: f32[9,16], index: 2, kind: input, shape index: {}]
  %s3 = inlined_call_operand.vmem [shape: f32[8,1], index: 3, kind: input, shape index: {}]
  %s4 = inlined_call_operand.vmem [shape: f32[2,8,16], index: 4, kind: output, shape index: {}]
  %s5 = sld [smem:[#allocation0]]
  $region53: #{neck_forward.8} parent=0
    _
  %s7 = ssub.s32 1, %s5
  %s8 = scalar_select 0, %s7, %s5
  loop: start=0, step=1, limit=4
  $region2: #{neck_forward.8} parent=0 // loop_pre_header
    _
  $region3: #{neck_forward.8} parent=0 // loop_header
    %s10 = sphi 0, %s14
    %p11 = scmp.ge.s32.totalorder %s10, 4
    %s20 = sphi 0, %s22
    %s23 = sphi 0, %s20
    %s24 = sphi 0, %s23
    %s40 = sphi 0, %s24
    %s44 = sphi 0, %s44
    %s46 = sphi 0, %s44
    %s47 = sphi 0, %s46
    %s61 = sphi 0, %s47
    %s65 = sphi 0, %s65
    %s67 = sphi 0, %s65
    %s68 = sphi 0, %s67
    %s82 = sphi 0, %s68
    %s86 = sphi 0, %s86
    %s88 = sphi 0, %s86
    %s89 = sphi 0, %s88
    %s103 = sphi 0, %s89
    %s109 = sphi 0, %s111
    %s112 = sphi 0, %s109
    %s113 = sphi 0, %s112
    %s129 = sphi 0, %s113
  $region4: #{neck_forward.8} parent=0 // loop_header_branch
    %13 = sbr.rel (%p11) target = $region8
  $region5: #{neck_forward.8} parent=0 // loop_body
    %s15 = ssub.s32 %s10, 1
    %s16 = ssub.s32 %s10, 2
    %s17 = sadd.s32 %s10, 1
    %s18 = ssub.s32 %s10, %s17
    %p19 = scmp.eq.s32.totalorder %s18, 0
    %s21 = sadd.s32 %s20, 1
    %s22 = scalar_select %p19, %s20, %s21
    %p25 = pneg %p19
    %p26 = scmp.eq.s32.totalorder %s10, 1
    %p27 = por %p25, %p26
    %p28 = scmp.ne.s32.totalorder %s20, %s23
    %p29 = scmp.eq.s32.totalorder %s10, 0
    %p30 = por %p28, %p29
    %p31 = scmp.ne.s32.totalorder %s20, %s23
    %p32 = scmp.eq.s32.totalorder %s15, 1
    %p33 = por %p31, %p32
    %p34 = scmp.ne.s32.totalorder %s23, %s24
    %p35 = scmp.eq.s32.totalorder %s15, 0
    %p36 = por %p34, %p35
    %p37 = scmp.ne.s32.totalorder %s23, %s24
    %p38 = scmp.eq.s32.totalorder %s16, 1
    %p39 = por %p37, %p38
    %p41 = scmp.ne.s32.totalorder %s24, %s40
    %p42 = scmp.eq.s32.totalorder %s16, 0
    %p43 = por %p41, %p42
    %s45 = sadd.s32 %s44, 1
    %p48 = scmp.eq.s32.totalorder %s10, 1
    %p49 = scmp.ne.s32.totalorder %s44, %s46
    %p50 = scmp.eq.s32.totalorder %s10, 0
    %p51 = por %p49, %p50
    %p52 = scmp.ne.s32.totalorder %s44, %s46
    %p53 = scmp.eq.s32.totalorder %s15, 1
    %p54 = por %p52, %p53
    %p55 = scmp.ne.s32.totalorder %s46, %s47
    %p56 = scmp.eq.s32.totalorder %s15, 0
    %p57 = por %p55, %p56
    %p58 = scmp.ne.s32.totalorder %s46, %s47
    %p59 = scmp.eq.s32.totalorder %s16, 1
    %p60 = por %p58, %p59
    %p62 = scmp.ne.s32.totalorder %s47, %s61
    %p63 = scmp.eq.s32.totalorder %s16, 0
    %p64 = por %p62, %p63
    %s66 = sadd.s32 %s65, 1
    %p69 = scmp.eq.s32.totalorder %s10, 1
    %p70 = scmp.ne.s32.totalorder %s65, %s67
    %p71 = scmp.eq.s32.totalorder %s10, 0
    %p72 = por %p70, %p71
    %p73 = scmp.ne.s32.totalorder %s65, %s67
    %p74 = scmp.eq.s32.totalorder %s15, 1
    %p75 = por %p73, %p74
    %p76 = scmp.ne.s32.totalorder %s67, %s68
    %p77 = scmp.eq.s32.totalorder %s15, 0
    %p78 = por %p76, %p77
    %p79 = scmp.ne.s32.totalorder %s67, %s68
    %p80 = scmp.eq.s32.totalorder %s16, 1
    %p81 = por %p79, %p80
    %p83 = scmp.ne.s32.totalorder %s68, %s82
    %p84 = scmp.eq.s32.totalorder %s16, 0
    %p85 = por %p83, %p84
    %s87 = sadd.s32 %s86, 1
    %p90 = scmp.eq.s32.totalorder %s10, 1
    %p91 = scmp.ne.s32.totalorder %s86, %s88
    %p92 = scmp.eq.s32.totalorder %s10, 0
    %p93 = por %p91, %p92
    %p94 = scmp.ne.s32.totalorder %s86, %s88
    %p95 = scmp.eq.s32.totalorder %s15, 1
    %p96 = por %p94, %p95
    %p97 = scmp.ne.s32.totalorder %s88, %s89
    %p98 = scmp.eq.s32.totalorder %s15, 0
    %p99 = por %p97, %p98
    %p100 = scmp.ne.s32.totalorder %s88, %s89
    %p101 = scmp.eq.s32.totalorder %s16, 1
    %p102 = por %p100, %p101
    %p104 = scmp.ne.s32.totalorder %s89, %s103
    %p105 = scmp.eq.s32.totalorder %s16, 0
    %p106 = por %p104, %p105
    %s107 = ssub.s32 %s10, %s17
    %p108 = scmp.eq.s32.totalorder %s107, 0
    %s110 = sadd.s32 %s109, 1
    %s111 = scalar_select %p108, %s109, %s110
    %p114 = pneg %p108
    %p115 = scmp.eq.s32.totalorder %s10, 1
    %p116 = por %p114, %p115
    %p117 = scmp.ne.s32.totalorder %s109, %s112
    %p118 = scmp.eq.s32.totalorder %s10, 0
    %p119 = por %p117, %p118
    %p120 = scmp.ne.s32.totalorder %s109, %s112
    %p121 = scmp.eq.s32.totalorder %s15, 1
    %p122 = por %p120, %p121
    %p123 = scmp.ne.s32.totalorder %s112, %s113
    %p124 = scmp.eq.s32.totalorder %s15, 0
    %p125 = por %p123, %p124
    %p126 = scmp.ne.s32.totalorder %s112, %s113
    %p127 = scmp.eq.s32.totalorder %s16, 1
    %p128 = por %p126, %p127
    %p130 = scmp.ne.s32.totalorder %s113, %s129
    %p131 = scmp.eq.s32.totalorder %s16, 0
    %p132 = por %p130, %p131
    %p133 = scmp.le.s32.totalorder 1, %s10
    %p134 = scmp.lt.s32.totalorder %s10, 3
    %p135 = pnand %p133, %p134
    %p136 = pneg %p135
    // Predicated region
    $region9: #{neck_forward.8} parent=5 // pred_check
      _
    $region10: #{neck_forward.8} parent=5 // pred_check_branch
      %138 = sbr.rel (%p135) target = $region12
    $region11: #{neck_forward.8} parent=5 // pred_region
      %s139 = ssub.s32 %s10, 1
      // Predicated region
      $region13: #{neck_forward.8} parent=11 // pred_check
        %p140 = pneg %p57
      $region14: #{neck_forward.8} parent=11 // pred_check_branch
        %142 = sbr.rel (%p140) target = $region16
      $region15: #{neck_forward.8} parent=11 // pred_region
        _
      $region16: #{neck_forward.8} parent=11 // pred_fallthru
        _
      // Predicated region
      $region17: #{neck_forward.8} parent=11 // pred_check
        %p143 = pneg %p78
      $region18: #{neck_forward.8} parent=11 // pred_check_branch
        %145 = sbr.rel (%p143) target = $region20
      $region19: #{neck_forward.8} parent=11 // pred_region
        _
      $region20: #{neck_forward.8} parent=11 // pred_fallthru
        _
      // Predicated region
      $region21: #{neck_forward.8} parent=11 // pred_check
        %p146 = pneg %p99
      $region22: #{neck_forward.8} parent=11 // pred_check_branch
        %148 = sbr.rel (%p146) target = $region24
      $region23: #{neck_forward.8} parent=11 // pred_region
        _
      $region24: #{neck_forward.8} parent=11 // pred_fallthru
        _
    $region12: #{neck_forward.8} parent=5 // pred_fallthru
      _
    %p149 = scmp.lt.s32.totalorder %s10, 2
    // Predicated region
    $region25: #{neck_forward.8} parent=5 // pred_check
      %p150 = pneg %p149
    $region26: #{neck_forward.8} parent=5 // pred_check_branch
      %152 = sbr.rel (%p150) target = $region28
    $region27: #{neck_forward.8} parent=5 // pred_region
      // Predicated region
      $region29: #{neck_forward.8} parent=27 // pred_check
        %p153 = pneg %p30
      $region30: #{neck_forward.8} parent=27 // pred_check_branch
        %155 = sbr.rel (%p153) target = $region32
      $region31: #{neck_forward.8} parent=27 // pred_region
        %p156 = scmp.lt.s32.totalorder %s10, 1
        %s157 = scalar_select %p156, %s10, 1
        %s158 = smul.addr %s157, 8
        %s159 = scalar_lea.vmem %s0, %s158
      $region32: #{neck_forward.8} parent=27 // pred_fallthru
        _
    $region28: #{neck_forward.8} parent=5 // pred_fallthru
      _
    %p160 = scmp.le.s32.totalorder 1, %s10
    %p161 = scmp.lt.s32.totalorder %s10, 3
    %p162 = pnand %p160, %p161
    %p163 = pneg %p162
    // Predicated region
    $region33: #{neck_forward.8} parent=5 // pred_check
      _
    $region34: #{neck_forward.8} parent=5 // pred_check_branch
      %165 = sbr.rel (%p162) target = $region36
    $region35: #{neck_forward.8} parent=5 // pred_region
      %s166 = ssub.s32 %s10, 1
      %p167 = scmp.lt.s32.totalorder %s15, 1
      %s168 = scalar_select %p167, %s15, 1
      %s169 = smul.addr %s168, 8
      %s170 = scalar_lea.vmem %s0, %s169
      %p171 = pneg %p36
      %p172 = pneg %p33
      %p173 = pneg %p57
      %p174 = pneg %p54
      %p175 = pneg %p78
      %p176 = pneg %p75
      %p177 = pneg %p99
      %p178 = pneg %p96
      %p179 = pneg %p125
      %p180 = pneg %p122
      %p181 = scmp.lt.s32.totalorder %s15, 1
      %s182 = scalar_select %p181, %s15, 1
      %s183 = smul.addr %s182, 8
      %s184 = scalar_lea.vmem %s4, %s183
      %p185 = scmp.lt.s32.totalorder %s15, 1
      %s186 = scalar_select %p185, %s15, 1
      %s187 = smul.addr %s186, 8
      %s188 = scalar_lea.vmem %s0, %s187
      %p189 = scmp.lt.s32.totalorder %s15, 1
      %s190 = scalar_select %p189, %s15, 1
      %s191 = smul.addr %s190, 8
      %s192 = scalar_lea.vmem %s4, %s191
      %p193 = scmp.eq.s32.totalorder %s15, 0
      // Predicated region
      $region37: #{neck_forward.8} parent=35 // pred_check
        %p194 = pneg %p193
      $region38: #{neck_forward.8} parent=35 // pred_check_branch
        %196 = sbr.rel (%p194) target = $region40
      $region39: #{neck_forward.8} parent=35 // pred_region
        %197 = vst [vmem:[#allocation2] sm:$0xff] 0.0
        %198 = vst [vmem:[#allocation2 + $0x8] sm:$0xff] 0.0
      $region40: #{neck_forward.8} parent=35 // pred_fallthru
        _
      %v199 = vld [vmem:[%s3] sm:$0xff]
      %201 = vset.pattern.permute.xlu0 0
      %202 = vperm.xlu0 %201, %v199
      %v203 = vpop.permute.xlu0 %202
      %v205 = vld [vmem:[%s2] sm:$0xff]
      %v206 = vld [vmem:[%s2 + $0x8] sm:$0x1]
      %v207 = vld [vmem:[%s188] sm:$0xff]
      %vm208 = vcmask 130048
      %209 = vst.msk [vmem:[#allocation2 + $0x8] sm:$0xff] %vm208, %v207
      %v210 = vld [vmem:[%s1] sm:$0xff]
      %v211 = vld [vmem:[%s1 + $0x8] sm:$0xff]
      %v212 = vld [vmem:[%s1 + $0x10] sm:$0xff]
      %v213 = vld [vmem:[%s1 + $0x18] sm:$0xff]
      %v214 = vld [vmem:[%s1 + $0x20] sm:$0xff]
      %v215 = vld [vmem:[%s1 + $0x28] sm:$0xff]
      %v216 = vld [vmem:[%s1 + $0x30] sm:$0xff]
      %v217 = vld [vmem:[%s1 + $0x38] sm:$0xff]
      %v218 = vld [vmem:[%s1 + $0x40] sm:$0xff]
      %v219 = vld [vmem:[#allocation2] sm:$0xff]
      %v220 = vld [vmem:[#allocation2 + $0x8] sm:$0xff]
      %v221 = vperm.slane %v205, 0
      %223 = vrot.lane.b32.xlu0 %v221, 123
      %v224 = vpop.permute.xlu0 %223
      %v226 = vmul.f32 %v219, %v224
      %v227 = vmul.f32 %v220, %v224
      %230 = vrot.lane.b32.xlu0 %v226, 5
      %v231 = vpop.permute.xlu0 %230
      %232 = vrot.lane.b32.xlu0 %v227, 5
      %v233 = vpop.permute.xlu0 %232
      %vm234 = vcmask 39936
      %v235 = vsel %vm234, %v231, %v233
      %vm237 = vcmask 64512
      %v239 = vsel %vm237, %v210, 0
      %241 = vmatpush.msra.mxu0 0.0
      %242 = vmatpush.msra.mxu0 0.0
      %243 = vmatpush.msra.mxu0 0.0
      %244 = vmatpush.msra.mxu0 0.0
      %245 = vmatpush.msra.mxu0 0.0
      %246 = vmatpush.msra.mxu0 0.0
      %247 = vmatpush.msra.mxu0 0.0
      %248 = vmatpush.msra.mxu0 0.0
      %249 = vmatpush.msra.mxu0 0.0
      %250 = vmatpush.msra.mxu0 0.0
      %251 = vmatpush.msra.mxu0 0.0
      %252 = vmatpush.msra.mxu0 0.0
      %253 = vmatpush.msra.mxu0 0.0
      %254 = vmatpush.msra.mxu0 0.0
      %255 = vmatpush.msra.mxu0 0.0
      %256 = vmatpush.msra.mxu0 %v235
      %257 = vmatmul.f32.gmra.mxu0 %v239
      %v258 = vpop.f32.mrf.mxu0
      %v259 = vadd.f32 0.0, %v258
      %260 = vdwg.mxu0
      %v261 = vadd.f32 %v203, %v259
      %264 = vrot.lane.b32.xlu0 %v219, 4
      %v265 = vpop.permute.xlu0 %264
      %266 = vrot.lane.b32.xlu0 %v220, 4
      %v267 = vpop.permute.xlu0 %266
      %vm268 = vcmask 31744
      %v269 = vsel %vm268, %v265, %v267
      %v272 = vsel %vm237, %v211, 0
      %274 = vmatpush.msra.mxu0 0.0
      %275 = vmatpush.msra.mxu0 0.0
      %276 = vmatpush.msra.mxu0 0.0
      %277 = vmatpush.msra.mxu0 0.0
      %278 = vmatpush.msra.mxu0 0.0
      %279 = vmatpush.msra.mxu0 0.0
      %280 = vmatpush.msra.mxu0 0.0
      %281 = vmatpush.msra.mxu0 0.0
      %282 = vmatpush.msra.mxu0 0.0
      %283 = vmatpush.msra.mxu0 0.0
      %284 = vmatpush.msra.mxu0 0.0
      %285 = vmatpush.msra.mxu0 0.0
      %286 = vmatpush.msra.mxu0 0.0
      %287 = vmatpush.msra.mxu0 0.0
      %288 = vmatpush.msra.mxu0 0.0
      %289 = vmatpush.msra.mxu0 %v269
      %290 = vmatmul.f32.gmra.mxu0 %v272
      %v291 = vpop.f32.mrf.mxu0
      %v292 = vadd.f32 0.0, %v291
      %293 = vdwg.mxu0
      %v294 = vadd.f32 %v261, %v292
      %v295 = vperm.slane %v205, 2
      %297 = vrot.lane.b32.xlu0 %v295, 125
      %v298 = vpop.permute.xlu0 %297
      %v300 = vmul.f32 %v219, %v298
      %v301 = vmul.f32 %v220, %v298
      %304 = vrot.lane.b32.xlu0 %v300, 3
      %v305 = vpop.permute.xlu0 %304
      %306 = vrot.lane.b32.xlu0 %v301, 3
      %v307 = vpop.permute.xlu0 %306
      %vm308 = vcmask 23552
      %v309 = vsel %vm308, %v305, %v307
      %v312 = vsel %vm237, %v212, 0
      %314 = vmatpush.msra.mxu0 0.0
      %315 = vmatpush.msra.mxu0 0.0
      %316 = vmatpush.msra.mxu0 0.0
      %317 = vmatpush.msra.mxu0 0.0
      %318 = vmatpush.msra.mxu0 0.0
      %319 = vmatpush.msra.mxu0 0.0
      %320 = vmatpush.msra.mxu0 0.0
      %321 = vmatpush.msra.mxu0 0.0
      %322 = vmatpush.msra.mxu0 0.0
      %323 = vmatpush.msra.mxu0 0.0
      %324 = vmatpush.msra.mxu0 0.0
      %325 = vmatpush.msra.mxu0 0.0
      %326 = vmatpush.msra.mxu0 0.0
      %327 = vmatpush.msra.mxu0 0.0
      %328 = vmatpush.msra.mxu0 0.0
      %329 = vmatpush.msra.mxu0 %v309
      %330 = vmatmul.f32.gmra.mxu0 %v312
      %v331 = vpop.f32.mrf.mxu0
      %v332 = vadd.f32 0.0, %v331
      %333 = vdwg.mxu0
      %v334 = vadd.f32 %v294, %v332
      %v335 = vperm.slane %v205, 3
      %337 = vrot.lane.b32.xlu0 %v335, 127
      %v338 = vpop.permute.xlu0 %337
      %v340 = vmul.f32 %v219, %v338
      %v341 = vmul.f32 %v220, %v338
      %344 = vrot.lane.b32.xlu0 %v340, 1
      %v345 = vpop.permute.xlu0 %344
      %346 = vrot.lane.b32.xlu0 %v341, 1
      %v347 = vpop.permute.xlu0 %346
      %vm348 = vcmask 7168
      %v349 = vsel %vm348, %v345, %v347
      %v352 = vsel %vm237, %v213, 0
      %354 = vmatpush.msra.mxu0 0.0
      %355 = vmatpush.msra.mxu0 0.0
      %356 = vmatpush.msra.mxu0 0.0
      %357 = vmatpush.msra.mxu0 0.0
      %358 = vmatpush.msra.mxu0 0.0
      %359 = vmatpush.msra.mxu0 0.0
      %360 = vmatpush.msra.mxu0 0.0
      %361 = vmatpush.msra.mxu0 0.0
      %362 = vmatpush.msra.mxu0 0.0
      %363 = vmatpush.msra.mxu0 0.0
      %364 = vmatpush.msra.mxu0 0.0
      %365 = vmatpush.msra.mxu0 0.0
      %366 = vmatpush.msra.mxu0 0.0
      %367 = vmatpush.msra.mxu0 0.0
      %368 = vmatpush.msra.mxu0 0.0
      %369 = vmatpush.msra.mxu0 %v349
      %370 = vmatmul.f32.gmra.mxu0 %v352
      %v371 = vpop.f32.mrf.mxu0
      %v372 = vadd.f32 0.0, %v371
      %373 = vdwg.mxu0
      %v374 = vadd.f32 %v334, %v372
      %v376 = vsel %vm237, %v214, 0
      %378 = vmatpush.msra.mxu0 0.0
      %379 = vmatpush.msra.mxu0 0.0
      %380 = vmatpush.msra.mxu0 0.0
      %381 = vmatpush.msra.mxu0 0.0
      %382 = vmatpush.msra.mxu0 0.0
      %383 = vmatpush.msra.mxu0 0.0
      %384 = vmatpush.msra.mxu0 0.0
      %385 = vmatpush.msra.mxu0 0.0
      %386 = vmatpush.msra.mxu0 0.0
      %387 = vmatpush.msra.mxu0 0.0
      %388 = vmatpush.msra.mxu0 0.0
      %389 = vmatpush.msra.mxu0 0.0
      %390 = vmatpush.msra.mxu0 0.0
      %391 = vmatpush.msra.mxu0 0.0
      %392 = vmatpush.msra.mxu0 0.0
      %393 = vmatpush.msra.mxu0 %v220
      %394 = vmatmul.f32.gmra.mxu0 %v376
      %v395 = vpop.f32.mrf.mxu0
      %v396 = vadd.f32 0.0, %v395
      %397 = vdwg.mxu0
      %v398 = vadd.f32 %v374, %v396
      %v399 = vperm.slane %v205, 5
      %401 = vrot.lane.b32.xlu0 %v399, 1
      %v402 = vpop.permute.xlu0 %401
      %v404 = vmul.f32 %v220, %v402
      %406 = vrot.lane.b32.xlu0 %v404, 127
      %v407 = vpop.permute.xlu0 %406
      %v410 = vsel %vm237, %v215, 0
      %412 = vmatpush.msra.mxu0 0.0
      %413 = vmatpush.msra.mxu0 0.0
      %414 = vmatpush.msra.mxu0 0.0
      %415 = vmatpush.msra.mxu0 0.0
      %416 = vmatpush.msra.mxu0 0.0
      %417 = vmatpush.msra.mxu0 0.0
      %418 = vmatpush.msra.mxu0 0.0
      %419 = vmatpush.msra.mxu0 0.0
      %420 = vmatpush.msra.mxu0 0.0
      %421 = vmatpush.msra.mxu0 0.0
      %422 = vmatpush.msra.mxu0 0.0
      %423 = vmatpush.msra.mxu0 0.0
      %424 = vmatpush.msra.mxu0 0.0
      %425 = vmatpush.msra.mxu0 0.0
      %426 = vmatpush.msra.mxu0 0.0
      %427 = vmatpush.msra.mxu0 %v407
      %428 = vmatmul.f32.gmra.mxu0 %v410
      %v429 = vpop.f32.mrf.mxu0
      %v430 = vadd.f32 0.0, %v429
      %431 = vdwg.mxu0
      %v432 = vadd.f32 %v398, %v430
      %v433 = vperm.slane %v205, 6
      %435 = vrot.lane.b32.xlu0 %v433, 3
      %v436 = vpop.permute.xlu0 %435
      %v438 = vmul.f32 %v220, %v436
      %440 = vrot.lane.b32.xlu0 %v438, 125
      %v441 = vpop.permute.xlu0 %440
      %v444 = vsel %vm237, %v216, 0
      %446 = vmatpush.msra.mxu0 0.0
      %447 = vmatpush.msra.mxu0 0.0
      %448 = vmatpush.msra.mxu0 0.0
      %449 = vmatpush.msra.mxu0 0.0
      %450 = vmatpush.msra.mxu0 0.0
      %451 = vmatpush.msra.mxu0 0.0
      %452 = vmatpush.msra.mxu0 0.0
      %453 = vmatpush.msra.mxu0 0.0
      %454 = vmatpush.msra.mxu0 0.0
      %455 = vmatpush.msra.mxu0 0.0
      %456 = vmatpush.msra.mxu0 0.0
      %457 = vmatpush.msra.mxu0 0.0
      %458 = vmatpush.msra.mxu0 0.0
      %459 = vmatpush.msra.mxu0 0.0
      %460 = vmatpush.msra.mxu0 0.0
      %461 = vmatpush.msra.mxu0 %v441
      %462 = vmatmul.f32.gmra.mxu0 %v444
      %v463 = vpop.f32.mrf.mxu0
      %v464 = vadd.f32 0.0, %v463
      %465 = vdwg.mxu0
      %v466 = vadd.f32 %v432, %v464
      %467 = vrot.lane.b32.xlu0 %v220, 124
      %v468 = vpop.permute.xlu0 %467
      %v471 = vsel %vm237, %v217, 0
      %473 = vmatpush.msra.mxu0 0.0
      %474 = vmatpush.msra.mxu0 0.0
      %475 = vmatpush.msra.mxu0 0.0
      %476 = vmatpush.msra.mxu0 0.0
      %477 = vmatpush.msra.mxu0 0.0
      %478 = vmatpush.msra.mxu0 0.0
      %479 = vmatpush.msra.mxu0 0.0
      %480 = vmatpush.msra.mxu0 0.0
      %481 = vmatpush.msra.mxu0 0.0
      %482 = vmatpush.msra.mxu0 0.0
      %483 = vmatpush.msra.mxu0 0.0
      %484 = vmatpush.msra.mxu0 0.0
      %485 = vmatpush.msra.mxu0 0.0
      %486 = vmatpush.msra.mxu0 0.0
      %487 = vmatpush.msra.mxu0 0.0
      %488 = vmatpush.msra.mxu0 %v468
      %489 = vmatmul.f32.gmra.mxu0 %v471
      %v490 = vpop.f32.mrf.mxu0
      %v491 = vadd.f32 0.0, %v490
      %492 = vdwg.mxu0
      %v493 = vadd.f32 %v466, %v491
      %v494 = vperm.slane %v206, 0
      %496 = vrot.lane.b32.xlu0 %v494, 5
      %v497 = vpop.permute.xlu0 %496
      %v499 = vmul.f32 %v220, %v497
      %501 = vrot.lane.b32.xlu0 %v499, 123
      %v502 = vpop.permute.xlu0 %501
      %v505 = vsel %vm237, %v218, 0
      %507 = vmatpush.msra.mxu0 0.0
      %508 = vmatpush.msra.mxu0 0.0
      %509 = vmatpush.msra.mxu0 0.0
      %510 = vmatpush.msra.mxu0 0.0
      %511 = vmatpush.msra.mxu0 0.0
      %512 = vmatpush.msra.mxu0 0.0
      %513 = vmatpush.msra.mxu0 0.0
      %514 = vmatpush.msra.mxu0 0.0
      %515 = vmatpush.msra.mxu0 0.0
      %516 = vmatpush.msra.mxu0 0.0
      %517 = vmatpush.msra.mxu0 0.0
      %518 = vmatpush.msra.mxu0 0.0
      %519 = vmatpush.msra.mxu0 0.0
      %520 = vmatpush.msra.mxu0 0.0
      %521 = vmatpush.msra.mxu0 0.0
      %522 = vmatpush.msra.mxu0 %v502
      %523 = vmatmul.f32.gmra.mxu0 %v505
      %v524 = vpop.f32.mrf.mxu0
      %v525 = vadd.f32 0.0, %v524
      %526 = vdwg.mxu0
      %v527 = vadd.f32 %v493, %v525
      %v528 = vmax.f32 %v527, 0.0
      %529 = vst.msk [vmem:[%s192] sm:$0xff] %vm208, %v528
      %p530 = scmp.lt.s32.totalorder %s15, 1
      %s531 = scalar_select %p530, %s15, 1
      %s532 = smul.addr %s531, 8
      %s533 = scalar_lea.vmem %s4, %s532
      // Predicated region
      $region41: #{neck_forward.8} parent=35 // pred_check
        %p534 = pneg %p122
      $region42: #{neck_forward.8} parent=35 // pred_check_branch
        %536 = sbr.rel (%p534) target = $region44
      $region43: #{neck_forward.8} parent=35 // pred_region
        _
      $region44: #{neck_forward.8} parent=35 // pred_fallthru
        _
    $region36: #{neck_forward.8} parent=5 // pred_fallthru
      _
    %p537 = scmp.le.s32.totalorder 2, %s10
    // Predicated region
    $region45: #{neck_forward.8} parent=5 // pred_check
      %p538 = pneg %p537
    $region46: #{neck_forward.8} parent=5 // pred_check_branch
      %540 = sbr.rel (%p538) target = $region48
    $region47: #{neck_forward.8} parent=5 // pred_region
      %s541 = ssub.s32 %s10, 2
      // Predicated region
      $region49: #{neck_forward.8} parent=47 // pred_check
        %p542 = pneg %p128
      $region50: #{neck_forward.8} parent=47 // pred_check_branch
        %544 = sbr.rel (%p542) target = $region52
      $region51: #{neck_forward.8} parent=47 // pred_region
        %p545 = scmp.lt.s32.totalorder %s16, 1
        %s546 = scalar_select %p545, %s16, 1
        %s547 = smul.addr %s546, 8
        %s548 = scalar_lea.vmem %s4, %s547
      $region52: #{neck_forward.8} parent=47 // pred_fallthru
        _
    $region48: #{neck_forward.8} parent=5 // pred_fallthru
      _
  $region6: #{neck_forward.8} parent=0 // loop_footer
    %s14 = sadd.s32 1, %s10
  $region7: #{neck_forward.8} parent=0 // loop_footer_branch
    %9 = sbr.rel target = $region3
  $region8: #{neck_forward.8} parent=0 // loop_exit
    _

// kernel: neck_forward.9
$region0: #{neck_forward.9}
  #allocation0 [shape = 'u32[]', space=smem, size = 0x4, offset = 0x4, fixed_abs, tag = 'smem constant byte address 0x4 - core index']
  #allocation1 [shape = 'u32[72,128]{1,0:T(1,128)}', space=vmem, size = 0x9000, scoped, tag = 'internal scratch']
  #allocation2 [shape = 'f32[16,256]{1,0:T(8,128)}', space=vmem, size = 0x4000, scoped, tag = 'scratch operand']
  %s0 = inlined_call_operand.vmem [shape: f32[2,16,4], index: 0, kind: input, shape index: {}]
  %s1 = inlined_call_operand.vmem [shape: f32[9,8,16], index: 1, kind: input, shape index: {}]
  %s2 = inlined_call_operand.vmem [shape: f32[9,4], index: 2, kind: input, shape index: {}]
  %s3 = inlined_call_operand.vmem [shape: f32[8,1], index: 3, kind: input, shape index: {}]
  %s4 = inlined_call_operand.vmem [shape: f32[2,8,4], index: 4, kind: output, shape index: {}]
  %s5 = sld [smem:[#allocation0]]
  $region53: #{neck_forward.9} parent=0
    _
  %s7 = ssub.s32 1, %s5
  %s8 = scalar_select 0, %s7, %s5
  loop: start=0, step=1, limit=4
  $region2: #{neck_forward.9} parent=0 // loop_pre_header
    _
  $region3: #{neck_forward.9} parent=0 // loop_header
    %s10 = sphi 0, %s14
    %p11 = scmp.ge.s32.totalorder %s10, 4
    %s20 = sphi 0, %s22
    %s23 = sphi 0, %s20
    %s24 = sphi 0, %s23
    %s40 = sphi 0, %s24
    %s44 = sphi 0, %s44
    %s46 = sphi 0, %s44
    %s47 = sphi 0, %s46
    %s61 = sphi 0, %s47
    %s65 = sphi 0, %s65
    %s67 = sphi 0, %s65
    %s68 = sphi 0, %s67
    %s82 = sphi 0, %s68
    %s86 = sphi 0, %s86
    %s88 = sphi 0, %s86
    %s89 = sphi 0, %s88
    %s103 = sphi 0, %s89
    %s109 = sphi 0, %s111
    %s112 = sphi 0, %s109
    %s113 = sphi 0, %s112
    %s129 = sphi 0, %s113
  $region4: #{neck_forward.9} parent=0 // loop_header_branch
    %13 = sbr.rel (%p11) target = $region8
  $region5: #{neck_forward.9} parent=0 // loop_body
    %s15 = ssub.s32 %s10, 1
    %s16 = ssub.s32 %s10, 2
    %s17 = sadd.s32 %s10, 1
    %s18 = ssub.s32 %s10, %s17
    %p19 = scmp.eq.s32.totalorder %s18, 0
    %s21 = sadd.s32 %s20, 1
    %s22 = scalar_select %p19, %s20, %s21
    %p25 = pneg %p19
    %p26 = scmp.eq.s32.totalorder %s10, 1
    %p27 = por %p25, %p26
    %p28 = scmp.ne.s32.totalorder %s20, %s23
    %p29 = scmp.eq.s32.totalorder %s10, 0
    %p30 = por %p28, %p29
    %p31 = scmp.ne.s32.totalorder %s20, %s23
    %p32 = scmp.eq.s32.totalorder %s15, 1
    %p33 = por %p31, %p32
    %p34 = scmp.ne.s32.totalorder %s23, %s24
    %p35 = scmp.eq.s32.totalorder %s15, 0
    %p36 = por %p34, %p35
    %p37 = scmp.ne.s32.totalorder %s23, %s24
    %p38 = scmp.eq.s32.totalorder %s16, 1
    %p39 = por %p37, %p38
    %p41 = scmp.ne.s32.totalorder %s24, %s40
    %p42 = scmp.eq.s32.totalorder %s16, 0
    %p43 = por %p41, %p42
    %s45 = sadd.s32 %s44, 1
    %p48 = scmp.eq.s32.totalorder %s10, 1
    %p49 = scmp.ne.s32.totalorder %s44, %s46
    %p50 = scmp.eq.s32.totalorder %s10, 0
    %p51 = por %p49, %p50
    %p52 = scmp.ne.s32.totalorder %s44, %s46
    %p53 = scmp.eq.s32.totalorder %s15, 1
    %p54 = por %p52, %p53
    %p55 = scmp.ne.s32.totalorder %s46, %s47
    %p56 = scmp.eq.s32.totalorder %s15, 0
    %p57 = por %p55, %p56
    %p58 = scmp.ne.s32.totalorder %s46, %s47
    %p59 = scmp.eq.s32.totalorder %s16, 1
    %p60 = por %p58, %p59
    %p62 = scmp.ne.s32.totalorder %s47, %s61
    %p63 = scmp.eq.s32.totalorder %s16, 0
    %p64 = por %p62, %p63
    %s66 = sadd.s32 %s65, 1
    %p69 = scmp.eq.s32.totalorder %s10, 1
    %p70 = scmp.ne.s32.totalorder %s65, %s67
    %p71 = scmp.eq.s32.totalorder %s10, 0
    %p72 = por %p70, %p71
    %p73 = scmp.ne.s32.totalorder %s65, %s67
    %p74 = scmp.eq.s32.totalorder %s15, 1
    %p75 = por %p73, %p74
    %p76 = scmp.ne.s32.totalorder %s67, %s68
    %p77 = scmp.eq.s32.totalorder %s15, 0
    %p78 = por %p76, %p77
    %p79 = scmp.ne.s32.totalorder %s67, %s68
    %p80 = scmp.eq.s32.totalorder %s16, 1
    %p81 = por %p79, %p80
    %p83 = scmp.ne.s32.totalorder %s68, %s82
    %p84 = scmp.eq.s32.totalorder %s16, 0
    %p85 = por %p83, %p84
    %s87 = sadd.s32 %s86, 1
    %p90 = scmp.eq.s32.totalorder %s10, 1
    %p91 = scmp.ne.s32.totalorder %s86, %s88
    %p92 = scmp.eq.s32.totalorder %s10, 0
    %p93 = por %p91, %p92
    %p94 = scmp.ne.s32.totalorder %s86, %s88
    %p95 = scmp.eq.s32.totalorder %s15, 1
    %p96 = por %p94, %p95
    %p97 = scmp.ne.s32.totalorder %s88, %s89
    %p98 = scmp.eq.s32.totalorder %s15, 0
    %p99 = por %p97, %p98
    %p100 = scmp.ne.s32.totalorder %s88, %s89
    %p101 = scmp.eq.s32.totalorder %s16, 1
    %p102 = por %p100, %p101
    %p104 = scmp.ne.s32.totalorder %s89, %s103
    %p105 = scmp.eq.s32.totalorder %s16, 0
    %p106 = por %p104, %p105
    %s107 = ssub.s32 %s10, %s17
    %p108 = scmp.eq.s32.totalorder %s107, 0
    %s110 = sadd.s32 %s109, 1
    %s111 = scalar_select %p108, %s109, %s110
    %p114 = pneg %p108
    %p115 = scmp.eq.s32.totalorder %s10, 1
    %p116 = por %p114, %p115
    %p117 = scmp.ne.s32.totalorder %s109, %s112
    %p118 = scmp.eq.s32.totalorder %s10, 0
    %p119 = por %p117, %p118
    %p120 = scmp.ne.s32.totalorder %s109, %s112
    %p121 = scmp.eq.s32.totalorder %s15, 1
    %p122 = por %p120, %p121
    %p123 = scmp.ne.s32.totalorder %s112, %s113
    %p124 = scmp.eq.s32.totalorder %s15, 0
    %p125 = por %p123, %p124
    %p126 = scmp.ne.s32.totalorder %s112, %s113
    %p127 = scmp.eq.s32.totalorder %s16, 1
    %p128 = por %p126, %p127
    %p130 = scmp.ne.s32.totalorder %s113, %s129
    %p131 = scmp.eq.s32.totalorder %s16, 0
    %p132 = por %p130, %p131
    %p133 = scmp.le.s32.totalorder 1, %s10
    %p134 = scmp.lt.s32.totalorder %s10, 3
    %p135 = pnand %p133, %p134
    %p136 = pneg %p135
    // Predicated region
    $region9: #{neck_forward.9} parent=5 // pred_check
      _
    $region10: #{neck_forward.9} parent=5 // pred_check_branch
      %138 = sbr.rel (%p135) target = $region12
    $region11: #{neck_forward.9} parent=5 // pred_region
      %s139 = ssub.s32 %s10, 1
      // Predicated region
      $region13: #{neck_forward.9} parent=11 // pred_check
        %p140 = pneg %p57
      $region14: #{neck_forward.9} parent=11 // pred_check_branch
        %142 = sbr.rel (%p140) target = $region16
      $region15: #{neck_forward.9} parent=11 // pred_region
        _
      $region16: #{neck_forward.9} parent=11 // pred_fallthru
        _
      // Predicated region
      $region17: #{neck_forward.9} parent=11 // pred_check
        %p143 = pneg %p78
      $region18: #{neck_forward.9} parent=11 // pred_check_branch
        %145 = sbr.rel (%p143) target = $region20
      $region19: #{neck_forward.9} parent=11 // pred_region
        _
      $region20: #{neck_forward.9} parent=11 // pred_fallthru
        _
      // Predicated region
      $region21: #{neck_forward.9} parent=11 // pred_check
        %p146 = pneg %p99
      $region22: #{neck_forward.9} parent=11 // pred_check_branch
        %148 = sbr.rel (%p146) target = $region24
      $region23: #{neck_forward.9} parent=11 // pred_region
        _
      $region24: #{neck_forward.9} parent=11 // pred_fallthru
        _
    $region12: #{neck_forward.9} parent=5 // pred_fallthru
      _
    %p149 = scmp.lt.s32.totalorder %s10, 2
    // Predicated region
    $region25: #{neck_forward.9} parent=5 // pred_check
      %p150 = pneg %p149
    $region26: #{neck_forward.9} parent=5 // pred_check_branch
      %152 = sbr.rel (%p150) target = $region28
    $region27: #{neck_forward.9} parent=5 // pred_region
      // Predicated region
      $region29: #{neck_forward.9} parent=27 // pred_check
        %p153 = pneg %p30
      $region30: #{neck_forward.9} parent=27 // pred_check_branch
        %155 = sbr.rel (%p153) target = $region32
      $region31: #{neck_forward.9} parent=27 // pred_region
        %p156 = scmp.lt.s32.totalorder %s10, 1
        %s157 = scalar_select %p156, %s10, 1
        %s158 = smul.addr %s157, 2
        %s159 = smul.addr %s158, 8
        %s160 = scalar_lea.vmem %s0, %s159
      $region32: #{neck_forward.9} parent=27 // pred_fallthru
        _
    $region28: #{neck_forward.9} parent=5 // pred_fallthru
      _
    %p161 = scmp.le.s32.totalorder 1, %s10
    %p162 = scmp.lt.s32.totalorder %s10, 3
    %p163 = pnand %p161, %p162
    %p164 = pneg %p163
    // Predicated region
    $region33: #{neck_forward.9} parent=5 // pred_check
      _
    $region34: #{neck_forward.9} parent=5 // pred_check_branch
      %166 = sbr.rel (%p163) target = $region36
    $region35: #{neck_forward.9} parent=5 // pred_region
      %s167 = ssub.s32 %s10, 1
      %p168 = scmp.lt.s32.totalorder %s15, 1
      %s169 = scalar_select %p168, %s15, 1
      %s170 = smul.addr %s169, 2
      %s171 = smul.addr %s170, 8
      %s172 = scalar_lea.vmem %s0, %s171
      %p173 = pneg %p36
      %p174 = pneg %p33
      %p175 = pneg %p57
      %p176 = pneg %p54
      %p177 = pneg %p78
      %p178 = pneg %p75
      %p179 = pneg %p99
      %p180 = pneg %p96
      %p181 = pneg %p125
      %p182 = pneg %p122
      %p183 = scmp.lt.s32.totalorder %s15, 1
      %s184 = scalar_select %p183, %s15, 1
      %s185 = smul.addr %s184, 8
      %s186 = scalar_lea.vmem %s4, %s185
      %p187 = scmp.lt.s32.totalorder %s15, 1
      %s188 = scalar_select %p187, %s15, 1
      %s189 = smul.addr %s188, 2
      %s190 = smul.addr %s189, 8
      %s191 = scalar_lea.vmem %s0, %s190
      %p192 = scmp.lt.s32.totalorder %s15, 1
      %s193 = scalar_select %p192, %s15, 1
      %s194 = smul.addr %s193, 8
      %s195 = scalar_lea.vmem %s4, %s194
      %p196 = scmp.eq.s32.totalorder %s15, 0
      // Predicated region
      $region37: #{neck_forward.9} parent=35 // pred_check
        %p197 = pneg %p196
      $region38: #{neck_forward.9} parent=35 // pred_check_branch
        %199 = sbr.rel (%p197) target = $region40
      $region39: #{neck_forward.9} parent=35 // pred_region
        %200 = vst [vmem:[#allocation2] sm:$0xff] 0.0
        %201 = vst [vmem:[#allocation2 + $0x8] sm:$0xff] 0.0
        %202 = vst [vmem:[#allocation2 + $0x10] sm:$0xff] 0.0
        %203 = vst [vmem:[#allocation2 + $0x18] sm:$0xff] 0.0
      $region40: #{neck_forward.9} parent=35 // pred_fallthru
        _
      %v204 = vld [vmem:[%s3] sm:$0xff]
      %206 = vset.pattern.permute.xlu0 0
      %207 = vperm.xlu0 %206, %v204
      %v208 = vpop.permute.xlu0 %207
      %v210 = vld [vmem:[%s2] sm:$0xff]
      %v211 = vld [vmem:[%s2 + $0x8] sm:$0x1]
      %v212 = vld [vmem:[%s191] sm:$0xff]
      %v213 = vld [vmem:[%s191 + $0x8] sm:$0xff]
      %vm214 = vcmask 31744
      %215 = vst.msk [vmem:[#allocation2 + $0x8] sm:$0xff] %vm214, %v212
      %216 = vst.msk [vmem:[#allocation2 + $0x18] sm:$0xff] %vm214, %v213
      %v217 = vld [vmem:[%s1] sm:$0xff]
      %v218 = vld [vmem:[%s1 + $0x8] sm:$0xff]
      %v219 = vld [vmem:[%s1 + $0x10] sm:$0xff]
      %v220 = vld [vmem:[%s1 + $0x18] sm:$0xff]
      %v221 = vld [vmem:[%s1 + $0x20] sm:$0xff]
      %v222 = vld [vmem:[%s1 + $0x28] sm:$0xff]
      %v223 = vld [vmem:[%s1 + $0x30] sm:$0xff]
      %v224 = vld [vmem:[%s1 + $0x38] sm:$0xff]
      %v225 = vld [vmem:[%s1 + $0x40] sm:$0xff]
      %v226 = vld [vmem:[#allocation2] sm:$0xff]
      %v227 = vld [vmem:[#allocation2 + $0x8] sm:$0xff]
      %v228 = vld [vmem:[#allocation2 + $0x10] sm:$0xff]
      %v229 = vld [vmem:[#allocation2 + $0x18] sm:$0xff]
      %v230 = vperm.slane %v210, 0
      %232 = vrot.lane.b32.xlu0 %v230, 125
      %v233 = vpop.permute.xlu0 %232
      %v235 = vmul.f32 %v226, %v233
      %v236 = vmul.f32 %v227, %v233
      %v237 = vmul.f32 %v228, %v233
      %v238 = vmul.f32 %v229, %v233
      %243 = vrot.lane.b32.xlu0 %v235, 3
      %v244 = vpop.permute.xlu0 %243
      %245 = vrot.lane.b32.xlu0 %v236, 3
      %v246 = vpop.permute.xlu0 %245
      %247 = vrot.lane.b32.xlu0 %v237, 3
      %v248 = vpop.permute.xlu0 %247
      %249 = vrot.lane.b32.xlu0 %v238, 3
      %v250 = vpop.permute.xlu0 %249
      %vm251 = vcmask 23552
      %v252 = vsel %vm251, %v244, %v246
      %v253 = vsel %vm251, %v248, %v250
      %vm256 = vcmask 130048
      %v258 = vsel %vm256, %v217, 0
      %260 = vmatpush.msra.mxu0 0.0
      %261 = vmatpush.msra.mxu0 0.0
      %262 = vmatpush.msra.mxu0 0.0
      %263 = vmatpush.msra.mxu0 0.0
      %264 = vmatpush.msra.mxu0 0.0
      %265 = vmatpush.msra.mxu0 0.0
      %266 = vmatpush.msra.mxu0 0.0
      %267 = vmatpush.msra.mxu0 0.0
      %268 = vmatpush.msra.mxu0 0.0
      %269 = vmatpush.msra.mxu0 0.0
      %270 = vmatpush.msra.mxu0 0.0
      %271 = vmatpush.msra.mxu0 0.0
      %272 = vmatpush.msra.mxu0 0.0
      %273 = vmatpush.msra.mxu0 0.0
      %274 = vmatpush.msra.mxu0 %v253
      %275 = vmatpush.msra.mxu0 %v252
      %276 = vmatmul.f32.gmra.mxu0 %v258
      %v277 = vpop.f32.mrf.mxu0
      %v278 = vadd.f32 0.0, %v277
      %279 = vdwg.mxu0
      %v280 = vadd.f32 %v208, %v278
      %285 = vrot.lane.b32.xlu0 %v226, 2
      %v286 = vpop.permute.xlu0 %285
      %287 = vrot.lane.b32.xlu0 %v227, 2
      %v288 = vpop.permute.xlu0 %287
      %289 = vrot.lane.b32.xlu0 %v228, 2
      %v290 = vpop.permute.xlu0 %289
      %291 = vrot.lane.b32.xlu0 %v229, 2
      %v292 = vpop.permute.xlu0 %291
      %vm293 = vcmask 15360
      %v294 = vsel %vm293, %v286, %v288
      %v295 = vsel %vm293, %v290, %v292
      %v299 = vsel %vm256, %v218, 0
      %301 = vmatpush.msra.mxu0 0.0
      %302 = vmatpush.msra.mxu0 0.0
      %303 = vmatpush.msra.mxu0 0.0
      %304 = vmatpush.msra.mxu0 0.0
      %305 = vmatpush.msra.mxu0 0.0
      %306 = vmatpush.msra.mxu0 0.0
      %307 = vmatpush.msra.mxu0 0.0
      %308 = vmatpush.msra.mxu0 0.0
      %309 = vmatpush.msra.mxu0 0.0
      %310 = vmatpush.msra.mxu0 0.0
      %311 = vmatpush.msra.mxu0 0.0
      %312 = vmatpush.msra.mxu0 0.0
      %313 = vmatpush.msra.mxu0 0.0
      %314 = vmatpush.msra.mxu0 0.0
      %315 = vmatpush.msra.mxu0 %v295
      %316 = vmatpush.msra.mxu0 %v294
      %317 = vmatmul.f32.gmra.mxu0 %v299
      %v318 = vpop.f32.mrf.mxu0
      %v319 = vadd.f32 0.0, %v318
      %320 = vdwg.mxu0
      %v321 = vadd.f32 %v280, %v319
      %v322 = vperm.slane %v210, 2
      %324 = vrot.lane.b32.xlu0 %v322, 127
      %v325 = vpop.permute.xlu0 %324
      %v327 = vmul.f32 %v226, %v325
      %v328 = vmul.f32 %v227, %v325
      %v329 = vmul.f32 %v228, %v325
      %v330 = vmul.f32 %v229, %v325
      %335 = vrot.lane.b32.xlu0 %v327, 1
      %v336 = vpop.permute.xlu0 %335
      %337 = vrot.lane.b32.xlu0 %v328, 1
      %v338 = vpop.permute.xlu0 %337
      %339 = vrot.lane.b32.xlu0 %v329, 1
      %v340 = vpop.permute.xlu0 %339
      %341 = vrot.lane.b32.xlu0 %v330, 1
      %v342 = vpop.permute.xlu0 %341
      %vm343 = vcmask 7168
      %v344 = vsel %vm343, %v336, %v338
      %v345 = vsel %vm343, %v340, %v342
      %v349 = vsel %vm256, %v219, 0
      %351 = vmatpush.msra.mxu0 0.0
      %352 = vmatpush.msra.mxu0 0.0
      %353 = vmatpush.msra.mxu0 0.0
      %354 = vmatpush.msra.mxu0 0.0
      %355 = vmatpush.msra.mxu0 0.0
      %356 = vmatpush.msra.mxu0 0.0
      %357 = vmatpush.msra.mxu0 0.0
      %358 = vmatpush.msra.mxu0 0.0
      %359 = vmatpush.msra.mxu0 0.0
      %360 = vmatpush.msra.mxu0 0.0
      %361 = vmatpush.msra.mxu0 0.0
      %362 = vmatpush.msra.mxu0 0.0
      %363 = vmatpush.msra.mxu0 0.0
      %364 = vmatpush.msra.mxu0 0.0
      %365 = vmatpush.msra.mxu0 %v345
      %366 = vmatpush.msra.mxu0 %v344
      %367 = vmatmul.f32.gmra.mxu0 %v349
      %v368 = vpop.f32.mrf.mxu0
      %v369 = vadd.f32 0.0, %v368
      %370 = vdwg.mxu0
      %v371 = vadd.f32 %v321, %v369
      %v372 = vperm.slane %v210, 3
      %374 = vrot.lane.b32.xlu0 %v372, 127
      %v375 = vpop.permute.xlu0 %374
      %v377 = vmul.f32 %v226, %v375
      %v378 = vmul.f32 %v227, %v375
      %v379 = vmul.f32 %v228, %v375
      %v380 = vmul.f32 %v229, %v375
      %385 = vrot.lane.b32.xlu0 %v377, 1
      %v386 = vpop.permute.xlu0 %385
      %387 = vrot.lane.b32.xlu0 %v378, 1
      %v388 = vpop.permute.xlu0 %387
      %389 = vrot.lane.b32.xlu0 %v379, 1
      %v390 = vpop.permute.xlu0 %389
      %391 = vrot.lane.b32.xlu0 %v380, 1
      %v392 = vpop.permute.xlu0 %391
      %v393 = vsel %vm343, %v386, %v388
      %v394 = vsel %vm343, %v390, %v392
      %v398 = vsel %vm256, %v220, 0
      %400 = vmatpush.msra.mxu0 0.0
      %401 = vmatpush.msra.mxu0 0.0
      %402 = vmatpush.msra.mxu0 0.0
      %403 = vmatpush.msra.mxu0 0.0
      %404 = vmatpush.msra.mxu0 0.0
      %405 = vmatpush.msra.mxu0 0.0
      %406 = vmatpush.msra.mxu0 0.0
      %407 = vmatpush.msra.mxu0 0.0
      %408 = vmatpush.msra.mxu0 0.0
      %409 = vmatpush.msra.mxu0 0.0
      %410 = vmatpush.msra.mxu0 0.0
      %411 = vmatpush.msra.mxu0 0.0
      %412 = vmatpush.msra.mxu0 0.0
      %413 = vmatpush.msra.mxu0 0.0
      %414 = vmatpush.msra.mxu0 %v394
      %415 = vmatpush.msra.mxu0 %v393
      %416 = vmatmul.f32.gmra.mxu0 %v398
      %v417 = vpop.f32.mrf.mxu0
      %v418 = vadd.f32 0.0, %v417
      %419 = vdwg.mxu0
      %v420 = vadd.f32 %v371, %v418
      %v422 = vsel %vm256, %v221, 0
      %424 = vmatpush.msra.mxu0 0.0
      %425 = vmatpush.msra.mxu0 0.0
      %426 = vmatpush.msra.mxu0 0.0
      %427 = vmatpush.msra.mxu0 0.0
      %428 = vmatpush.msra.mxu0 0.0
      %429 = vmatpush.msra.mxu0 0.0
      %430 = vmatpush.msra.mxu0 0.0
      %431 = vmatpush.msra.mxu0 0.0
      %432 = vmatpush.msra.mxu0 0.0
      %433 = vmatpush.msra.mxu0 0.0
      %434 = vmatpush.msra.mxu0 0.0
      %435 = vmatpush.msra.mxu0 0.0
      %436 = vmatpush.msra.mxu0 0.0
      %437 = vmatpush.msra.mxu0 0.0
      %438 = vmatpush.msra.mxu0 %v229
      %439 = vmatpush.msra.mxu0 %v227
      %440 = vmatmul.f32.gmra.mxu0 %v422
      %v441 = vpop.f32.mrf.mxu0
      %v442 = vadd.f32 0.0, %v441
      %443 = vdwg.mxu0
      %v444 = vadd.f32 %v420, %v442
      %v445 = vperm.slane %v210, 5
      %447 = vrot.lane.b32.xlu0 %v445, 1
      %v448 = vpop.permute.xlu0 %447
      %v450 = vmul.f32 %v227, %v448
      %v451 = vmul.f32 %v229, %v448
      %454 = vrot.lane.b32.xlu0 %v450, 127
      %v455 = vpop.permute.xlu0 %454
      %456 = vrot.lane.b32.xlu0 %v451, 127
      %v457 = vpop.permute.xlu0 %456
      %v461 = vsel %vm256, %v222, 0
      %463 = vmatpush.msra.mxu0 0.0
      %464 = vmatpush.msra.mxu0 0.0
      %465 = vmatpush.msra.mxu0 0.0
      %466 = vmatpush.msra.mxu0 0.0
      %467 = vmatpush.msra.mxu0 0.0
      %468 = vmatpush.msra.mxu0 0.0
      %469 = vmatpush.msra.mxu0 0.0
      %470 = vmatpush.msra.mxu0 0.0
      %471 = vmatpush.msra.mxu0 0.0
      %472 = vmatpush.msra.mxu0 0.0
      %473 = vmatpush.msra.mxu0 0.0
      %474 = vmatpush.msra.mxu0 0.0
      %475 = vmatpush.msra.mxu0 0.0
      %476 = vmatpush.msra.mxu0 0.0
      %477 = vmatpush.msra.mxu0 %v457
      %478 = vmatpush.msra.mxu0 %v455
      %479 = vmatmul.f32.gmra.mxu0 %v461
      %v480 = vpop.f32.mrf.mxu0
      %v481 = vadd.f32 0.0, %v480
      %482 = vdwg.mxu0
      %v483 = vadd.f32 %v444, %v481
      %v484 = vperm.slane %v210, 6
      %486 = vrot.lane.b32.xlu0 %v484, 1
      %v487 = vpop.permute.xlu0 %486
      %v489 = vmul.f32 %v227, %v487
      %v490 = vmul.f32 %v229, %v487
      %493 = vrot.lane.b32.xlu0 %v489, 127
      %v494 = vpop.permute.xlu0 %493
      %495 = vrot.lane.b32.xlu0 %v490, 127
      %v496 = vpop.permute.xlu0 %495
      %v500 = vsel %vm256, %v223, 0
      %502 = vmatpush.msra.mxu0 0.0
      %503 = vmatpush.msra.mxu0 0.0
      %504 = vmatpush.msra.mxu0 0.0
      %505 = vmatpush.msra.mxu0 0.0
      %506 = vmatpush.msra.mxu0 0.0
      %507 = vmatpush.msra.mxu0 0.0
      %508 = vmatpush.msra.mxu0 0.0
      %509 = vmatpush.msra.mxu0 0.0
      %510 = vmatpush.msra.mxu0 0.0
      %511 = vmatpush.msra.mxu0 0.0
      %512 = vmatpush.msra.mxu0 0.0
      %513 = vmatpush.msra.mxu0 0.0
      %514 = vmatpush.msra.mxu0 0.0
      %515 = vmatpush.msra.mxu0 0.0
      %516 = vmatpush.msra.mxu0 %v496
      %517 = vmatpush.msra.mxu0 %v494
      %518 = vmatmul.f32.gmra.mxu0 %v500
      %v519 = vpop.f32.mrf.mxu0
      %v520 = vadd.f32 0.0, %v519
      %521 = vdwg.mxu0
      %v522 = vadd.f32 %v483, %v520
      %523 = vrot.lane.b32.xlu0 %v227, 126
      %v524 = vpop.permute.xlu0 %523
      %525 = vrot.lane.b32.xlu0 %v229, 126
      %v526 = vpop.permute.xlu0 %525
      %v530 = vsel %vm256, %v224, 0
      %532 = vmatpush.msra.mxu0 0.0
      %533 = vmatpush.msra.mxu0 0.0
      %534 = vmatpush.msra.mxu0 0.0
      %535 = vmatpush.msra.mxu0 0.0
      %536 = vmatpush.msra.mxu0 0.0
      %537 = vmatpush.msra.mxu0 0.0
      %538 = vmatpush.msra.mxu0 0.0
      %539 = vmatpush.msra.mxu0 0.0
      %540 = vmatpush.msra.mxu0 0.0
      %541 = vmatpush.msra.mxu0 0.0
      %542 = vmatpush.msra.mxu0 0.0
      %543 = vmatpush.msra.mxu0 0.0
      %544 = vmatpush.msra.mxu0 0.0
      %545 = vmatpush.msra.mxu0 0.0
      %546 = vmatpush.msra.mxu0 %v526
      %547 = vmatpush.msra.mxu0 %v524
      %548 = vmatmul.f32.gmra.mxu0 %v530
      %v549 = vpop.f32.mrf.mxu0
      %v550 = vadd.f32 0.0, %v549
      %551 = vdwg.mxu0
      %v552 = vadd.f32 %v522, %v550
      %v553 = vperm.slane %v211, 0
      %555 = vrot.lane.b32.xlu0 %v553, 3
      %v556 = vpop.permute.xlu0 %555
      %v558 = vmul.f32 %v227, %v556
      %v559 = vmul.f32 %v229, %v556
      %562 = vrot.lane.b32.xlu0 %v558, 125
      %v563 = vpop.permute.xlu0 %562
      %564 = vrot.lane.b32.xlu0 %v559, 125
      %v565 = vpop.permute.xlu0 %564
      %v569 = vsel %vm256, %v225, 0
      %571 = vmatpush.msra.mxu0 0.0
      %572 = vmatpush.msra.mxu0 0.0
      %573 = vmatpush.msra.mxu0 0.0
      %574 = vmatpush.msra.mxu0 0.0
      %575 = vmatpush.msra.mxu0 0.0
      %576 = vmatpush.msra.mxu0 0.0
      %577 = vmatpush.msra.mxu0 0.0
      %578 = vmatpush.msra.mxu0 0.0
      %579 = vmatpush.msra.mxu0 0.0
      %580 = vmatpush.msra.mxu0 0.0
      %581 = vmatpush.msra.mxu0 0.0
      %582 = vmatpush.msra.mxu0 0.0
      %583 = vmatpush.msra.mxu0 0.0
      %584 = vmatpush.msra.mxu0 0.0
      %585 = vmatpush.msra.mxu0 %v565
      %586 = vmatpush.msra.mxu0 %v563
      %587 = vmatmul.f32.gmra.mxu0 %v569
      %v588 = vpop.f32.mrf.mxu0
      %v589 = vadd.f32 0.0, %v588
      %590 = vdwg.mxu0
      %v591 = vadd.f32 %v552, %v589
      %v592 = vmax.f32 %v591, 0.0
      %593 = vst.msk [vmem:[%s195] sm:$0xff] %vm214, %v592
      %p594 = scmp.lt.s32.totalorder %s15, 1
      %s595 = scalar_select %p594, %s15, 1
      %s596 = smul.addr %s595, 8
      %s597 = scalar_lea.vmem %s4, %s596
      // Predicated region
      $region41: #{neck_forward.9} parent=35 // pred_check
        %p598 = pneg %p122
      $region42: #{neck_forward.9} parent=35 // pred_check_branch
        %600 = sbr.rel (%p598) target = $region44
      $region43: #{neck_forward.9} parent=35 // pred_region
        _
      $region44: #{neck_forward.9} parent=35 // pred_fallthru
        _
    $region36: #{neck_forward.9} parent=5 // pred_fallthru
      _
    %p601 = scmp.le.s32.totalorder 2, %s10
    // Predicated region
    $region45: #{neck_forward.9} parent=5 // pred_check
      %p602 = pneg %p601
    $region46: #{neck_forward.9} parent=5 // pred_check_branch
      %604 = sbr.rel (%p602) target = $region48
    $region47: #{neck_forward.9} parent=5 // pred_region
      %s605 = ssub.s32 %s10, 2
      // Predicated region
      $region49: #{neck_forward.9} parent=47 // pred_check
        %p606 = pneg %p128
      $region50: #{neck_forward.9} parent=47 // pred_check_branch
        %608 = sbr.rel (%p606) target = $region52
      $region51: #{neck_forward.9} parent=47 // pred_region
        %p609 = scmp.lt.s32.totalorder %s16, 1
        %s610 = scalar_select %p609, %s16, 1
        %s611 = smul.addr %s610, 8
        %s612 = scalar_lea.vmem %s4, %s611
      $region52: #{neck_forward.9} parent=47 // pred_fallthru
        _
    $region48: #{neck_forward.9} parent=5 // pred_fallthru
      _
  $region6: #{neck_forward.9} parent=0 // loop_footer
    %s14 = sadd.s32 1, %s10
  $region7: #{neck_forward.9} parent=0 // loop_footer_branch
    %9 = sbr.rel target = $region3
  $region8: #{neck_forward.9} parent=0 // loop_exit
    _

// kernel: neck_forward.10
$region0: #{neck_forward.10}
  #allocation0 [shape = 'u32[]', space=smem, size = 0x4, offset = 0x4, fixed_abs, tag = 'smem constant byte address 0x4 - core index']
  #allocation1 [shape = 'u32[72,128]{1,0:T(1,128)}', space=vmem, size = 0x9000, scoped, tag = 'internal scratch']
  #allocation2 [shape = 'f32[8,256]{1,0:T(8,128)}', space=vmem, size = 0x2000, scoped, tag = 'scratch operand']
  %s0 = inlined_call_operand.vmem [shape: f32[2,8,4], index: 0, kind: input, shape index: {}]
  %s1 = inlined_call_operand.vmem [shape: f32[4,16], index: 1, kind: input, shape index: {}]
  %s2 = inlined_call_operand.vmem [shape: f32[9,8,8], index: 2, kind: input, shape index: {}]
  %s3 = inlined_call_operand.vmem [shape: f32[9,16], index: 3, kind: input, shape index: {}]
  %s4 = inlined_call_operand.vmem [shape: f32[8,1], index: 4, kind: input, shape index: {}]
  %s5 = inlined_call_operand.vmem [shape: f32[2,8,16], index: 5, kind: output, shape index: {}]
  %s6 = sld [smem:[#allocation0]]
  $region57: #{neck_forward.10} parent=0
    _
  %s8 = ssub.s32 1, %s6
  %s9 = scalar_select 0, %s8, %s6
  loop: start=0, step=1, limit=4
  $region2: #{neck_forward.10} parent=0 // loop_pre_header
    _
  $region3: #{neck_forward.10} parent=0 // loop_header
    %s11 = sphi 0, %s15
    %p12 = scmp.ge.s32.totalorder %s11, 4
    %s21 = sphi 0, %s23
    %s24 = sphi 0, %s21
    %s25 = sphi 0, %s24
    %s41 = sphi 0, %s25
    %s45 = sphi 0, %s45
    %s47 = sphi 0, %s45
    %s48 = sphi 0, %s47
    %s62 = sphi 0, %s48
    %s66 = sphi 0, %s66
    %s68 = sphi 0, %s66
    %s69 = sphi 0, %s68
    %s83 = sphi 0, %s69
    %s87 = sphi 0, %s87
    %s89 = sphi 0, %s87
    %s90 = sphi 0, %s89
    %s104 = sphi 0, %s90
    %s108 = sphi 0, %s108
    %s110 = sphi 0, %s108
    %s111 = sphi 0, %s110
    %s125 = sphi 0, %s111
    %s131 = sphi 0, %s133
    %s134 = sphi 0, %s131
    %s135 = sphi 0, %s134
    %s151 = sphi 0, %s135
  $region4: #{neck_forward.10} parent=0 // loop_header_branch
    %14 = sbr.rel (%p12) target = $region8
  $region5: #{neck_forward.10} parent=0 // loop_body
    %s16 = ssub.s32 %s11, 1
    %s17 = ssub.s32 %s11, 2
    %s18 = sadd.s32 %s11, 1
    %s19 = ssub.s32 %s11, %s18
    %p20 = scmp.eq.s32.totalorder %s19, 0
    %s22 = sadd.s32 %s21, 1
    %s23 = scalar_select %p20, %s21, %s22
    %p26 = pneg %p20
    %p27 = scmp.eq.s32.totalorder %s11, 1
    %p28 = por %p26, %p27
    %p29 = scmp.ne.s32.totalorder %s21, %s24
    %p30 = scmp.eq.s32.totalorder %s11, 0
    %p31 = por %p29, %p30
    %p32 = scmp.ne.s32.totalorder %s21, %s24
    %p33 = scmp.eq.s32.totalorder %s16, 1
    %p34 = por %p32, %p33
    %p35 = scmp.ne.s32.totalorder %s24, %s25
    %p36 = scmp.eq.s32.totalorder %s16, 0
    %p37 = por %p35, %p36
    %p38 = scmp.ne.s32.totalorder %s24, %s25
    %p39 = scmp.eq.s32.totalorder %s17, 1
    %p40 = por %p38, %p39
    %p42 = scmp.ne.s32.totalorder %s25, %s41
    %p43 = scmp.eq.s32.totalorder %s17, 0
    %p44 = por %p42, %p43
    %s46 = sadd.s32 %s45, 1
    %p49 = scmp.eq.s32.totalorder %s11, 1
    %p50 = scmp.ne.s32.totalorder %s45, %s47
    %p51 = scmp.eq.s32.totalorder %s11, 0
    %p52 = por %p50, %p51
    %p53 = scmp.ne.s32.totalorder %s45, %s47
    %p54 = scmp.eq.s32.totalorder %s16, 1
    %p55 = por %p53, %p54
    %p56 = scmp.ne.s32.totalorder %s47, %s48
    %p57 = scmp.eq.s32.totalorder %s16, 0
    %p58 = por %p56, %p57
    %p59 = scmp.ne.s32.totalorder %s47, %s48
    %p60 = scmp.eq.s32.totalorder %s17, 1
    %p61 = por %p59, %p60
    %p63 = scmp.ne.s32.totalorder %s48, %s62
    %p64 = scmp.eq.s32.totalorder %s17, 0
    %p65 = por %p63, %p64
    %s67 = sadd.s32 %s66, 1
    %p70 = scmp.eq.s32.totalorder %s11, 1
    %p71 = scmp.ne.s32.totalorder %s66, %s68
    %p72 = scmp.eq.s32.totalorder %s11, 0
    %p73 = por %p71, %p72
    %p74 = scmp.ne.s32.totalorder %s66, %s68
    %p75 = scmp.eq.s32.totalorder %s16, 1
    %p76 = por %p74, %p75
    %p77 = scmp.ne.s32.totalorder %s68, %s69
    %p78 = scmp.eq.s32.totalorder %s16, 0
    %p79 = por %p77, %p78
    %p80 = scmp.ne.s32.totalorder %s68, %s69
    %p81 = scmp.eq.s32.totalorder %s17, 1
    %p82 = por %p80, %p81
    %p84 = scmp.ne.s32.totalorder %s69, %s83
    %p85 = scmp.eq.s32.totalorder %s17, 0
    %p86 = por %p84, %p85
    %s88 = sadd.s32 %s87, 1
    %p91 = scmp.eq.s32.totalorder %s11, 1
    %p92 = scmp.ne.s32.totalorder %s87, %s89
    %p93 = scmp.eq.s32.totalorder %s11, 0
    %p94 = por %p92, %p93
    %p95 = scmp.ne.s32.totalorder %s87, %s89
    %p96 = scmp.eq.s32.totalorder %s16, 1
    %p97 = por %p95, %p96
    %p98 = scmp.ne.s32.totalorder %s89, %s90
    %p99 = scmp.eq.s32.totalorder %s16, 0
    %p100 = por %p98, %p99
    %p101 = scmp.ne.s32.totalorder %s89, %s90
    %p102 = scmp.eq.s32.totalorder %s17, 1
    %p103 = por %p101, %p102
    %p105 = scmp.ne.s32.totalorder %s90, %s104
    %p106 = scmp.eq.s32.totalorder %s17, 0
    %p107 = por %p105, %p106
    %s109 = sadd.s32 %s108, 1
    %p112 = scmp.eq.s32.totalorder %s11, 1
    %p113 = scmp.ne.s32.totalorder %s108, %s110
    %p114 = scmp.eq.s32.totalorder %s11, 0
    %p115 = por %p113, %p114
    %p116 = scmp.ne.s32.totalorder %s108, %s110
    %p117 = scmp.eq.s32.totalorder %s16, 1
    %p118 = por %p116, %p117
    %p119 = scmp.ne.s32.totalorder %s110, %s111
    %p120 = scmp.eq.s32.totalorder %s16, 0
    %p121 = por %p119, %p120
    %p122 = scmp.ne.s32.totalorder %s110, %s111
    %p123 = scmp.eq.s32.totalorder %s17, 1
    %p124 = por %p122, %p123
    %p126 = scmp.ne.s32.totalorder %s111, %s125
    %p127 = scmp.eq.s32.totalorder %s17, 0
    %p128 = por %p126, %p127
    %s129 = ssub.s32 %s11, %s18
    %p130 = scmp.eq.s32.totalorder %s129, 0
    %s132 = sadd.s32 %s131, 1
    %s133 = scalar_select %p130, %s131, %s132
    %p136 = pneg %p130
    %p137 = scmp.eq.s32.totalorder %s11, 1
    %p138 = por %p136, %p137
    %p139 = scmp.ne.s32.totalorder %s131, %s134
    %p140 = scmp.eq.s32.totalorder %s11, 0
    %p141 = por %p139, %p140
    %p142 = scmp.ne.s32.totalorder %s131, %s134
    %p143 = scmp.eq.s32.totalorder %s16, 1
    %p144 = por %p142, %p143
    %p145 = scmp.ne.s32.totalorder %s134, %s135
    %p146 = scmp.eq.s32.totalorder %s16, 0
    %p147 = por %p145, %p146
    %p148 = scmp.ne.s32.totalorder %s134, %s135
    %p149 = scmp.eq.s32.totalorder %s17, 1
    %p150 = por %p148, %p149
    %p152 = scmp.ne.s32.totalorder %s135, %s151
    %p153 = scmp.eq.s32.totalorder %s17, 0
    %p154 = por %p152, %p153
    %p155 = scmp.le.s32.totalorder 1, %s11
    %p156 = scmp.lt.s32.totalorder %s11, 3
    %p157 = pnand %p155, %p156
    %p158 = pneg %p157
    // Predicated region
    $region9: #{neck_forward.10} parent=5 // pred_check
      _
    $region10: #{neck_forward.10} parent=5 // pred_check_branch
      %160 = sbr.rel (%p157) target = $region12
    $region11: #{neck_forward.10} parent=5 // pred_region
      %s161 = ssub.s32 %s11, 1
      // Predicated region
      $region13: #{neck_forward.10} parent=11 // pred_check
        %p162 = pneg %p58
      $region14: #{neck_forward.10} parent=11 // pred_check_branch
        %164 = sbr.rel (%p162) target = $region16
      $region15: #{neck_forward.10} parent=11 // pred_region
        _
      $region16: #{neck_forward.10} parent=11 // pred_fallthru
        _
      // Predicated region
      $region17: #{neck_forward.10} parent=11 // pred_check
        %p165 = pneg %p79
      $region18: #{neck_forward.10} parent=11 // pred_check_branch
        %167 = sbr.rel (%p165) target = $region20
      $region19: #{neck_forward.10} parent=11 // pred_region
        _
      $region20: #{neck_forward.10} parent=11 // pred_fallthru
        _
      // Predicated region
      $region21: #{neck_forward.10} parent=11 // pred_check
        %p168 = pneg %p100
      $region22: #{neck_forward.10} parent=11 // pred_check_branch
        %170 = sbr.rel (%p168) target = $region24
      $region23: #{neck_forward.10} parent=11 // pred_region
        _
      $region24: #{neck_forward.10} parent=11 // pred_fallthru
        _
      // Predicated region
      $region25: #{neck_forward.10} parent=11 // pred_check
        %p171 = pneg %p121
      $region26: #{neck_forward.10} parent=11 // pred_check_branch
        %173 = sbr.rel (%p171) target = $region28
      $region27: #{neck_forward.10} parent=11 // pred_region
        _
      $region28: #{neck_forward.10} parent=11 // pred_fallthru
        _
    $region12: #{neck_forward.10} parent=5 // pred_fallthru
      _
    %p174 = scmp.lt.s32.totalorder %s11, 2
    // Predicated region
    $region29: #{neck_forward.10} parent=5 // pred_check
      %p175 = pneg %p174
    $region30: #{neck_forward.10} parent=5 // pred_check_branch
      %177 = sbr.rel (%p175) target = $region32
    $region31: #{neck_forward.10} parent=5 // pred_region
      // Predicated region
      $region33: #{neck_forward.10} parent=31 // pred_check
        %p178 = pneg %p31
      $region34: #{neck_forward.10} parent=31 // pred_check_branch
        %180 = sbr.rel (%p178) target = $region36
      $region35: #{neck_forward.10} parent=31 // pred_region
        %p181 = scmp.lt.s32.totalorder %s11, 1
        %s182 = scalar_select %p181, %s11, 1
        %s183 = smul.addr %s182, 8
        %s184 = scalar_lea.vmem %s0, %s183
      $region36: #{neck_forward.10} parent=31 // pred_fallthru
        _
    $region32: #{neck_forward.10} parent=5 // pred_fallthru
      _
    %p185 = scmp.le.s32.totalorder 1, %s11
    %p186 = scmp.lt.s32.totalorder %s11, 3
    %p187 = pnand %p185, %p186
    %p188 = pneg %p187
    // Predicated region
    $region37: #{neck_forward.10} parent=5 // pred_check
      _
    $region38: #{neck_forward.10} parent=5 // pred_check_branch
      %190 = sbr.rel (%p187) target = $region40
    $region39: #{neck_forward.10} parent=5 // pred_region
      %s191 = ssub.s32 %s11, 1
      %p192 = scmp.lt.s32.totalorder %s16, 1
      %s193 = scalar_select %p192, %s16, 1
      %s194 = smul.addr %s193, 8
      %s195 = scalar_lea.vmem %s0, %s194
      %p196 = pneg %p37
      %p197 = pneg %p34
      %p198 = pneg %p58
      %p199 = pneg %p55
      %p200 = pneg %p79
      %p201 = pneg %p76
      %p202 = pneg %p100
      %p203 = pneg %p97
      %p204 = pneg %p121
      %p205 = pneg %p118
      %p206 = pneg %p147
      %p207 = pneg %p144
      %p208 = scmp.lt.s32.totalorder %s16, 1
      %s209 = scalar_select %p208, %s16, 1
      %s210 = smul.addr %s209, 8
      %s211 = scalar_lea.vmem %s5, %s210
      %p212 = scmp.lt.s32.totalorder %s16, 1
      %s213 = scalar_select %p212, %s16, 1
      %s214 = smul.addr %s213, 8
      %s215 = scalar_lea.vmem %s0, %s214
      %p216 = scmp.lt.s32.totalorder %s16, 1
      %s217 = scalar_select %p216, %s16, 1
      %s218 = smul.addr %s217, 8
      %s219 = scalar_lea.vmem %s5, %s218
      %p220 = scmp.eq.s32.totalorder %s16, 0
      // Predicated region
      $region41: #{neck_forward.10} parent=39 // pred_check
        %p221 = pneg %p220
      $region42: #{neck_forward.10} parent=39 // pred_check_branch
        %223 = sbr.rel (%p221) target = $region44
      $region43: #{neck_forward.10} parent=39 // pred_region
        %224 = vst [vmem:[#allocation2] sm:$0xff] 0.0
        %225 = vst [vmem:[#allocation2 + $0x8] sm:$0xff] 0.0
      $region44: #{neck_forward.10} parent=39 // pred_fallthru
        _
      %v226 = vld [vmem:[%s4] sm:$0xff]
      %228 = vset.pattern.permute.xlu0 0
      %229 = vperm.xlu0 %228, %v226
      %v230 = vpop.permute.xlu0 %229
      %v232 = vld [vmem:[%s3] sm:$0xff]
      %v233 = vld [vmem:[%s3 + $0x8] sm:$0x1]
      %v234 = vld [vmem:[%s215] sm:$0xff]
      %v235 = vld [vmem:[%s1] sm:$0xf]
      %vm236 = vcmask 31744
      %v238 = vsel %vm236, %v234, 0
      %vm240 = vcmask 1043456
      %v242 = vsel %vm240, %v235, 0
      %244 = vmatpush.msra.mxu0 0.0
      %245 = vmatpush.msra.mxu0 0.0
      %246 = vmatpush.msra.mxu0 0.0
      %247 = vmatpush.msra.mxu0 0.0
      %248 = vmatpush.msra.mxu0 0.0
      %249 = vmatpush.msra.mxu0 0.0
      %250 = vmatpush.msra.mxu0 0.0
      %251 = vmatpush.msra.mxu0 0.0
      %252 = vmatpush.msra.mxu0 0.0
      %253 = vmatpush.msra.mxu0 0.0
      %254 = vmatpush.msra.mxu0 0.0
      %255 = vmatpush.msra.mxu0 0.0
      %256 = vmatpush.msra.mxu0 0.0
      %257 = vmatpush.msra.mxu0 0.0
      %258 = vmatpush.msra.mxu0 0.0
      %259 = vmatpush.msra.mxu0 %v242
      %260 = vmatmul.f32.gmra.mxu0 %v238
      %v261 = vpop.f32.mrf.mxu0
      %v262 = vadd.f32 0.0, %v261
      %263 = vdwg.mxu0
      %vm264 = vcmask 130048
      %265 = vst.msk [vmem:[#allocation2 + $0x8] sm:$0xff] %vm264, %v262
      %v266 = vld [vmem:[%s2] sm:$0xff]
      %v267 = vld [vmem:[%s2 + $0x8] sm:$0xff]
      %v268 = vld [vmem:[%s2 + $0x10] sm:$0xff]
      %v269 = vld [vmem:[%s2 + $0x18] sm:$0xff]
      %v270 = vld [vmem:[%s2 + $0x20] sm:$0xff]
      %v271 = vld [vmem:[%s2 + $0x28] sm:$0xff]
      %v272 = vld [vmem:[%s2 + $0x30] sm:$0xff]
      %v273 = vld [vmem:[%s2 + $0x38] sm:$0xff]
      %v274 = vld [vmem:[%s2 + $0x40] sm:$0xff]
      %v275 = vld [vmem:[#allocation2] sm:$0xff]
      %v276 = vld [vmem:[#allocation2 + $0x8] sm:$0xff]
      %v277 = vperm.slane %v232, 0
      %279 = vrot.lane.b32.xlu0 %v277, 123
      %v280 = vpop.permute.xlu0 %279
      %v282 = vmul.f32 %v275, %v280
      %v283 = vmul.f32 %v276, %v280
      %286 = vrot.lane.b32.xlu0 %v282, 5
      %v287 = vpop.permute.xlu0 %286
      %288 = vrot.lane.b32.xlu0 %v283, 5
      %v289 = vpop.permute.xlu0 %288
      %vm290 = vcmask 39936
      %v291 = vsel %vm290, %v287, %v289
      %vm293 = vcmask 64512
      %v295 = vsel %vm293, %v266, 0
      %297 = vmatpush.msra.mxu0 0.0
      %298 = vmatpush.msra.mxu0 0.0
      %299 = vmatpush.msra.mxu0 0.0
      %300 = vmatpush.msra.mxu0 0.0
      %301 = vmatpush.msra.mxu0 0.0
      %302 = vmatpush.msra.mxu0 0.0
      %303 = vmatpush.msra.mxu0 0.0
      %304 = vmatpush.msra.mxu0 0.0
      %305 = vmatpush.msra.mxu0 0.0
      %306 = vmatpush.msra.mxu0 0.0
      %307 = vmatpush.msra.mxu0 0.0
      %308 = vmatpush.msra.mxu0 0.0
      %309 = vmatpush.msra.mxu0 0.0
      %310 = vmatpush.msra.mxu0 0.0
      %311 = vmatpush.msra.mxu0 0.0
      %312 = vmatpush.msra.mxu0 %v291
      %313 = vmatmul.f32.gmra.mxu0 %v295
      %v314 = vpop.f32.mrf.mxu0
      %v315 = vadd.f32 0.0, %v314
      %316 = vdwg.mxu0
      %v317 = vadd.f32 %v230, %v315
      %320 = vrot.lane.b32.xlu0 %v275, 4
      %v321 = vpop.permute.xlu0 %320
      %322 = vrot.lane.b32.xlu0 %v276, 4
      %v323 = vpop.permute.xlu0 %322
      %v324 = vsel %vm236, %v321, %v323
      %v327 = vsel %vm293, %v267, 0
      %329 = vmatpush.msra.mxu0 0.0
      %330 = vmatpush.msra.mxu0 0.0
      %331 = vmatpush.msra.mxu0 0.0
      %332 = vmatpush.msra.mxu0 0.0
      %333 = vmatpush.msra.mxu0 0.0
      %334 = vmatpush.msra.mxu0 0.0
      %335 = vmatpush.msra.mxu0 0.0
      %336 = vmatpush.msra.mxu0 0.0
      %337 = vmatpush.msra.mxu0 0.0
      %338 = vmatpush.msra.mxu0 0.0
      %339 = vmatpush.msra.mxu0 0.0
      %340 = vmatpush.msra.mxu0 0.0
      %341 = vmatpush.msra.mxu0 0.0
      %342 = vmatpush.msra.mxu0 0.0
      %343 = vmatpush.msra.mxu0 0.0
      %344 = vmatpush.msra.mxu0 %v324
      %345 = vmatmul.f32.gmra.mxu0 %v327
      %v346 = vpop.f32.mrf.mxu0
      %v347 = vadd.f32 0.0, %v346
      %348 = vdwg.mxu0
      %v349 = vadd.f32 %v317, %v347
      %v350 = vperm.slane %v232, 2
      %352 = vrot.lane.b32.xlu0 %v350, 125
      %v353 = vpop.permute.xlu0 %352
      %v355 = vmul.f32 %v275, %v353
      %v356 = vmul.f32 %v276, %v353
      %359 = vrot.lane.b32.xlu0 %v355, 3
      %v360 = vpop.permute.xlu0 %359
      %361 = vrot.lane.b32.xlu0 %v356, 3
      %v362 = vpop.permute.xlu0 %361
      %vm363 = vcmask 23552
      %v364 = vsel %vm363, %v360, %v362
      %v367 = vsel %vm293, %v268, 0
      %369 = vmatpush.msra.mxu0 0.0
      %370 = vmatpush.msra.mxu0 0.0
      %371 = vmatpush.msra.mxu0 0.0
      %372 = vmatpush.msra.mxu0 0.0
      %373 = vmatpush.msra.mxu0 0.0
      %374 = vmatpush.msra.mxu0 0.0
      %375 = vmatpush.msra.mxu0 0.0
      %376 = vmatpush.msra.mxu0 0.0
      %377 = vmatpush.msra.mxu0 0.0
      %378 = vmatpush.msra.mxu0 0.0
      %379 = vmatpush.msra.mxu0 0.0
      %380 = vmatpush.msra.mxu0 0.0
      %381 = vmatpush.msra.mxu0 0.0
      %382 = vmatpush.msra.mxu0 0.0
      %383 = vmatpush.msra.mxu0 0.0
      %384 = vmatpush.msra.mxu0 %v364
      %385 = vmatmul.f32.gmra.mxu0 %v367
      %v386 = vpop.f32.mrf.mxu0
      %v387 = vadd.f32 0.0, %v386
      %388 = vdwg.mxu0
      %v389 = vadd.f32 %v349, %v387
      %v390 = vperm.slane %v232, 3
      %392 = vrot.lane.b32.xlu0 %v390, 127
      %v393 = vpop.permute.xlu0 %392
      %v395 = vmul.f32 %v275, %v393
      %v396 = vmul.f32 %v276, %v393
      %399 = vrot.lane.b32.xlu0 %v395, 1
      %v400 = vpop.permute.xlu0 %399
      %401 = vrot.lane.b32.xlu0 %v396, 1
      %v402 = vpop.permute.xlu0 %401
      %vm403 = vcmask 7168
      %v404 = vsel %vm403, %v400, %v402
      %v407 = vsel %vm293, %v269, 0
      %409 = vmatpush.msra.mxu0 0.0
      %410 = vmatpush.msra.mxu0 0.0
      %411 = vmatpush.msra.mxu0 0.0
      %412 = vmatpush.msra.mxu0 0.0
      %413 = vmatpush.msra.mxu0 0.0
      %414 = vmatpush.msra.mxu0 0.0
      %415 = vmatpush.msra.mxu0 0.0
      %416 = vmatpush.msra.mxu0 0.0
      %417 = vmatpush.msra.mxu0 0.0
      %418 = vmatpush.msra.mxu0 0.0
      %419 = vmatpush.msra.mxu0 0.0
      %420 = vmatpush.msra.mxu0 0.0
      %421 = vmatpush.msra.mxu0 0.0
      %422 = vmatpush.msra.mxu0 0.0
      %423 = vmatpush.msra.mxu0 0.0
      %424 = vmatpush.msra.mxu0 %v404
      %425 = vmatmul.f32.gmra.mxu0 %v407
      %v426 = vpop.f32.mrf.mxu0
      %v427 = vadd.f32 0.0, %v426
      %428 = vdwg.mxu0
      %v429 = vadd.f32 %v389, %v427
      %v431 = vsel %vm293, %v270, 0
      %433 = vmatpush.msra.mxu0 0.0
      %434 = vmatpush.msra.mxu0 0.0
      %435 = vmatpush.msra.mxu0 0.0
      %436 = vmatpush.msra.mxu0 0.0
      %437 = vmatpush.msra.mxu0 0.0
      %438 = vmatpush.msra.mxu0 0.0
      %439 = vmatpush.msra.mxu0 0.0
      %440 = vmatpush.msra.mxu0 0.0
      %441 = vmatpush.msra.mxu0 0.0
      %442 = vmatpush.msra.mxu0 0.0
      %443 = vmatpush.msra.mxu0 0.0
      %444 = vmatpush.msra.mxu0 0.0
      %445 = vmatpush.msra.mxu0 0.0
      %446 = vmatpush.msra.mxu0 0.0
      %447 = vmatpush.msra.mxu0 0.0
      %448 = vmatpush.msra.mxu0 %v276
      %449 = vmatmul.f32.gmra.mxu0 %v431
      %v450 = vpop.f32.mrf.mxu0
      %v451 = vadd.f32 0.0, %v450
      %452 = vdwg.mxu0
      %v453 = vadd.f32 %v429, %v451
      %v454 = vperm.slane %v232, 5
      %456 = vrot.lane.b32.xlu0 %v454, 1
      %v457 = vpop.permute.xlu0 %456
      %v459 = vmul.f32 %v276, %v457
      %461 = vrot.lane.b32.xlu0 %v459, 127
      %v462 = vpop.permute.xlu0 %461
      %v465 = vsel %vm293, %v271, 0
      %467 = vmatpush.msra.mxu0 0.0
      %468 = vmatpush.msra.mxu0 0.0
      %469 = vmatpush.msra.mxu0 0.0
      %470 = vmatpush.msra.mxu0 0.0
      %471 = vmatpush.msra.mxu0 0.0
      %472 = vmatpush.msra.mxu0 0.0
      %473 = vmatpush.msra.mxu0 0.0
      %474 = vmatpush.msra.mxu0 0.0
      %475 = vmatpush.msra.mxu0 0.0
      %476 = vmatpush.msra.mxu0 0.0
      %477 = vmatpush.msra.mxu0 0.0
      %478 = vmatpush.msra.mxu0 0.0
      %479 = vmatpush.msra.mxu0 0.0
      %480 = vmatpush.msra.mxu0 0.0
      %481 = vmatpush.msra.mxu0 0.0
      %482 = vmatpush.msra.mxu0 %v462
      %483 = vmatmul.f32.gmra.mxu0 %v465
      %v484 = vpop.f32.mrf.mxu0
      %v485 = vadd.f32 0.0, %v484
      %486 = vdwg.mxu0
      %v487 = vadd.f32 %v453, %v485
      %v488 = vperm.slane %v232, 6
      %490 = vrot.lane.b32.xlu0 %v488, 3
      %v491 = vpop.permute.xlu0 %490
      %v493 = vmul.f32 %v276, %v491
      %495 = vrot.lane.b32.xlu0 %v493, 125
      %v496 = vpop.permute.xlu0 %495
      %v499 = vsel %vm293, %v272, 0
      %501 = vmatpush.msra.mxu0 0.0
      %502 = vmatpush.msra.mxu0 0.0
      %503 = vmatpush.msra.mxu0 0.0
      %504 = vmatpush.msra.mxu0 0.0
      %505 = vmatpush.msra.mxu0 0.0
      %506 = vmatpush.msra.mxu0 0.0
      %507 = vmatpush.msra.mxu0 0.0
      %508 = vmatpush.msra.mxu0 0.0
      %509 = vmatpush.msra.mxu0 0.0
      %510 = vmatpush.msra.mxu0 0.0
      %511 = vmatpush.msra.mxu0 0.0
      %512 = vmatpush.msra.mxu0 0.0
      %513 = vmatpush.msra.mxu0 0.0
      %514 = vmatpush.msra.mxu0 0.0
      %515 = vmatpush.msra.mxu0 0.0
      %516 = vmatpush.msra.mxu0 %v496
      %517 = vmatmul.f32.gmra.mxu0 %v499
      %v518 = vpop.f32.mrf.mxu0
      %v519 = vadd.f32 0.0, %v518
      %520 = vdwg.mxu0
      %v521 = vadd.f32 %v487, %v519
      %522 = vrot.lane.b32.xlu0 %v276, 124
      %v523 = vpop.permute.xlu0 %522
      %v526 = vsel %vm293, %v273, 0
      %528 = vmatpush.msra.mxu0 0.0
      %529 = vmatpush.msra.mxu0 0.0
      %530 = vmatpush.msra.mxu0 0.0
      %531 = vmatpush.msra.mxu0 0.0
      %532 = vmatpush.msra.mxu0 0.0
      %533 = vmatpush.msra.mxu0 0.0
      %534 = vmatpush.msra.mxu0 0.0
      %535 = vmatpush.msra.mxu0 0.0
      %536 = vmatpush.msra.mxu0 0.0
      %537 = vmatpush.msra.mxu0 0.0
      %538 = vmatpush.msra.mxu0 0.0
      %539 = vmatpush.msra.mxu0 0.0
      %540 = vmatpush.msra.mxu0 0.0
      %541 = vmatpush.msra.mxu0 0.0
      %542 = vmatpush.msra.mxu0 0.0
      %543 = vmatpush.msra.mxu0 %v523
      %544 = vmatmul.f32.gmra.mxu0 %v526
      %v545 = vpop.f32.mrf.mxu0
      %v546 = vadd.f32 0.0, %v545
      %547 = vdwg.mxu0
      %v548 = vadd.f32 %v521, %v546
      %v549 = vperm.slane %v233, 0
      %551 = vrot.lane.b32.xlu0 %v549, 5
      %v552 = vpop.permute.xlu0 %551
      %v554 = vmul.f32 %v276, %v552
      %556 = vrot.lane.b32.xlu0 %v554, 123
      %v557 = vpop.permute.xlu0 %556
      %v560 = vsel %vm293, %v274, 0
      %562 = vmatpush.msra.mxu0 0.0
      %563 = vmatpush.msra.mxu0 0.0
      %564 = vmatpush.msra.mxu0 0.0
      %565 = vmatpush.msra.mxu0 0.0
      %566 = vmatpush.msra.mxu0 0.0
      %567 = vmatpush.msra.mxu0 0.0
      %568 = vmatpush.msra.mxu0 0.0
      %569 = vmatpush.msra.mxu0 0.0
      %570 = vmatpush.msra.mxu0 0.0
      %571 = vmatpush.msra.mxu0 0.0
      %572 = vmatpush.msra.mxu0 0.0
      %573 = vmatpush.msra.mxu0 0.0
      %574 = vmatpush.msra.mxu0 0.0
      %575 = vmatpush.msra.mxu0 0.0
      %576 = vmatpush.msra.mxu0 0.0
      %577 = vmatpush.msra.mxu0 %v557
      %578 = vmatmul.f32.gmra.mxu0 %v560
      %v579 = vpop.f32.mrf.mxu0
      %v580 = vadd.f32 0.0, %v579
      %581 = vdwg.mxu0
      %v582 = vadd.f32 %v548, %v580
      %v583 = vmax.f32 %v582, 0.0
      %584 = vst.msk [vmem:[%s219] sm:$0xff] %vm264, %v583
      %p585 = scmp.lt.s32.totalorder %s16, 1
      %s586 = scalar_select %p585, %s16, 1
      %s587 = smul.addr %s586, 8
      %s588 = scalar_lea.vmem %s5, %s587
      // Predicated region
      $region45: #{neck_forward.10} parent=39 // pred_check
        %p589 = pneg %p144
      $region46: #{neck_forward.10} parent=39 // pred_check_branch
        %591 = sbr.rel (%p589) target = $region48
      $region47: #{neck_forward.10} parent=39 // pred_region
        _
      $region48: #{neck_forward.10} parent=39 // pred_fallthru
        _
    $region40: #{neck_forward.10} parent=5 // pred_fallthru
      _
    %p592 = scmp.le.s32.totalorder 2, %s11
    // Predicated region
    $region49: #{neck_forward.10} parent=5 // pred_check
      %p593 = pneg %p592
    $region50: #{neck_forward.10} parent=5 // pred_check_branch
      %595 = sbr.rel (%p593) target = $region52
    $region51: #{neck_forward.10} parent=5 // pred_region
      %s596 = ssub.s32 %s11, 2
      // Predicated region
      $region53: #{neck_forward.10} parent=51 // pred_check
        %p597 = pneg %p150
      $region54: #{neck_forward.10} parent=51 // pred_check_branch
        %599 = sbr.rel (%p597) target = $region56
      $region55: #{neck_forward.10} parent=51 // pred_region
        %p600 = scmp.lt.s32.totalorder %s17, 1
        %s601 = scalar_select %p600, %s17, 1
        %s602 = smul.addr %s601, 8
        %s603 = scalar_lea.vmem %s5, %s602
      $region56: #{neck_forward.10} parent=51 // pred_fallthru
        _
    $region52: #{neck_forward.10} parent=5 // pred_fallthru
      _
  $region6: #{neck_forward.10} parent=0 // loop_footer
    %s15 = sadd.s32 1, %s11
  $region7: #{neck_forward.10} parent=0 // loop_footer_branch
    %10 = sbr.rel target = $region3
  $region8: #{neck_forward.10} parent=0 // loop_exit
    _

// kernel: neck_forward.11
$region0: #{neck_forward.11}
  #allocation0 [shape = 'u32[]', space=smem, size = 0x4, offset = 0x4, fixed_abs, tag = 'smem constant byte address 0x4 - core index']
  #allocation1 [shape = 'u32[72,128]{1,0:T(1,128)}', space=vmem, size = 0x9000, scoped, tag = 'internal scratch']
  #allocation2 [shape = 'f32[8,256]{1,0:T(8,128)}', space=vmem, size = 0x2000, scoped, tag = 'scratch operand']
  %s0 = inlined_call_operand.vmem [shape: f32[2,8,16], index: 0, kind: input, shape index: {}]
  %s1 = inlined_call_operand.vmem [shape: f32[16,64], index: 1, kind: input, shape index: {}, may-alias: {1,4}]
  %s2 = inlined_call_operand.vmem [shape: f32[9,8,8], index: 2, kind: input, shape index: {}]
  %s3 = inlined_call_operand.vmem [shape: f32[2,8,16], index: 3, kind: input, shape index: {}]
  %s4 = inlined_call_operand.vmem [shape: f32[16,64], index: 4, kind: input, shape index: {}, may-alias: {1,4}]
  %s5 = inlined_call_operand.vmem [shape: f32[9,8,8], index: 5, kind: input, shape index: {}]
  %s6 = inlined_call_operand.vmem [shape: f32[9,64], index: 6, kind: input, shape index: {}]
  %s7 = inlined_call_operand.vmem [shape: f32[8,1], index: 7, kind: input, shape index: {}]
  %s8 = inlined_call_operand.vmem [shape: f32[2,8,64], index: 8, kind: output, shape index: {}]
  %s9 = sld [smem:[#allocation0]]
  $region69: #{neck_forward.11} parent=0
    _
  %s11 = ssub.s32 1, %s9
  %s12 = scalar_select 0, %s11, %s9
  loop: start=0, step=1, limit=4
  $region2: #{neck_forward.11} parent=0 // loop_pre_header
    _
  $region3: #{neck_forward.11} parent=0 // loop_header
    %s14 = sphi 0, %s18
    %p15 = scmp.ge.s32.totalorder %s14, 4
    %s24 = sphi 0, %s26
    %s27 = sphi 0, %s24
    %s28 = sphi 0, %s27
    %s44 = sphi 0, %s28
    %s48 = sphi 0, %s48
    %s50 = sphi 0, %s48
    %s51 = sphi 0, %s50
    %s65 = sphi 0, %s51
    %s69 = sphi 0, %s69
    %s71 = sphi 0, %s69
    %s72 = sphi 0, %s71
    %s86 = sphi 0, %s72
    %s92 = sphi 0, %s94
    %s95 = sphi 0, %s92
    %s96 = sphi 0, %s95
    %s112 = sphi 0, %s96
    %s116 = sphi 0, %s116
    %s118 = sphi 0, %s116
    %s119 = sphi 0, %s118
    %s133 = sphi 0, %s119
    %s137 = sphi 0, %s137
    %s139 = sphi 0, %s137
    %s140 = sphi 0, %s139
    %s154 = sphi 0, %s140
    %s158 = sphi 0, %s158
    %s160 = sphi 0, %s158
    %s161 = sphi 0, %s160
    %s175 = sphi 0, %s161
    %s179 = sphi 0, %s179
    %s181 = sphi 0, %s179
    %s182 = sphi 0, %s181
    %s196 = sphi 0, %s182
    %s202 = sphi 0, %s204
    %s205 = sphi 0, %s202
    %s206 = sphi 0, %s205
    %s222 = sphi 0, %s206
  $region4: #{neck_forward.11} parent=0 // loop_header_branch
    %17 = sbr.rel (%p15) target = $region8
  $region5: #{neck_forward.11} parent=0 // loop_body
    %s19 = ssub.s32 %s14, 1
    %s20 = ssub.s32 %s14, 2
    %s21 = sadd.s32 %s14, 1
    %s22 = ssub.s32 %s14, %s21
    %p23 = scmp.eq.s32.totalorder %s22, 0
    %s25 = sadd.s32 %s24, 1
    %s26 = scalar_select %p23, %s24, %s25
    %p29 = pneg %p23
    %p30 = scmp.eq.s32.totalorder %s14, 1
    %p31 = por %p29, %p30
    %p32 = scmp.ne.s32.totalorder %s24, %s27
    %p33 = scmp.eq.s32.totalorder %s14, 0
    %p34 = por %p32, %p33
    %p35 = scmp.ne.s32.totalorder %s24, %s27
    %p36 = scmp.eq.s32.totalorder %s19, 1
    %p37 = por %p35, %p36
    %p38 = scmp.ne.s32.totalorder %s27, %s28
    %p39 = scmp.eq.s32.totalorder %s19, 0
    %p40 = por %p38, %p39
    %p41 = scmp.ne.s32.totalorder %s27, %s28
    %p42 = scmp.eq.s32.totalorder %s20, 1
    %p43 = por %p41, %p42
    %p45 = scmp.ne.s32.totalorder %s28, %s44
    %p46 = scmp.eq.s32.totalorder %s20, 0
    %p47 = por %p45, %p46
    %s49 = sadd.s32 %s48, 1
    %p52 = scmp.eq.s32.totalorder %s14, 1
    %p53 = scmp.ne.s32.totalorder %s48, %s50
    %p54 = scmp.eq.s32.totalorder %s14, 0
    %p55 = por %p53, %p54
    %p56 = scmp.ne.s32.totalorder %s48, %s50
    %p57 = scmp.eq.s32.totalorder %s19, 1
    %p58 = por %p56, %p57
    %p59 = scmp.ne.s32.totalorder %s50, %s51
    %p60 = scmp.eq.s32.totalorder %s19, 0
    %p61 = por %p59, %p60
    %p62 = scmp.ne.s32.totalorder %s50, %s51
    %p63 = scmp.eq.s32.totalorder %s20, 1
    %p64 = por %p62, %p63
    %p66 = scmp.ne.s32.totalorder %s51, %s65
    %p67 = scmp.eq.s32.totalorder %s20, 0
    %p68 = por %p66, %p67
    %s70 = sadd.s32 %s69, 1
    %p73 = scmp.eq.s32.totalorder %s14, 1
    %p74 = scmp.ne.s32.totalorder %s69, %s71
    %p75 = scmp.eq.s32.totalorder %s14, 0
    %p76 = por %p74, %p75
    %p77 = scmp.ne.s32.totalorder %s69, %s71
    %p78 = scmp.eq.s32.totalorder %s19, 1
    %p79 = por %p77, %p78
    %p80 = scmp.ne.s32.totalorder %s71, %s72
    %p81 = scmp.eq.s32.totalorder %s19, 0
    %p82 = por %p80, %p81
    %p83 = scmp.ne.s32.totalorder %s71, %s72
    %p84 = scmp.eq.s32.totalorder %s20, 1
    %p85 = por %p83, %p84
    %p87 = scmp.ne.s32.totalorder %s72, %s86
    %p88 = scmp.eq.s32.totalorder %s20, 0
    %p89 = por %p87, %p88
    %s90 = ssub.s32 %s14, %s21
    %p91 = scmp.eq.s32.totalorder %s90, 0
    %s93 = sadd.s32 %s92, 1
    %s94 = scalar_select %p91, %s92, %s93
    %p97 = pneg %p91
    %p98 = scmp.eq.s32.totalorder %s14, 1
    %p99 = por %p97, %p98
    %p100 = scmp.ne.s32.totalorder %s92, %s95
    %p101 = scmp.eq.s32.totalorder %s14, 0
    %p102 = por %p100, %p101
    %p103 = scmp.ne.s32.totalorder %s92, %s95
    %p104 = scmp.eq.s32.totalorder %s19, 1
    %p105 = por %p103, %p104
    %p106 = scmp.ne.s32.totalorder %s95, %s96
    %p107 = scmp.eq.s32.totalorder %s19, 0
    %p108 = por %p106, %p107
    %p109 = scmp.ne.s32.totalorder %s95, %s96
    %p110 = scmp.eq.s32.totalorder %s20, 1
    %p111 = por %p109, %p110
    %p113 = scmp.ne.s32.totalorder %s96, %s112
    %p114 = scmp.eq.s32.totalorder %s20, 0
    %p115 = por %p113, %p114
    %s117 = sadd.s32 %s116, 1
    %p120 = scmp.eq.s32.totalorder %s14, 1
    %p121 = scmp.ne.s32.totalorder %s116, %s118
    %p122 = scmp.eq.s32.totalorder %s14, 0
    %p123 = por %p121, %p122
    %p124 = scmp.ne.s32.totalorder %s116, %s118
    %p125 = scmp.eq.s32.totalorder %s19, 1
    %p126 = por %p124, %p125
    %p127 = scmp.ne.s32.totalorder %s118, %s119
    %p128 = scmp.eq.s32.totalorder %s19, 0
    %p129 = por %p127, %p128
    %p130 = scmp.ne.s32.totalorder %s118, %s119
    %p131 = scmp.eq.s32.totalorder %s20, 1
    %p132 = por %p130, %p131
    %p134 = scmp.ne.s32.totalorder %s119, %s133
    %p135 = scmp.eq.s32.totalorder %s20, 0
    %p136 = por %p134, %p135
    %s138 = sadd.s32 %s137, 1
    %p141 = scmp.eq.s32.totalorder %s14, 1
    %p142 = scmp.ne.s32.totalorder %s137, %s139
    %p143 = scmp.eq.s32.totalorder %s14, 0
    %p144 = por %p142, %p143
    %p145 = scmp.ne.s32.totalorder %s137, %s139
    %p146 = scmp.eq.s32.totalorder %s19, 1
    %p147 = por %p145, %p146
    %p148 = scmp.ne.s32.totalorder %s139, %s140
    %p149 = scmp.eq.s32.totalorder %s19, 0
    %p150 = por %p148, %p149
    %p151 = scmp.ne.s32.totalorder %s139, %s140
    %p152 = scmp.eq.s32.totalorder %s20, 1
    %p153 = por %p151, %p152
    %p155 = scmp.ne.s32.totalorder %s140, %s154
    %p156 = scmp.eq.s32.totalorder %s20, 0
    %p157 = por %p155, %p156
    %s159 = sadd.s32 %s158, 1
    %p162 = scmp.eq.s32.totalorder %s14, 1
    %p163 = scmp.ne.s32.totalorder %s158, %s160
    %p164 = scmp.eq.s32.totalorder %s14, 0
    %p165 = por %p163, %p164
    %p166 = scmp.ne.s32.totalorder %s158, %s160
    %p167 = scmp.eq.s32.totalorder %s19, 1
    %p168 = por %p166, %p167
    %p169 = scmp.ne.s32.totalorder %s160, %s161
    %p170 = scmp.eq.s32.totalorder %s19, 0
    %p171 = por %p169, %p170
    %p172 = scmp.ne.s32.totalorder %s160, %s161
    %p173 = scmp.eq.s32.totalorder %s20, 1
    %p174 = por %p172, %p173
    %p176 = scmp.ne.s32.totalorder %s161, %s175
    %p177 = scmp.eq.s32.totalorder %s20, 0
    %p178 = por %p176, %p177
    %s180 = sadd.s32 %s179, 1
    %p183 = scmp.eq.s32.totalorder %s14, 1
    %p184 = scmp.ne.s32.totalorder %s179, %s181
    %p185 = scmp.eq.s32.totalorder %s14, 0
    %p186 = por %p184, %p185
    %p187 = scmp.ne.s32.totalorder %s179, %s181
    %p188 = scmp.eq.s32.totalorder %s19, 1
    %p189 = por %p187, %p188
    %p190 = scmp.ne.s32.totalorder %s181, %s182
    %p191 = scmp.eq.s32.totalorder %s19, 0
    %p192 = por %p190, %p191
    %p193 = scmp.ne.s32.totalorder %s181, %s182
    %p194 = scmp.eq.s32.totalorder %s20, 1
    %p195 = por %p193, %p194
    %p197 = scmp.ne.s32.totalorder %s182, %s196
    %p198 = scmp.eq.s32.totalorder %s20, 0
    %p199 = por %p197, %p198
    %s200 = ssub.s32 %s14, %s21
    %p201 = scmp.eq.s32.totalorder %s200, 0
    %s203 = sadd.s32 %s202, 1
    %s204 = scalar_select %p201, %s202, %s203
    %p207 = pneg %p201
    %p208 = scmp.eq.s32.totalorder %s14, 1
    %p209 = por %p207, %p208
    %p210 = scmp.ne.s32.totalorder %s202, %s205
    %p211 = scmp.eq.s32.totalorder %s14, 0
    %p212 = por %p210, %p211
    %p213 = scmp.ne.s32.totalorder %s202, %s205
    %p214 = scmp.eq.s32.totalorder %s19, 1
    %p215 = por %p213, %p214
    %p216 = scmp.ne.s32.totalorder %s205, %s206
    %p217 = scmp.eq.s32.totalorder %s19, 0
    %p218 = por %p216, %p217
    %p219 = scmp.ne.s32.totalorder %s205, %s206
    %p220 = scmp.eq.s32.totalorder %s20, 1
    %p221 = por %p219, %p220
    %p223 = scmp.ne.s32.totalorder %s206, %s222
    %p224 = scmp.eq.s32.totalorder %s20, 0
    %p225 = por %p223, %p224
    %p226 = scmp.le.s32.totalorder 1, %s14
    %p227 = scmp.lt.s32.totalorder %s14, 3
    %p228 = pnand %p226, %p227
    %p229 = pneg %p228
    // Predicated region
    $region9: #{neck_forward.11} parent=5 // pred_check
      _
    $region10: #{neck_forward.11} parent=5 // pred_check_branch
      %231 = sbr.rel (%p228) target = $region12
    $region11: #{neck_forward.11} parent=5 // pred_region
      %s232 = ssub.s32 %s14, 1
      // Predicated region
      $region13: #{neck_forward.11} parent=11 // pred_check
        %p233 = pneg %p61
      $region14: #{neck_forward.11} parent=11 // pred_check_branch
        %235 = sbr.rel (%p233) target = $region16
      $region15: #{neck_forward.11} parent=11 // pred_region
        _
      $region16: #{neck_forward.11} parent=11 // pred_fallthru
        _
      // Predicated region
      $region17: #{neck_forward.11} parent=11 // pred_check
        %p236 = pneg %p82
      $region18: #{neck_forward.11} parent=11 // pred_check_branch
        %238 = sbr.rel (%p236) target = $region20
      $region19: #{neck_forward.11} parent=11 // pred_region
        _
      $region20: #{neck_forward.11} parent=11 // pred_fallthru
        _
      // Predicated region
      $region21: #{neck_forward.11} parent=11 // pred_check
        %p239 = pneg %p129
      $region22: #{neck_forward.11} parent=11 // pred_check_branch
        %241 = sbr.rel (%p239) target = $region24
      $region23: #{neck_forward.11} parent=11 // pred_region
        _
      $region24: #{neck_forward.11} parent=11 // pred_fallthru
        _
      // Predicated region
      $region25: #{neck_forward.11} parent=11 // pred_check
        %p242 = pneg %p150
      $region26: #{neck_forward.11} parent=11 // pred_check_branch
        %244 = sbr.rel (%p242) target = $region28
      $region27: #{neck_forward.11} parent=11 // pred_region
        _
      $region28: #{neck_forward.11} parent=11 // pred_fallthru
        _
      // Predicated region
      $region29: #{neck_forward.11} parent=11 // pred_check
        %p245 = pneg %p171
      $region30: #{neck_forward.11} parent=11 // pred_check_branch
        %247 = sbr.rel (%p245) target = $region32
      $region31: #{neck_forward.11} parent=11 // pred_region
        _
      $region32: #{neck_forward.11} parent=11 // pred_fallthru
        _
      // Predicated region
      $region33: #{neck_forward.11} parent=11 // pred_check
        %p248 = pneg %p192
      $region34: #{neck_forward.11} parent=11 // pred_check_branch
        %250 = sbr.rel (%p248) target = $region36
      $region35: #{neck_forward.11} parent=11 // pred_region
        _
      $region36: #{neck_forward.11} parent=11 // pred_fallthru
        _
    $region12: #{neck_forward.11} parent=5 // pred_fallthru
      _
    %p251 = scmp.lt.s32.totalorder %s14, 2
    // Predicated region
    $region37: #{neck_forward.11} parent=5 // pred_check
      %p252 = pneg %p251
    $region38: #{neck_forward.11} parent=5 // pred_check_branch
      %254 = sbr.rel (%p252) target = $region40
    $region39: #{neck_forward.11} parent=5 // pred_region
      // Predicated region
      $region41: #{neck_forward.11} parent=39 // pred_check
        %p255 = pneg %p34
      $region42: #{neck_forward.11} parent=39 // pred_check_branch
        %257 = sbr.rel (%p255) target = $region44
      $region43: #{neck_forward.11} parent=39 // pred_region
        %p258 = scmp.lt.s32.totalorder %s14, 1
        %s259 = scalar_select %p258, %s14, 1
        %s260 = smul.addr %s259, 8
        %s261 = scalar_lea.vmem %s0, %s260
      $region44: #{neck_forward.11} parent=39 // pred_fallthru
        _
      // Predicated region
      $region45: #{neck_forward.11} parent=39 // pred_check
        %p262 = pneg %p102
      $region46: #{neck_forward.11} parent=39 // pred_check_branch
        %264 = sbr.rel (%p262) target = $region48
      $region47: #{neck_forward.11} parent=39 // pred_region
        %p265 = scmp.lt.s32.totalorder %s14, 1
        %s266 = scalar_select %p265, %s14, 1
        %s267 = smul.addr %s266, 8
        %s268 = scalar_lea.vmem %s3, %s267
      $region48: #{neck_forward.11} parent=39 // pred_fallthru
        _
    $region40: #{neck_forward.11} parent=5 // pred_fallthru
      _
    %p269 = scmp.le.s32.totalorder 1, %s14
    %p270 = scmp.lt.s32.totalorder %s14, 3
    %p271 = pnand %p269, %p270
    %p272 = pneg %p271
    // Predicated region
    $region49: #{neck_forward.11} parent=5 // pred_check
      _
    $region50: #{neck_forward.11} parent=5 // pred_check_branch
      %274 = sbr.rel (%p271) target = $region52
    $region51: #{neck_forward.11} parent=5 // pred_region
      %s275 = ssub.s32 %s14, 1
      %p276 = scmp.lt.s32.totalorder %s19, 1
      %s277 = scalar_select %p276, %s19, 1
      %s278 = smul.addr %s277, 8
      %s279 = scalar_lea.vmem %s0, %s278
      %p280 = pneg %p40
      %p281 = pneg %p37
      %p282 = pneg %p61
      %p283 = pneg %p58
      %p284 = pneg %p82
      %p285 = pneg %p79
      %p286 = scmp.lt.s32.totalorder %s19, 1
      %s287 = scalar_select %p286, %s19, 1
      %s288 = smul.addr %s287, 8
      %s289 = scalar_lea.vmem %s3, %s288
      %p290 = pneg %p108
      %p291 = pneg %p105
      %p292 = pneg %p129
      %p293 = pneg %p126
      %p294 = pneg %p150
      %p295 = pneg %p147
      %p296 = pneg %p171
      %p297 = pneg %p168
      %p298 = pneg %p192
      %p299 = pneg %p189
      %p300 = pneg %p218
      %p301 = pneg %p215
      %p302 = scmp.lt.s32.totalorder %s19, 1
      %s303 = scalar_select %p302, %s19, 1
      %s304 = smul.addr %s303, 8
      %s305 = scalar_lea.vmem %s8, %s304
      %p306 = scmp.lt.s32.totalorder %s19, 1
      %s307 = scalar_select %p306, %s19, 1
      %s308 = smul.addr %s307, 8
      %s309 = scalar_lea.vmem %s0, %s308
      %p310 = scmp.lt.s32.totalorder %s19, 1
      %s311 = scalar_select %p310, %s19, 1
      %s312 = smul.addr %s311, 8
      %s313 = scalar_lea.vmem %s3, %s312
      %p314 = scmp.lt.s32.totalorder %s19, 1
      %s315 = scalar_select %p314, %s19, 1
      %s316 = smul.addr %s315, 8
      %s317 = scalar_lea.vmem %s8, %s316
      %p318 = scmp.eq.s32.totalorder %s19, 0
      // Predicated region
      $region53: #{neck_forward.11} parent=51 // pred_check
        %p319 = pneg %p318
      $region54: #{neck_forward.11} parent=51 // pred_check_branch
        %321 = sbr.rel (%p319) target = $region56
      $region55: #{neck_forward.11} parent=51 // pred_region
        %322 = vst [vmem:[#allocation2] sm:$0xff] 0.0
        %323 = vst [vmem:[#allocation2 + $0x8] sm:$0xff] 0.0
      $region56: #{neck_forward.11} parent=51 // pred_fallthru
        _
      %v324 = vld [vmem:[%s7] sm:$0xff]
      %326 = vset.pattern.permute.xlu0 0
      %327 = vperm.xlu0 %326, %v324
      %v328 = vpop.permute.xlu0 %327
      %v330 = vld [vmem:[%s6] sm:$0xff]
      %v331 = vld [vmem:[%s6 + $0x8] sm:$0x1]
      %v332 = vld [vmem:[%s309] sm:$0xff]
      %v333 = vld [vmem:[%s1] sm:$0xff]
      %v334 = vld [vmem:[%s1 + $0x8] sm:$0xff]
      %vm335 = vcmask 130048
      %v337 = vsel %vm335, %v332, 0
      %339 = vmatpush.msra.mxu0 0.0
      %340 = vmatpush.msra.mxu0 0.0
      %341 = vmatpush.msra.mxu0 0.0
      %342 = vmatpush.msra.mxu0 0.0
      %343 = vmatpush.msra.mxu0 0.0
      %344 = vmatpush.msra.mxu0 0.0
      %345 = vmatpush.msra.mxu0 0.0
      %346 = vmatpush.msra.mxu0 0.0
      %347 = vmatpush.msra.mxu0 0.0
      %348 = vmatpush.msra.mxu0 0.0
      %349 = vmatpush.msra.mxu0 0.0
      %350 = vmatpush.msra.mxu0 0.0
      %351 = vmatpush.msra.mxu0 0.0
      %352 = vmatpush.msra.mxu0 0.0
      %353 = vmatpush.msra.mxu0 %v334
      %354 = vmatpush.msra.mxu0 %v333
      %355 = vmatmul.f32.gmra.mxu0 %v337
      %v356 = vpop.f32.mrf.mxu0
      %v357 = vadd.f32 0.0, %v356
      %358 = vdwg.mxu0
      %vm359 = vcmask 523264
      %360 = vst.msk [vmem:[#allocation2 + $0x8] sm:$0xff] %vm359, %v357
      %v361 = vld [vmem:[%s2] sm:$0xff]
      %v362 = vld [vmem:[%s2 + $0x8] sm:$0xff]
      %v363 = vld [vmem:[%s2 + $0x10] sm:$0xff]
      %v364 = vld [vmem:[%s2 + $0x18] sm:$0xff]
      %v365 = vld [vmem:[%s2 + $0x20] sm:$0xff]
      %v366 = vld [vmem:[%s2 + $0x28] sm:$0xff]
      %v367 = vld [vmem:[%s2 + $0x30] sm:$0xff]
      %v368 = vld [vmem:[%s2 + $0x38] sm:$0xff]
      %v369 = vld [vmem:[%s2 + $0x40] sm:$0xff]
      %v370 = vld [vmem:[#allocation2] sm:$0xff]
      %v371 = vld [vmem:[#allocation2 + $0x8] sm:$0xff]
      %v372 = vperm.slane %v330, 0
      %374 = vrot.lane.b32.xlu0 %v372, 119
      %v375 = vpop.permute.xlu0 %374
      %v377 = vmul.f32 %v370, %v375
      %v378 = vmul.f32 %v371, %v375
      %381 = vrot.lane.b32.xlu0 %v377, 9
      %v382 = vpop.permute.xlu0 %381
      %383 = vrot.lane.b32.xlu0 %v378, 9
      %v384 = vpop.permute.xlu0 %383
      %vm385 = vcmask 72704
      %v386 = vsel %vm385, %v382, %v384
      %vm388 = vcmask 64512
      %v390 = vsel %vm388, %v361, 0
      %392 = vmatpush.msra.mxu0 0.0
      %393 = vmatpush.msra.mxu0 0.0
      %394 = vmatpush.msra.mxu0 0.0
      %395 = vmatpush.msra.mxu0 0.0
      %396 = vmatpush.msra.mxu0 0.0
      %397 = vmatpush.msra.mxu0 0.0
      %398 = vmatpush.msra.mxu0 0.0
      %399 = vmatpush.msra.mxu0 0.0
      %400 = vmatpush.msra.mxu0 0.0
      %401 = vmatpush.msra.mxu0 0.0
      %402 = vmatpush.msra.mxu0 0.0
      %403 = vmatpush.msra.mxu0 0.0
      %404 = vmatpush.msra.mxu0 0.0
      %405 = vmatpush.msra.mxu0 0.0
      %406 = vmatpush.msra.mxu0 0.0
      %407 = vmatpush.msra.mxu0 %v386
      %408 = vmatmul.f32.gmra.mxu0 %v390
      %v409 = vpop.f32.mrf.mxu0
      %v410 = vadd.f32 0.0, %v409
      %411 = vdwg.mxu0
      %v412 = vadd.f32 %v328, %v410
      %415 = vrot.lane.b32.xlu0 %v370, 8
      %v416 = vpop.permute.xlu0 %415
      %417 = vrot.lane.b32.xlu0 %v371, 8
      %v418 = vpop.permute.xlu0 %417
      %v419 = vsel %vm388, %v416, %v418
      %v422 = vsel %vm388, %v362, 0
      %424 = vmatpush.msra.mxu0 0.0
      %425 = vmatpush.msra.mxu0 0.0
      %426 = vmatpush.msra.mxu0 0.0
      %427 = vmatpush.msra.mxu0 0.0
      %428 = vmatpush.msra.mxu0 0.0
      %429 = vmatpush.msra.mxu0 0.0
      %430 = vmatpush.msra.mxu0 0.0
      %431 = vmatpush.msra.mxu0 0.0
      %432 = vmatpush.msra.mxu0 0.0
      %433 = vmatpush.msra.mxu0 0.0
      %434 = vmatpush.msra.mxu0 0.0
      %435 = vmatpush.msra.mxu0 0.0
      %436 = vmatpush.msra.mxu0 0.0
      %437 = vmatpush.msra.mxu0 0.0
      %438 = vmatpush.msra.mxu0 0.0
      %439 = vmatpush.msra.mxu0 %v419
      %440 = vmatmul.f32.gmra.mxu0 %v422
      %v441 = vpop.f32.mrf.mxu0
      %v442 = vadd.f32 0.0, %v441
      %443 = vdwg.mxu0
      %v444 = vadd.f32 %v412, %v442
      %v445 = vperm.slane %v330, 2
      %447 = vrot.lane.b32.xlu0 %v445, 121
      %v448 = vpop.permute.xlu0 %447
      %v450 = vmul.f32 %v370, %v448
      %v451 = vmul.f32 %v371, %v448
      %454 = vrot.lane.b32.xlu0 %v450, 7
      %v455 = vpop.permute.xlu0 %454
      %456 = vrot.lane.b32.xlu0 %v451, 7
      %v457 = vpop.permute.xlu0 %456
      %vm458 = vcmask 56320
      %v459 = vsel %vm458, %v455, %v457
      %v462 = vsel %vm388, %v363, 0
      %464 = vmatpush.msra.mxu0 0.0
      %465 = vmatpush.msra.mxu0 0.0
      %466 = vmatpush.msra.mxu0 0.0
      %467 = vmatpush.msra.mxu0 0.0
      %468 = vmatpush.msra.mxu0 0.0
      %469 = vmatpush.msra.mxu0 0.0
      %470 = vmatpush.msra.mxu0 0.0
      %471 = vmatpush.msra.mxu0 0.0
      %472 = vmatpush.msra.mxu0 0.0
      %473 = vmatpush.msra.mxu0 0.0
      %474 = vmatpush.msra.mxu0 0.0
      %475 = vmatpush.msra.mxu0 0.0
      %476 = vmatpush.msra.mxu0 0.0
      %477 = vmatpush.msra.mxu0 0.0
      %478 = vmatpush.msra.mxu0 0.0
      %479 = vmatpush.msra.mxu0 %v459
      %480 = vmatmul.f32.gmra.mxu0 %v462
      %v481 = vpop.f32.mrf.mxu0
      %v482 = vadd.f32 0.0, %v481
      %483 = vdwg.mxu0
      %v484 = vadd.f32 %v444, %v482
      %v485 = vperm.slane %v330, 3
      %487 = vrot.lane.b32.xlu0 %v485, 127
      %v488 = vpop.permute.xlu0 %487
      %v490 = vmul.f32 %v370, %v488
      %v491 = vmul.f32 %v371, %v488
      %494 = vrot.lane.b32.xlu0 %v490, 1
      %v495 = vpop.permute.xlu0 %494
      %496 = vrot.lane.b32.xlu0 %v491, 1
      %v497 = vpop.permute.xlu0 %496
      %vm498 = vcmask 7168
      %v499 = vsel %vm498, %v495, %v497
      %v502 = vsel %vm388, %v364, 0
      %504 = vmatpush.msra.mxu0 0.0
      %505 = vmatpush.msra.mxu0 0.0
      %506 = vmatpush.msra.mxu0 0.0
      %507 = vmatpush.msra.mxu0 0.0
      %508 = vmatpush.msra.mxu0 0.0
      %509 = vmatpush.msra.mxu0 0.0
      %510 = vmatpush.msra.mxu0 0.0
      %511 = vmatpush.msra.mxu0 0.0
      %512 = vmatpush.msra.mxu0 0.0
      %513 = vmatpush.msra.mxu0 0.0
      %514 = vmatpush.msra.mxu0 0.0
      %515 = vmatpush.msra.mxu0 0.0
      %516 = vmatpush.msra.mxu0 0.0
      %517 = vmatpush.msra.mxu0 0.0
      %518 = vmatpush.msra.mxu0 0.0
      %519 = vmatpush.msra.mxu0 %v499
      %520 = vmatmul.f32.gmra.mxu0 %v502
      %v521 = vpop.f32.mrf.mxu0
      %v522 = vadd.f32 0.0, %v521
      %523 = vdwg.mxu0
      %v524 = vadd.f32 %v484, %v522
      %v526 = vsel %vm388, %v365, 0
      %528 = vmatpush.msra.mxu0 0.0
      %529 = vmatpush.msra.mxu0 0.0
      %530 = vmatpush.msra.mxu0 0.0
      %531 = vmatpush.msra.mxu0 0.0
      %532 = vmatpush.msra.mxu0 0.0
      %533 = vmatpush.msra.mxu0 0.0
      %534 = vmatpush.msra.mxu0 0.0
      %535 = vmatpush.msra.mxu0 0.0
      %536 = vmatpush.msra.mxu0 0.0
      %537 = vmatpush.msra.mxu0 0.0
      %538 = vmatpush.msra.mxu0 0.0
      %539 = vmatpush.msra.mxu0 0.0
      %540 = vmatpush.msra.mxu0 0.0
      %541 = vmatpush.msra.mxu0 0.0
      %542 = vmatpush.msra.mxu0 0.0
      %543 = vmatpush.msra.mxu0 %v371
      %544 = vmatmul.f32.gmra.mxu0 %v526
      %v545 = vpop.f32.mrf.mxu0
      %v546 = vadd.f32 0.0, %v545
      %547 = vdwg.mxu0
      %v548 = vadd.f32 %v524, %v546
      %v549 = vperm.slane %v330, 5
      %551 = vrot.lane.b32.xlu0 %v549, 1
      %v552 = vpop.permute.xlu0 %551
      %v554 = vmul.f32 %v371, %v552
      %556 = vrot.lane.b32.xlu0 %v554, 127
      %v557 = vpop.permute.xlu0 %556
      %v560 = vsel %vm388, %v366, 0
      %562 = vmatpush.msra.mxu0 0.0
      %563 = vmatpush.msra.mxu0 0.0
      %564 = vmatpush.msra.mxu0 0.0
      %565 = vmatpush.msra.mxu0 0.0
      %566 = vmatpush.msra.mxu0 0.0
      %567 = vmatpush.msra.mxu0 0.0
      %568 = vmatpush.msra.mxu0 0.0
      %569 = vmatpush.msra.mxu0 0.0
      %570 = vmatpush.msra.mxu0 0.0
      %571 = vmatpush.msra.mxu0 0.0
      %572 = vmatpush.msra.mxu0 0.0
      %573 = vmatpush.msra.mxu0 0.0
      %574 = vmatpush.msra.mxu0 0.0
      %575 = vmatpush.msra.mxu0 0.0
      %576 = vmatpush.msra.mxu0 0.0
      %577 = vmatpush.msra.mxu0 %v557
      %578 = vmatmul.f32.gmra.mxu0 %v560
      %v579 = vpop.f32.mrf.mxu0
      %v580 = vadd.f32 0.0, %v579
      %581 = vdwg.mxu0
      %v582 = vadd.f32 %v548, %v580
      %v583 = vperm.slane %v330, 6
      %585 = vrot.lane.b32.xlu0 %v583, 7
      %v586 = vpop.permute.xlu0 %585
      %v588 = vmul.f32 %v371, %v586
      %590 = vrot.lane.b32.xlu0 %v588, 121
      %v591 = vpop.permute.xlu0 %590
      %v594 = vsel %vm388, %v367, 0
      %596 = vmatpush.msra.mxu0 0.0
      %597 = vmatpush.msra.mxu0 0.0
      %598 = vmatpush.msra.mxu0 0.0
      %599 = vmatpush.msra.mxu0 0.0
      %600 = vmatpush.msra.mxu0 0.0
      %601 = vmatpush.msra.mxu0 0.0
      %602 = vmatpush.msra.mxu0 0.0
      %603 = vmatpush.msra.mxu0 0.0
      %604 = vmatpush.msra.mxu0 0.0
      %605 = vmatpush.msra.mxu0 0.0
      %606 = vmatpush.msra.mxu0 0.0
      %607 = vmatpush.msra.mxu0 0.0
      %608 = vmatpush.msra.mxu0 0.0
      %609 = vmatpush.msra.mxu0 0.0
      %610 = vmatpush.msra.mxu0 0.0
      %611 = vmatpush.msra.mxu0 %v591
      %612 = vmatmul.f32.gmra.mxu0 %v594
      %v613 = vpop.f32.mrf.mxu0
      %v614 = vadd.f32 0.0, %v613
      %615 = vdwg.mxu0
      %v616 = vadd.f32 %v582, %v614
      %617 = vrot.lane.b32.xlu0 %v371, 120
      %v618 = vpop.permute.xlu0 %617
      %v621 = vsel %vm388, %v368, 0
      %623 = vmatpush.msra.mxu0 0.0
      %624 = vmatpush.msra.mxu0 0.0
      %625 = vmatpush.msra.mxu0 0.0
      %626 = vmatpush.msra.mxu0 0.0
      %627 = vmatpush.msra.mxu0 0.0
      %628 = vmatpush.msra.mxu0 0.0
      %629 = vmatpush.msra.mxu0 0.0
      %630 = vmatpush.msra.mxu0 0.0
      %631 = vmatpush.msra.mxu0 0.0
      %632 = vmatpush.msra.mxu0 0.0
      %633 = vmatpush.msra.mxu0 0.0
      %634 = vmatpush.msra.mxu0 0.0
      %635 = vmatpush.msra.mxu0 0.0
      %636 = vmatpush.msra.mxu0 0.0
      %637 = vmatpush.msra.mxu0 0.0
      %638 = vmatpush.msra.mxu0 %v618
      %639 = vmatmul.f32.gmra.mxu0 %v621
      %v640 = vpop.f32.mrf.mxu0
      %v641 = vadd.f32 0.0, %v640
      %642 = vdwg.mxu0
      %v643 = vadd.f32 %v616, %v641
      %v644 = vperm.slane %v331, 0
      %646 = vrot.lane.b32.xlu0 %v644, 9
      %v647 = vpop.permute.xlu0 %646
      %v649 = vmul.f32 %v371, %v647
      %651 = vrot.lane.b32.xlu0 %v649, 119
      %v652 = vpop.permute.xlu0 %651
      %v655 = vsel %vm388, %v369, 0
      %657 = vmatpush.msra.mxu0 0.0
      %658 = vmatpush.msra.mxu0 0.0
      %659 = vmatpush.msra.mxu0 0.0
      %660 = vmatpush.msra.mxu0 0.0
      %661 = vmatpush.msra.mxu0 0.0
      %662 = vmatpush.msra.mxu0 0.0
      %663 = vmatpush.msra.mxu0 0.0
      %664 = vmatpush.msra.mxu0 0.0
      %665 = vmatpush.msra.mxu0 0.0
      %666 = vmatpush.msra.mxu0 0.0
      %667 = vmatpush.msra.mxu0 0.0
      %668 = vmatpush.msra.mxu0 0.0
      %669 = vmatpush.msra.mxu0 0.0
      %670 = vmatpush.msra.mxu0 0.0
      %671 = vmatpush.msra.mxu0 0.0
      %672 = vmatpush.msra.mxu0 %v652
      %673 = vmatmul.f32.gmra.mxu0 %v655
      %v674 = vpop.f32.mrf.mxu0
      %v675 = vadd.f32 0.0, %v674
      %676 = vdwg.mxu0
      %v677 = vadd.f32 %v643, %v675
      %v678 = vld [vmem:[%s313] sm:$0xff]
      %v679 = vld [vmem:[%s4] sm:$0xff]
      %v680 = vld [vmem:[%s4 + $0x8] sm:$0xff]
      %v682 = vsel %vm335, %v678, 0
      %684 = vmatpush.msra.mxu0 0.0
      %685 = vmatpush.msra.mxu0 0.0
      %686 = vmatpush.msra.mxu0 0.0
      %687 = vmatpush.msra.mxu0 0.0
      %688 = vmatpush.msra.mxu0 0.0
      %689 = vmatpush.msra.mxu0 0.0
      %690 = vmatpush.msra.mxu0 0.0
      %691 = vmatpush.msra.mxu0 0.0
      %692 = vmatpush.msra.mxu0 0.0
      %693 = vmatpush.msra.mxu0 0.0
      %694 = vmatpush.msra.mxu0 0.0
      %695 = vmatpush.msra.mxu0 0.0
      %696 = vmatpush.msra.mxu0 0.0
      %697 = vmatpush.msra.mxu0 0.0
      %698 = vmatpush.msra.mxu0 %v680
      %699 = vmatpush.msra.mxu0 %v679
      %700 = vmatmul.f32.gmra.mxu0 %v682
      %v701 = vpop.f32.mrf.mxu0
      %v702 = vadd.f32 0.0, %v701
      %703 = vdwg.mxu0
      %704 = vst.msk [vmem:[#allocation2 + $0x8] sm:$0xff] %vm359, %v702
      %v705 = vld [vmem:[%s5] sm:$0xff]
      %v706 = vld [vmem:[%s5 + $0x8] sm:$0xff]
      %v707 = vld [vmem:[%s5 + $0x10] sm:$0xff]
      %v708 = vld [vmem:[%s5 + $0x18] sm:$0xff]
      %v709 = vld [vmem:[%s5 + $0x20] sm:$0xff]
      %v710 = vld [vmem:[%s5 + $0x28] sm:$0xff]
      %v711 = vld [vmem:[%s5 + $0x30] sm:$0xff]
      %v712 = vld [vmem:[%s5 + $0x38] sm:$0xff]
      %v713 = vld [vmem:[%s5 + $0x40] sm:$0xff]
      %v714 = vld [vmem:[#allocation2] sm:$0xff]
      %v715 = vld [vmem:[#allocation2 + $0x8] sm:$0xff]
      %v716 = vmul.f32 %v714, %v375
      %v717 = vmul.f32 %v715, %v375
      %720 = vrot.lane.b32.xlu0 %v716, 9
      %v721 = vpop.permute.xlu0 %720
      %722 = vrot.lane.b32.xlu0 %v717, 9
      %v723 = vpop.permute.xlu0 %722
      %v724 = vsel %vm385, %v721, %v723
      %v727 = vsel %vm388, %v705, 0
      %729 = vmatpush.msra.mxu0 0.0
      %730 = vmatpush.msra.mxu0 0.0
      %731 = vmatpush.msra.mxu0 0.0
      %732 = vmatpush.msra.mxu0 0.0
      %733 = vmatpush.msra.mxu0 0.0
      %734 = vmatpush.msra.mxu0 0.0
      %735 = vmatpush.msra.mxu0 0.0
      %736 = vmatpush.msra.mxu0 0.0
      %737 = vmatpush.msra.mxu0 0.0
      %738 = vmatpush.msra.mxu0 0.0
      %739 = vmatpush.msra.mxu0 0.0
      %740 = vmatpush.msra.mxu0 0.0
      %741 = vmatpush.msra.mxu0 0.0
      %742 = vmatpush.msra.mxu0 0.0
      %743 = vmatpush.msra.mxu0 0.0
      %744 = vmatpush.msra.mxu0 %v724
      %745 = vmatmul.f32.gmra.mxu0 %v727
      %v746 = vpop.f32.mrf.mxu0
      %v747 = vadd.f32 0.0, %v746
      %748 = vdwg.mxu0
      %v749 = vadd.f32 %v677, %v747
      %752 = vrot.lane.b32.xlu0 %v714, 8
      %v753 = vpop.permute.xlu0 %752
      %754 = vrot.lane.b32.xlu0 %v715, 8
      %v755 = vpop.permute.xlu0 %754
      %v756 = vsel %vm388, %v753, %v755
      %v759 = vsel %vm388, %v706, 0
      %761 = vmatpush.msra.mxu0 0.0
      %762 = vmatpush.msra.mxu0 0.0
      %763 = vmatpush.msra.mxu0 0.0
      %764 = vmatpush.msra.mxu0 0.0
      %765 = vmatpush.msra.mxu0 0.0
      %766 = vmatpush.msra.mxu0 0.0
      %767 = vmatpush.msra.mxu0 0.0
      %768 = vmatpush.msra.mxu0 0.0
      %769 = vmatpush.msra.mxu0 0.0
      %770 = vmatpush.msra.mxu0 0.0
      %771 = vmatpush.msra.mxu0 0.0
      %772 = vmatpush.msra.mxu0 0.0
      %773 = vmatpush.msra.mxu0 0.0
      %774 = vmatpush.msra.mxu0 0.0
      %775 = vmatpush.msra.mxu0 0.0
      %776 = vmatpush.msra.mxu0 %v756
      %777 = vmatmul.f32.gmra.mxu0 %v759
      %v778 = vpop.f32.mrf.mxu0
      %v779 = vadd.f32 0.0, %v778
      %780 = vdwg.mxu0
      %v781 = vadd.f32 %v749, %v779
      %v782 = vmul.f32 %v714, %v448
      %v783 = vmul.f32 %v715, %v448
      %786 = vrot.lane.b32.xlu0 %v782, 7
      %v787 = vpop.permute.xlu0 %786
      %788 = vrot.lane.b32.xlu0 %v783, 7
      %v789 = vpop.permute.xlu0 %788
      %v790 = vsel %vm458, %v787, %v789
      %v793 = vsel %vm388, %v707, 0
      %795 = vmatpush.msra.mxu0 0.0
      %796 = vmatpush.msra.mxu0 0.0
      %797 = vmatpush.msra.mxu0 0.0
      %798 = vmatpush.msra.mxu0 0.0
      %799 = vmatpush.msra.mxu0 0.0
      %800 = vmatpush.msra.mxu0 0.0
      %801 = vmatpush.msra.mxu0 0.0
      %802 = vmatpush.msra.mxu0 0.0
      %803 = vmatpush.msra.mxu0 0.0
      %804 = vmatpush.msra.mxu0 0.0
      %805 = vmatpush.msra.mxu0 0.0
      %806 = vmatpush.msra.mxu0 0.0
      %807 = vmatpush.msra.mxu0 0.0
      %808 = vmatpush.msra.mxu0 0.0
      %809 = vmatpush.msra.mxu0 0.0
      %810 = vmatpush.msra.mxu0 %v790
      %811 = vmatmul.f32.gmra.mxu0 %v793
      %v812 = vpop.f32.mrf.mxu0
      %v813 = vadd.f32 0.0, %v812
      %814 = vdwg.mxu0
      %v815 = vadd.f32 %v781, %v813
      %v816 = vmul.f32 %v714, %v488
      %v817 = vmul.f32 %v715, %v488
      %820 = vrot.lane.b32.xlu0 %v816, 1
      %v821 = vpop.permute.xlu0 %820
      %822 = vrot.lane.b32.xlu0 %v817, 1
      %v823 = vpop.permute.xlu0 %822
      %v824 = vsel %vm498, %v821, %v823
      %v827 = vsel %vm388, %v708, 0
      %829 = vmatpush.msra.mxu0 0.0
      %830 = vmatpush.msra.mxu0 0.0
      %831 = vmatpush.msra.mxu0 0.0
      %832 = vmatpush.msra.mxu0 0.0
      %833 = vmatpush.msra.mxu0 0.0
      %834 = vmatpush.msra.mxu0 0.0
      %835 = vmatpush.msra.mxu0 0.0
      %836 = vmatpush.msra.mxu0 0.0
      %837 = vmatpush.msra.mxu0 0.0
      %838 = vmatpush.msra.mxu0 0.0
      %839 = vmatpush.msra.mxu0 0.0
      %840 = vmatpush.msra.mxu0 0.0
      %841 = vmatpush.msra.mxu0 0.0
      %842 = vmatpush.msra.mxu0 0.0
      %843 = vmatpush.msra.mxu0 0.0
      %844 = vmatpush.msra.mxu0 %v824
      %845 = vmatmul.f32.gmra.mxu0 %v827
      %v846 = vpop.f32.mrf.mxu0
      %v847 = vadd.f32 0.0, %v846
      %848 = vdwg.mxu0
      %v849 = vadd.f32 %v815, %v847
      %v851 = vsel %vm388, %v709, 0
      %853 = vmatpush.msra.mxu0 0.0
      %854 = vmatpush.msra.mxu0 0.0
      %855 = vmatpush.msra.mxu0 0.0
      %856 = vmatpush.msra.mxu0 0.0
      %857 = vmatpush.msra.mxu0 0.0
      %858 = vmatpush.msra.mxu0 0.0
      %859 = vmatpush.msra.mxu0 0.0
      %860 = vmatpush.msra.mxu0 0.0
      %861 = vmatpush.msra.mxu0 0.0
      %862 = vmatpush.msra.mxu0 0.0
      %863 = vmatpush.msra.mxu0 0.0
      %864 = vmatpush.msra.mxu0 0.0
      %865 = vmatpush.msra.mxu0 0.0
      %866 = vmatpush.msra.mxu0 0.0
      %867 = vmatpush.msra.mxu0 0.0
      %868 = vmatpush.msra.mxu0 %v715
      %869 = vmatmul.f32.gmra.mxu0 %v851
      %v870 = vpop.f32.mrf.mxu0
      %v871 = vadd.f32 0.0, %v870
      %872 = vdwg.mxu0
      %v873 = vadd.f32 %v849, %v871
      %v874 = vmul.f32 %v715, %v552
      %876 = vrot.lane.b32.xlu0 %v874, 127
      %v877 = vpop.permute.xlu0 %876
      %v880 = vsel %vm388, %v710, 0
      %882 = vmatpush.msra.mxu0 0.0
      %883 = vmatpush.msra.mxu0 0.0
      %884 = vmatpush.msra.mxu0 0.0
      %885 = vmatpush.msra.mxu0 0.0
      %886 = vmatpush.msra.mxu0 0.0
      %887 = vmatpush.msra.mxu0 0.0
      %888 = vmatpush.msra.mxu0 0.0
      %889 = vmatpush.msra.mxu0 0.0
      %890 = vmatpush.msra.mxu0 0.0
      %891 = vmatpush.msra.mxu0 0.0
      %892 = vmatpush.msra.mxu0 0.0
      %893 = vmatpush.msra.mxu0 0.0
      %894 = vmatpush.msra.mxu0 0.0
      %895 = vmatpush.msra.mxu0 0.0
      %896 = vmatpush.msra.mxu0 0.0
      %897 = vmatpush.msra.mxu0 %v877
      %898 = vmatmul.f32.gmra.mxu0 %v880
      %v899 = vpop.f32.mrf.mxu0
      %v900 = vadd.f32 0.0, %v899
      %901 = vdwg.mxu0
      %v902 = vadd.f32 %v873, %v900
      %v903 = vmul.f32 %v715, %v586
      %905 = vrot.lane.b32.xlu0 %v903, 121
      %v906 = vpop.permute.xlu0 %905
      %v909 = vsel %vm388, %v711, 0
      %911 = vmatpush.msra.mxu0 0.0
      %912 = vmatpush.msra.mxu0 0.0
      %913 = vmatpush.msra.mxu0 0.0
      %914 = vmatpush.msra.mxu0 0.0
      %915 = vmatpush.msra.mxu0 0.0
      %916 = vmatpush.msra.mxu0 0.0
      %917 = vmatpush.msra.mxu0 0.0
      %918 = vmatpush.msra.mxu0 0.0
      %919 = vmatpush.msra.mxu0 0.0
      %920 = vmatpush.msra.mxu0 0.0
      %921 = vmatpush.msra.mxu0 0.0
      %922 = vmatpush.msra.mxu0 0.0
      %923 = vmatpush.msra.mxu0 0.0
      %924 = vmatpush.msra.mxu0 0.0
      %925 = vmatpush.msra.mxu0 0.0
      %926 = vmatpush.msra.mxu0 %v906
      %927 = vmatmul.f32.gmra.mxu0 %v909
      %v928 = vpop.f32.mrf.mxu0
      %v929 = vadd.f32 0.0, %v928
      %930 = vdwg.mxu0
      %v931 = vadd.f32 %v902, %v929
      %932 = vrot.lane.b32.xlu0 %v715, 120
      %v933 = vpop.permute.xlu0 %932
      %v936 = vsel %vm388, %v712, 0
      %938 = vmatpush.msra.mxu0 0.0
      %939 = vmatpush.msra.mxu0 0.0
      %940 = vmatpush.msra.mxu0 0.0
      %941 = vmatpush.msra.mxu0 0.0
      %942 = vmatpush.msra.mxu0 0.0
      %943 = vmatpush.msra.mxu0 0.0
      %944 = vmatpush.msra.mxu0 0.0
      %945 = vmatpush.msra.mxu0 0.0
      %946 = vmatpush.msra.mxu0 0.0
      %947 = vmatpush.msra.mxu0 0.0
      %948 = vmatpush.msra.mxu0 0.0
      %949 = vmatpush.msra.mxu0 0.0
      %950 = vmatpush.msra.mxu0 0.0
      %951 = vmatpush.msra.mxu0 0.0
      %952 = vmatpush.msra.mxu0 0.0
      %953 = vmatpush.msra.mxu0 %v933
      %954 = vmatmul.f32.gmra.mxu0 %v936
      %v955 = vpop.f32.mrf.mxu0
      %v956 = vadd.f32 0.0, %v955
      %957 = vdwg.mxu0
      %v958 = vadd.f32 %v931, %v956
      %v959 = vmul.f32 %v715, %v647
      %961 = vrot.lane.b32.xlu0 %v959, 119
      %v962 = vpop.permute.xlu0 %961
      %v965 = vsel %vm388, %v713, 0
      %967 = vmatpush.msra.mxu0 0.0
      %968 = vmatpush.msra.mxu0 0.0
      %969 = vmatpush.msra.mxu0 0.0
      %970 = vmatpush.msra.mxu0 0.0
      %971 = vmatpush.msra.mxu0 0.0
      %972 = vmatpush.msra.mxu0 0.0
      %973 = vmatpush.msra.mxu0 0.0
      %974 = vmatpush.msra.mxu0 0.0
      %975 = vmatpush.msra.mxu0 0.0
      %976 = vmatpush.msra.mxu0 0.0
      %977 = vmatpush.msra.mxu0 0.0
      %978 = vmatpush.msra.mxu0 0.0
      %979 = vmatpush.msra.mxu0 0.0
      %980 = vmatpush.msra.mxu0 0.0
      %981 = vmatpush.msra.mxu0 0.0
      %982 = vmatpush.msra.mxu0 %v962
      %983 = vmatmul.f32.gmra.mxu0 %v965
      %v984 = vpop.f32.mrf.mxu0
      %v985 = vadd.f32 0.0, %v984
      %986 = vdwg.mxu0
      %v987 = vadd.f32 %v958, %v985
      %v988 = vmax.f32 %v987, 0.0
      %989 = vst.msk [vmem:[%s317] sm:$0xff] %vm359, %v988
      %p990 = scmp.lt.s32.totalorder %s19, 1
      %s991 = scalar_select %p990, %s19, 1
      %s992 = smul.addr %s991, 8
      %s993 = scalar_lea.vmem %s8, %s992
      // Predicated region
      $region57: #{neck_forward.11} parent=51 // pred_check
        %p994 = pneg %p215
      $region58: #{neck_forward.11} parent=51 // pred_check_branch
        %996 = sbr.rel (%p994) target = $region60
      $region59: #{neck_forward.11} parent=51 // pred_region
        _
      $region60: #{neck_forward.11} parent=51 // pred_fallthru
        _
    $region52: #{neck_forward.11} parent=5 // pred_fallthru
      _
    %p997 = scmp.le.s32.totalorder 2, %s14
    // Predicated region
    $region61: #{neck_forward.11} parent=5 // pred_check
      %p998 = pneg %p997
    $region62: #{neck_forward.11} parent=5 // pred_check_branch
      %1000 = sbr.rel (%p998) target = $region64
    $region63: #{neck_forward.11} parent=5 // pred_region
      %s1001 = ssub.s32 %s14, 2
      // Predicated region
      $region65: #{neck_forward.11} parent=63 // pred_check
        %p1002 = pneg %p221
      $region66: #{neck_forward.11} parent=63 // pred_check_branch
        %1004 = sbr.rel (%p1002) target = $region68
      $region67: #{neck_forward.11} parent=63 // pred_region
        %p1005 = scmp.lt.s32.totalorder %s20, 1
        %s1006 = scalar_select %p1005, %s20, 1
        %s1007 = smul.addr %s1006, 8
        %s1008 = scalar_lea.vmem %s8, %s1007
      $region68: #{neck_forward.11} parent=63 // pred_fallthru
        _
    $region64: #{neck_forward.11} parent=5 // pred_fallthru
      _
  $region6: #{neck_forward.11} parent=0 // loop_footer
    %s18 = sadd.s32 1, %s14
  $region7: #{neck_forward.11} parent=0 // loop_footer_branch
    %13 = sbr.rel target = $region3
  $region8: #{neck_forward.11} parent=0 // loop_exit
    _

// kernel: neck_forward.7
$region0: #{neck_forward.7}
  #allocation0 [shape = 'u32[]', space=smem, size = 0x4, offset = 0x4, fixed_abs, tag = 'smem constant byte address 0x4 - core index']
  #allocation1 [shape = 'u32[72,128]{1,0:T(1,128)}', space=vmem, size = 0x9000, scoped, tag = 'internal scratch']
  #allocation2 [shape = 'f32[4,256]{1,0:T(4,128)}', space=vmem, size = 0x1000, scoped, tag = 'scratch operand']
  %s0 = inlined_call_operand.vmem [shape: f32[2,4,64], index: 0, kind: input, shape index: {}]
  %s1 = inlined_call_operand.vmem [shape: f32[9,8,4], index: 1, kind: input, shape index: {}]
  %s2 = inlined_call_operand.vmem [shape: f32[9,64], index: 2, kind: input, shape index: {}]
  %s3 = inlined_call_operand.vmem [shape: f32[8,1], index: 3, kind: input, shape index: {}]
  %s4 = inlined_call_operand.vmem [shape: f32[2,8,64], index: 4, kind: output, shape index: {}]
  %s5 = sld [smem:[#allocation0]]
  $region53: #{neck_forward.7} parent=0
    _
  %s7 = ssub.s32 1, %s5
  %s8 = scalar_select 0, %s7, %s5
  loop: start=0, step=1, limit=4
  $region2: #{neck_forward.7} parent=0 // loop_pre_header
    _
  $region3: #{neck_forward.7} parent=0 // loop_header
    %s10 = sphi 0, %s14
    %p11 = scmp.ge.s32.totalorder %s10, 4
    %s20 = sphi 0, %s22
    %s23 = sphi 0, %s20
    %s24 = sphi 0, %s23
    %s40 = sphi 0, %s24
    %s44 = sphi 0, %s44
    %s46 = sphi 0, %s44
    %s47 = sphi 0, %s46
    %s61 = sphi 0, %s47
    %s65 = sphi 0, %s65
    %s67 = sphi 0, %s65
    %s68 = sphi 0, %s67
    %s82 = sphi 0, %s68
    %s86 = sphi 0, %s86
    %s88 = sphi 0, %s86
    %s89 = sphi 0, %s88
    %s103 = sphi 0, %s89
    %s109 = sphi 0, %s111
    %s112 = sphi 0, %s109
    %s113 = sphi 0, %s112
    %s129 = sphi 0, %s113
  $region4: #{neck_forward.7} parent=0 // loop_header_branch
    %13 = sbr.rel (%p11) target = $region8
  $region5: #{neck_forward.7} parent=0 // loop_body
    %s15 = ssub.s32 %s10, 1
    %s16 = ssub.s32 %s10, 2
    %s17 = sadd.s32 %s10, 1
    %s18 = ssub.s32 %s10, %s17
    %p19 = scmp.eq.s32.totalorder %s18, 0
    %s21 = sadd.s32 %s20, 1
    %s22 = scalar_select %p19, %s20, %s21
    %p25 = pneg %p19
    %p26 = scmp.eq.s32.totalorder %s10, 1
    %p27 = por %p25, %p26
    %p28 = scmp.ne.s32.totalorder %s20, %s23
    %p29 = scmp.eq.s32.totalorder %s10, 0
    %p30 = por %p28, %p29
    %p31 = scmp.ne.s32.totalorder %s20, %s23
    %p32 = scmp.eq.s32.totalorder %s15, 1
    %p33 = por %p31, %p32
    %p34 = scmp.ne.s32.totalorder %s23, %s24
    %p35 = scmp.eq.s32.totalorder %s15, 0
    %p36 = por %p34, %p35
    %p37 = scmp.ne.s32.totalorder %s23, %s24
    %p38 = scmp.eq.s32.totalorder %s16, 1
    %p39 = por %p37, %p38
    %p41 = scmp.ne.s32.totalorder %s24, %s40
    %p42 = scmp.eq.s32.totalorder %s16, 0
    %p43 = por %p41, %p42
    %s45 = sadd.s32 %s44, 1
    %p48 = scmp.eq.s32.totalorder %s10, 1
    %p49 = scmp.ne.s32.totalorder %s44, %s46
    %p50 = scmp.eq.s32.totalorder %s10, 0
    %p51 = por %p49, %p50
    %p52 = scmp.ne.s32.totalorder %s44, %s46
    %p53 = scmp.eq.s32.totalorder %s15, 1
    %p54 = por %p52, %p53
    %p55 = scmp.ne.s32.totalorder %s46, %s47
    %p56 = scmp.eq.s32.totalorder %s15, 0
    %p57 = por %p55, %p56
    %p58 = scmp.ne.s32.totalorder %s46, %s47
    %p59 = scmp.eq.s32.totalorder %s16, 1
    %p60 = por %p58, %p59
    %p62 = scmp.ne.s32.totalorder %s47, %s61
    %p63 = scmp.eq.s32.totalorder %s16, 0
    %p64 = por %p62, %p63
    %s66 = sadd.s32 %s65, 1
    %p69 = scmp.eq.s32.totalorder %s10, 1
    %p70 = scmp.ne.s32.totalorder %s65, %s67
    %p71 = scmp.eq.s32.totalorder %s10, 0
    %p72 = por %p70, %p71
    %p73 = scmp.ne.s32.totalorder %s65, %s67
    %p74 = scmp.eq.s32.totalorder %s15, 1
    %p75 = por %p73, %p74
    %p76 = scmp.ne.s32.totalorder %s67, %s68
    %p77 = scmp.eq.s32.totalorder %s15, 0
    %p78 = por %p76, %p77
    %p79 = scmp.ne.s32.totalorder %s67, %s68
    %p80 = scmp.eq.s32.totalorder %s16, 1
    %p81 = por %p79, %p80
    %p83 = scmp.ne.s32.totalorder %s68, %s82
    %p84 = scmp.eq.s32.totalorder %s16, 0
    %p85 = por %p83, %p84
    %s87 = sadd.s32 %s86, 1
    %p90 = scmp.eq.s32.totalorder %s10, 1
    %p91 = scmp.ne.s32.totalorder %s86, %s88
    %p92 = scmp.eq.s32.totalorder %s10, 0
    %p93 = por %p91, %p92
    %p94 = scmp.ne.s32.totalorder %s86, %s88
    %p95 = scmp.eq.s32.totalorder %s15, 1
    %p96 = por %p94, %p95
    %p97 = scmp.ne.s32.totalorder %s88, %s89
    %p98 = scmp.eq.s32.totalorder %s15, 0
    %p99 = por %p97, %p98
    %p100 = scmp.ne.s32.totalorder %s88, %s89
    %p101 = scmp.eq.s32.totalorder %s16, 1
    %p102 = por %p100, %p101
    %p104 = scmp.ne.s32.totalorder %s89, %s103
    %p105 = scmp.eq.s32.totalorder %s16, 0
    %p106 = por %p104, %p105
    %s107 = ssub.s32 %s10, %s17
    %p108 = scmp.eq.s32.totalorder %s107, 0
    %s110 = sadd.s32 %s109, 1
    %s111 = scalar_select %p108, %s109, %s110
    %p114 = pneg %p108
    %p115 = scmp.eq.s32.totalorder %s10, 1
    %p116 = por %p114, %p115
    %p117 = scmp.ne.s32.totalorder %s109, %s112
    %p118 = scmp.eq.s32.totalorder %s10, 0
    %p119 = por %p117, %p118
    %p120 = scmp.ne.s32.totalorder %s109, %s112
    %p121 = scmp.eq.s32.totalorder %s15, 1
    %p122 = por %p120, %p121
    %p123 = scmp.ne.s32.totalorder %s112, %s113
    %p124 = scmp.eq.s32.totalorder %s15, 0
    %p125 = por %p123, %p124
    %p126 = scmp.ne.s32.totalorder %s112, %s113
    %p127 = scmp.eq.s32.totalorder %s16, 1
    %p128 = por %p126, %p127
    %p130 = scmp.ne.s32.totalorder %s113, %s129
    %p131 = scmp.eq.s32.totalorder %s16, 0
    %p132 = por %p130, %p131
    %p133 = scmp.le.s32.totalorder 1, %s10
    %p134 = scmp.lt.s32.totalorder %s10, 3
    %p135 = pnand %p133, %p134
    %p136 = pneg %p135
    // Predicated region
    $region9: #{neck_forward.7} parent=5 // pred_check
      _
    $region10: #{neck_forward.7} parent=5 // pred_check_branch
      %138 = sbr.rel (%p135) target = $region12
    $region11: #{neck_forward.7} parent=5 // pred_region
      %s139 = ssub.s32 %s10, 1
      // Predicated region
      $region13: #{neck_forward.7} parent=11 // pred_check
        %p140 = pneg %p57
      $region14: #{neck_forward.7} parent=11 // pred_check_branch
        %142 = sbr.rel (%p140) target = $region16
      $region15: #{neck_forward.7} parent=11 // pred_region
        _
      $region16: #{neck_forward.7} parent=11 // pred_fallthru
        _
      // Predicated region
      $region17: #{neck_forward.7} parent=11 // pred_check
        %p143 = pneg %p78
      $region18: #{neck_forward.7} parent=11 // pred_check_branch
        %145 = sbr.rel (%p143) target = $region20
      $region19: #{neck_forward.7} parent=11 // pred_region
        _
      $region20: #{neck_forward.7} parent=11 // pred_fallthru
        _
      // Predicated region
      $region21: #{neck_forward.7} parent=11 // pred_check
        %p146 = pneg %p99
      $region22: #{neck_forward.7} parent=11 // pred_check_branch
        %148 = sbr.rel (%p146) target = $region24
      $region23: #{neck_forward.7} parent=11 // pred_region
        _
      $region24: #{neck_forward.7} parent=11 // pred_fallthru
        _
    $region12: #{neck_forward.7} parent=5 // pred_fallthru
      _
    %p149 = scmp.lt.s32.totalorder %s10, 2
    // Predicated region
    $region25: #{neck_forward.7} parent=5 // pred_check
      %p150 = pneg %p149
    $region26: #{neck_forward.7} parent=5 // pred_check_branch
      %152 = sbr.rel (%p150) target = $region28
    $region27: #{neck_forward.7} parent=5 // pred_region
      // Predicated region
      $region29: #{neck_forward.7} parent=27 // pred_check
        %p153 = pneg %p30
      $region30: #{neck_forward.7} parent=27 // pred_check_branch
        %155 = sbr.rel (%p153) target = $region32
      $region31: #{neck_forward.7} parent=27 // pred_region
        %p156 = scmp.lt.s32.totalorder %s10, 1
        %s157 = scalar_select %p156, %s10, 1
        %s158 = smul.addr %s157, 4
        %s159 = scalar_lea.vmem %s0, %s158
      $region32: #{neck_forward.7} parent=27 // pred_fallthru
        _
    $region28: #{neck_forward.7} parent=5 // pred_fallthru
      _
    %p160 = scmp.le.s32.totalorder 1, %s10
    %p161 = scmp.lt.s32.totalorder %s10, 3
    %p162 = pnand %p160, %p161
    %p163 = pneg %p162
    // Predicated region
    $region33: #{neck_forward.7} parent=5 // pred_check
      _
    $region34: #{neck_forward.7} parent=5 // pred_check_branch
      %165 = sbr.rel (%p162) target = $region36
    $region35: #{neck_forward.7} parent=5 // pred_region
      %s166 = ssub.s32 %s10, 1
      %p167 = scmp.lt.s32.totalorder %s15, 1
      %s168 = scalar_select %p167, %s15, 1
      %s169 = smul.addr %s168, 4
      %s170 = scalar_lea.vmem %s0, %s169
      %p171 = pneg %p36
      %p172 = pneg %p33
      %p173 = pneg %p57
      %p174 = pneg %p54
      %p175 = pneg %p78
      %p176 = pneg %p75
      %p177 = pneg %p99
      %p178 = pneg %p96
      %p179 = pneg %p125
      %p180 = pneg %p122
      %p181 = scmp.lt.s32.totalorder %s15, 1
      %s182 = scalar_select %p181, %s15, 1
      %s183 = smul.addr %s182, 8
      %s184 = scalar_lea.vmem %s4, %s183
      %p185 = scmp.lt.s32.totalorder %s15, 1
      %s186 = scalar_select %p185, %s15, 1
      %s187 = smul.addr %s186, 4
      %s188 = scalar_lea.vmem %s0, %s187
      %p189 = scmp.lt.s32.totalorder %s15, 1
      %s190 = scalar_select %p189, %s15, 1
      %s191 = smul.addr %s190, 8
      %s192 = scalar_lea.vmem %s4, %s191
      %p193 = scmp.eq.s32.totalorder %s15, 0
      // Predicated region
      $region37: #{neck_forward.7} parent=35 // pred_check
        %p194 = pneg %p193
      $region38: #{neck_forward.7} parent=35 // pred_check_branch
        %196 = sbr.rel (%p194) target = $region40
      $region39: #{neck_forward.7} parent=35 // pred_region
        %197 = vst [vmem:[#allocation2] sm:$0xff] 0.0
      $region40: #{neck_forward.7} parent=35 // pred_fallthru
        _
      %v198 = vld [vmem:[%s3] sm:$0xff]
      %200 = vset.pattern.permute.xlu0 0
      %201 = vperm.xlu0 %200, %v198
      %v202 = vpop.permute.xlu0 %201
      %v204 = vld [vmem:[%s2] sm:$0xff]
      %v205 = vld [vmem:[%s2 + $0x8] sm:$0x1]
      %v206 = vld [vmem:[%s188] sm:$0xf]
      %vm207 = vcmask 519168
      %208 = vst.msk [vmem:[#allocation2 + $0x4] sm:$0xf] %vm207, %v206
      %v209 = vld [vmem:[%s1] sm:$0xff]
      %v210 = vld [vmem:[%s1 + $0x8] sm:$0xff]
      %v211 = vld [vmem:[%s1 + $0x10] sm:$0xff]
      %v212 = vld [vmem:[%s1 + $0x18] sm:$0xff]
      %v213 = vld [vmem:[%s1 + $0x20] sm:$0xff]
      %v214 = vld [vmem:[%s1 + $0x28] sm:$0xff]
      %v215 = vld [vmem:[%s1 + $0x30] sm:$0xff]
      %v216 = vld [vmem:[%s1 + $0x38] sm:$0xff]
      %v217 = vld [vmem:[%s1 + $0x40] sm:$0xff]
      %v218 = vld [vmem:[#allocation2] sm:$0xff]
      %v219 = vperm.slane %v204, 0
      %221 = vrot.lane.b32.xlu0 %v219, 119
      %v222 = vpop.permute.xlu0 %221
      %v223 = vrot.slane %v222, 4
      %vm224 = vcmask 973824
      %v225 = vsel %vm224, %v223, %v222
      %v227 = vmul.f32 %v218, %v225
      %229 = vst [vmem:[#allocation1] ss:$2 sm:$0xff] %v227
      %v230 = vld.sshfl [vmem:[#allocation1] sm:$0xff pattern:$0x75316420]
      %v231 = vld.sshfl [vmem:[#allocation1 + $0x8] sm:$0xff pattern:$0x75316420]
      %232 = vrot.lane.b32.xlu0 %v230, 9
      %v233 = vpop.permute.xlu0 %232
      %234 = vrot.lane.b32.xlu0 %v231, 9
      %v235 = vpop.permute.xlu0 %234
      %vm236 = vcmask 72704
      %v237 = vsel %vm236, %v233, %v235
      %vm238 = vcmask 31744
      %v240 = vsel %vm238, %v209, 0
      %vm242 = vcmask 1043456
      %v243 = vsel %vm242, %v237, 0
      %245 = vmatpush.msra.mxu0 0.0
      %246 = vmatpush.msra.mxu0 0.0
      %247 = vmatpush.msra.mxu0 0.0
      %248 = vmatpush.msra.mxu0 0.0
      %249 = vmatpush.msra.mxu0 0.0
      %250 = vmatpush.msra.mxu0 0.0
      %251 = vmatpush.msra.mxu0 0.0
      %252 = vmatpush.msra.mxu0 0.0
      %253 = vmatpush.msra.mxu0 0.0
      %254 = vmatpush.msra.mxu0 0.0
      %255 = vmatpush.msra.mxu0 0.0
      %256 = vmatpush.msra.mxu0 0.0
      %257 = vmatpush.msra.mxu0 0.0
      %258 = vmatpush.msra.mxu0 0.0
      %259 = vmatpush.msra.mxu0 0.0
      %260 = vmatpush.msra.mxu0 %v243
      %261 = vmatmul.f32.gmra.mxu0 %v240
      %v262 = vpop.f32.mrf.mxu0
      %v263 = vadd.f32 0.0, %v262
      %264 = vdwg.mxu0
      %v265 = vadd.f32 %v202, %v263
      %v266 = vld [vmem:[#allocation2] sm:$0xff]
      %268 = vst [vmem:[#allocation1] ss:$2 sm:$0xff] %v266
      %v269 = vld.sshfl [vmem:[#allocation1] sm:$0xff pattern:$0x75316420]
      %v270 = vld.sshfl [vmem:[#allocation1 + $0x8] sm:$0xff pattern:$0x75316420]
      %271 = vrot.lane.b32.xlu0 %v269, 8
      %v272 = vpop.permute.xlu0 %271
      %273 = vrot.lane.b32.xlu0 %v270, 8
      %v274 = vpop.permute.xlu0 %273
      %vm275 = vcmask 64512
      %v276 = vsel %vm275, %v272, %v274
      %v278 = vsel %vm238, %v210, 0
      %v280 = vsel %vm242, %v276, 0
      %282 = vmatpush.msra.mxu0 0.0
      %283 = vmatpush.msra.mxu0 0.0
      %284 = vmatpush.msra.mxu0 0.0
      %285 = vmatpush.msra.mxu0 0.0
      %286 = vmatpush.msra.mxu0 0.0
      %287 = vmatpush.msra.mxu0 0.0
      %288 = vmatpush.msra.mxu0 0.0
      %289 = vmatpush.msra.mxu0 0.0
      %290 = vmatpush.msra.mxu0 0.0
      %291 = vmatpush.msra.mxu0 0.0
      %292 = vmatpush.msra.mxu0 0.0
      %293 = vmatpush.msra.mxu0 0.0
      %294 = vmatpush.msra.mxu0 0.0
      %295 = vmatpush.msra.mxu0 0.0
      %296 = vmatpush.msra.mxu0 0.0
      %297 = vmatpush.msra.mxu0 %v280
      %298 = vmatmul.f32.gmra.mxu0 %v278
      %v299 = vpop.f32.mrf.mxu0
      %v300 = vadd.f32 0.0, %v299
      %301 = vdwg.mxu0
      %v302 = vadd.f32 %v265, %v300
      %v303 = vld [vmem:[#allocation2] sm:$0xff]
      %v304 = vperm.slane %v204, 2
      %306 = vrot.lane.b32.xlu0 %v304, 121
      %v307 = vpop.permute.xlu0 %306
      %v308 = vrot.slane %v307, 4
      %vm309 = vcmask 990208
      %v310 = vsel %vm309, %v308, %v307
      %v312 = vmul.f32 %v303, %v310
      %314 = vst [vmem:[#allocation1] ss:$2 sm:$0xff] %v312
      %v315 = vld.sshfl [vmem:[#allocation1] sm:$0xff pattern:$0x75316420]
      %v316 = vld.sshfl [vmem:[#allocation1 + $0x8] sm:$0xff pattern:$0x75316420]
      %317 = vrot.lane.b32.xlu0 %v315, 7
      %v318 = vpop.permute.xlu0 %317
      %319 = vrot.lane.b32.xlu0 %v316, 7
      %v320 = vpop.permute.xlu0 %319
      %vm321 = vcmask 56320
      %v322 = vsel %vm321, %v318, %v320
      %v324 = vsel %vm238, %v211, 0
      %v326 = vsel %vm242, %v322, 0
      %328 = vmatpush.msra.mxu0 0.0
      %329 = vmatpush.msra.mxu0 0.0
      %330 = vmatpush.msra.mxu0 0.0
      %331 = vmatpush.msra.mxu0 0.0
      %332 = vmatpush.msra.mxu0 0.0
      %333 = vmatpush.msra.mxu0 0.0
      %334 = vmatpush.msra.mxu0 0.0
      %335 = vmatpush.msra.mxu0 0.0
      %336 = vmatpush.msra.mxu0 0.0
      %337 = vmatpush.msra.mxu0 0.0
      %338 = vmatpush.msra.mxu0 0.0
      %339 = vmatpush.msra.mxu0 0.0
      %340 = vmatpush.msra.mxu0 0.0
      %341 = vmatpush.msra.mxu0 0.0
      %342 = vmatpush.msra.mxu0 0.0
      %343 = vmatpush.msra.mxu0 %v326
      %344 = vmatmul.f32.gmra.mxu0 %v324
      %v345 = vpop.f32.mrf.mxu0
      %v346 = vadd.f32 0.0, %v345
      %347 = vdwg.mxu0
      %v348 = vadd.f32 %v302, %v346
      %v349 = vld [vmem:[#allocation2] sm:$0xff]
      %v350 = vperm.slane %v204, 3
      %352 = vrot.lane.b32.xlu0 %v350, 127
      %v353 = vpop.permute.xlu0 %352
      %v354 = vrot.slane %v353, 4
      %vm355 = vcmask 1039360
      %v356 = vsel %vm355, %v354, %v353
      %v358 = vmul.f32 %v349, %v356
      %360 = vst [vmem:[#allocation1] ss:$2 sm:$0xff] %v358
      %v361 = vld.sshfl [vmem:[#allocation1] sm:$0xff pattern:$0x75316420]
      %v362 = vld.sshfl [vmem:[#allocation1 + $0x8] sm:$0xff pattern:$0x75316420]
      %363 = vrot.lane.b32.xlu0 %v361, 1
      %v364 = vpop.permute.xlu0 %363
      %365 = vrot.lane.b32.xlu0 %v362, 1
      %v366 = vpop.permute.xlu0 %365
      %vm367 = vcmask 7168
      %v368 = vsel %vm367, %v364, %v366
      %v370 = vsel %vm238, %v212, 0
      %v372 = vsel %vm242, %v368, 0
      %374 = vmatpush.msra.mxu0 0.0
      %375 = vmatpush.msra.mxu0 0.0
      %376 = vmatpush.msra.mxu0 0.0
      %377 = vmatpush.msra.mxu0 0.0
      %378 = vmatpush.msra.mxu0 0.0
      %379 = vmatpush.msra.mxu0 0.0
      %380 = vmatpush.msra.mxu0 0.0
      %381 = vmatpush.msra.mxu0 0.0
      %382 = vmatpush.msra.mxu0 0.0
      %383 = vmatpush.msra.mxu0 0.0
      %384 = vmatpush.msra.mxu0 0.0
      %385 = vmatpush.msra.mxu0 0.0
      %386 = vmatpush.msra.mxu0 0.0
      %387 = vmatpush.msra.mxu0 0.0
      %388 = vmatpush.msra.mxu0 0.0
      %389 = vmatpush.msra.mxu0 %v372
      %390 = vmatmul.f32.gmra.mxu0 %v370
      %v391 = vpop.f32.mrf.mxu0
      %v392 = vadd.f32 0.0, %v391
      %393 = vdwg.mxu0
      %v394 = vadd.f32 %v348, %v392
      %v395 = vld [vmem:[#allocation2 + $0x4] sm:$0xf]
      %v397 = vsel %vm238, %v213, 0
      %v400 = vsel %vm242, %v395, 0
      %402 = vmatpush.msra.mxu0 0.0
      %403 = vmatpush.msra.mxu0 0.0
      %404 = vmatpush.msra.mxu0 0.0
      %405 = vmatpush.msra.mxu0 0.0
      %406 = vmatpush.msra.mxu0 0.0
      %407 = vmatpush.msra.mxu0 0.0
      %408 = vmatpush.msra.mxu0 0.0
      %409 = vmatpush.msra.mxu0 0.0
      %410 = vmatpush.msra.mxu0 0.0
      %411 = vmatpush.msra.mxu0 0.0
      %412 = vmatpush.msra.mxu0 0.0
      %413 = vmatpush.msra.mxu0 0.0
      %414 = vmatpush.msra.mxu0 0.0
      %415 = vmatpush.msra.mxu0 0.0
      %416 = vmatpush.msra.mxu0 0.0
      %417 = vmatpush.msra.mxu0 %v400
      %418 = vmatmul.f32.gmra.mxu0 %v397
      %v419 = vpop.f32.mrf.mxu0
      %v420 = vadd.f32 0.0, %v419
      %421 = vdwg.mxu0
      %v422 = vadd.f32 %v394, %v420
      %v423 = vperm.slane %v204, 5
      %425 = vrot.lane.b32.xlu0 %v423, 1
      %v426 = vpop.permute.xlu0 %425
      %v428 = vmul.f32 %v395, %v426
      %430 = vst [vmem:[#allocation1] ss:$2 sm:$0xff] %v428
      %v431 = vld.sshfl [vmem:[#allocation1] sm:$0xff pattern:$0x75316420]
      %432 = vrot.lane.b32.xlu0 %v431, 127
      %v433 = vpop.permute.xlu0 %432
      %v435 = vsel %vm238, %v214, 0
      %v437 = vsel %vm242, %v433, 0
      %439 = vmatpush.msra.mxu0 0.0
      %440 = vmatpush.msra.mxu0 0.0
      %441 = vmatpush.msra.mxu0 0.0
      %442 = vmatpush.msra.mxu0 0.0
      %443 = vmatpush.msra.mxu0 0.0
      %444 = vmatpush.msra.mxu0 0.0
      %445 = vmatpush.msra.mxu0 0.0
      %446 = vmatpush.msra.mxu0 0.0
      %447 = vmatpush.msra.mxu0 0.0
      %448 = vmatpush.msra.mxu0 0.0
      %449 = vmatpush.msra.mxu0 0.0
      %450 = vmatpush.msra.mxu0 0.0
      %451 = vmatpush.msra.mxu0 0.0
      %452 = vmatpush.msra.mxu0 0.0
      %453 = vmatpush.msra.mxu0 0.0
      %454 = vmatpush.msra.mxu0 %v437
      %455 = vmatmul.f32.gmra.mxu0 %v435
      %v456 = vpop.f32.mrf.mxu0
      %v457 = vadd.f32 0.0, %v456
      %458 = vdwg.mxu0
      %v459 = vadd.f32 %v422, %v457
      %v460 = vld [vmem:[#allocation2 + $0x4] sm:$0xf]
      %v461 = vperm.slane %v204, 6
      %463 = vrot.lane.b32.xlu0 %v461, 7
      %v464 = vpop.permute.xlu0 %463
      %v466 = vmul.f32 %v460, %v464
      %468 = vst [vmem:[#allocation1] ss:$2 sm:$0xff] %v466
      %v469 = vld.sshfl [vmem:[#allocation1] sm:$0xff pattern:$0x75316420]
      %470 = vrot.lane.b32.xlu0 %v469, 121
      %v471 = vpop.permute.xlu0 %470
      %v473 = vsel %vm238, %v215, 0
      %v475 = vsel %vm242, %v471, 0
      %477 = vmatpush.msra.mxu0 0.0
      %478 = vmatpush.msra.mxu0 0.0
      %479 = vmatpush.msra.mxu0 0.0
      %480 = vmatpush.msra.mxu0 0.0
      %481 = vmatpush.msra.mxu0 0.0
      %482 = vmatpush.msra.mxu0 0.0
      %483 = vmatpush.msra.mxu0 0.0
      %484 = vmatpush.msra.mxu0 0.0
      %485 = vmatpush.msra.mxu0 0.0
      %486 = vmatpush.msra.mxu0 0.0
      %487 = vmatpush.msra.mxu0 0.0
      %488 = vmatpush.msra.mxu0 0.0
      %489 = vmatpush.msra.mxu0 0.0
      %490 = vmatpush.msra.mxu0 0.0
      %491 = vmatpush.msra.mxu0 0.0
      %492 = vmatpush.msra.mxu0 %v475
      %493 = vmatmul.f32.gmra.mxu0 %v473
      %v494 = vpop.f32.mrf.mxu0
      %v495 = vadd.f32 0.0, %v494
      %496 = vdwg.mxu0
      %v497 = vadd.f32 %v459, %v495
      %v498 = vld [vmem:[#allocation2 + $0x4] sm:$0xf]
      %500 = vst [vmem:[#allocation1] ss:$2 sm:$0xff] %v498
      %v501 = vld.sshfl [vmem:[#allocation1] sm:$0xff pattern:$0x75316420]
      %502 = vrot.lane.b32.xlu0 %v501, 120
      %v503 = vpop.permute.xlu0 %502
      %v505 = vsel %vm238, %v216, 0
      %v507 = vsel %vm242, %v503, 0
      %509 = vmatpush.msra.mxu0 0.0
      %510 = vmatpush.msra.mxu0 0.0
      %511 = vmatpush.msra.mxu0 0.0
      %512 = vmatpush.msra.mxu0 0.0
      %513 = vmatpush.msra.mxu0 0.0
      %514 = vmatpush.msra.mxu0 0.0
      %515 = vmatpush.msra.mxu0 0.0
      %516 = vmatpush.msra.mxu0 0.0
      %517 = vmatpush.msra.mxu0 0.0
      %518 = vmatpush.msra.mxu0 0.0
      %519 = vmatpush.msra.mxu0 0.0
      %520 = vmatpush.msra.mxu0 0.0
      %521 = vmatpush.msra.mxu0 0.0
      %522 = vmatpush.msra.mxu0 0.0
      %523 = vmatpush.msra.mxu0 0.0
      %524 = vmatpush.msra.mxu0 %v507
      %525 = vmatmul.f32.gmra.mxu0 %v505
      %v526 = vpop.f32.mrf.mxu0
      %v527 = vadd.f32 0.0, %v526
      %528 = vdwg.mxu0
      %v529 = vadd.f32 %v497, %v527
      %v530 = vld [vmem:[#allocation2 + $0x4] sm:$0xf]
      %v531 = vperm.slane %v205, 0
      %533 = vrot.lane.b32.xlu0 %v531, 9
      %v534 = vpop.permute.xlu0 %533
      %v536 = vmul.f32 %v530, %v534
      %538 = vst [vmem:[#allocation1] ss:$2 sm:$0xff] %v536
      %v539 = vld.sshfl [vmem:[#allocation1] sm:$0xff pattern:$0x75316420]
      %540 = vrot.lane.b32.xlu0 %v539, 119
      %v541 = vpop.permute.xlu0 %540
      %v543 = vsel %vm238, %v217, 0
      %v545 = vsel %vm242, %v541, 0
      %547 = vmatpush.msra.mxu0 0.0
      %548 = vmatpush.msra.mxu0 0.0
      %549 = vmatpush.msra.mxu0 0.0
      %550 = vmatpush.msra.mxu0 0.0
      %551 = vmatpush.msra.mxu0 0.0
      %552 = vmatpush.msra.mxu0 0.0
      %553 = vmatpush.msra.mxu0 0.0
      %554 = vmatpush.msra.mxu0 0.0
      %555 = vmatpush.msra.mxu0 0.0
      %556 = vmatpush.msra.mxu0 0.0
      %557 = vmatpush.msra.mxu0 0.0
      %558 = vmatpush.msra.mxu0 0.0
      %559 = vmatpush.msra.mxu0 0.0
      %560 = vmatpush.msra.mxu0 0.0
      %561 = vmatpush.msra.mxu0 0.0
      %562 = vmatpush.msra.mxu0 %v545
      %563 = vmatmul.f32.gmra.mxu0 %v543
      %v564 = vpop.f32.mrf.mxu0
      %v565 = vadd.f32 0.0, %v564
      %566 = vdwg.mxu0
      %v567 = vadd.f32 %v529, %v565
      %v568 = vmax.f32 %v567, 0.0
      %vm569 = vcmask 523264
      %570 = vst.msk [vmem:[%s192] sm:$0xff] %vm569, %v568
      %p571 = scmp.lt.s32.totalorder %s15, 1
      %s572 = scalar_select %p571, %s15, 1
      %s573 = smul.addr %s572, 8
      %s574 = scalar_lea.vmem %s4, %s573
      // Predicated region
      $region41: #{neck_forward.7} parent=35 // pred_check
        %p575 = pneg %p122
      $region42: #{neck_forward.7} parent=35 // pred_check_branch
        %577 = sbr.rel (%p575) target = $region44
      $region43: #{neck_forward.7} parent=35 // pred_region
        _
      $region44: #{neck_forward.7} parent=35 // pred_fallthru
        _
    $region36: #{neck_forward.7} parent=5 // pred_fallthru
      _
    %p578 = scmp.le.s32.totalorder 2, %s10
    // Predicated region
    $region45: #{neck_forward.7} parent=5 // pred_check
      %p579 = pneg %p578
    $region46: #{neck_forward.7} parent=5 // pred_check_branch
      %581 = sbr.rel (%p579) target = $region48
    $region47: #{neck_forward.7} parent=5 // pred_region
      %s582 = ssub.s32 %s10, 2
      // Predicated region
      $region49: #{neck_forward.7} parent=47 // pred_check
        %p583 = pneg %p128
      $region50: #{neck_forward.7} parent=47 // pred_check_branch
        %585 = sbr.rel (%p583) target = $region52
      $region51: #{neck_forward.7} parent=47 // pred_region
        %p586 = scmp.lt.s32.totalorder %s16, 1
        %s587 = scalar_select %p586, %s16, 1
        %s588 = smul.addr %s587, 8
        %s589 = scalar_lea.vmem %s4, %s588
      $region52: #{neck_forward.7} parent=47 // pred_fallthru
        _
    $region48: #{neck_forward.7} parent=5 // pred_fallthru
      _
  $region6: #{neck_forward.7} parent=0 // loop_footer
    %s14 = sadd.s32 1, %s10
  $region7: #{neck_forward.7} parent=0 // loop_footer_branch
    %9 = sbr.rel target = $region3
  $region8: #{neck_forward.7} parent=0 // loop_exit
    _

// kernel: neck_forward.12
$region0: #{neck_forward.12}
  #allocation0 [shape = 'u32[]', space=smem, size = 0x4, offset = 0x4, fixed_abs, tag = 'smem constant byte address 0x4 - core index']
  #allocation1 [shape = 'u32[72,128]{1,0:T(1,128)}', space=vmem, size = 0x9000, scoped, tag = 'internal scratch']
  #allocation2 [shape = 'f32[8,512]{1,0:T(8,128)}', space=vmem, size = 0x4000, scoped, tag = 'scratch operand']
  %s0 = inlined_call_operand.vmem [shape: f32[2,8,64], index: 0, kind: input, shape index: {}]
  %s1 = inlined_call_operand.vmem [shape: f32[64,256], index: 1, kind: input, shape index: {}, may-alias: {1,4}]
  %s2 = inlined_call_operand.vmem [shape: f32[9,8,8], index: 2, kind: input, shape index: {}]
  %s3 = inlined_call_operand.vmem [shape: f32[2,8,64], index: 3, kind: input, shape index: {}]
  %s4 = inlined_call_operand.vmem [shape: f32[64,256], index: 4, kind: input, shape index: {}, may-alias: {1,4}]
  %s5 = inlined_call_operand.vmem [shape: f32[9,8,8], index: 5, kind: input, shape index: {}]
  %s6 = inlined_call_operand.vmem [shape: f32[9,256], index: 6, kind: input, shape index: {}]
  %s7 = inlined_call_operand.vmem [shape: f32[8,1], index: 7, kind: input, shape index: {}]
  %s8 = inlined_call_operand.vmem [shape: f32[2,8,256], index: 8, kind: output, shape index: {}]
  %s9 = sld [smem:[#allocation0]]
  $region69: #{neck_forward.12} parent=0
    _
  %s11 = ssub.s32 1, %s9
  %s12 = scalar_select 0, %s11, %s9
  loop: start=0, step=1, limit=4
  $region2: #{neck_forward.12} parent=0 // loop_pre_header
    _
  $region3: #{neck_forward.12} parent=0 // loop_header
    %s14 = sphi 0, %s18
    %p15 = scmp.ge.s32.totalorder %s14, 4
    %s24 = sphi 0, %s26
    %s27 = sphi 0, %s24
    %s28 = sphi 0, %s27
    %s44 = sphi 0, %s28
    %s48 = sphi 0, %s48
    %s50 = sphi 0, %s48
    %s51 = sphi 0, %s50
    %s65 = sphi 0, %s51
    %s69 = sphi 0, %s69
    %s71 = sphi 0, %s69
    %s72 = sphi 0, %s71
    %s86 = sphi 0, %s72
    %s92 = sphi 0, %s94
    %s95 = sphi 0, %s92
    %s96 = sphi 0, %s95
    %s112 = sphi 0, %s96
    %s116 = sphi 0, %s116
    %s118 = sphi 0, %s116
    %s119 = sphi 0, %s118
    %s133 = sphi 0, %s119
    %s137 = sphi 0, %s137
    %s139 = sphi 0, %s137
    %s140 = sphi 0, %s139
    %s154 = sphi 0, %s140
    %s158 = sphi 0, %s158
    %s160 = sphi 0, %s158
    %s161 = sphi 0, %s160
    %s175 = sphi 0, %s161
    %s179 = sphi 0, %s179
    %s181 = sphi 0, %s179
    %s182 = sphi 0, %s181
    %s196 = sphi 0, %s182
    %s202 = sphi 0, %s204
    %s205 = sphi 0, %s202
    %s206 = sphi 0, %s205
    %s222 = sphi 0, %s206
  $region4: #{neck_forward.12} parent=0 // loop_header_branch
    %17 = sbr.rel (%p15) target = $region8
  $region5: #{neck_forward.12} parent=0 // loop_body
    %s19 = ssub.s32 %s14, 1
    %s20 = ssub.s32 %s14, 2
    %s21 = sadd.s32 %s14, 1
    %s22 = ssub.s32 %s14, %s21
    %p23 = scmp.eq.s32.totalorder %s22, 0
    %s25 = sadd.s32 %s24, 1
    %s26 = scalar_select %p23, %s24, %s25
    %p29 = pneg %p23
    %p30 = scmp.eq.s32.totalorder %s14, 1
    %p31 = por %p29, %p30
    %p32 = scmp.ne.s32.totalorder %s24, %s27
    %p33 = scmp.eq.s32.totalorder %s14, 0
    %p34 = por %p32, %p33
    %p35 = scmp.ne.s32.totalorder %s24, %s27
    %p36 = scmp.eq.s32.totalorder %s19, 1
    %p37 = por %p35, %p36
    %p38 = scmp.ne.s32.totalorder %s27, %s28
    %p39 = scmp.eq.s32.totalorder %s19, 0
    %p40 = por %p38, %p39
    %p41 = scmp.ne.s32.totalorder %s27, %s28
    %p42 = scmp.eq.s32.totalorder %s20, 1
    %p43 = por %p41, %p42
    %p45 = scmp.ne.s32.totalorder %s28, %s44
    %p46 = scmp.eq.s32.totalorder %s20, 0
    %p47 = por %p45, %p46
    %s49 = sadd.s32 %s48, 1
    %p52 = scmp.eq.s32.totalorder %s14, 1
    %p53 = scmp.ne.s32.totalorder %s48, %s50
    %p54 = scmp.eq.s32.totalorder %s14, 0
    %p55 = por %p53, %p54
    %p56 = scmp.ne.s32.totalorder %s48, %s50
    %p57 = scmp.eq.s32.totalorder %s19, 1
    %p58 = por %p56, %p57
    %p59 = scmp.ne.s32.totalorder %s50, %s51
    %p60 = scmp.eq.s32.totalorder %s19, 0
    %p61 = por %p59, %p60
    %p62 = scmp.ne.s32.totalorder %s50, %s51
    %p63 = scmp.eq.s32.totalorder %s20, 1
    %p64 = por %p62, %p63
    %p66 = scmp.ne.s32.totalorder %s51, %s65
    %p67 = scmp.eq.s32.totalorder %s20, 0
    %p68 = por %p66, %p67
    %s70 = sadd.s32 %s69, 1
    %p73 = scmp.eq.s32.totalorder %s14, 1
    %p74 = scmp.ne.s32.totalorder %s69, %s71
    %p75 = scmp.eq.s32.totalorder %s14, 0
    %p76 = por %p74, %p75
    %p77 = scmp.ne.s32.totalorder %s69, %s71
    %p78 = scmp.eq.s32.totalorder %s19, 1
    %p79 = por %p77, %p78
    %p80 = scmp.ne.s32.totalorder %s71, %s72
    %p81 = scmp.eq.s32.totalorder %s19, 0
    %p82 = por %p80, %p81
    %p83 = scmp.ne.s32.totalorder %s71, %s72
    %p84 = scmp.eq.s32.totalorder %s20, 1
    %p85 = por %p83, %p84
    %p87 = scmp.ne.s32.totalorder %s72, %s86
    %p88 = scmp.eq.s32.totalorder %s20, 0
    %p89 = por %p87, %p88
    %s90 = ssub.s32 %s14, %s21
    %p91 = scmp.eq.s32.totalorder %s90, 0
    %s93 = sadd.s32 %s92, 1
    %s94 = scalar_select %p91, %s92, %s93
    %p97 = pneg %p91
    %p98 = scmp.eq.s32.totalorder %s14, 1
    %p99 = por %p97, %p98
    %p100 = scmp.ne.s32.totalorder %s92, %s95
    %p101 = scmp.eq.s32.totalorder %s14, 0
    %p102 = por %p100, %p101
    %p103 = scmp.ne.s32.totalorder %s92, %s95
    %p104 = scmp.eq.s32.totalorder %s19, 1
    %p105 = por %p103, %p104
    %p106 = scmp.ne.s32.totalorder %s95, %s96
    %p107 = scmp.eq.s32.totalorder %s19, 0
    %p108 = por %p106, %p107
    %p109 = scmp.ne.s32.totalorder %s95, %s96
    %p110 = scmp.eq.s32.totalorder %s20, 1
    %p111 = por %p109, %p110
    %p113 = scmp.ne.s32.totalorder %s96, %s112
    %p114 = scmp.eq.s32.totalorder %s20, 0
    %p115 = por %p113, %p114
    %s117 = sadd.s32 %s116, 1
    %p120 = scmp.eq.s32.totalorder %s14, 1
    %p121 = scmp.ne.s32.totalorder %s116, %s118
    %p122 = scmp.eq.s32.totalorder %s14, 0
    %p123 = por %p121, %p122
    %p124 = scmp.ne.s32.totalorder %s116, %s118
    %p125 = scmp.eq.s32.totalorder %s19, 1
    %p126 = por %p124, %p125
    %p127 = scmp.ne.s32.totalorder %s118, %s119
    %p128 = scmp.eq.s32.totalorder %s19, 0
    %p129 = por %p127, %p128
    %p130 = scmp.ne.s32.totalorder %s118, %s119
    %p131 = scmp.eq.s32.totalorder %s20, 1
    %p132 = por %p130, %p131
    %p134 = scmp.ne.s32.totalorder %s119, %s133
    %p135 = scmp.eq.s32.totalorder %s20, 0
    %p136 = por %p134, %p135
    %s138 = sadd.s32 %s137, 1
    %p141 = scmp.eq.s32.totalorder %s14, 1
    %p142 = scmp.ne.s32.totalorder %s137, %s139
    %p143 = scmp.eq.s32.totalorder %s14, 0
    %p144 = por %p142, %p143
    %p145 = scmp.ne.s32.totalorder %s137, %s139
    %p146 = scmp.eq.s32.totalorder %s19, 1
    %p147 = por %p145, %p146
    %p148 = scmp.ne.s32.totalorder %s139, %s140
    %p149 = scmp.eq.s32.totalorder %s19, 0
    %p150 = por %p148, %p149
    %p151 = scmp.ne.s32.totalorder %s139, %s140
    %p152 = scmp.eq.s32.totalorder %s20, 1
    %p153 = por %p151, %p152
    %p155 = scmp.ne.s32.totalorder %s140, %s154
    %p156 = scmp.eq.s32.totalorder %s20, 0
    %p157 = por %p155, %p156
    %s159 = sadd.s32 %s158, 1
    %p162 = scmp.eq.s32.totalorder %s14, 1
    %p163 = scmp.ne.s32.totalorder %s158, %s160
    %p164 = scmp.eq.s32.totalorder %s14, 0
    %p165 = por %p163, %p164
    %p166 = scmp.ne.s32.totalorder %s158, %s160
    %p167 = scmp.eq.s32.totalorder %s19, 1
    %p168 = por %p166, %p167
    %p169 = scmp.ne.s32.totalorder %s160, %s161
    %p170 = scmp.eq.s32.totalorder %s19, 0
    %p171 = por %p169, %p170
    %p172 = scmp.ne.s32.totalorder %s160, %s161
    %p173 = scmp.eq.s32.totalorder %s20, 1
    %p174 = por %p172, %p173
    %p176 = scmp.ne.s32.totalorder %s161, %s175
    %p177 = scmp.eq.s32.totalorder %s20, 0
    %p178 = por %p176, %p177
    %s180 = sadd.s32 %s179, 1
    %p183 = scmp.eq.s32.totalorder %s14, 1
    %p184 = scmp.ne.s32.totalorder %s179, %s181
    %p185 = scmp.eq.s32.totalorder %s14, 0
    %p186 = por %p184, %p185
    %p187 = scmp.ne.s32.totalorder %s179, %s181
    %p188 = scmp.eq.s32.totalorder %s19, 1
    %p189 = por %p187, %p188
    %p190 = scmp.ne.s32.totalorder %s181, %s182
    %p191 = scmp.eq.s32.totalorder %s19, 0
    %p192 = por %p190, %p191
    %p193 = scmp.ne.s32.totalorder %s181, %s182
    %p194 = scmp.eq.s32.totalorder %s20, 1
    %p195 = por %p193, %p194
    %p197 = scmp.ne.s32.totalorder %s182, %s196
    %p198 = scmp.eq.s32.totalorder %s20, 0
    %p199 = por %p197, %p198
    %s200 = ssub.s32 %s14, %s21
    %p201 = scmp.eq.s32.totalorder %s200, 0
    %s203 = sadd.s32 %s202, 1
    %s204 = scalar_select %p201, %s202, %s203
    %p207 = pneg %p201
    %p208 = scmp.eq.s32.totalorder %s14, 1
    %p209 = por %p207, %p208
    %p210 = scmp.ne.s32.totalorder %s202, %s205
    %p211 = scmp.eq.s32.totalorder %s14, 0
    %p212 = por %p210, %p211
    %p213 = scmp.ne.s32.totalorder %s202, %s205
    %p214 = scmp.eq.s32.totalorder %s19, 1
    %p215 = por %p213, %p214
    %p216 = scmp.ne.s32.totalorder %s205, %s206
    %p217 = scmp.eq.s32.totalorder %s19, 0
    %p218 = por %p216, %p217
    %p219 = scmp.ne.s32.totalorder %s205, %s206
    %p220 = scmp.eq.s32.totalorder %s20, 1
    %p221 = por %p219, %p220
    %p223 = scmp.ne.s32.totalorder %s206, %s222
    %p224 = scmp.eq.s32.totalorder %s20, 0
    %p225 = por %p223, %p224
    %p226 = scmp.le.s32.totalorder 1, %s14
    %p227 = scmp.lt.s32.totalorder %s14, 3
    %p228 = pnand %p226, %p227
    %p229 = pneg %p228
    // Predicated region
    $region9: #{neck_forward.12} parent=5 // pred_check
      _
    $region10: #{neck_forward.12} parent=5 // pred_check_branch
      %231 = sbr.rel (%p228) target = $region12
    $region11: #{neck_forward.12} parent=5 // pred_region
      %s232 = ssub.s32 %s14, 1
      // Predicated region
      $region13: #{neck_forward.12} parent=11 // pred_check
        %p233 = pneg %p61
      $region14: #{neck_forward.12} parent=11 // pred_check_branch
        %235 = sbr.rel (%p233) target = $region16
      $region15: #{neck_forward.12} parent=11 // pred_region
        _
      $region16: #{neck_forward.12} parent=11 // pred_fallthru
        _
      // Predicated region
      $region17: #{neck_forward.12} parent=11 // pred_check
        %p236 = pneg %p82
      $region18: #{neck_forward.12} parent=11 // pred_check_branch
        %238 = sbr.rel (%p236) target = $region20
      $region19: #{neck_forward.12} parent=11 // pred_region
        _
      $region20: #{neck_forward.12} parent=11 // pred_fallthru
        _
      // Predicated region
      $region21: #{neck_forward.12} parent=11 // pred_check
        %p239 = pneg %p129
      $region22: #{neck_forward.12} parent=11 // pred_check_branch
        %241 = sbr.rel (%p239) target = $region24
      $region23: #{neck_forward.12} parent=11 // pred_region
        _
      $region24: #{neck_forward.12} parent=11 // pred_fallthru
        _
      // Predicated region
      $region25: #{neck_forward.12} parent=11 // pred_check
        %p242 = pneg %p150
      $region26: #{neck_forward.12} parent=11 // pred_check_branch
        %244 = sbr.rel (%p242) target = $region28
      $region27: #{neck_forward.12} parent=11 // pred_region
        _
      $region28: #{neck_forward.12} parent=11 // pred_fallthru
        _
      // Predicated region
      $region29: #{neck_forward.12} parent=11 // pred_check
        %p245 = pneg %p171
      $region30: #{neck_forward.12} parent=11 // pred_check_branch
        %247 = sbr.rel (%p245) target = $region32
      $region31: #{neck_forward.12} parent=11 // pred_region
        _
      $region32: #{neck_forward.12} parent=11 // pred_fallthru
        _
      // Predicated region
      $region33: #{neck_forward.12} parent=11 // pred_check
        %p248 = pneg %p192
      $region34: #{neck_forward.12} parent=11 // pred_check_branch
        %250 = sbr.rel (%p248) target = $region36
      $region35: #{neck_forward.12} parent=11 // pred_region
        _
      $region36: #{neck_forward.12} parent=11 // pred_fallthru
        _
    $region12: #{neck_forward.12} parent=5 // pred_fallthru
      _
    %p251 = scmp.lt.s32.totalorder %s14, 2
    // Predicated region
    $region37: #{neck_forward.12} parent=5 // pred_check
      %p252 = pneg %p251
    $region38: #{neck_forward.12} parent=5 // pred_check_branch
      %254 = sbr.rel (%p252) target = $region40
    $region39: #{neck_forward.12} parent=5 // pred_region
      // Predicated region
      $region41: #{neck_forward.12} parent=39 // pred_check
        %p255 = pneg %p34
      $region42: #{neck_forward.12} parent=39 // pred_check_branch
        %257 = sbr.rel (%p255) target = $region44
      $region43: #{neck_forward.12} parent=39 // pred_region
        %p258 = scmp.lt.s32.totalorder %s14, 1
        %s259 = scalar_select %p258, %s14, 1
        %s260 = smul.addr %s259, 8
        %s261 = scalar_lea.vmem %s0, %s260
      $region44: #{neck_forward.12} parent=39 // pred_fallthru
        _
      // Predicated region
      $region45: #{neck_forward.12} parent=39 // pred_check
        %p262 = pneg %p102
      $region46: #{neck_forward.12} parent=39 // pred_check_branch
        %264 = sbr.rel (%p262) target = $region48
      $region47: #{neck_forward.12} parent=39 // pred_region
        %p265 = scmp.lt.s32.totalorder %s14, 1
        %s266 = scalar_select %p265, %s14, 1
        %s267 = smul.addr %s266, 8
        %s268 = scalar_lea.vmem %s3, %s267
      $region48: #{neck_forward.12} parent=39 // pred_fallthru
        _
    $region40: #{neck_forward.12} parent=5 // pred_fallthru
      _
    %p269 = scmp.le.s32.totalorder 1, %s14
    %p270 = scmp.lt.s32.totalorder %s14, 3
    %p271 = pnand %p269, %p270
    %p272 = pneg %p271
    // Predicated region
    $region49: #{neck_forward.12} parent=5 // pred_check
      _
    $region50: #{neck_forward.12} parent=5 // pred_check_branch
      %274 = sbr.rel (%p271) target = $region52
    $region51: #{neck_forward.12} parent=5 // pred_region
      %s275 = ssub.s32 %s14, 1
      %p276 = scmp.lt.s32.totalorder %s19, 1
      %s277 = scalar_select %p276, %s19, 1
      %s278 = smul.addr %s277, 8
      %s279 = scalar_lea.vmem %s0, %s278
      %p280 = pneg %p40
      %p281 = pneg %p37
      %p282 = pneg %p61
      %p283 = pneg %p58
      %p284 = pneg %p82
      %p285 = pneg %p79
      %p286 = scmp.lt.s32.totalorder %s19, 1
      %s287 = scalar_select %p286, %s19, 1
      %s288 = smul.addr %s287, 8
      %s289 = scalar_lea.vmem %s3, %s288
      %p290 = pneg %p108
      %p291 = pneg %p105
      %p292 = pneg %p129
      %p293 = pneg %p126
      %p294 = pneg %p150
      %p295 = pneg %p147
      %p296 = pneg %p171
      %p297 = pneg %p168
      %p298 = pneg %p192
      %p299 = pneg %p189
      %p300 = pneg %p218
      %p301 = pneg %p215
      %p302 = scmp.lt.s32.totalorder %s19, 1
      %s303 = scalar_select %p302, %s19, 1
      %s304 = smul.addr %s303, 2
      %s305 = smul.addr %s304, 8
      %s306 = scalar_lea.vmem %s8, %s305
      %p307 = scmp.lt.s32.totalorder %s19, 1
      %s308 = scalar_select %p307, %s19, 1
      %s309 = smul.addr %s308, 8
      %s310 = scalar_lea.vmem %s0, %s309
      %p311 = scmp.lt.s32.totalorder %s19, 1
      %s312 = scalar_select %p311, %s19, 1
      %s313 = smul.addr %s312, 8
      %s314 = scalar_lea.vmem %s3, %s313
      %p315 = scmp.lt.s32.totalorder %s19, 1
      %s316 = scalar_select %p315, %s19, 1
      %s317 = smul.addr %s316, 2
      %s318 = smul.addr %s317, 8
      %s319 = scalar_lea.vmem %s8, %s318
      %p320 = scmp.eq.s32.totalorder %s19, 0
      // Predicated region
      $region53: #{neck_forward.12} parent=51 // pred_check
        %p321 = pneg %p320
      $region54: #{neck_forward.12} parent=51 // pred_check_branch
        %323 = sbr.rel (%p321) target = $region56
      $region55: #{neck_forward.12} parent=51 // pred_region
        %324 = vst [vmem:[#allocation2] sm:$0xff] 0.0
        %325 = vst [vmem:[#allocation2 + $0x8] sm:$0xff] 0.0
        %326 = vst [vmem:[#allocation2 + $0x10] sm:$0xff] 0.0
        %327 = vst [vmem:[#allocation2 + $0x18] sm:$0xff] 0.0
      $region56: #{neck_forward.12} parent=51 // pred_fallthru
        _
      %v328 = vld [vmem:[%s7] sm:$0xff]
      %330 = vset.pattern.permute.xlu0 0
      %331 = vperm.xlu0 %330, %v328
      %v332 = vpop.permute.xlu0 %331
      %v334 = vld [vmem:[%s6] sm:$0xff]
      %v335 = vld [vmem:[%s6 + $0x8] sm:$0xff]
      %v336 = vld [vmem:[%s6 + $0x10] sm:$0x1]
      %v337 = vld [vmem:[%s6 + $0x18] sm:$0x1]
      %v338 = vld [vmem:[%s310] sm:$0xff]
      %v339 = vld [vmem:[%s1] sm:$0xff]
      %v340 = vld [vmem:[%s1 + $0x8] sm:$0xff]
      %v341 = vld [vmem:[%s1 + $0x10] sm:$0xff]
      %v342 = vld [vmem:[%s1 + $0x18] sm:$0xff]
      %v343 = vld [vmem:[%s1 + $0x20] sm:$0xff]
      %v344 = vld [vmem:[%s1 + $0x28] sm:$0xff]
      %v345 = vld [vmem:[%s1 + $0x30] sm:$0xff]
      %v346 = vld [vmem:[%s1 + $0x38] sm:$0xff]
      %v347 = vld [vmem:[%s1 + $0x40] sm:$0xff]
      %v348 = vld [vmem:[%s1 + $0x48] sm:$0xff]
      %v349 = vld [vmem:[%s1 + $0x50] sm:$0xff]
      %v350 = vld [vmem:[%s1 + $0x58] sm:$0xff]
      %v351 = vld [vmem:[%s1 + $0x60] sm:$0xff]
      %v352 = vld [vmem:[%s1 + $0x68] sm:$0xff]
      %v353 = vld [vmem:[%s1 + $0x70] sm:$0xff]
      %v354 = vld [vmem:[%s1 + $0x78] sm:$0xff]
      %vm355 = vcmask 523264
      %v357 = vsel %vm355, %v338, 0
      %359 = vmatpush.msra.mxu0 0.0
      %360 = vmatpush.msra.mxu0 0.0
      %361 = vmatpush.msra.mxu0 0.0
      %362 = vmatpush.msra.mxu0 0.0
      %363 = vmatpush.msra.mxu0 0.0
      %364 = vmatpush.msra.mxu0 0.0
      %365 = vmatpush.msra.mxu0 0.0
      %366 = vmatpush.msra.mxu0 0.0
      %367 = vmatpush.msra.mxu0 %v353
      %368 = vmatpush.msra.mxu0 %v351
      %369 = vmatpush.msra.mxu0 %v349
      %370 = vmatpush.msra.mxu0 %v347
      %371 = vmatpush.msra.mxu0 %v345
      %372 = vmatpush.msra.mxu0 %v343
      %373 = vmatpush.msra.mxu0 %v341
      %374 = vmatpush.msra.mxu0 %v339
      %375 = vmatmul.f32.gmra.mxu0 %v357
      %v376 = vpop.f32.mrf.mxu0
      %v377 = vadd.f32 0.0, %v376
      %378 = vdwg.mxu0
      %379 = vmatpush.msra.mxu0 0.0
      %380 = vmatpush.msra.mxu0 0.0
      %381 = vmatpush.msra.mxu0 0.0
      %382 = vmatpush.msra.mxu0 0.0
      %383 = vmatpush.msra.mxu0 0.0
      %384 = vmatpush.msra.mxu0 0.0
      %385 = vmatpush.msra.mxu0 0.0
      %386 = vmatpush.msra.mxu0 0.0
      %387 = vmatpush.msra.mxu0 %v354
      %388 = vmatpush.msra.mxu0 %v352
      %389 = vmatpush.msra.mxu0 %v350
      %390 = vmatpush.msra.mxu0 %v348
      %391 = vmatpush.msra.mxu0 %v346
      %392 = vmatpush.msra.mxu0 %v344
      %393 = vmatpush.msra.mxu0 %v342
      %394 = vmatpush.msra.mxu0 %v340
      %395 = vmatmul.f32.gmra.mxu0 %v357
      %v396 = vpop.f32.mrf.mxu0
      %v397 = vadd.f32 0.0, %v396
      %398 = vdwg.mxu0
      %399 = vst [vmem:[#allocation2 + $0x8] sm:$0xff] %v377
      %400 = vst [vmem:[#allocation2 + $0x10] sm:$0xff] %v397
      %v401 = vld [vmem:[%s2] sm:$0xff]
      %v402 = vld [vmem:[%s2 + $0x8] sm:$0xff]
      %v403 = vld [vmem:[%s2 + $0x10] sm:$0xff]
      %v404 = vld [vmem:[%s2 + $0x18] sm:$0xff]
      %v405 = vld [vmem:[%s2 + $0x20] sm:$0xff]
      %v406 = vld [vmem:[%s2 + $0x28] sm:$0xff]
      %v407 = vld [vmem:[%s2 + $0x30] sm:$0xff]
      %v408 = vld [vmem:[%s2 + $0x38] sm:$0xff]
      %v409 = vld [vmem:[%s2 + $0x40] sm:$0xff]
      %v410 = vld [vmem:[#allocation2] sm:$0xff]
      %v411 = vld [vmem:[#allocation2 + $0x8] sm:$0xff]
      %v412 = vld [vmem:[#allocation2 + $0x10] sm:$0xff]
      %v413 = vperm.slane %v334, 0
      %v414 = vperm.slane %v335, 0
      %417 = vrot.lane.b32.xlu0 %v413, 111
      %v418 = vpop.permute.xlu0 %417
      %419 = vrot.lane.b32.xlu0 %v414, 111
      %v420 = vpop.permute.xlu0 %419
      %vm421 = vcmask 908288
      %v422 = vsel %vm421, %v418, %v420
      %v426 = vmul.f32 %v410, %v418
      %v427 = vmul.f32 %v411, %v422
      %v428 = vmul.f32 %v412, %v420
      %432 = vrot.lane.b32.xlu0 %v426, 17
      %v433 = vpop.permute.xlu0 %432
      %434 = vrot.lane.b32.xlu0 %v427, 17
      %v435 = vpop.permute.xlu0 %434
      %436 = vrot.lane.b32.xlu0 %v428, 17
      %v437 = vpop.permute.xlu0 %436
      %vm438 = vcmask 138240
      %v439 = vsel %vm438, %v433, %v435
      %v440 = vsel %vm438, %v435, %v437
      %vm443 = vcmask 64512
      %v445 = vsel %vm443, %v401, 0
      %447 = vmatpush.msra.mxu0 0.0
      %448 = vmatpush.msra.mxu0 0.0
      %449 = vmatpush.msra.mxu0 0.0
      %450 = vmatpush.msra.mxu0 0.0
      %451 = vmatpush.msra.mxu0 0.0
      %452 = vmatpush.msra.mxu0 0.0
      %453 = vmatpush.msra.mxu0 0.0
      %454 = vmatpush.msra.mxu0 0.0
      %455 = vmatpush.msra.mxu0 0.0
      %456 = vmatpush.msra.mxu0 0.0
      %457 = vmatpush.msra.mxu0 0.0
      %458 = vmatpush.msra.mxu0 0.0
      %459 = vmatpush.msra.mxu0 0.0
      %460 = vmatpush.msra.mxu0 0.0
      %461 = vmatpush.msra.mxu0 0.0
      %462 = vmatpush.msra.mxu0 %v439
      %463 = vmatmul.f32.gmra.mxu0 %v445
      %v464 = vpop.f32.mrf.mxu0
      %v465 = vadd.f32 0.0, %v464
      %466 = vdwg.mxu0
      %467 = vmatpush.msra.mxu0 0.0
      %468 = vmatpush.msra.mxu0 0.0
      %469 = vmatpush.msra.mxu0 0.0
      %470 = vmatpush.msra.mxu0 0.0
      %471 = vmatpush.msra.mxu0 0.0
      %472 = vmatpush.msra.mxu0 0.0
      %473 = vmatpush.msra.mxu0 0.0
      %474 = vmatpush.msra.mxu0 0.0
      %475 = vmatpush.msra.mxu0 0.0
      %476 = vmatpush.msra.mxu0 0.0
      %477 = vmatpush.msra.mxu0 0.0
      %478 = vmatpush.msra.mxu0 0.0
      %479 = vmatpush.msra.mxu0 0.0
      %480 = vmatpush.msra.mxu0 0.0
      %481 = vmatpush.msra.mxu0 0.0
      %482 = vmatpush.msra.mxu0 %v440
      %483 = vmatmul.f32.gmra.mxu0 %v445
      %v484 = vpop.f32.mrf.mxu0
      %v485 = vadd.f32 0.0, %v484
      %486 = vdwg.mxu0
      %v487 = vadd.f32 %v332, %v465
      %v488 = vadd.f32 %v332, %v485
      %492 = vrot.lane.b32.xlu0 %v410, 16
      %v493 = vpop.permute.xlu0 %492
      %494 = vrot.lane.b32.xlu0 %v411, 16
      %v495 = vpop.permute.xlu0 %494
      %496 = vrot.lane.b32.xlu0 %v412, 16
      %v497 = vpop.permute.xlu0 %496
      %vm498 = vcmask 130048
      %v499 = vsel %vm498, %v493, %v495
      %v500 = vsel %vm498, %v495, %v497
      %v504 = vsel %vm443, %v402, 0
      %506 = vmatpush.msra.mxu0 0.0
      %507 = vmatpush.msra.mxu0 0.0
      %508 = vmatpush.msra.mxu0 0.0
      %509 = vmatpush.msra.mxu0 0.0
      %510 = vmatpush.msra.mxu0 0.0
      %511 = vmatpush.msra.mxu0 0.0
      %512 = vmatpush.msra.mxu0 0.0
      %513 = vmatpush.msra.mxu0 0.0
      %514 = vmatpush.msra.mxu0 0.0
      %515 = vmatpush.msra.mxu0 0.0
      %516 = vmatpush.msra.mxu0 0.0
      %517 = vmatpush.msra.mxu0 0.0
      %518 = vmatpush.msra.mxu0 0.0
      %519 = vmatpush.msra.mxu0 0.0
      %520 = vmatpush.msra.mxu0 0.0
      %521 = vmatpush.msra.mxu0 %v499
      %522 = vmatmul.f32.gmra.mxu0 %v504
      %v523 = vpop.f32.mrf.mxu0
      %v524 = vadd.f32 0.0, %v523
      %525 = vdwg.mxu0
      %526 = vmatpush.msra.mxu0 0.0
      %527 = vmatpush.msra.mxu0 0.0
      %528 = vmatpush.msra.mxu0 0.0
      %529 = vmatpush.msra.mxu0 0.0
      %530 = vmatpush.msra.mxu0 0.0
      %531 = vmatpush.msra.mxu0 0.0
      %532 = vmatpush.msra.mxu0 0.0
      %533 = vmatpush.msra.mxu0 0.0
      %534 = vmatpush.msra.mxu0 0.0
      %535 = vmatpush.msra.mxu0 0.0
      %536 = vmatpush.msra.mxu0 0.0
      %537 = vmatpush.msra.mxu0 0.0
      %538 = vmatpush.msra.mxu0 0.0
      %539 = vmatpush.msra.mxu0 0.0
      %540 = vmatpush.msra.mxu0 0.0
      %541 = vmatpush.msra.mxu0 %v500
      %542 = vmatmul.f32.gmra.mxu0 %v504
      %v543 = vpop.f32.mrf.mxu0
      %v544 = vadd.f32 0.0, %v543
      %545 = vdwg.mxu0
      %v546 = vadd.f32 %v487, %v524
      %v547 = vadd.f32 %v488, %v544
      %v548 = vperm.slane %v334, 2
      %v549 = vperm.slane %v335, 2
      %552 = vrot.lane.b32.xlu0 %v548, 113
      %v553 = vpop.permute.xlu0 %552
      %554 = vrot.lane.b32.xlu0 %v549, 113
      %v555 = vpop.permute.xlu0 %554
      %vm556 = vcmask 924672
      %v557 = vsel %vm556, %v553, %v555
      %v561 = vmul.f32 %v410, %v553
      %v562 = vmul.f32 %v411, %v557
      %v563 = vmul.f32 %v412, %v555
      %567 = vrot.lane.b32.xlu0 %v561, 15
      %v568 = vpop.permute.xlu0 %567
      %569 = vrot.lane.b32.xlu0 %v562, 15
      %v570 = vpop.permute.xlu0 %569
      %571 = vrot.lane.b32.xlu0 %v563, 15
      %v572 = vpop.permute.xlu0 %571
      %vm573 = vcmask 121856
      %v574 = vsel %vm573, %v568, %v570
      %v575 = vsel %vm573, %v570, %v572
      %v579 = vsel %vm443, %v403, 0
      %581 = vmatpush.msra.mxu0 0.0
      %582 = vmatpush.msra.mxu0 0.0
      %583 = vmatpush.msra.mxu0 0.0
      %584 = vmatpush.msra.mxu0 0.0
      %585 = vmatpush.msra.mxu0 0.0
      %586 = vmatpush.msra.mxu0 0.0
      %587 = vmatpush.msra.mxu0 0.0
      %588 = vmatpush.msra.mxu0 0.0
      %589 = vmatpush.msra.mxu0 0.0
      %590 = vmatpush.msra.mxu0 0.0
      %591 = vmatpush.msra.mxu0 0.0
      %592 = vmatpush.msra.mxu0 0.0
      %593 = vmatpush.msra.mxu0 0.0
      %594 = vmatpush.msra.mxu0 0.0
      %595 = vmatpush.msra.mxu0 0.0
      %596 = vmatpush.msra.mxu0 %v574
      %597 = vmatmul.f32.gmra.mxu0 %v579
      %v598 = vpop.f32.mrf.mxu0
      %v599 = vadd.f32 0.0, %v598
      %600 = vdwg.mxu0
      %601 = vmatpush.msra.mxu0 0.0
      %602 = vmatpush.msra.mxu0 0.0
      %603 = vmatpush.msra.mxu0 0.0
      %604 = vmatpush.msra.mxu0 0.0
      %605 = vmatpush.msra.mxu0 0.0
      %606 = vmatpush.msra.mxu0 0.0
      %607 = vmatpush.msra.mxu0 0.0
      %608 = vmatpush.msra.mxu0 0.0
      %609 = vmatpush.msra.mxu0 0.0
      %610 = vmatpush.msra.mxu0 0.0
      %611 = vmatpush.msra.mxu0 0.0
      %612 = vmatpush.msra.mxu0 0.0
      %613 = vmatpush.msra.mxu0 0.0
      %614 = vmatpush.msra.mxu0 0.0
      %615 = vmatpush.msra.mxu0 0.0
      %616 = vmatpush.msra.mxu0 %v575
      %617 = vmatmul.f32.gmra.mxu0 %v579
      %v618 = vpop.f32.mrf.mxu0
      %v619 = vadd.f32 0.0, %v618
      %620 = vdwg.mxu0
      %v621 = vadd.f32 %v546, %v599
      %v622 = vadd.f32 %v547, %v619
      %v623 = vperm.slane %v334, 3
      %v624 = vperm.slane %v335, 3
      %627 = vrot.lane.b32.xlu0 %v623, 127
      %v628 = vpop.permute.xlu0 %627
      %629 = vrot.lane.b32.xlu0 %v624, 127
      %v630 = vpop.permute.xlu0 %629
      %vm631 = vcmask 1039360
      %v632 = vsel %vm631, %v628, %v630
      %v636 = vmul.f32 %v410, %v628
      %v637 = vmul.f32 %v411, %v632
      %v638 = vmul.f32 %v412, %v630
      %642 = vrot.lane.b32.xlu0 %v636, 1
      %v643 = vpop.permute.xlu0 %642
      %644 = vrot.lane.b32.xlu0 %v637, 1
      %v645 = vpop.permute.xlu0 %644
      %646 = vrot.lane.b32.xlu0 %v638, 1
      %v647 = vpop.permute.xlu0 %646
      %vm648 = vcmask 7168
      %v649 = vsel %vm648, %v643, %v645
      %v650 = vsel %vm648, %v645, %v647
      %v654 = vsel %vm443, %v404, 0
      %656 = vmatpush.msra.mxu0 0.0
      %657 = vmatpush.msra.mxu0 0.0
      %658 = vmatpush.msra.mxu0 0.0
      %659 = vmatpush.msra.mxu0 0.0
      %660 = vmatpush.msra.mxu0 0.0
      %661 = vmatpush.msra.mxu0 0.0
      %662 = vmatpush.msra.mxu0 0.0
      %663 = vmatpush.msra.mxu0 0.0
      %664 = vmatpush.msra.mxu0 0.0
      %665 = vmatpush.msra.mxu0 0.0
      %666 = vmatpush.msra.mxu0 0.0
      %667 = vmatpush.msra.mxu0 0.0
      %668 = vmatpush.msra.mxu0 0.0
      %669 = vmatpush.msra.mxu0 0.0
      %670 = vmatpush.msra.mxu0 0.0
      %671 = vmatpush.msra.mxu0 %v649
      %672 = vmatmul.f32.gmra.mxu0 %v654
      %v673 = vpop.f32.mrf.mxu0
      %v674 = vadd.f32 0.0, %v673
      %675 = vdwg.mxu0
      %676 = vmatpush.msra.mxu0 0.0
      %677 = vmatpush.msra.mxu0 0.0
      %678 = vmatpush.msra.mxu0 0.0
      %679 = vmatpush.msra.mxu0 0.0
      %680 = vmatpush.msra.mxu0 0.0
      %681 = vmatpush.msra.mxu0 0.0
      %682 = vmatpush.msra.mxu0 0.0
      %683 = vmatpush.msra.mxu0 0.0
      %684 = vmatpush.msra.mxu0 0.0
      %685 = vmatpush.msra.mxu0 0.0
      %686 = vmatpush.msra.mxu0 0.0
      %687 = vmatpush.msra.mxu0 0.0
      %688 = vmatpush.msra.mxu0 0.0
      %689 = vmatpush.msra.mxu0 0.0
      %690 = vmatpush.msra.mxu0 0.0
      %691 = vmatpush.msra.mxu0 %v650
      %692 = vmatmul.f32.gmra.mxu0 %v654
      %v693 = vpop.f32.mrf.mxu0
      %v694 = vadd.f32 0.0, %v693
      %695 = vdwg.mxu0
      %v696 = vadd.f32 %v621, %v674
      %v697 = vadd.f32 %v622, %v694
      %v699 = vsel %vm443, %v405, 0
      %701 = vmatpush.msra.mxu0 0.0
      %702 = vmatpush.msra.mxu0 0.0
      %703 = vmatpush.msra.mxu0 0.0
      %704 = vmatpush.msra.mxu0 0.0
      %705 = vmatpush.msra.mxu0 0.0
      %706 = vmatpush.msra.mxu0 0.0
      %707 = vmatpush.msra.mxu0 0.0
      %708 = vmatpush.msra.mxu0 0.0
      %709 = vmatpush.msra.mxu0 0.0
      %710 = vmatpush.msra.mxu0 0.0
      %711 = vmatpush.msra.mxu0 0.0
      %712 = vmatpush.msra.mxu0 0.0
      %713 = vmatpush.msra.mxu0 0.0
      %714 = vmatpush.msra.mxu0 0.0
      %715 = vmatpush.msra.mxu0 0.0
      %716 = vmatpush.msra.mxu0 %v411
      %717 = vmatmul.f32.gmra.mxu0 %v699
      %v718 = vpop.f32.mrf.mxu0
      %v719 = vadd.f32 0.0, %v718
      %720 = vdwg.mxu0
      %721 = vmatpush.msra.mxu0 0.0
      %722 = vmatpush.msra.mxu0 0.0
      %723 = vmatpush.msra.mxu0 0.0
      %724 = vmatpush.msra.mxu0 0.0
      %725 = vmatpush.msra.mxu0 0.0
      %726 = vmatpush.msra.mxu0 0.0
      %727 = vmatpush.msra.mxu0 0.0
      %728 = vmatpush.msra.mxu0 0.0
      %729 = vmatpush.msra.mxu0 0.0
      %730 = vmatpush.msra.mxu0 0.0
      %731 = vmatpush.msra.mxu0 0.0
      %732 = vmatpush.msra.mxu0 0.0
      %733 = vmatpush.msra.mxu0 0.0
      %734 = vmatpush.msra.mxu0 0.0
      %735 = vmatpush.msra.mxu0 0.0
      %736 = vmatpush.msra.mxu0 %v412
      %737 = vmatmul.f32.gmra.mxu0 %v699
      %v738 = vpop.f32.mrf.mxu0
      %v739 = vadd.f32 0.0, %v738
      %740 = vdwg.mxu0
      %v741 = vadd.f32 %v696, %v719
      %v742 = vadd.f32 %v697, %v739
      %v743 = vld [vmem:[#allocation2 + $0x8] sm:$0xff]
      %v744 = vld [vmem:[#allocation2 + $0x10] sm:$0xff]
      %v745 = vld [vmem:[#allocation2 + $0x18] sm:$0xff]
      %v746 = vperm.slane %v334, 5
      %v747 = vperm.slane %v335, 5
      %750 = vrot.lane.b32.xlu0 %v746, 1
      %v751 = vpop.permute.xlu0 %750
      %752 = vrot.lane.b32.xlu0 %v747, 1
      %v753 = vpop.permute.xlu0 %752
      %v754 = vsel %vm648, %v751, %v753
      %v758 = vmul.f32 %v743, %v751
      %v759 = vmul.f32 %v744, %v754
      %v760 = vmul.f32 %v745, %v753
      %764 = vrot.lane.b32.xlu0 %v758, 127
      %v765 = vpop.permute.xlu0 %764
      %766 = vrot.lane.b32.xlu0 %v759, 127
      %v767 = vpop.permute.xlu0 %766
      %768 = vrot.lane.b32.xlu0 %v760, 127
      %v769 = vpop.permute.xlu0 %768
      %v770 = vsel %vm631, %v765, %v767
      %v771 = vsel %vm631, %v767, %v769
      %v775 = vsel %vm443, %v406, 0
      %777 = vmatpush.msra.mxu0 0.0
      %778 = vmatpush.msra.mxu0 0.0
      %779 = vmatpush.msra.mxu0 0.0
      %780 = vmatpush.msra.mxu0 0.0
      %781 = vmatpush.msra.mxu0 0.0
      %782 = vmatpush.msra.mxu0 0.0
      %783 = vmatpush.msra.mxu0 0.0
      %784 = vmatpush.msra.mxu0 0.0
      %785 = vmatpush.msra.mxu0 0.0
      %786 = vmatpush.msra.mxu0 0.0
      %787 = vmatpush.msra.mxu0 0.0
      %788 = vmatpush.msra.mxu0 0.0
      %789 = vmatpush.msra.mxu0 0.0
      %790 = vmatpush.msra.mxu0 0.0
      %791 = vmatpush.msra.mxu0 0.0
      %792 = vmatpush.msra.mxu0 %v770
      %793 = vmatmul.f32.gmra.mxu0 %v775
      %v794 = vpop.f32.mrf.mxu0
      %v795 = vadd.f32 0.0, %v794
      %796 = vdwg.mxu0
      %797 = vmatpush.msra.mxu0 0.0
      %798 = vmatpush.msra.mxu0 0.0
      %799 = vmatpush.msra.mxu0 0.0
      %800 = vmatpush.msra.mxu0 0.0
      %801 = vmatpush.msra.mxu0 0.0
      %802 = vmatpush.msra.mxu0 0.0
      %803 = vmatpush.msra.mxu0 0.0
      %804 = vmatpush.msra.mxu0 0.0
      %805 = vmatpush.msra.mxu0 0.0
      %806 = vmatpush.msra.mxu0 0.0
      %807 = vmatpush.msra.mxu0 0.0
      %808 = vmatpush.msra.mxu0 0.0
      %809 = vmatpush.msra.mxu0 0.0
      %810 = vmatpush.msra.mxu0 0.0
      %811 = vmatpush.msra.mxu0 0.0
      %812 = vmatpush.msra.mxu0 %v771
      %813 = vmatmul.f32.gmra.mxu0 %v775
      %v814 = vpop.f32.mrf.mxu0
      %v815 = vadd.f32 0.0, %v814
      %816 = vdwg.mxu0
      %v817 = vadd.f32 %v741, %v795
      %v818 = vadd.f32 %v742, %v815
      %v819 = vperm.slane %v334, 6
      %v820 = vperm.slane %v335, 6
      %823 = vrot.lane.b32.xlu0 %v819, 15
      %v824 = vpop.permute.xlu0 %823
      %825 = vrot.lane.b32.xlu0 %v820, 15
      %v826 = vpop.permute.xlu0 %825
      %v827 = vsel %vm573, %v824, %v826
      %v831 = vmul.f32 %v743, %v824
      %v832 = vmul.f32 %v744, %v827
      %v833 = vmul.f32 %v745, %v826
      %837 = vrot.lane.b32.xlu0 %v831, 113
      %v838 = vpop.permute.xlu0 %837
      %839 = vrot.lane.b32.xlu0 %v832, 113
      %v840 = vpop.permute.xlu0 %839
      %841 = vrot.lane.b32.xlu0 %v833, 113
      %v842 = vpop.permute.xlu0 %841
      %v843 = vsel %vm556, %v838, %v840
      %v844 = vsel %vm556, %v840, %v842
      %v848 = vsel %vm443, %v407, 0
      %850 = vmatpush.msra.mxu0 0.0
      %851 = vmatpush.msra.mxu0 0.0
      %852 = vmatpush.msra.mxu0 0.0
      %853 = vmatpush.msra.mxu0 0.0
      %854 = vmatpush.msra.mxu0 0.0
      %855 = vmatpush.msra.mxu0 0.0
      %856 = vmatpush.msra.mxu0 0.0
      %857 = vmatpush.msra.mxu0 0.0
      %858 = vmatpush.msra.mxu0 0.0
      %859 = vmatpush.msra.mxu0 0.0
      %860 = vmatpush.msra.mxu0 0.0
      %861 = vmatpush.msra.mxu0 0.0
      %862 = vmatpush.msra.mxu0 0.0
      %863 = vmatpush.msra.mxu0 0.0
      %864 = vmatpush.msra.mxu0 0.0
      %865 = vmatpush.msra.mxu0 %v843
      %866 = vmatmul.f32.gmra.mxu0 %v848
      %v867 = vpop.f32.mrf.mxu0
      %v868 = vadd.f32 0.0, %v867
      %869 = vdwg.mxu0
      %870 = vmatpush.msra.mxu0 0.0
      %871 = vmatpush.msra.mxu0 0.0
      %872 = vmatpush.msra.mxu0 0.0
      %873 = vmatpush.msra.mxu0 0.0
      %874 = vmatpush.msra.mxu0 0.0
      %875 = vmatpush.msra.mxu0 0.0
      %876 = vmatpush.msra.mxu0 0.0
      %877 = vmatpush.msra.mxu0 0.0
      %878 = vmatpush.msra.mxu0 0.0
      %879 = vmatpush.msra.mxu0 0.0
      %880 = vmatpush.msra.mxu0 0.0
      %881 = vmatpush.msra.mxu0 0.0
      %882 = vmatpush.msra.mxu0 0.0
      %883 = vmatpush.msra.mxu0 0.0
      %884 = vmatpush.msra.mxu0 0.0
      %885 = vmatpush.msra.mxu0 %v844
      %886 = vmatmul.f32.gmra.mxu0 %v848
      %v887 = vpop.f32.mrf.mxu0
      %v888 = vadd.f32 0.0, %v887
      %889 = vdwg.mxu0
      %v890 = vadd.f32 %v817, %v868
      %v891 = vadd.f32 %v818, %v888
      %895 = vrot.lane.b32.xlu0 %v743, 112
      %v896 = vpop.permute.xlu0 %895
      %897 = vrot.lane.b32.xlu0 %v744, 112
      %v898 = vpop.permute.xlu0 %897
      %899 = vrot.lane.b32.xlu0 %v745, 112
      %v900 = vpop.permute.xlu0 %899
      %vm901 = vcmask 916480
      %v902 = vsel %vm901, %v896, %v898
      %v903 = vsel %vm901, %v898, %v900
      %v907 = vsel %vm443, %v408, 0
      %909 = vmatpush.msra.mxu0 0.0
      %910 = vmatpush.msra.mxu0 0.0
      %911 = vmatpush.msra.mxu0 0.0
      %912 = vmatpush.msra.mxu0 0.0
      %913 = vmatpush.msra.mxu0 0.0
      %914 = vmatpush.msra.mxu0 0.0
      %915 = vmatpush.msra.mxu0 0.0
      %916 = vmatpush.msra.mxu0 0.0
      %917 = vmatpush.msra.mxu0 0.0
      %918 = vmatpush.msra.mxu0 0.0
      %919 = vmatpush.msra.mxu0 0.0
      %920 = vmatpush.msra.mxu0 0.0
      %921 = vmatpush.msra.mxu0 0.0
      %922 = vmatpush.msra.mxu0 0.0
      %923 = vmatpush.msra.mxu0 0.0
      %924 = vmatpush.msra.mxu0 %v902
      %925 = vmatmul.f32.gmra.mxu0 %v907
      %v926 = vpop.f32.mrf.mxu0
      %v927 = vadd.f32 0.0, %v926
      %928 = vdwg.mxu0
      %929 = vmatpush.msra.mxu0 0.0
      %930 = vmatpush.msra.mxu0 0.0
      %931 = vmatpush.msra.mxu0 0.0
      %932 = vmatpush.msra.mxu0 0.0
      %933 = vmatpush.msra.mxu0 0.0
      %934 = vmatpush.msra.mxu0 0.0
      %935 = vmatpush.msra.mxu0 0.0
      %936 = vmatpush.msra.mxu0 0.0
      %937 = vmatpush.msra.mxu0 0.0
      %938 = vmatpush.msra.mxu0 0.0
      %939 = vmatpush.msra.mxu0 0.0
      %940 = vmatpush.msra.mxu0 0.0
      %941 = vmatpush.msra.mxu0 0.0
      %942 = vmatpush.msra.mxu0 0.0
      %943 = vmatpush.msra.mxu0 0.0
      %944 = vmatpush.msra.mxu0 %v903
      %945 = vmatmul.f32.gmra.mxu0 %v907
      %v946 = vpop.f32.mrf.mxu0
      %v947 = vadd.f32 0.0, %v946
      %948 = vdwg.mxu0
      %v949 = vadd.f32 %v890, %v927
      %v950 = vadd.f32 %v891, %v947
      %v951 = vperm.slane %v336, 0
      %v952 = vperm.slane %v337, 0
      %955 = vrot.lane.b32.xlu0 %v951, 17
      %v956 = vpop.permute.xlu0 %955
      %957 = vrot.lane.b32.xlu0 %v952, 17
      %v958 = vpop.permute.xlu0 %957
      %v959 = vsel %vm438, %v956, %v958
      %v963 = vmul.f32 %v743, %v956
      %v964 = vmul.f32 %v744, %v959
      %v965 = vmul.f32 %v745, %v958
      %969 = vrot.lane.b32.xlu0 %v963, 111
      %v970 = vpop.permute.xlu0 %969
      %971 = vrot.lane.b32.xlu0 %v964, 111
      %v972 = vpop.permute.xlu0 %971
      %973 = vrot.lane.b32.xlu0 %v965, 111
      %v974 = vpop.permute.xlu0 %973
      %v975 = vsel %vm421, %v970, %v972
      %v976 = vsel %vm421, %v972, %v974
      %v980 = vsel %vm443, %v409, 0
      %982 = vmatpush.msra.mxu0 0.0
      %983 = vmatpush.msra.mxu0 0.0
      %984 = vmatpush.msra.mxu0 0.0
      %985 = vmatpush.msra.mxu0 0.0
      %986 = vmatpush.msra.mxu0 0.0
      %987 = vmatpush.msra.mxu0 0.0
      %988 = vmatpush.msra.mxu0 0.0
      %989 = vmatpush.msra.mxu0 0.0
      %990 = vmatpush.msra.mxu0 0.0
      %991 = vmatpush.msra.mxu0 0.0
      %992 = vmatpush.msra.mxu0 0.0
      %993 = vmatpush.msra.mxu0 0.0
      %994 = vmatpush.msra.mxu0 0.0
      %995 = vmatpush.msra.mxu0 0.0
      %996 = vmatpush.msra.mxu0 0.0
      %997 = vmatpush.msra.mxu0 %v975
      %998 = vmatmul.f32.gmra.mxu0 %v980
      %v999 = vpop.f32.mrf.mxu0
      %v1000 = vadd.f32 0.0, %v999
      %1001 = vdwg.mxu0
      %1002 = vmatpush.msra.mxu0 0.0
      %1003 = vmatpush.msra.mxu0 0.0
      %1004 = vmatpush.msra.mxu0 0.0
      %1005 = vmatpush.msra.mxu0 0.0
      %1006 = vmatpush.msra.mxu0 0.0
      %1007 = vmatpush.msra.mxu0 0.0
      %1008 = vmatpush.msra.mxu0 0.0
      %1009 = vmatpush.msra.mxu0 0.0
      %1010 = vmatpush.msra.mxu0 0.0
      %1011 = vmatpush.msra.mxu0 0.0
      %1012 = vmatpush.msra.mxu0 0.0
      %1013 = vmatpush.msra.mxu0 0.0
      %1014 = vmatpush.msra.mxu0 0.0
      %1015 = vmatpush.msra.mxu0 0.0
      %1016 = vmatpush.msra.mxu0 0.0
      %1017 = vmatpush.msra.mxu0 %v976
      %1018 = vmatmul.f32.gmra.mxu0 %v980
      %v1019 = vpop.f32.mrf.mxu0
      %v1020 = vadd.f32 0.0, %v1019
      %1021 = vdwg.mxu0
      %v1022 = vadd.f32 %v949, %v1000
      %v1023 = vadd.f32 %v950, %v1020
      %v1024 = vld [vmem:[%s314] sm:$0xff]
      %v1025 = vld [vmem:[%s4] sm:$0xff]
      %v1026 = vld [vmem:[%s4 + $0x8] sm:$0xff]
      %v1027 = vld [vmem:[%s4 + $0x10] sm:$0xff]
      %v1028 = vld [vmem:[%s4 + $0x18] sm:$0xff]
      %v1029 = vld [vmem:[%s4 + $0x20] sm:$0xff]
      %v1030 = vld [vmem:[%s4 + $0x28] sm:$0xff]
      %v1031 = vld [vmem:[%s4 + $0x30] sm:$0xff]
      %v1032 = vld [vmem:[%s4 + $0x38] sm:$0xff]
      %v1033 = vld [vmem:[%s4 + $0x40] sm:$0xff]
      %v1034 = vld [vmem:[%s4 + $0x48] sm:$0xff]
      %v1035 = vld [vmem:[%s4 + $0x50] sm:$0xff]
      %v1036 = vld [vmem:[%s4 + $0x58] sm:$0xff]
      %v1037 = vld [vmem:[%s4 + $0x60] sm:$0xff]
      %v1038 = vld [vmem:[%s4 + $0x68] sm:$0xff]
      %v1039 = vld [vmem:[%s4 + $0x70] sm:$0xff]
      %v1040 = vld [vmem:[%s4 + $0x78] sm:$0xff]
      %v1042 = vsel %vm355, %v1024, 0
      %1044 = vmatpush.msra.mxu0 0.0
      %1045 = vmatpush.msra.mxu0 0.0
      %1046 = vmatpush.msra.mxu0 0.0
      %1047 = vmatpush.msra.mxu0 0.0
      %1048 = vmatpush.msra.mxu0 0.0
      %1049 = vmatpush.msra.mxu0 0.0
      %1050 = vmatpush.msra.mxu0 0.0
      %1051 = vmatpush.msra.mxu0 0.0
      %1052 = vmatpush.msra.mxu0 %v1039
      %1053 = vmatpush.msra.mxu0 %v1037
      %1054 = vmatpush.msra.mxu0 %v1035
      %1055 = vmatpush.msra.mxu0 %v1033
      %1056 = vmatpush.msra.mxu0 %v1031
      %1057 = vmatpush.msra.mxu0 %v1029
      %1058 = vmatpush.msra.mxu0 %v1027
      %1059 = vmatpush.msra.mxu0 %v1025
      %1060 = vmatmul.f32.gmra.mxu0 %v1042
      %v1061 = vpop.f32.mrf.mxu0
      %v1062 = vadd.f32 0.0, %v1061
      %1063 = vdwg.mxu0
      %1064 = vmatpush.msra.mxu0 0.0
      %1065 = vmatpush.msra.mxu0 0.0
      %1066 = vmatpush.msra.mxu0 0.0
      %1067 = vmatpush.msra.mxu0 0.0
      %1068 = vmatpush.msra.mxu0 0.0
      %1069 = vmatpush.msra.mxu0 0.0
      %1070 = vmatpush.msra.mxu0 0.0
      %1071 = vmatpush.msra.mxu0 0.0
      %1072 = vmatpush.msra.mxu0 %v1040
      %1073 = vmatpush.msra.mxu0 %v1038
      %1074 = vmatpush.msra.mxu0 %v1036
      %1075 = vmatpush.msra.mxu0 %v1034
      %1076 = vmatpush.msra.mxu0 %v1032
      %1077 = vmatpush.msra.mxu0 %v1030
      %1078 = vmatpush.msra.mxu0 %v1028
      %1079 = vmatpush.msra.mxu0 %v1026
      %1080 = vmatmul.f32.gmra.mxu0 %v1042
      %v1081 = vpop.f32.mrf.mxu0
      %v1082 = vadd.f32 0.0, %v1081
      %1083 = vdwg.mxu0
      %1084 = vst [vmem:[#allocation2 + $0x8] sm:$0xff] %v1062
      %1085 = vst [vmem:[#allocation2 + $0x10] sm:$0xff] %v1082
      %v1086 = vld [vmem:[%s5] sm:$0xff]
      %v1087 = vld [vmem:[%s5 + $0x8] sm:$0xff]
      %v1088 = vld [vmem:[%s5 + $0x10] sm:$0xff]
      %v1089 = vld [vmem:[%s5 + $0x18] sm:$0xff]
      %v1090 = vld [vmem:[%s5 + $0x20] sm:$0xff]
      %v1091 = vld [vmem:[%s5 + $0x28] sm:$0xff]
      %v1092 = vld [vmem:[%s5 + $0x30] sm:$0xff]
      %v1093 = vld [vmem:[%s5 + $0x38] sm:$0xff]
      %v1094 = vld [vmem:[%s5 + $0x40] sm:$0xff]
      %v1095 = vld [vmem:[#allocation2] sm:$0xff]
      %v1096 = vld [vmem:[#allocation2 + $0x8] sm:$0xff]
      %v1097 = vld [vmem:[#allocation2 + $0x10] sm:$0xff]
      %v1098 = vmul.f32 %v1095, %v418
      %v1099 = vmul.f32 %v1096, %v422
      %v1100 = vmul.f32 %v1097, %v420
      %1104 = vrot.lane.b32.xlu0 %v1098, 17
      %v1105 = vpop.permute.xlu0 %1104
      %1106 = vrot.lane.b32.xlu0 %v1099, 17
      %v1107 = vpop.permute.xlu0 %1106
      %1108 = vrot.lane.b32.xlu0 %v1100, 17
      %v1109 = vpop.permute.xlu0 %1108
      %v1110 = vsel %vm438, %v1105, %v1107
      %v1111 = vsel %vm438, %v1107, %v1109
      %v1115 = vsel %vm443, %v1086, 0
      %1117 = vmatpush.msra.mxu0 0.0
      %1118 = vmatpush.msra.mxu0 0.0
      %1119 = vmatpush.msra.mxu0 0.0
      %1120 = vmatpush.msra.mxu0 0.0
      %1121 = vmatpush.msra.mxu0 0.0
      %1122 = vmatpush.msra.mxu0 0.0
      %1123 = vmatpush.msra.mxu0 0.0
      %1124 = vmatpush.msra.mxu0 0.0
      %1125 = vmatpush.msra.mxu0 0.0
      %1126 = vmatpush.msra.mxu0 0.0
      %1127 = vmatpush.msra.mxu0 0.0
      %1128 = vmatpush.msra.mxu0 0.0
      %1129 = vmatpush.msra.mxu0 0.0
      %1130 = vmatpush.msra.mxu0 0.0
      %1131 = vmatpush.msra.mxu0 0.0
      %1132 = vmatpush.msra.mxu0 %v1110
      %1133 = vmatmul.f32.gmra.mxu0 %v1115
      %v1134 = vpop.f32.mrf.mxu0
      %v1135 = vadd.f32 0.0, %v1134
      %1136 = vdwg.mxu0
      %1137 = vmatpush.msra.mxu0 0.0
      %1138 = vmatpush.msra.mxu0 0.0
      %1139 = vmatpush.msra.mxu0 0.0
      %1140 = vmatpush.msra.mxu0 0.0
      %1141 = vmatpush.msra.mxu0 0.0
      %1142 = vmatpush.msra.mxu0 0.0
      %1143 = vmatpush.msra.mxu0 0.0
      %1144 = vmatpush.msra.mxu0 0.0
      %1145 = vmatpush.msra.mxu0 0.0
      %1146 = vmatpush.msra.mxu0 0.0
      %1147 = vmatpush.msra.mxu0 0.0
      %1148 = vmatpush.msra.mxu0 0.0
      %1149 = vmatpush.msra.mxu0 0.0
      %1150 = vmatpush.msra.mxu0 0.0
      %1151 = vmatpush.msra.mxu0 0.0
      %1152 = vmatpush.msra.mxu0 %v1111
      %1153 = vmatmul.f32.gmra.mxu0 %v1115
      %v1154 = vpop.f32.mrf.mxu0
      %v1155 = vadd.f32 0.0, %v1154
      %1156 = vdwg.mxu0
      %v1157 = vadd.f32 %v1022, %v1135
      %v1158 = vadd.f32 %v1023, %v1155
      %1162 = vrot.lane.b32.xlu0 %v1095, 16
      %v1163 = vpop.permute.xlu0 %1162
      %1164 = vrot.lane.b32.xlu0 %v1096, 16
      %v1165 = vpop.permute.xlu0 %1164
      %1166 = vrot.lane.b32.xlu0 %v1097, 16
      %v1167 = vpop.permute.xlu0 %1166
      %v1168 = vsel %vm498, %v1163, %v1165
      %v1169 = vsel %vm498, %v1165, %v1167
      %v1173 = vsel %vm443, %v1087, 0
      %1175 = vmatpush.msra.mxu0 0.0
      %1176 = vmatpush.msra.mxu0 0.0
      %1177 = vmatpush.msra.mxu0 0.0
      %1178 = vmatpush.msra.mxu0 0.0
      %1179 = vmatpush.msra.mxu0 0.0
      %1180 = vmatpush.msra.mxu0 0.0
      %1181 = vmatpush.msra.mxu0 0.0
      %1182 = vmatpush.msra.mxu0 0.0
      %1183 = vmatpush.msra.mxu0 0.0
      %1184 = vmatpush.msra.mxu0 0.0
      %1185 = vmatpush.msra.mxu0 0.0
      %1186 = vmatpush.msra.mxu0 0.0
      %1187 = vmatpush.msra.mxu0 0.0
      %1188 = vmatpush.msra.mxu0 0.0
      %1189 = vmatpush.msra.mxu0 0.0
      %1190 = vmatpush.msra.mxu0 %v1168
      %1191 = vmatmul.f32.gmra.mxu0 %v1173
      %v1192 = vpop.f32.mrf.mxu0
      %v1193 = vadd.f32 0.0, %v1192
      %1194 = vdwg.mxu0
      %1195 = vmatpush.msra.mxu0 0.0
      %1196 = vmatpush.msra.mxu0 0.0
      %1197 = vmatpush.msra.mxu0 0.0
      %1198 = vmatpush.msra.mxu0 0.0
      %1199 = vmatpush.msra.mxu0 0.0
      %1200 = vmatpush.msra.mxu0 0.0
      %1201 = vmatpush.msra.mxu0 0.0
      %1202 = vmatpush.msra.mxu0 0.0
      %1203 = vmatpush.msra.mxu0 0.0
      %1204 = vmatpush.msra.mxu0 0.0
      %1205 = vmatpush.msra.mxu0 0.0
      %1206 = vmatpush.msra.mxu0 0.0
      %1207 = vmatpush.msra.mxu0 0.0
      %1208 = vmatpush.msra.mxu0 0.0
      %1209 = vmatpush.msra.mxu0 0.0
      %1210 = vmatpush.msra.mxu0 %v1169
      %1211 = vmatmul.f32.gmra.mxu0 %v1173
      %v1212 = vpop.f32.mrf.mxu0
      %v1213 = vadd.f32 0.0, %v1212
      %1214 = vdwg.mxu0
      %v1215 = vadd.f32 %v1157, %v1193
      %v1216 = vadd.f32 %v1158, %v1213
      %v1217 = vmul.f32 %v1095, %v553
      %v1218 = vmul.f32 %v1096, %v557
      %v1219 = vmul.f32 %v1097, %v555
      %1223 = vrot.lane.b32.xlu0 %v1217, 15
      %v1224 = vpop.permute.xlu0 %1223
      %1225 = vrot.lane.b32.xlu0 %v1218, 15
      %v1226 = vpop.permute.xlu0 %1225
      %1227 = vrot.lane.b32.xlu0 %v1219, 15
      %v1228 = vpop.permute.xlu0 %1227
      %v1229 = vsel %vm573, %v1224, %v1226
      %v1230 = vsel %vm573, %v1226, %v1228
      %v1234 = vsel %vm443, %v1088, 0
      %1236 = vmatpush.msra.mxu0 0.0
      %1237 = vmatpush.msra.mxu0 0.0
      %1238 = vmatpush.msra.mxu0 0.0
      %1239 = vmatpush.msra.mxu0 0.0
      %1240 = vmatpush.msra.mxu0 0.0
      %1241 = vmatpush.msra.mxu0 0.0
      %1242 = vmatpush.msra.mxu0 0.0
      %1243 = vmatpush.msra.mxu0 0.0
      %1244 = vmatpush.msra.mxu0 0.0
      %1245 = vmatpush.msra.mxu0 0.0
      %1246 = vmatpush.msra.mxu0 0.0
      %1247 = vmatpush.msra.mxu0 0.0
      %1248 = vmatpush.msra.mxu0 0.0
      %1249 = vmatpush.msra.mxu0 0.0
      %1250 = vmatpush.msra.mxu0 0.0
      %1251 = vmatpush.msra.mxu0 %v1229
      %1252 = vmatmul.f32.gmra.mxu0 %v1234
      %v1253 = vpop.f32.mrf.mxu0
      %v1254 = vadd.f32 0.0, %v1253
      %1255 = vdwg.mxu0
      %1256 = vmatpush.msra.mxu0 0.0
      %1257 = vmatpush.msra.mxu0 0.0
      %1258 = vmatpush.msra.mxu0 0.0
      %1259 = vmatpush.msra.mxu0 0.0
      %1260 = vmatpush.msra.mxu0 0.0
      %1261 = vmatpush.msra.mxu0 0.0
      %1262 = vmatpush.msra.mxu0 0.0
      %1263 = vmatpush.msra.mxu0 0.0
      %1264 = vmatpush.msra.mxu0 0.0
      %1265 = vmatpush.msra.mxu0 0.0
      %1266 = vmatpush.msra.mxu0 0.0
      %1267 = vmatpush.msra.mxu0 0.0
      %1268 = vmatpush.msra.mxu0 0.0
      %1269 = vmatpush.msra.mxu0 0.0
      %1270 = vmatpush.msra.mxu0 0.0
      %1271 = vmatpush.msra.mxu0 %v1230
      %1272 = vmatmul.f32.gmra.mxu0 %v1234
      %v1273 = vpop.f32.mrf.mxu0
      %v1274 = vadd.f32 0.0, %v1273
      %1275 = vdwg.mxu0
      %v1276 = vadd.f32 %v1215, %v1254
      %v1277 = vadd.f32 %v1216, %v1274
      %v1278 = vmul.f32 %v1095, %v628
      %v1279 = vmul.f32 %v1096, %v632
      %v1280 = vmul.f32 %v1097, %v630
      %1284 = vrot.lane.b32.xlu0 %v1278, 1
      %v1285 = vpop.permute.xlu0 %1284
      %1286 = vrot.lane.b32.xlu0 %v1279, 1
      %v1287 = vpop.permute.xlu0 %1286
      %1288 = vrot.lane.b32.xlu0 %v1280, 1
      %v1289 = vpop.permute.xlu0 %1288
      %v1290 = vsel %vm648, %v1285, %v1287
      %v1291 = vsel %vm648, %v1287, %v1289
      %v1295 = vsel %vm443, %v1089, 0
      %1297 = vmatpush.msra.mxu0 0.0
      %1298 = vmatpush.msra.mxu0 0.0
      %1299 = vmatpush.msra.mxu0 0.0
      %1300 = vmatpush.msra.mxu0 0.0
      %1301 = vmatpush.msra.mxu0 0.0
      %1302 = vmatpush.msra.mxu0 0.0
      %1303 = vmatpush.msra.mxu0 0.0
      %1304 = vmatpush.msra.mxu0 0.0
      %1305 = vmatpush.msra.mxu0 0.0
      %1306 = vmatpush.msra.mxu0 0.0
      %1307 = vmatpush.msra.mxu0 0.0
      %1308 = vmatpush.msra.mxu0 0.0
      %1309 = vmatpush.msra.mxu0 0.0
      %1310 = vmatpush.msra.mxu0 0.0
      %1311 = vmatpush.msra.mxu0 0.0
      %1312 = vmatpush.msra.mxu0 %v1290
      %1313 = vmatmul.f32.gmra.mxu0 %v1295
      %v1314 = vpop.f32.mrf.mxu0
      %v1315 = vadd.f32 0.0, %v1314
      %1316 = vdwg.mxu0
      %1317 = vmatpush.msra.mxu0 0.0
      %1318 = vmatpush.msra.mxu0 0.0
      %1319 = vmatpush.msra.mxu0 0.0
      %1320 = vmatpush.msra.mxu0 0.0
      %1321 = vmatpush.msra.mxu0 0.0
      %1322 = vmatpush.msra.mxu0 0.0
      %1323 = vmatpush.msra.mxu0 0.0
      %1324 = vmatpush.msra.mxu0 0.0
      %1325 = vmatpush.msra.mxu0 0.0
      %1326 = vmatpush.msra.mxu0 0.0
      %1327 = vmatpush.msra.mxu0 0.0
      %1328 = vmatpush.msra.mxu0 0.0
      %1329 = vmatpush.msra.mxu0 0.0
      %1330 = vmatpush.msra.mxu0 0.0
      %1331 = vmatpush.msra.mxu0 0.0
      %1332 = vmatpush.msra.mxu0 %v1291
      %1333 = vmatmul.f32.gmra.mxu0 %v1295
      %v1334 = vpop.f32.mrf.mxu0
      %v1335 = vadd.f32 0.0, %v1334
      %1336 = vdwg.mxu0
      %v1337 = vadd.f32 %v1276, %v1315
      %v1338 = vadd.f32 %v1277, %v1335
      %v1340 = vsel %vm443, %v1090, 0
      %1342 = vmatpush.msra.mxu0 0.0
      %1343 = vmatpush.msra.mxu0 0.0
      %1344 = vmatpush.msra.mxu0 0.0
      %1345 = vmatpush.msra.mxu0 0.0
      %1346 = vmatpush.msra.mxu0 0.0
      %1347 = vmatpush.msra.mxu0 0.0
      %1348 = vmatpush.msra.mxu0 0.0
      %1349 = vmatpush.msra.mxu0 0.0
      %1350 = vmatpush.msra.mxu0 0.0
      %1351 = vmatpush.msra.mxu0 0.0
      %1352 = vmatpush.msra.mxu0 0.0
      %1353 = vmatpush.msra.mxu0 0.0
      %1354 = vmatpush.msra.mxu0 0.0
      %1355 = vmatpush.msra.mxu0 0.0
      %1356 = vmatpush.msra.mxu0 0.0
      %1357 = vmatpush.msra.mxu0 %v1096
      %1358 = vmatmul.f32.gmra.mxu0 %v1340
      %v1359 = vpop.f32.mrf.mxu0
      %v1360 = vadd.f32 0.0, %v1359
      %1361 = vdwg.mxu0
      %1362 = vmatpush.msra.mxu0 0.0
      %1363 = vmatpush.msra.mxu0 0.0
      %1364 = vmatpush.msra.mxu0 0.0
      %1365 = vmatpush.msra.mxu0 0.0
      %1366 = vmatpush.msra.mxu0 0.0
      %1367 = vmatpush.msra.mxu0 0.0
      %1368 = vmatpush.msra.mxu0 0.0
      %1369 = vmatpush.msra.mxu0 0.0
      %1370 = vmatpush.msra.mxu0 0.0
      %1371 = vmatpush.msra.mxu0 0.0
      %1372 = vmatpush.msra.mxu0 0.0
      %1373 = vmatpush.msra.mxu0 0.0
      %1374 = vmatpush.msra.mxu0 0.0
      %1375 = vmatpush.msra.mxu0 0.0
      %1376 = vmatpush.msra.mxu0 0.0
      %1377 = vmatpush.msra.mxu0 %v1097
      %1378 = vmatmul.f32.gmra.mxu0 %v1340
      %v1379 = vpop.f32.mrf.mxu0
      %v1380 = vadd.f32 0.0, %v1379
      %1381 = vdwg.mxu0
      %v1382 = vadd.f32 %v1337, %v1360
      %v1383 = vadd.f32 %v1338, %v1380
      %v1384 = vld [vmem:[#allocation2 + $0x8] sm:$0xff]
      %v1385 = vld [vmem:[#allocation2 + $0x10] sm:$0xff]
      %v1386 = vld [vmem:[#allocation2 + $0x18] sm:$0xff]
      %v1387 = vmul.f32 %v1384, %v751
      %v1388 = vmul.f32 %v1385, %v754
      %v1389 = vmul.f32 %v1386, %v753
      %1393 = vrot.lane.b32.xlu0 %v1387, 127
      %v1394 = vpop.permute.xlu0 %1393
      %1395 = vrot.lane.b32.xlu0 %v1388, 127
      %v1396 = vpop.permute.xlu0 %1395
      %1397 = vrot.lane.b32.xlu0 %v1389, 127
      %v1398 = vpop.permute.xlu0 %1397
      %v1399 = vsel %vm631, %v1394, %v1396
      %v1400 = vsel %vm631, %v1396, %v1398
      %v1404 = vsel %vm443, %v1091, 0
      %1406 = vmatpush.msra.mxu0 0.0
      %1407 = vmatpush.msra.mxu0 0.0
      %1408 = vmatpush.msra.mxu0 0.0
      %1409 = vmatpush.msra.mxu0 0.0
      %1410 = vmatpush.msra.mxu0 0.0
      %1411 = vmatpush.msra.mxu0 0.0
      %1412 = vmatpush.msra.mxu0 0.0
      %1413 = vmatpush.msra.mxu0 0.0
      %1414 = vmatpush.msra.mxu0 0.0
      %1415 = vmatpush.msra.mxu0 0.0
      %1416 = vmatpush.msra.mxu0 0.0
      %1417 = vmatpush.msra.mxu0 0.0
      %1418 = vmatpush.msra.mxu0 0.0
      %1419 = vmatpush.msra.mxu0 0.0
      %1420 = vmatpush.msra.mxu0 0.0
      %1421 = vmatpush.msra.mxu0 %v1399
      %1422 = vmatmul.f32.gmra.mxu0 %v1404
      %v1423 = vpop.f32.mrf.mxu0
      %v1424 = vadd.f32 0.0, %v1423
      %1425 = vdwg.mxu0
      %1426 = vmatpush.msra.mxu0 0.0
      %1427 = vmatpush.msra.mxu0 0.0
      %1428 = vmatpush.msra.mxu0 0.0
      %1429 = vmatpush.msra.mxu0 0.0
      %1430 = vmatpush.msra.mxu0 0.0
      %1431 = vmatpush.msra.mxu0 0.0
      %1432 = vmatpush.msra.mxu0 0.0
      %1433 = vmatpush.msra.mxu0 0.0
      %1434 = vmatpush.msra.mxu0 0.0
      %1435 = vmatpush.msra.mxu0 0.0
      %1436 = vmatpush.msra.mxu0 0.0
      %1437 = vmatpush.msra.mxu0 0.0
      %1438 = vmatpush.msra.mxu0 0.0
      %1439 = vmatpush.msra.mxu0 0.0
      %1440 = vmatpush.msra.mxu0 0.0
      %1441 = vmatpush.msra.mxu0 %v1400
      %1442 = vmatmul.f32.gmra.mxu0 %v1404
      %v1443 = vpop.f32.mrf.mxu0
      %v1444 = vadd.f32 0.0, %v1443
      %1445 = vdwg.mxu0
      %v1446 = vadd.f32 %v1382, %v1424
      %v1447 = vadd.f32 %v1383, %v1444
      %v1448 = vmul.f32 %v1384, %v824
      %v1449 = vmul.f32 %v1385, %v827
      %v1450 = vmul.f32 %v1386, %v826
      %1454 = vrot.lane.b32.xlu0 %v1448, 113
      %v1455 = vpop.permute.xlu0 %1454
      %1456 = vrot.lane.b32.xlu0 %v1449, 113
      %v1457 = vpop.permute.xlu0 %1456
      %1458 = vrot.lane.b32.xlu0 %v1450, 113
      %v1459 = vpop.permute.xlu0 %1458
      %v1460 = vsel %vm556, %v1455, %v1457
      %v1461 = vsel %vm556, %v1457, %v1459
      %v1465 = vsel %vm443, %v1092, 0
      %1467 = vmatpush.msra.mxu0 0.0
      %1468 = vmatpush.msra.mxu0 0.0
      %1469 = vmatpush.msra.mxu0 0.0
      %1470 = vmatpush.msra.mxu0 0.0
      %1471 = vmatpush.msra.mxu0 0.0
      %1472 = vmatpush.msra.mxu0 0.0
      %1473 = vmatpush.msra.mxu0 0.0
      %1474 = vmatpush.msra.mxu0 0.0
      %1475 = vmatpush.msra.mxu0 0.0
      %1476 = vmatpush.msra.mxu0 0.0
      %1477 = vmatpush.msra.mxu0 0.0
      %1478 = vmatpush.msra.mxu0 0.0
      %1479 = vmatpush.msra.mxu0 0.0
      %1480 = vmatpush.msra.mxu0 0.0
      %1481 = vmatpush.msra.mxu0 0.0
      %1482 = vmatpush.msra.mxu0 %v1460
      %1483 = vmatmul.f32.gmra.mxu0 %v1465
      %v1484 = vpop.f32.mrf.mxu0
      %v1485 = vadd.f32 0.0, %v1484
      %1486 = vdwg.mxu0
      %1487 = vmatpush.msra.mxu0 0.0
      %1488 = vmatpush.msra.mxu0 0.0
      %1489 = vmatpush.msra.mxu0 0.0
      %1490 = vmatpush.msra.mxu0 0.0
      %1491 = vmatpush.msra.mxu0 0.0
      %1492 = vmatpush.msra.mxu0 0.0
      %1493 = vmatpush.msra.mxu0 0.0
      %1494 = vmatpush.msra.mxu0 0.0
      %1495 = vmatpush.msra.mxu0 0.0
      %1496 = vmatpush.msra.mxu0 0.0
      %1497 = vmatpush.msra.mxu0 0.0
      %1498 = vmatpush.msra.mxu0 0.0
      %1499 = vmatpush.msra.mxu0 0.0
      %1500 = vmatpush.msra.mxu0 0.0
      %1501 = vmatpush.msra.mxu0 0.0
      %1502 = vmatpush.msra.mxu0 %v1461
      %1503 = vmatmul.f32.gmra.mxu0 %v1465
      %v1504 = vpop.f32.mrf.mxu0
      %v1505 = vadd.f32 0.0, %v1504
      %1506 = vdwg.mxu0
      %v1507 = vadd.f32 %v1446, %v1485
      %v1508 = vadd.f32 %v1447, %v1505
      %1512 = vrot.lane.b32.xlu0 %v1384, 112
      %v1513 = vpop.permute.xlu0 %1512
      %1514 = vrot.lane.b32.xlu0 %v1385, 112
      %v1515 = vpop.permute.xlu0 %1514
      %1516 = vrot.lane.b32.xlu0 %v1386, 112
      %v1517 = vpop.permute.xlu0 %1516
      %v1518 = vsel %vm901, %v1513, %v1515
      %v1519 = vsel %vm901, %v1515, %v1517
      %v1523 = vsel %vm443, %v1093, 0
      %1525 = vmatpush.msra.mxu0 0.0
      %1526 = vmatpush.msra.mxu0 0.0
      %1527 = vmatpush.msra.mxu0 0.0
      %1528 = vmatpush.msra.mxu0 0.0
      %1529 = vmatpush.msra.mxu0 0.0
      %1530 = vmatpush.msra.mxu0 0.0
      %1531 = vmatpush.msra.mxu0 0.0
      %1532 = vmatpush.msra.mxu0 0.0
      %1533 = vmatpush.msra.mxu0 0.0
      %1534 = vmatpush.msra.mxu0 0.0
      %1535 = vmatpush.msra.mxu0 0.0
      %1536 = vmatpush.msra.mxu0 0.0
      %1537 = vmatpush.msra.mxu0 0.0
      %1538 = vmatpush.msra.mxu0 0.0
      %1539 = vmatpush.msra.mxu0 0.0
      %1540 = vmatpush.msra.mxu0 %v1518
      %1541 = vmatmul.f32.gmra.mxu0 %v1523
      %v1542 = vpop.f32.mrf.mxu0
      %v1543 = vadd.f32 0.0, %v1542
      %1544 = vdwg.mxu0
      %1545 = vmatpush.msra.mxu0 0.0
      %1546 = vmatpush.msra.mxu0 0.0
      %1547 = vmatpush.msra.mxu0 0.0
      %1548 = vmatpush.msra.mxu0 0.0
      %1549 = vmatpush.msra.mxu0 0.0
      %1550 = vmatpush.msra.mxu0 0.0
      %1551 = vmatpush.msra.mxu0 0.0
      %1552 = vmatpush.msra.mxu0 0.0
      %1553 = vmatpush.msra.mxu0 0.0
      %1554 = vmatpush.msra.mxu0 0.0
      %1555 = vmatpush.msra.mxu0 0.0
      %1556 = vmatpush.msra.mxu0 0.0
      %1557 = vmatpush.msra.mxu0 0.0
      %1558 = vmatpush.msra.mxu0 0.0
      %1559 = vmatpush.msra.mxu0 0.0
      %1560 = vmatpush.msra.mxu0 %v1519
      %1561 = vmatmul.f32.gmra.mxu0 %v1523
      %v1562 = vpop.f32.mrf.mxu0
      %v1563 = vadd.f32 0.0, %v1562
      %1564 = vdwg.mxu0
      %v1565 = vadd.f32 %v1507, %v1543
      %v1566 = vadd.f32 %v1508, %v1563
      %v1567 = vmul.f32 %v1384, %v956
      %v1568 = vmul.f32 %v1385, %v959
      %v1569 = vmul.f32 %v1386, %v958
      %1573 = vrot.lane.b32.xlu0 %v1567, 111
      %v1574 = vpop.permute.xlu0 %1573
      %1575 = vrot.lane.b32.xlu0 %v1568, 111
      %v1576 = vpop.permute.xlu0 %1575
      %1577 = vrot.lane.b32.xlu0 %v1569, 111
      %v1578 = vpop.permute.xlu0 %1577
      %v1579 = vsel %vm421, %v1574, %v1576
      %v1580 = vsel %vm421, %v1576, %v1578
      %v1584 = vsel %vm443, %v1094, 0
      %1586 = vmatpush.msra.mxu0 0.0
      %1587 = vmatpush.msra.mxu0 0.0
      %1588 = vmatpush.msra.mxu0 0.0
      %1589 = vmatpush.msra.mxu0 0.0
      %1590 = vmatpush.msra.mxu0 0.0
      %1591 = vmatpush.msra.mxu0 0.0
      %1592 = vmatpush.msra.mxu0 0.0
      %1593 = vmatpush.msra.mxu0 0.0
      %1594 = vmatpush.msra.mxu0 0.0
      %1595 = vmatpush.msra.mxu0 0.0
      %1596 = vmatpush.msra.mxu0 0.0
      %1597 = vmatpush.msra.mxu0 0.0
      %1598 = vmatpush.msra.mxu0 0.0
      %1599 = vmatpush.msra.mxu0 0.0
      %1600 = vmatpush.msra.mxu0 0.0
      %1601 = vmatpush.msra.mxu0 %v1579
      %1602 = vmatmul.f32.gmra.mxu0 %v1584
      %v1603 = vpop.f32.mrf.mxu0
      %v1604 = vadd.f32 0.0, %v1603
      %1605 = vdwg.mxu0
      %1606 = vmatpush.msra.mxu0 0.0
      %1607 = vmatpush.msra.mxu0 0.0
      %1608 = vmatpush.msra.mxu0 0.0
      %1609 = vmatpush.msra.mxu0 0.0
      %1610 = vmatpush.msra.mxu0 0.0
      %1611 = vmatpush.msra.mxu0 0.0
      %1612 = vmatpush.msra.mxu0 0.0
      %1613 = vmatpush.msra.mxu0 0.0
      %1614 = vmatpush.msra.mxu0 0.0
      %1615 = vmatpush.msra.mxu0 0.0
      %1616 = vmatpush.msra.mxu0 0.0
      %1617 = vmatpush.msra.mxu0 0.0
      %1618 = vmatpush.msra.mxu0 0.0
      %1619 = vmatpush.msra.mxu0 0.0
      %1620 = vmatpush.msra.mxu0 0.0
      %1621 = vmatpush.msra.mxu0 %v1580
      %1622 = vmatmul.f32.gmra.mxu0 %v1584
      %v1623 = vpop.f32.mrf.mxu0
      %v1624 = vadd.f32 0.0, %v1623
      %1625 = vdwg.mxu0
      %v1626 = vadd.f32 %v1565, %v1604
      %v1627 = vadd.f32 %v1566, %v1624
      %v1628 = vmax.f32 %v1626, 0.0
      %v1629 = vmax.f32 %v1627, 0.0
      %1630 = vst [vmem:[%s319] sm:$0xff] %v1628
      %1631 = vst [vmem:[%s319 + $0x8] sm:$0xff] %v1629
      %p1632 = scmp.lt.s32.totalorder %s19, 1
      %s1633 = scalar_select %p1632, %s19, 1
      %s1634 = smul.addr %s1633, 2
      %s1635 = smul.addr %s1634, 8
      %s1636 = scalar_lea.vmem %s8, %s1635
      // Predicated region
      $region57: #{neck_forward.12} parent=51 // pred_check
        %p1637 = pneg %p215
      $region58: #{neck_forward.12} parent=51 // pred_check_branch
        %1639 = sbr.rel (%p1637) target = $region60
      $region59: #{neck_forward.12} parent=51 // pred_region
        _
      $region60: #{neck_forward.12} parent=51 // pred_fallthru
        _
    $region52: #{neck_forward.12} parent=5 // pred_fallthru
      _
    %p1640 = scmp.le.s32.totalorder 2, %s14
    // Predicated region
    $region61: #{neck_forward.12} parent=5 // pred_check
      %p1641 = pneg %p1640
    $region62: #{neck_forward.12} parent=5 // pred_check_branch
      %1643 = sbr.rel (%p1641) target = $region64
    $region63: #{neck_forward.12} parent=5 // pred_region
      %s1644 = ssub.s32 %s14, 2
      // Predicated region
      $region65: #{neck_forward.12} parent=63 // pred_check
        %p1645 = pneg %p221
      $region66: #{neck_forward.12} parent=63 // pred_check_branch
        %1647 = sbr.rel (%p1645) target = $region68
      $region67: #{neck_forward.12} parent=63 // pred_region
        %p1648 = scmp.lt.s32.totalorder %s20, 1
        %s1649 = scalar_select %p1648, %s20, 1
        %s1650 = smul.addr %s1649, 2
        %s1651 = smul.addr %s1650, 8
        %s1652 = scalar_lea.vmem %s8, %s1651
      $region68: #{neck_forward.12} parent=63 // pred_fallthru
        _
    $region64: #{neck_forward.12} parent=5 // pred_fallthru
      _
  $region6: #{neck_forward.12} parent=0 // loop_footer
    %s18 = sadd.s32 1, %s14
  $region7: #{neck_forward.12} parent=0 // loop_footer_branch
    %13 = sbr.rel target = $region3
  $region8: #{neck_forward.12} parent=0 // loop_exit
    _

// kernel: neck_forward.13
$region0: #{neck_forward.13}
  #allocation0 [shape = 'u32[]', space=smem, size = 0x4, offset = 0x4, fixed_abs, tag = 'smem constant byte address 0x4 - core index']
  #allocation1 [shape = 'u32[72,128]{1,0:T(1,128)}', space=vmem, size = 0x9000, scoped, tag = 'internal scratch']
  #allocation2 [shape = 'f32[8,512]{1,0:T(8,128)}', space=vmem, size = 0x4000, scoped, tag = 'scratch operand']
  %s0 = inlined_call_operand.vmem [shape: f32[2,8,256], index: 0, kind: input, shape index: {}]
  %s1 = inlined_call_operand.vmem [shape: f32[9,8,8], index: 1, kind: input, shape index: {}]
  %s2 = inlined_call_operand.vmem [shape: f32[2,3,256], index: 2, kind: input, shape index: {}]
  %s3 = inlined_call_operand.vmem [shape: f32[9,8,3], index: 3, kind: input, shape index: {}]
  %s4 = inlined_call_operand.vmem [shape: f32[9,256], index: 4, kind: input, shape index: {}]
  %s5 = inlined_call_operand.vmem [shape: f32[8,1], index: 5, kind: input, shape index: {}]
  %s6 = inlined_call_operand.vmem [shape: f32[2,8,256], index: 6, kind: output, shape index: {}]
  %s7 = sld [smem:[#allocation0]]
  $region61: #{neck_forward.13} parent=0
    _
  %s9 = ssub.s32 1, %s7
  %s10 = scalar_select 0, %s9, %s7
  loop: start=0, step=1, limit=4
  $region2: #{neck_forward.13} parent=0 // loop_pre_header
    _
  $region3: #{neck_forward.13} parent=0 // loop_header
    %s12 = sphi 0, %s16
    %p13 = scmp.ge.s32.totalorder %s12, 4
    %s22 = sphi 0, %s24
    %s25 = sphi 0, %s22
    %s26 = sphi 0, %s25
    %s42 = sphi 0, %s26
    %s46 = sphi 0, %s46
    %s48 = sphi 0, %s46
    %s49 = sphi 0, %s48
    %s63 = sphi 0, %s49
    %s69 = sphi 0, %s71
    %s72 = sphi 0, %s69
    %s73 = sphi 0, %s72
    %s89 = sphi 0, %s73
    %s93 = sphi 0, %s93
    %s95 = sphi 0, %s93
    %s96 = sphi 0, %s95
    %s110 = sphi 0, %s96
    %s114 = sphi 0, %s114
    %s116 = sphi 0, %s114
    %s117 = sphi 0, %s116
    %s131 = sphi 0, %s117
    %s135 = sphi 0, %s135
    %s137 = sphi 0, %s135
    %s138 = sphi 0, %s137
    %s152 = sphi 0, %s138
    %s158 = sphi 0, %s160
    %s161 = sphi 0, %s158
    %s162 = sphi 0, %s161
    %s178 = sphi 0, %s162
  $region4: #{neck_forward.13} parent=0 // loop_header_branch
    %15 = sbr.rel (%p13) target = $region8
  $region5: #{neck_forward.13} parent=0 // loop_body
    %s17 = ssub.s32 %s12, 1
    %s18 = ssub.s32 %s12, 2
    %s19 = sadd.s32 %s12, 1
    %s20 = ssub.s32 %s12, %s19
    %p21 = scmp.eq.s32.totalorder %s20, 0
    %s23 = sadd.s32 %s22, 1
    %s24 = scalar_select %p21, %s22, %s23
    %p27 = pneg %p21
    %p28 = scmp.eq.s32.totalorder %s12, 1
    %p29 = por %p27, %p28
    %p30 = scmp.ne.s32.totalorder %s22, %s25
    %p31 = scmp.eq.s32.totalorder %s12, 0
    %p32 = por %p30, %p31
    %p33 = scmp.ne.s32.totalorder %s22, %s25
    %p34 = scmp.eq.s32.totalorder %s17, 1
    %p35 = por %p33, %p34
    %p36 = scmp.ne.s32.totalorder %s25, %s26
    %p37 = scmp.eq.s32.totalorder %s17, 0
    %p38 = por %p36, %p37
    %p39 = scmp.ne.s32.totalorder %s25, %s26
    %p40 = scmp.eq.s32.totalorder %s18, 1
    %p41 = por %p39, %p40
    %p43 = scmp.ne.s32.totalorder %s26, %s42
    %p44 = scmp.eq.s32.totalorder %s18, 0
    %p45 = por %p43, %p44
    %s47 = sadd.s32 %s46, 1
    %p50 = scmp.eq.s32.totalorder %s12, 1
    %p51 = scmp.ne.s32.totalorder %s46, %s48
    %p52 = scmp.eq.s32.totalorder %s12, 0
    %p53 = por %p51, %p52
    %p54 = scmp.ne.s32.totalorder %s46, %s48
    %p55 = scmp.eq.s32.totalorder %s17, 1
    %p56 = por %p54, %p55
    %p57 = scmp.ne.s32.totalorder %s48, %s49
    %p58 = scmp.eq.s32.totalorder %s17, 0
    %p59 = por %p57, %p58
    %p60 = scmp.ne.s32.totalorder %s48, %s49
    %p61 = scmp.eq.s32.totalorder %s18, 1
    %p62 = por %p60, %p61
    %p64 = scmp.ne.s32.totalorder %s49, %s63
    %p65 = scmp.eq.s32.totalorder %s18, 0
    %p66 = por %p64, %p65
    %s67 = ssub.s32 %s12, %s19
    %p68 = scmp.eq.s32.totalorder %s67, 0
    %s70 = sadd.s32 %s69, 1
    %s71 = scalar_select %p68, %s69, %s70
    %p74 = pneg %p68
    %p75 = scmp.eq.s32.totalorder %s12, 1
    %p76 = por %p74, %p75
    %p77 = scmp.ne.s32.totalorder %s69, %s72
    %p78 = scmp.eq.s32.totalorder %s12, 0
    %p79 = por %p77, %p78
    %p80 = scmp.ne.s32.totalorder %s69, %s72
    %p81 = scmp.eq.s32.totalorder %s17, 1
    %p82 = por %p80, %p81
    %p83 = scmp.ne.s32.totalorder %s72, %s73
    %p84 = scmp.eq.s32.totalorder %s17, 0
    %p85 = por %p83, %p84
    %p86 = scmp.ne.s32.totalorder %s72, %s73
    %p87 = scmp.eq.s32.totalorder %s18, 1
    %p88 = por %p86, %p87
    %p90 = scmp.ne.s32.totalorder %s73, %s89
    %p91 = scmp.eq.s32.totalorder %s18, 0
    %p92 = por %p90, %p91
    %s94 = sadd.s32 %s93, 1
    %p97 = scmp.eq.s32.totalorder %s12, 1
    %p98 = scmp.ne.s32.totalorder %s93, %s95
    %p99 = scmp.eq.s32.totalorder %s12, 0
    %p100 = por %p98, %p99
    %p101 = scmp.ne.s32.totalorder %s93, %s95
    %p102 = scmp.eq.s32.totalorder %s17, 1
    %p103 = por %p101, %p102
    %p104 = scmp.ne.s32.totalorder %s95, %s96
    %p105 = scmp.eq.s32.totalorder %s17, 0
    %p106 = por %p104, %p105
    %p107 = scmp.ne.s32.totalorder %s95, %s96
    %p108 = scmp.eq.s32.totalorder %s18, 1
    %p109 = por %p107, %p108
    %p111 = scmp.ne.s32.totalorder %s96, %s110
    %p112 = scmp.eq.s32.totalorder %s18, 0
    %p113 = por %p111, %p112
    %s115 = sadd.s32 %s114, 1
    %p118 = scmp.eq.s32.totalorder %s12, 1
    %p119 = scmp.ne.s32.totalorder %s114, %s116
    %p120 = scmp.eq.s32.totalorder %s12, 0
    %p121 = por %p119, %p120
    %p122 = scmp.ne.s32.totalorder %s114, %s116
    %p123 = scmp.eq.s32.totalorder %s17, 1
    %p124 = por %p122, %p123
    %p125 = scmp.ne.s32.totalorder %s116, %s117
    %p126 = scmp.eq.s32.totalorder %s17, 0
    %p127 = por %p125, %p126
    %p128 = scmp.ne.s32.totalorder %s116, %s117
    %p129 = scmp.eq.s32.totalorder %s18, 1
    %p130 = por %p128, %p129
    %p132 = scmp.ne.s32.totalorder %s117, %s131
    %p133 = scmp.eq.s32.totalorder %s18, 0
    %p134 = por %p132, %p133
    %s136 = sadd.s32 %s135, 1
    %p139 = scmp.eq.s32.totalorder %s12, 1
    %p140 = scmp.ne.s32.totalorder %s135, %s137
    %p141 = scmp.eq.s32.totalorder %s12, 0
    %p142 = por %p140, %p141
    %p143 = scmp.ne.s32.totalorder %s135, %s137
    %p144 = scmp.eq.s32.totalorder %s17, 1
    %p145 = por %p143, %p144
    %p146 = scmp.ne.s32.totalorder %s137, %s138
    %p147 = scmp.eq.s32.totalorder %s17, 0
    %p148 = por %p146, %p147
    %p149 = scmp.ne.s32.totalorder %s137, %s138
    %p150 = scmp.eq.s32.totalorder %s18, 1
    %p151 = por %p149, %p150
    %p153 = scmp.ne.s32.totalorder %s138, %s152
    %p154 = scmp.eq.s32.totalorder %s18, 0
    %p155 = por %p153, %p154
    %s156 = ssub.s32 %s12, %s19
    %p157 = scmp.eq.s32.totalorder %s156, 0
    %s159 = sadd.s32 %s158, 1
    %s160 = scalar_select %p157, %s158, %s159
    %p163 = pneg %p157
    %p164 = scmp.eq.s32.totalorder %s12, 1
    %p165 = por %p163, %p164
    %p166 = scmp.ne.s32.totalorder %s158, %s161
    %p167 = scmp.eq.s32.totalorder %s12, 0
    %p168 = por %p166, %p167
    %p169 = scmp.ne.s32.totalorder %s158, %s161
    %p170 = scmp.eq.s32.totalorder %s17, 1
    %p171 = por %p169, %p170
    %p172 = scmp.ne.s32.totalorder %s161, %s162
    %p173 = scmp.eq.s32.totalorder %s17, 0
    %p174 = por %p172, %p173
    %p175 = scmp.ne.s32.totalorder %s161, %s162
    %p176 = scmp.eq.s32.totalorder %s18, 1
    %p177 = por %p175, %p176
    %p179 = scmp.ne.s32.totalorder %s162, %s178
    %p180 = scmp.eq.s32.totalorder %s18, 0
    %p181 = por %p179, %p180
    %p182 = scmp.le.s32.totalorder 1, %s12
    %p183 = scmp.lt.s32.totalorder %s12, 3
    %p184 = pnand %p182, %p183
    %p185 = pneg %p184
    // Predicated region
    $region9: #{neck_forward.13} parent=5 // pred_check
      _
    $region10: #{neck_forward.13} parent=5 // pred_check_branch
      %187 = sbr.rel (%p184) target = $region12
    $region11: #{neck_forward.13} parent=5 // pred_region
      %s188 = ssub.s32 %s12, 1
      // Predicated region
      $region13: #{neck_forward.13} parent=11 // pred_check
        %p189 = pneg %p59
      $region14: #{neck_forward.13} parent=11 // pred_check_branch
        %191 = sbr.rel (%p189) target = $region16
      $region15: #{neck_forward.13} parent=11 // pred_region
        _
      $region16: #{neck_forward.13} parent=11 // pred_fallthru
        _
      // Predicated region
      $region17: #{neck_forward.13} parent=11 // pred_check
        %p192 = pneg %p106
      $region18: #{neck_forward.13} parent=11 // pred_check_branch
        %194 = sbr.rel (%p192) target = $region20
      $region19: #{neck_forward.13} parent=11 // pred_region
        _
      $region20: #{neck_forward.13} parent=11 // pred_fallthru
        _
      // Predicated region
      $region21: #{neck_forward.13} parent=11 // pred_check
        %p195 = pneg %p127
      $region22: #{neck_forward.13} parent=11 // pred_check_branch
        %197 = sbr.rel (%p195) target = $region24
      $region23: #{neck_forward.13} parent=11 // pred_region
        _
      $region24: #{neck_forward.13} parent=11 // pred_fallthru
        _
      // Predicated region
      $region25: #{neck_forward.13} parent=11 // pred_check
        %p198 = pneg %p148
      $region26: #{neck_forward.13} parent=11 // pred_check_branch
        %200 = sbr.rel (%p198) target = $region28
      $region27: #{neck_forward.13} parent=11 // pred_region
        _
      $region28: #{neck_forward.13} parent=11 // pred_fallthru
        _
    $region12: #{neck_forward.13} parent=5 // pred_fallthru
      _
    %p201 = scmp.lt.s32.totalorder %s12, 2
    // Predicated region
    $region29: #{neck_forward.13} parent=5 // pred_check
      %p202 = pneg %p201
    $region30: #{neck_forward.13} parent=5 // pred_check_branch
      %204 = sbr.rel (%p202) target = $region32
    $region31: #{neck_forward.13} parent=5 // pred_region
      // Predicated region
      $region33: #{neck_forward.13} parent=31 // pred_check
        %p205 = pneg %p32
      $region34: #{neck_forward.13} parent=31 // pred_check_branch
        %207 = sbr.rel (%p205) target = $region36
      $region35: #{neck_forward.13} parent=31 // pred_region
        %p208 = scmp.lt.s32.totalorder %s12, 1
        %s209 = scalar_select %p208, %s12, 1
        %s210 = smul.addr %s209, 2
        %s211 = smul.addr %s210, 8
        %s212 = scalar_lea.vmem %s0, %s211
      $region36: #{neck_forward.13} parent=31 // pred_fallthru
        _
      // Predicated region
      $region37: #{neck_forward.13} parent=31 // pred_check
        %p213 = pneg %p79
      $region38: #{neck_forward.13} parent=31 // pred_check_branch
        %215 = sbr.rel (%p213) target = $region40
      $region39: #{neck_forward.13} parent=31 // pred_region
        %p216 = scmp.lt.s32.totalorder %s12, 1
        %s217 = scalar_select %p216, %s12, 1
        %s218 = smul.addr %s217, 2
        %s219 = smul.addr %s218, 4
        %s220 = scalar_lea.vmem %s2, %s219
      $region40: #{neck_forward.13} parent=31 // pred_fallthru
        _
    $region32: #{neck_forward.13} parent=5 // pred_fallthru
      _
    %p221 = scmp.le.s32.totalorder 1, %s12
    %p222 = scmp.lt.s32.totalorder %s12, 3
    %p223 = pnand %p221, %p222
    %p224 = pneg %p223
    // Predicated region
    $region41: #{neck_forward.13} parent=5 // pred_check
      _
    $region42: #{neck_forward.13} parent=5 // pred_check_branch
      %226 = sbr.rel (%p223) target = $region44
    $region43: #{neck_forward.13} parent=5 // pred_region
      %s227 = ssub.s32 %s12, 1
      %p228 = scmp.lt.s32.totalorder %s17, 1
      %s229 = scalar_select %p228, %s17, 1
      %s230 = smul.addr %s229, 2
      %s231 = smul.addr %s230, 8
      %s232 = scalar_lea.vmem %s0, %s231
      %p233 = pneg %p38
      %p234 = pneg %p35
      %p235 = pneg %p59
      %p236 = pneg %p56
      %p237 = scmp.lt.s32.totalorder %s17, 1
      %s238 = scalar_select %p237, %s17, 1
      %s239 = smul.addr %s238, 2
      %s240 = smul.addr %s239, 4
      %s241 = scalar_lea.vmem %s2, %s240
      %p242 = pneg %p85
      %p243 = pneg %p82
      %p244 = pneg %p106
      %p245 = pneg %p103
      %p246 = pneg %p127
      %p247 = pneg %p124
      %p248 = pneg %p148
      %p249 = pneg %p145
      %p250 = pneg %p174
      %p251 = pneg %p171
      %p252 = scmp.lt.s32.totalorder %s17, 1
      %s253 = scalar_select %p252, %s17, 1
      %s254 = smul.addr %s253, 2
      %s255 = smul.addr %s254, 8
      %s256 = scalar_lea.vmem %s6, %s255
      %p257 = scmp.lt.s32.totalorder %s17, 1
      %s258 = scalar_select %p257, %s17, 1
      %s259 = smul.addr %s258, 2
      %s260 = smul.addr %s259, 8
      %s261 = scalar_lea.vmem %s0, %s260
      %p262 = scmp.lt.s32.totalorder %s17, 1
      %s263 = scalar_select %p262, %s17, 1
      %s264 = smul.addr %s263, 2
      %s265 = smul.addr %s264, 4
      %s266 = scalar_lea.vmem %s2, %s265
      %p267 = scmp.lt.s32.totalorder %s17, 1
      %s268 = scalar_select %p267, %s17, 1
      %s269 = smul.addr %s268, 2
      %s270 = smul.addr %s269, 8
      %s271 = scalar_lea.vmem %s6, %s270
      %p272 = scmp.eq.s32.totalorder %s17, 0
      // Predicated region
      $region45: #{neck_forward.13} parent=43 // pred_check
        %p273 = pneg %p272
      $region46: #{neck_forward.13} parent=43 // pred_check_branch
        %275 = sbr.rel (%p273) target = $region48
      $region47: #{neck_forward.13} parent=43 // pred_region
        %276 = vst [vmem:[#allocation2] sm:$0xff] 0.0
        %277 = vst [vmem:[#allocation2 + $0x8] sm:$0xff] 0.0
        %278 = vst [vmem:[#allocation2 + $0x10] sm:$0xff] 0.0
        %279 = vst [vmem:[#allocation2 + $0x18] sm:$0xff] 0.0
      $region48: #{neck_forward.13} parent=43 // pred_fallthru
        _
      %v280 = vld [vmem:[%s5] sm:$0xff]
      %282 = vset.pattern.permute.xlu0 0
      %283 = vperm.xlu0 %282, %v280
      %v284 = vpop.permute.xlu0 %283
      %v286 = vld [vmem:[%s4] sm:$0xff]
      %v287 = vld [vmem:[%s4 + $0x8] sm:$0xff]
      %v288 = vld [vmem:[%s4 + $0x10] sm:$0x1]
      %v289 = vld [vmem:[%s4 + $0x18] sm:$0x1]
      %v290 = vld [vmem:[%s261] sm:$0xff]
      %v291 = vld [vmem:[%s261 + $0x8] sm:$0xff]
      %292 = vst [vmem:[#allocation2 + $0x8] sm:$0xff] %v290
      %293 = vst [vmem:[#allocation2 + $0x10] sm:$0xff] %v291
      %v294 = vld [vmem:[%s1] sm:$0xff]
      %v295 = vld [vmem:[%s1 + $0x8] sm:$0xff]
      %v296 = vld [vmem:[%s1 + $0x10] sm:$0xff]
      %v297 = vld [vmem:[%s1 + $0x18] sm:$0xff]
      %v298 = vld [vmem:[%s1 + $0x20] sm:$0xff]
      %v299 = vld [vmem:[%s1 + $0x28] sm:$0xff]
      %v300 = vld [vmem:[%s1 + $0x30] sm:$0xff]
      %v301 = vld [vmem:[%s1 + $0x38] sm:$0xff]
      %v302 = vld [vmem:[%s1 + $0x40] sm:$0xff]
      %v303 = vld [vmem:[#allocation2] sm:$0xff]
      %v304 = vld [vmem:[#allocation2 + $0x8] sm:$0xff]
      %v305 = vld [vmem:[#allocation2 + $0x10] sm:$0xff]
      %v306 = vperm.slane %v286, 0
      %v307 = vperm.slane %v287, 0
      %310 = vrot.lane.b32.xlu0 %v306, 111
      %v311 = vpop.permute.xlu0 %310
      %312 = vrot.lane.b32.xlu0 %v307, 111
      %v313 = vpop.permute.xlu0 %312
      %vm314 = vcmask 908288
      %v315 = vsel %vm314, %v311, %v313
      %v319 = vmul.f32 %v303, %v311
      %v320 = vmul.f32 %v304, %v315
      %v321 = vmul.f32 %v305, %v313
      %325 = vrot.lane.b32.xlu0 %v319, 17
      %v326 = vpop.permute.xlu0 %325
      %327 = vrot.lane.b32.xlu0 %v320, 17
      %v328 = vpop.permute.xlu0 %327
      %329 = vrot.lane.b32.xlu0 %v321, 17
      %v330 = vpop.permute.xlu0 %329
      %vm331 = vcmask 138240
      %v332 = vsel %vm331, %v326, %v328
      %v333 = vsel %vm331, %v328, %v330
      %vm336 = vcmask 64512
      %v338 = vsel %vm336, %v294, 0
      %340 = vmatpush.msra.mxu0 0.0
      %341 = vmatpush.msra.mxu0 0.0
      %342 = vmatpush.msra.mxu0 0.0
      %343 = vmatpush.msra.mxu0 0.0
      %344 = vmatpush.msra.mxu0 0.0
      %345 = vmatpush.msra.mxu0 0.0
      %346 = vmatpush.msra.mxu0 0.0
      %347 = vmatpush.msra.mxu0 0.0
      %348 = vmatpush.msra.mxu0 0.0
      %349 = vmatpush.msra.mxu0 0.0
      %350 = vmatpush.msra.mxu0 0.0
      %351 = vmatpush.msra.mxu0 0.0
      %352 = vmatpush.msra.mxu0 0.0
      %353 = vmatpush.msra.mxu0 0.0
      %354 = vmatpush.msra.mxu0 0.0
      %355 = vmatpush.msra.mxu0 %v332
      %356 = vmatmul.f32.gmra.mxu0 %v338
      %v357 = vpop.f32.mrf.mxu0
      %v358 = vadd.f32 0.0, %v357
      %359 = vdwg.mxu0
      %360 = vmatpush.msra.mxu0 0.0
      %361 = vmatpush.msra.mxu0 0.0
      %362 = vmatpush.msra.mxu0 0.0
      %363 = vmatpush.msra.mxu0 0.0
      %364 = vmatpush.msra.mxu0 0.0
      %365 = vmatpush.msra.mxu0 0.0
      %366 = vmatpush.msra.mxu0 0.0
      %367 = vmatpush.msra.mxu0 0.0
      %368 = vmatpush.msra.mxu0 0.0
      %369 = vmatpush.msra.mxu0 0.0
      %370 = vmatpush.msra.mxu0 0.0
      %371 = vmatpush.msra.mxu0 0.0
      %372 = vmatpush.msra.mxu0 0.0
      %373 = vmatpush.msra.mxu0 0.0
      %374 = vmatpush.msra.mxu0 0.0
      %375 = vmatpush.msra.mxu0 %v333
      %376 = vmatmul.f32.gmra.mxu0 %v338
      %v377 = vpop.f32.mrf.mxu0
      %v378 = vadd.f32 0.0, %v377
      %379 = vdwg.mxu0
      %v380 = vadd.f32 %v284, %v358
      %v381 = vadd.f32 %v284, %v378
      %385 = vrot.lane.b32.xlu0 %v303, 16
      %v386 = vpop.permute.xlu0 %385
      %387 = vrot.lane.b32.xlu0 %v304, 16
      %v388 = vpop.permute.xlu0 %387
      %389 = vrot.lane.b32.xlu0 %v305, 16
      %v390 = vpop.permute.xlu0 %389
      %vm391 = vcmask 130048
      %v392 = vsel %vm391, %v386, %v388
      %v393 = vsel %vm391, %v388, %v390
      %v397 = vsel %vm336, %v295, 0
      %399 = vmatpush.msra.mxu0 0.0
      %400 = vmatpush.msra.mxu0 0.0
      %401 = vmatpush.msra.mxu0 0.0
      %402 = vmatpush.msra.mxu0 0.0
      %403 = vmatpush.msra.mxu0 0.0
      %404 = vmatpush.msra.mxu0 0.0
      %405 = vmatpush.msra.mxu0 0.0
      %406 = vmatpush.msra.mxu0 0.0
      %407 = vmatpush.msra.mxu0 0.0
      %408 = vmatpush.msra.mxu0 0.0
      %409 = vmatpush.msra.mxu0 0.0
      %410 = vmatpush.msra.mxu0 0.0
      %411 = vmatpush.msra.mxu0 0.0
      %412 = vmatpush.msra.mxu0 0.0
      %413 = vmatpush.msra.mxu0 0.0
      %414 = vmatpush.msra.mxu0 %v392
      %415 = vmatmul.f32.gmra.mxu0 %v397
      %v416 = vpop.f32.mrf.mxu0
      %v417 = vadd.f32 0.0, %v416
      %418 = vdwg.mxu0
      %419 = vmatpush.msra.mxu0 0.0
      %420 = vmatpush.msra.mxu0 0.0
      %421 = vmatpush.msra.mxu0 0.0
      %422 = vmatpush.msra.mxu0 0.0
      %423 = vmatpush.msra.mxu0 0.0
      %424 = vmatpush.msra.mxu0 0.0
      %425 = vmatpush.msra.mxu0 0.0
      %426 = vmatpush.msra.mxu0 0.0
      %427 = vmatpush.msra.mxu0 0.0
      %428 = vmatpush.msra.mxu0 0.0
      %429 = vmatpush.msra.mxu0 0.0
      %430 = vmatpush.msra.mxu0 0.0
      %431 = vmatpush.msra.mxu0 0.0
      %432 = vmatpush.msra.mxu0 0.0
      %433 = vmatpush.msra.mxu0 0.0
      %434 = vmatpush.msra.mxu0 %v393
      %435 = vmatmul.f32.gmra.mxu0 %v397
      %v436 = vpop.f32.mrf.mxu0
      %v437 = vadd.f32 0.0, %v436
      %438 = vdwg.mxu0
      %v439 = vadd.f32 %v380, %v417
      %v440 = vadd.f32 %v381, %v437
      %v441 = vperm.slane %v286, 2
      %v442 = vperm.slane %v287, 2
      %445 = vrot.lane.b32.xlu0 %v441, 113
      %v446 = vpop.permute.xlu0 %445
      %447 = vrot.lane.b32.xlu0 %v442, 113
      %v448 = vpop.permute.xlu0 %447
      %vm449 = vcmask 924672
      %v450 = vsel %vm449, %v446, %v448
      %v454 = vmul.f32 %v303, %v446
      %v455 = vmul.f32 %v304, %v450
      %v456 = vmul.f32 %v305, %v448
      %460 = vrot.lane.b32.xlu0 %v454, 15
      %v461 = vpop.permute.xlu0 %460
      %462 = vrot.lane.b32.xlu0 %v455, 15
      %v463 = vpop.permute.xlu0 %462
      %464 = vrot.lane.b32.xlu0 %v456, 15
      %v465 = vpop.permute.xlu0 %464
      %vm466 = vcmask 121856
      %v467 = vsel %vm466, %v461, %v463
      %v468 = vsel %vm466, %v463, %v465
      %v472 = vsel %vm336, %v296, 0
      %474 = vmatpush.msra.mxu0 0.0
      %475 = vmatpush.msra.mxu0 0.0
      %476 = vmatpush.msra.mxu0 0.0
      %477 = vmatpush.msra.mxu0 0.0
      %478 = vmatpush.msra.mxu0 0.0
      %479 = vmatpush.msra.mxu0 0.0
      %480 = vmatpush.msra.mxu0 0.0
      %481 = vmatpush.msra.mxu0 0.0
      %482 = vmatpush.msra.mxu0 0.0
      %483 = vmatpush.msra.mxu0 0.0
      %484 = vmatpush.msra.mxu0 0.0
      %485 = vmatpush.msra.mxu0 0.0
      %486 = vmatpush.msra.mxu0 0.0
      %487 = vmatpush.msra.mxu0 0.0
      %488 = vmatpush.msra.mxu0 0.0
      %489 = vmatpush.msra.mxu0 %v467
      %490 = vmatmul.f32.gmra.mxu0 %v472
      %v491 = vpop.f32.mrf.mxu0
      %v492 = vadd.f32 0.0, %v491
      %493 = vdwg.mxu0
      %494 = vmatpush.msra.mxu0 0.0
      %495 = vmatpush.msra.mxu0 0.0
      %496 = vmatpush.msra.mxu0 0.0
      %497 = vmatpush.msra.mxu0 0.0
      %498 = vmatpush.msra.mxu0 0.0
      %499 = vmatpush.msra.mxu0 0.0
      %500 = vmatpush.msra.mxu0 0.0
      %501 = vmatpush.msra.mxu0 0.0
      %502 = vmatpush.msra.mxu0 0.0
      %503 = vmatpush.msra.mxu0 0.0
      %504 = vmatpush.msra.mxu0 0.0
      %505 = vmatpush.msra.mxu0 0.0
      %506 = vmatpush.msra.mxu0 0.0
      %507 = vmatpush.msra.mxu0 0.0
      %508 = vmatpush.msra.mxu0 0.0
      %509 = vmatpush.msra.mxu0 %v468
      %510 = vmatmul.f32.gmra.mxu0 %v472
      %v511 = vpop.f32.mrf.mxu0
      %v512 = vadd.f32 0.0, %v511
      %513 = vdwg.mxu0
      %v514 = vadd.f32 %v439, %v492
      %v515 = vadd.f32 %v440, %v512
      %v516 = vperm.slane %v286, 3
      %v517 = vperm.slane %v287, 3
      %520 = vrot.lane.b32.xlu0 %v516, 127
      %v521 = vpop.permute.xlu0 %520
      %522 = vrot.lane.b32.xlu0 %v517, 127
      %v523 = vpop.permute.xlu0 %522
      %vm524 = vcmask 1039360
      %v525 = vsel %vm524, %v521, %v523
      %v529 = vmul.f32 %v303, %v521
      %v530 = vmul.f32 %v304, %v525
      %v531 = vmul.f32 %v305, %v523
      %535 = vrot.lane.b32.xlu0 %v529, 1
      %v536 = vpop.permute.xlu0 %535
      %537 = vrot.lane.b32.xlu0 %v530, 1
      %v538 = vpop.permute.xlu0 %537
      %539 = vrot.lane.b32.xlu0 %v531, 1
      %v540 = vpop.permute.xlu0 %539
      %vm541 = vcmask 7168
      %v542 = vsel %vm541, %v536, %v538
      %v543 = vsel %vm541, %v538, %v540
      %v547 = vsel %vm336, %v297, 0
      %549 = vmatpush.msra.mxu0 0.0
      %550 = vmatpush.msra.mxu0 0.0
      %551 = vmatpush.msra.mxu0 0.0
      %552 = vmatpush.msra.mxu0 0.0
      %553 = vmatpush.msra.mxu0 0.0
      %554 = vmatpush.msra.mxu0 0.0
      %555 = vmatpush.msra.mxu0 0.0
      %556 = vmatpush.msra.mxu0 0.0
      %557 = vmatpush.msra.mxu0 0.0
      %558 = vmatpush.msra.mxu0 0.0
      %559 = vmatpush.msra.mxu0 0.0
      %560 = vmatpush.msra.mxu0 0.0
      %561 = vmatpush.msra.mxu0 0.0
      %562 = vmatpush.msra.mxu0 0.0
      %563 = vmatpush.msra.mxu0 0.0
      %564 = vmatpush.msra.mxu0 %v542
      %565 = vmatmul.f32.gmra.mxu0 %v547
      %v566 = vpop.f32.mrf.mxu0
      %v567 = vadd.f32 0.0, %v566
      %568 = vdwg.mxu0
      %569 = vmatpush.msra.mxu0 0.0
      %570 = vmatpush.msra.mxu0 0.0
      %571 = vmatpush.msra.mxu0 0.0
      %572 = vmatpush.msra.mxu0 0.0
      %573 = vmatpush.msra.mxu0 0.0
      %574 = vmatpush.msra.mxu0 0.0
      %575 = vmatpush.msra.mxu0 0.0
      %576 = vmatpush.msra.mxu0 0.0
      %577 = vmatpush.msra.mxu0 0.0
      %578 = vmatpush.msra.mxu0 0.0
      %579 = vmatpush.msra.mxu0 0.0
      %580 = vmatpush.msra.mxu0 0.0
      %581 = vmatpush.msra.mxu0 0.0
      %582 = vmatpush.msra.mxu0 0.0
      %583 = vmatpush.msra.mxu0 0.0
      %584 = vmatpush.msra.mxu0 %v543
      %585 = vmatmul.f32.gmra.mxu0 %v547
      %v586 = vpop.f32.mrf.mxu0
      %v587 = vadd.f32 0.0, %v586
      %588 = vdwg.mxu0
      %v589 = vadd.f32 %v514, %v567
      %v590 = vadd.f32 %v515, %v587
      %v592 = vsel %vm336, %v298, 0
      %594 = vmatpush.msra.mxu0 0.0
      %595 = vmatpush.msra.mxu0 0.0
      %596 = vmatpush.msra.mxu0 0.0
      %597 = vmatpush.msra.mxu0 0.0
      %598 = vmatpush.msra.mxu0 0.0
      %599 = vmatpush.msra.mxu0 0.0
      %600 = vmatpush.msra.mxu0 0.0
      %601 = vmatpush.msra.mxu0 0.0
      %602 = vmatpush.msra.mxu0 0.0
      %603 = vmatpush.msra.mxu0 0.0
      %604 = vmatpush.msra.mxu0 0.0
      %605 = vmatpush.msra.mxu0 0.0
      %606 = vmatpush.msra.mxu0 0.0
      %607 = vmatpush.msra.mxu0 0.0
      %608 = vmatpush.msra.mxu0 0.0
      %609 = vmatpush.msra.mxu0 %v304
      %610 = vmatmul.f32.gmra.mxu0 %v592
      %v611 = vpop.f32.mrf.mxu0
      %v612 = vadd.f32 0.0, %v611
      %613 = vdwg.mxu0
      %614 = vmatpush.msra.mxu0 0.0
      %615 = vmatpush.msra.mxu0 0.0
      %616 = vmatpush.msra.mxu0 0.0
      %617 = vmatpush.msra.mxu0 0.0
      %618 = vmatpush.msra.mxu0 0.0
      %619 = vmatpush.msra.mxu0 0.0
      %620 = vmatpush.msra.mxu0 0.0
      %621 = vmatpush.msra.mxu0 0.0
      %622 = vmatpush.msra.mxu0 0.0
      %623 = vmatpush.msra.mxu0 0.0
      %624 = vmatpush.msra.mxu0 0.0
      %625 = vmatpush.msra.mxu0 0.0
      %626 = vmatpush.msra.mxu0 0.0
      %627 = vmatpush.msra.mxu0 0.0
      %628 = vmatpush.msra.mxu0 0.0
      %629 = vmatpush.msra.mxu0 %v305
      %630 = vmatmul.f32.gmra.mxu0 %v592
      %v631 = vpop.f32.mrf.mxu0
      %v632 = vadd.f32 0.0, %v631
      %633 = vdwg.mxu0
      %v634 = vadd.f32 %v589, %v612
      %v635 = vadd.f32 %v590, %v632
      %v636 = vld [vmem:[#allocation2 + $0x8] sm:$0xff]
      %v637 = vld [vmem:[#allocation2 + $0x10] sm:$0xff]
      %v638 = vld [vmem:[#allocation2 + $0x18] sm:$0xff]
      %v639 = vperm.slane %v286, 5
      %v640 = vperm.slane %v287, 5
      %643 = vrot.lane.b32.xlu0 %v639, 1
      %v644 = vpop.permute.xlu0 %643
      %645 = vrot.lane.b32.xlu0 %v640, 1
      %v646 = vpop.permute.xlu0 %645
      %v647 = vsel %vm541, %v644, %v646
      %v651 = vmul.f32 %v636, %v644
      %v652 = vmul.f32 %v637, %v647
      %v653 = vmul.f32 %v638, %v646
      %657 = vrot.lane.b32.xlu0 %v651, 127
      %v658 = vpop.permute.xlu0 %657
      %659 = vrot.lane.b32.xlu0 %v652, 127
      %v660 = vpop.permute.xlu0 %659
      %661 = vrot.lane.b32.xlu0 %v653, 127
      %v662 = vpop.permute.xlu0 %661
      %v663 = vsel %vm524, %v658, %v660
      %v664 = vsel %vm524, %v660, %v662
      %v668 = vsel %vm336, %v299, 0
      %670 = vmatpush.msra.mxu0 0.0
      %671 = vmatpush.msra.mxu0 0.0
      %672 = vmatpush.msra.mxu0 0.0
      %673 = vmatpush.msra.mxu0 0.0
      %674 = vmatpush.msra.mxu0 0.0
      %675 = vmatpush.msra.mxu0 0.0
      %676 = vmatpush.msra.mxu0 0.0
      %677 = vmatpush.msra.mxu0 0.0
      %678 = vmatpush.msra.mxu0 0.0
      %679 = vmatpush.msra.mxu0 0.0
      %680 = vmatpush.msra.mxu0 0.0
      %681 = vmatpush.msra.mxu0 0.0
      %682 = vmatpush.msra.mxu0 0.0
      %683 = vmatpush.msra.mxu0 0.0
      %684 = vmatpush.msra.mxu0 0.0
      %685 = vmatpush.msra.mxu0 %v663
      %686 = vmatmul.f32.gmra.mxu0 %v668
      %v687 = vpop.f32.mrf.mxu0
      %v688 = vadd.f32 0.0, %v687
      %689 = vdwg.mxu0
      %690 = vmatpush.msra.mxu0 0.0
      %691 = vmatpush.msra.mxu0 0.0
      %692 = vmatpush.msra.mxu0 0.0
      %693 = vmatpush.msra.mxu0 0.0
      %694 = vmatpush.msra.mxu0 0.0
      %695 = vmatpush.msra.mxu0 0.0
      %696 = vmatpush.msra.mxu0 0.0
      %697 = vmatpush.msra.mxu0 0.0
      %698 = vmatpush.msra.mxu0 0.0
      %699 = vmatpush.msra.mxu0 0.0
      %700 = vmatpush.msra.mxu0 0.0
      %701 = vmatpush.msra.mxu0 0.0
      %702 = vmatpush.msra.mxu0 0.0
      %703 = vmatpush.msra.mxu0 0.0
      %704 = vmatpush.msra.mxu0 0.0
      %705 = vmatpush.msra.mxu0 %v664
      %706 = vmatmul.f32.gmra.mxu0 %v668
      %v707 = vpop.f32.mrf.mxu0
      %v708 = vadd.f32 0.0, %v707
      %709 = vdwg.mxu0
      %v710 = vadd.f32 %v634, %v688
      %v711 = vadd.f32 %v635, %v708
      %v712 = vperm.slane %v286, 6
      %v713 = vperm.slane %v287, 6
      %716 = vrot.lane.b32.xlu0 %v712, 15
      %v717 = vpop.permute.xlu0 %716
      %718 = vrot.lane.b32.xlu0 %v713, 15
      %v719 = vpop.permute.xlu0 %718
      %v720 = vsel %vm466, %v717, %v719
      %v724 = vmul.f32 %v636, %v717
      %v725 = vmul.f32 %v637, %v720
      %v726 = vmul.f32 %v638, %v719
      %730 = vrot.lane.b32.xlu0 %v724, 113
      %v731 = vpop.permute.xlu0 %730
      %732 = vrot.lane.b32.xlu0 %v725, 113
      %v733 = vpop.permute.xlu0 %732
      %734 = vrot.lane.b32.xlu0 %v726, 113
      %v735 = vpop.permute.xlu0 %734
      %v736 = vsel %vm449, %v731, %v733
      %v737 = vsel %vm449, %v733, %v735
      %v741 = vsel %vm336, %v300, 0
      %743 = vmatpush.msra.mxu0 0.0
      %744 = vmatpush.msra.mxu0 0.0
      %745 = vmatpush.msra.mxu0 0.0
      %746 = vmatpush.msra.mxu0 0.0
      %747 = vmatpush.msra.mxu0 0.0
      %748 = vmatpush.msra.mxu0 0.0
      %749 = vmatpush.msra.mxu0 0.0
      %750 = vmatpush.msra.mxu0 0.0
      %751 = vmatpush.msra.mxu0 0.0
      %752 = vmatpush.msra.mxu0 0.0
      %753 = vmatpush.msra.mxu0 0.0
      %754 = vmatpush.msra.mxu0 0.0
      %755 = vmatpush.msra.mxu0 0.0
      %756 = vmatpush.msra.mxu0 0.0
      %757 = vmatpush.msra.mxu0 0.0
      %758 = vmatpush.msra.mxu0 %v736
      %759 = vmatmul.f32.gmra.mxu0 %v741
      %v760 = vpop.f32.mrf.mxu0
      %v761 = vadd.f32 0.0, %v760
      %762 = vdwg.mxu0
      %763 = vmatpush.msra.mxu0 0.0
      %764 = vmatpush.msra.mxu0 0.0
      %765 = vmatpush.msra.mxu0 0.0
      %766 = vmatpush.msra.mxu0 0.0
      %767 = vmatpush.msra.mxu0 0.0
      %768 = vmatpush.msra.mxu0 0.0
      %769 = vmatpush.msra.mxu0 0.0
      %770 = vmatpush.msra.mxu0 0.0
      %771 = vmatpush.msra.mxu0 0.0
      %772 = vmatpush.msra.mxu0 0.0
      %773 = vmatpush.msra.mxu0 0.0
      %774 = vmatpush.msra.mxu0 0.0
      %775 = vmatpush.msra.mxu0 0.0
      %776 = vmatpush.msra.mxu0 0.0
      %777 = vmatpush.msra.mxu0 0.0
      %778 = vmatpush.msra.mxu0 %v737
      %779 = vmatmul.f32.gmra.mxu0 %v741
      %v780 = vpop.f32.mrf.mxu0
      %v781 = vadd.f32 0.0, %v780
      %782 = vdwg.mxu0
      %v783 = vadd.f32 %v710, %v761
      %v784 = vadd.f32 %v711, %v781
      %788 = vrot.lane.b32.xlu0 %v636, 112
      %v789 = vpop.permute.xlu0 %788
      %790 = vrot.lane.b32.xlu0 %v637, 112
      %v791 = vpop.permute.xlu0 %790
      %792 = vrot.lane.b32.xlu0 %v638, 112
      %v793 = vpop.permute.xlu0 %792
      %vm794 = vcmask 916480
      %v795 = vsel %vm794, %v789, %v791
      %v796 = vsel %vm794, %v791, %v793
      %v800 = vsel %vm336, %v301, 0
      %802 = vmatpush.msra.mxu0 0.0
      %803 = vmatpush.msra.mxu0 0.0
      %804 = vmatpush.msra.mxu0 0.0
      %805 = vmatpush.msra.mxu0 0.0
      %806 = vmatpush.msra.mxu0 0.0
      %807 = vmatpush.msra.mxu0 0.0
      %808 = vmatpush.msra.mxu0 0.0
      %809 = vmatpush.msra.mxu0 0.0
      %810 = vmatpush.msra.mxu0 0.0
      %811 = vmatpush.msra.mxu0 0.0
      %812 = vmatpush.msra.mxu0 0.0
      %813 = vmatpush.msra.mxu0 0.0
      %814 = vmatpush.msra.mxu0 0.0
      %815 = vmatpush.msra.mxu0 0.0
      %816 = vmatpush.msra.mxu0 0.0
      %817 = vmatpush.msra.mxu0 %v795
      %818 = vmatmul.f32.gmra.mxu0 %v800
      %v819 = vpop.f32.mrf.mxu0
      %v820 = vadd.f32 0.0, %v819
      %821 = vdwg.mxu0
      %822 = vmatpush.msra.mxu0 0.0
      %823 = vmatpush.msra.mxu0 0.0
      %824 = vmatpush.msra.mxu0 0.0
      %825 = vmatpush.msra.mxu0 0.0
      %826 = vmatpush.msra.mxu0 0.0
      %827 = vmatpush.msra.mxu0 0.0
      %828 = vmatpush.msra.mxu0 0.0
      %829 = vmatpush.msra.mxu0 0.0
      %830 = vmatpush.msra.mxu0 0.0
      %831 = vmatpush.msra.mxu0 0.0
      %832 = vmatpush.msra.mxu0 0.0
      %833 = vmatpush.msra.mxu0 0.0
      %834 = vmatpush.msra.mxu0 0.0
      %835 = vmatpush.msra.mxu0 0.0
      %836 = vmatpush.msra.mxu0 0.0
      %837 = vmatpush.msra.mxu0 %v796
      %838 = vmatmul.f32.gmra.mxu0 %v800
      %v839 = vpop.f32.mrf.mxu0
      %v840 = vadd.f32 0.0, %v839
      %841 = vdwg.mxu0
      %v842 = vadd.f32 %v783, %v820
      %v843 = vadd.f32 %v784, %v840
      %v844 = vperm.slane %v288, 0
      %v845 = vperm.slane %v289, 0
      %848 = vrot.lane.b32.xlu0 %v844, 17
      %v849 = vpop.permute.xlu0 %848
      %850 = vrot.lane.b32.xlu0 %v845, 17
      %v851 = vpop.permute.xlu0 %850
      %v852 = vsel %vm331, %v849, %v851
      %v856 = vmul.f32 %v636, %v849
      %v857 = vmul.f32 %v637, %v852
      %v858 = vmul.f32 %v638, %v851
      %862 = vrot.lane.b32.xlu0 %v856, 111
      %v863 = vpop.permute.xlu0 %862
      %864 = vrot.lane.b32.xlu0 %v857, 111
      %v865 = vpop.permute.xlu0 %864
      %866 = vrot.lane.b32.xlu0 %v858, 111
      %v867 = vpop.permute.xlu0 %866
      %v868 = vsel %vm314, %v863, %v865
      %v869 = vsel %vm314, %v865, %v867
      %v873 = vsel %vm336, %v302, 0
      %875 = vmatpush.msra.mxu0 0.0
      %876 = vmatpush.msra.mxu0 0.0
      %877 = vmatpush.msra.mxu0 0.0
      %878 = vmatpush.msra.mxu0 0.0
      %879 = vmatpush.msra.mxu0 0.0
      %880 = vmatpush.msra.mxu0 0.0
      %881 = vmatpush.msra.mxu0 0.0
      %882 = vmatpush.msra.mxu0 0.0
      %883 = vmatpush.msra.mxu0 0.0
      %884 = vmatpush.msra.mxu0 0.0
      %885 = vmatpush.msra.mxu0 0.0
      %886 = vmatpush.msra.mxu0 0.0
      %887 = vmatpush.msra.mxu0 0.0
      %888 = vmatpush.msra.mxu0 0.0
      %889 = vmatpush.msra.mxu0 0.0
      %890 = vmatpush.msra.mxu0 %v868
      %891 = vmatmul.f32.gmra.mxu0 %v873
      %v892 = vpop.f32.mrf.mxu0
      %v893 = vadd.f32 0.0, %v892
      %894 = vdwg.mxu0
      %895 = vmatpush.msra.mxu0 0.0
      %896 = vmatpush.msra.mxu0 0.0
      %897 = vmatpush.msra.mxu0 0.0
      %898 = vmatpush.msra.mxu0 0.0
      %899 = vmatpush.msra.mxu0 0.0
      %900 = vmatpush.msra.mxu0 0.0
      %901 = vmatpush.msra.mxu0 0.0
      %902 = vmatpush.msra.mxu0 0.0
      %903 = vmatpush.msra.mxu0 0.0
      %904 = vmatpush.msra.mxu0 0.0
      %905 = vmatpush.msra.mxu0 0.0
      %906 = vmatpush.msra.mxu0 0.0
      %907 = vmatpush.msra.mxu0 0.0
      %908 = vmatpush.msra.mxu0 0.0
      %909 = vmatpush.msra.mxu0 0.0
      %910 = vmatpush.msra.mxu0 %v869
      %911 = vmatmul.f32.gmra.mxu0 %v873
      %v912 = vpop.f32.mrf.mxu0
      %v913 = vadd.f32 0.0, %v912
      %914 = vdwg.mxu0
      %v915 = vadd.f32 %v842, %v893
      %v916 = vadd.f32 %v843, %v913
      %v917 = vld [vmem:[%s266] sm:$0x77]
      %919 = vst [vmem:[#allocation1] ss:$2 sm:$0xff] %v917
      %v920 = vld.sshfl [vmem:[#allocation1] sm:$0xff pattern:$0x75316420]
      %v921 = vld.sshfl [vmem:[#allocation1 + $0x8] sm:$0xff pattern:$0x75316420]
      %924 = vst [vmem:[#allocation2 + $0x8] sm:$0x7] %v920
      %925 = vst [vmem:[#allocation2 + $0x10] sm:$0x7] %v921
      %v926 = vld [vmem:[%s3] sm:$0xff]
      %v927 = vld [vmem:[%s3 + $0x8] sm:$0xff]
      %v928 = vld [vmem:[%s3 + $0x10] sm:$0xff]
      %v929 = vld [vmem:[%s3 + $0x18] sm:$0xff]
      %v930 = vld [vmem:[%s3 + $0x20] sm:$0xff]
      %v931 = vld [vmem:[%s3 + $0x28] sm:$0xff]
      %v932 = vld [vmem:[%s3 + $0x30] sm:$0xff]
      %v933 = vld [vmem:[%s3 + $0x38] sm:$0xff]
      %v934 = vld [vmem:[%s3 + $0x40] sm:$0xff]
      %v935 = vld [vmem:[#allocation2] sm:$0x7]
      %v936 = vld [vmem:[#allocation2 + $0x8] sm:$0x7]
      %v937 = vld [vmem:[#allocation2 + $0x10] sm:$0x7]
      %v938 = vmul.f32 %v935, %v311
      %v939 = vmul.f32 %v936, %v315
      %v940 = vmul.f32 %v937, %v313
      %944 = vrot.lane.b32.xlu0 %v938, 17
      %v945 = vpop.permute.xlu0 %944
      %946 = vrot.lane.b32.xlu0 %v939, 17
      %v947 = vpop.permute.xlu0 %946
      %948 = vrot.lane.b32.xlu0 %v940, 17
      %v949 = vpop.permute.xlu0 %948
      %v950 = vsel %vm331, %v945, %v947
      %v951 = vsel %vm331, %v947, %v949
      %vm952 = vcmask 23552
      %v954 = vsel %vm952, %v926, 0
      %vm956 = vcmask 1042432
      %v957 = vsel %vm956, %v950, 0
      %v959 = vsel %vm956, %v951, 0
      %961 = vmatpush.msra.mxu0 0.0
      %962 = vmatpush.msra.mxu0 0.0
      %963 = vmatpush.msra.mxu0 0.0
      %964 = vmatpush.msra.mxu0 0.0
      %965 = vmatpush.msra.mxu0 0.0
      %966 = vmatpush.msra.mxu0 0.0
      %967 = vmatpush.msra.mxu0 0.0
      %968 = vmatpush.msra.mxu0 0.0
      %969 = vmatpush.msra.mxu0 0.0
      %970 = vmatpush.msra.mxu0 0.0
      %971 = vmatpush.msra.mxu0 0.0
      %972 = vmatpush.msra.mxu0 0.0
      %973 = vmatpush.msra.mxu0 0.0
      %974 = vmatpush.msra.mxu0 0.0
      %975 = vmatpush.msra.mxu0 0.0
      %976 = vmatpush.msra.mxu0 %v957
      %977 = vmatmul.f32.gmra.mxu0 %v954
      %v978 = vpop.f32.mrf.mxu0
      %v979 = vadd.f32 0.0, %v978
      %980 = vdwg.mxu0
      %981 = vmatpush.msra.mxu0 0.0
      %982 = vmatpush.msra.mxu0 0.0
      %983 = vmatpush.msra.mxu0 0.0
      %984 = vmatpush.msra.mxu0 0.0
      %985 = vmatpush.msra.mxu0 0.0
      %986 = vmatpush.msra.mxu0 0.0
      %987 = vmatpush.msra.mxu0 0.0
      %988 = vmatpush.msra.mxu0 0.0
      %989 = vmatpush.msra.mxu0 0.0
      %990 = vmatpush.msra.mxu0 0.0
      %991 = vmatpush.msra.mxu0 0.0
      %992 = vmatpush.msra.mxu0 0.0
      %993 = vmatpush.msra.mxu0 0.0
      %994 = vmatpush.msra.mxu0 0.0
      %995 = vmatpush.msra.mxu0 0.0
      %996 = vmatpush.msra.mxu0 %v959
      %997 = vmatmul.f32.gmra.mxu0 %v954
      %v998 = vpop.f32.mrf.mxu0
      %v999 = vadd.f32 0.0, %v998
      %1000 = vdwg.mxu0
      %v1001 = vadd.f32 %v915, %v979
      %v1002 = vadd.f32 %v916, %v999
      %1006 = vrot.lane.b32.xlu0 %v935, 16
      %v1007 = vpop.permute.xlu0 %1006
      %1008 = vrot.lane.b32.xlu0 %v936, 16
      %v1009 = vpop.permute.xlu0 %1008
      %1010 = vrot.lane.b32.xlu0 %v937, 16
      %v1011 = vpop.permute.xlu0 %1010
      %v1012 = vsel %vm391, %v1007, %v1009
      %v1013 = vsel %vm391, %v1009, %v1011
      %v1015 = vsel %vm952, %v927, 0
      %v1017 = vsel %vm956, %v1012, 0
      %v1019 = vsel %vm956, %v1013, 0
      %1021 = vmatpush.msra.mxu0 0.0
      %1022 = vmatpush.msra.mxu0 0.0
      %1023 = vmatpush.msra.mxu0 0.0
      %1024 = vmatpush.msra.mxu0 0.0
      %1025 = vmatpush.msra.mxu0 0.0
      %1026 = vmatpush.msra.mxu0 0.0
      %1027 = vmatpush.msra.mxu0 0.0
      %1028 = vmatpush.msra.mxu0 0.0
      %1029 = vmatpush.msra.mxu0 0.0
      %1030 = vmatpush.msra.mxu0 0.0
      %1031 = vmatpush.msra.mxu0 0.0
      %1032 = vmatpush.msra.mxu0 0.0
      %1033 = vmatpush.msra.mxu0 0.0
      %1034 = vmatpush.msra.mxu0 0.0
      %1035 = vmatpush.msra.mxu0 0.0
      %1036 = vmatpush.msra.mxu0 %v1017
      %1037 = vmatmul.f32.gmra.mxu0 %v1015
      %v1038 = vpop.f32.mrf.mxu0
      %v1039 = vadd.f32 0.0, %v1038
      %1040 = vdwg.mxu0
      %1041 = vmatpush.msra.mxu0 0.0
      %1042 = vmatpush.msra.mxu0 0.0
      %1043 = vmatpush.msra.mxu0 0.0
      %1044 = vmatpush.msra.mxu0 0.0
      %1045 = vmatpush.msra.mxu0 0.0
      %1046 = vmatpush.msra.mxu0 0.0
      %1047 = vmatpush.msra.mxu0 0.0
      %1048 = vmatpush.msra.mxu0 0.0
      %1049 = vmatpush.msra.mxu0 0.0
      %1050 = vmatpush.msra.mxu0 0.0
      %1051 = vmatpush.msra.mxu0 0.0
      %1052 = vmatpush.msra.mxu0 0.0
      %1053 = vmatpush.msra.mxu0 0.0
      %1054 = vmatpush.msra.mxu0 0.0
      %1055 = vmatpush.msra.mxu0 0.0
      %1056 = vmatpush.msra.mxu0 %v1019
      %1057 = vmatmul.f32.gmra.mxu0 %v1015
      %v1058 = vpop.f32.mrf.mxu0
      %v1059 = vadd.f32 0.0, %v1058
      %1060 = vdwg.mxu0
      %v1061 = vadd.f32 %v1001, %v1039
      %v1062 = vadd.f32 %v1002, %v1059
      %v1063 = vmul.f32 %v935, %v446
      %v1064 = vmul.f32 %v936, %v450
      %v1065 = vmul.f32 %v937, %v448
      %1069 = vrot.lane.b32.xlu0 %v1063, 15
      %v1070 = vpop.permute.xlu0 %1069
      %1071 = vrot.lane.b32.xlu0 %v1064, 15
      %v1072 = vpop.permute.xlu0 %1071
      %1073 = vrot.lane.b32.xlu0 %v1065, 15
      %v1074 = vpop.permute.xlu0 %1073
      %v1075 = vsel %vm466, %v1070, %v1072
      %v1076 = vsel %vm466, %v1072, %v1074
      %v1078 = vsel %vm952, %v928, 0
      %v1080 = vsel %vm956, %v1075, 0
      %v1082 = vsel %vm956, %v1076, 0
      %1084 = vmatpush.msra.mxu0 0.0
      %1085 = vmatpush.msra.mxu0 0.0
      %1086 = vmatpush.msra.mxu0 0.0
      %1087 = vmatpush.msra.mxu0 0.0
      %1088 = vmatpush.msra.mxu0 0.0
      %1089 = vmatpush.msra.mxu0 0.0
      %1090 = vmatpush.msra.mxu0 0.0
      %1091 = vmatpush.msra.mxu0 0.0
      %1092 = vmatpush.msra.mxu0 0.0
      %1093 = vmatpush.msra.mxu0 0.0
      %1094 = vmatpush.msra.mxu0 0.0
      %1095 = vmatpush.msra.mxu0 0.0
      %1096 = vmatpush.msra.mxu0 0.0
      %1097 = vmatpush.msra.mxu0 0.0
      %1098 = vmatpush.msra.mxu0 0.0
      %1099 = vmatpush.msra.mxu0 %v1080
      %1100 = vmatmul.f32.gmra.mxu0 %v1078
      %v1101 = vpop.f32.mrf.mxu0
      %v1102 = vadd.f32 0.0, %v1101
      %1103 = vdwg.mxu0
      %1104 = vmatpush.msra.mxu0 0.0
      %1105 = vmatpush.msra.mxu0 0.0
      %1106 = vmatpush.msra.mxu0 0.0
      %1107 = vmatpush.msra.mxu0 0.0
      %1108 = vmatpush.msra.mxu0 0.0
      %1109 = vmatpush.msra.mxu0 0.0
      %1110 = vmatpush.msra.mxu0 0.0
      %1111 = vmatpush.msra.mxu0 0.0
      %1112 = vmatpush.msra.mxu0 0.0
      %1113 = vmatpush.msra.mxu0 0.0
      %1114 = vmatpush.msra.mxu0 0.0
      %1115 = vmatpush.msra.mxu0 0.0
      %1116 = vmatpush.msra.mxu0 0.0
      %1117 = vmatpush.msra.mxu0 0.0
      %1118 = vmatpush.msra.mxu0 0.0
      %1119 = vmatpush.msra.mxu0 %v1082
      %1120 = vmatmul.f32.gmra.mxu0 %v1078
      %v1121 = vpop.f32.mrf.mxu0
      %v1122 = vadd.f32 0.0, %v1121
      %1123 = vdwg.mxu0
      %v1124 = vadd.f32 %v1061, %v1102
      %v1125 = vadd.f32 %v1062, %v1122
      %v1126 = vmul.f32 %v935, %v521
      %v1127 = vmul.f32 %v936, %v525
      %v1128 = vmul.f32 %v937, %v523
      %1132 = vrot.lane.b32.xlu0 %v1126, 1
      %v1133 = vpop.permute.xlu0 %1132
      %1134 = vrot.lane.b32.xlu0 %v1127, 1
      %v1135 = vpop.permute.xlu0 %1134
      %1136 = vrot.lane.b32.xlu0 %v1128, 1
      %v1137 = vpop.permute.xlu0 %1136
      %v1138 = vsel %vm541, %v1133, %v1135
      %v1139 = vsel %vm541, %v1135, %v1137
      %v1141 = vsel %vm952, %v929, 0
      %v1143 = vsel %vm956, %v1138, 0
      %v1145 = vsel %vm956, %v1139, 0
      %1147 = vmatpush.msra.mxu0 0.0
      %1148 = vmatpush.msra.mxu0 0.0
      %1149 = vmatpush.msra.mxu0 0.0
      %1150 = vmatpush.msra.mxu0 0.0
      %1151 = vmatpush.msra.mxu0 0.0
      %1152 = vmatpush.msra.mxu0 0.0
      %1153 = vmatpush.msra.mxu0 0.0
      %1154 = vmatpush.msra.mxu0 0.0
      %1155 = vmatpush.msra.mxu0 0.0
      %1156 = vmatpush.msra.mxu0 0.0
      %1157 = vmatpush.msra.mxu0 0.0
      %1158 = vmatpush.msra.mxu0 0.0
      %1159 = vmatpush.msra.mxu0 0.0
      %1160 = vmatpush.msra.mxu0 0.0
      %1161 = vmatpush.msra.mxu0 0.0
      %1162 = vmatpush.msra.mxu0 %v1143
      %1163 = vmatmul.f32.gmra.mxu0 %v1141
      %v1164 = vpop.f32.mrf.mxu0
      %v1165 = vadd.f32 0.0, %v1164
      %1166 = vdwg.mxu0
      %1167 = vmatpush.msra.mxu0 0.0
      %1168 = vmatpush.msra.mxu0 0.0
      %1169 = vmatpush.msra.mxu0 0.0
      %1170 = vmatpush.msra.mxu0 0.0
      %1171 = vmatpush.msra.mxu0 0.0
      %1172 = vmatpush.msra.mxu0 0.0
      %1173 = vmatpush.msra.mxu0 0.0
      %1174 = vmatpush.msra.mxu0 0.0
      %1175 = vmatpush.msra.mxu0 0.0
      %1176 = vmatpush.msra.mxu0 0.0
      %1177 = vmatpush.msra.mxu0 0.0
      %1178 = vmatpush.msra.mxu0 0.0
      %1179 = vmatpush.msra.mxu0 0.0
      %1180 = vmatpush.msra.mxu0 0.0
      %1181 = vmatpush.msra.mxu0 0.0
      %1182 = vmatpush.msra.mxu0 %v1145
      %1183 = vmatmul.f32.gmra.mxu0 %v1141
      %v1184 = vpop.f32.mrf.mxu0
      %v1185 = vadd.f32 0.0, %v1184
      %1186 = vdwg.mxu0
      %v1187 = vadd.f32 %v1124, %v1165
      %v1188 = vadd.f32 %v1125, %v1185
      %v1190 = vsel %vm952, %v930, 0
      %v1192 = vsel %vm956, %v936, 0
      %v1194 = vsel %vm956, %v937, 0
      %1196 = vmatpush.msra.mxu0 0.0
      %1197 = vmatpush.msra.mxu0 0.0
      %1198 = vmatpush.msra.mxu0 0.0
      %1199 = vmatpush.msra.mxu0 0.0
      %1200 = vmatpush.msra.mxu0 0.0
      %1201 = vmatpush.msra.mxu0 0.0
      %1202 = vmatpush.msra.mxu0 0.0
      %1203 = vmatpush.msra.mxu0 0.0
      %1204 = vmatpush.msra.mxu0 0.0
      %1205 = vmatpush.msra.mxu0 0.0
      %1206 = vmatpush.msra.mxu0 0.0
      %1207 = vmatpush.msra.mxu0 0.0
      %1208 = vmatpush.msra.mxu0 0.0
      %1209 = vmatpush.msra.mxu0 0.0
      %1210 = vmatpush.msra.mxu0 0.0
      %1211 = vmatpush.msra.mxu0 %v1192
      %1212 = vmatmul.f32.gmra.mxu0 %v1190
      %v1213 = vpop.f32.mrf.mxu0
      %v1214 = vadd.f32 0.0, %v1213
      %1215 = vdwg.mxu0
      %1216 = vmatpush.msra.mxu0 0.0
      %1217 = vmatpush.msra.mxu0 0.0
      %1218 = vmatpush.msra.mxu0 0.0
      %1219 = vmatpush.msra.mxu0 0.0
      %1220 = vmatpush.msra.mxu0 0.0
      %1221 = vmatpush.msra.mxu0 0.0
      %1222 = vmatpush.msra.mxu0 0.0
      %1223 = vmatpush.msra.mxu0 0.0
      %1224 = vmatpush.msra.mxu0 0.0
      %1225 = vmatpush.msra.mxu0 0.0
      %1226 = vmatpush.msra.mxu0 0.0
      %1227 = vmatpush.msra.mxu0 0.0
      %1228 = vmatpush.msra.mxu0 0.0
      %1229 = vmatpush.msra.mxu0 0.0
      %1230 = vmatpush.msra.mxu0 0.0
      %1231 = vmatpush.msra.mxu0 %v1194
      %1232 = vmatmul.f32.gmra.mxu0 %v1190
      %v1233 = vpop.f32.mrf.mxu0
      %v1234 = vadd.f32 0.0, %v1233
      %1235 = vdwg.mxu0
      %v1236 = vadd.f32 %v1187, %v1214
      %v1237 = vadd.f32 %v1188, %v1234
      %v1238 = vld [vmem:[#allocation2 + $0x8] sm:$0x7]
      %v1239 = vld [vmem:[#allocation2 + $0x10] sm:$0x7]
      %v1240 = vld [vmem:[#allocation2 + $0x18] sm:$0x7]
      %v1241 = vmul.f32 %v1238, %v644
      %v1242 = vmul.f32 %v1239, %v647
      %v1243 = vmul.f32 %v1240, %v646
      %1247 = vrot.lane.b32.xlu0 %v1241, 127
      %v1248 = vpop.permute.xlu0 %1247
      %1249 = vrot.lane.b32.xlu0 %v1242, 127
      %v1250 = vpop.permute.xlu0 %1249
      %1251 = vrot.lane.b32.xlu0 %v1243, 127
      %v1252 = vpop.permute.xlu0 %1251
      %v1253 = vsel %vm524, %v1248, %v1250
      %v1254 = vsel %vm524, %v1250, %v1252
      %v1256 = vsel %vm952, %v931, 0
      %v1258 = vsel %vm956, %v1253, 0
      %v1260 = vsel %vm956, %v1254, 0
      %1262 = vmatpush.msra.mxu0 0.0
      %1263 = vmatpush.msra.mxu0 0.0
      %1264 = vmatpush.msra.mxu0 0.0
      %1265 = vmatpush.msra.mxu0 0.0
      %1266 = vmatpush.msra.mxu0 0.0
      %1267 = vmatpush.msra.mxu0 0.0
      %1268 = vmatpush.msra.mxu0 0.0
      %1269 = vmatpush.msra.mxu0 0.0
      %1270 = vmatpush.msra.mxu0 0.0
      %1271 = vmatpush.msra.mxu0 0.0
      %1272 = vmatpush.msra.mxu0 0.0
      %1273 = vmatpush.msra.mxu0 0.0
      %1274 = vmatpush.msra.mxu0 0.0
      %1275 = vmatpush.msra.mxu0 0.0
      %1276 = vmatpush.msra.mxu0 0.0
      %1277 = vmatpush.msra.mxu0 %v1258
      %1278 = vmatmul.f32.gmra.mxu0 %v1256
      %v1279 = vpop.f32.mrf.mxu0
      %v1280 = vadd.f32 0.0, %v1279
      %1281 = vdwg.mxu0
      %1282 = vmatpush.msra.mxu0 0.0
      %1283 = vmatpush.msra.mxu0 0.0
      %1284 = vmatpush.msra.mxu0 0.0
      %1285 = vmatpush.msra.mxu0 0.0
      %1286 = vmatpush.msra.mxu0 0.0
      %1287 = vmatpush.msra.mxu0 0.0
      %1288 = vmatpush.msra.mxu0 0.0
      %1289 = vmatpush.msra.mxu0 0.0
      %1290 = vmatpush.msra.mxu0 0.0
      %1291 = vmatpush.msra.mxu0 0.0
      %1292 = vmatpush.msra.mxu0 0.0
      %1293 = vmatpush.msra.mxu0 0.0
      %1294 = vmatpush.msra.mxu0 0.0
      %1295 = vmatpush.msra.mxu0 0.0
      %1296 = vmatpush.msra.mxu0 0.0
      %1297 = vmatpush.msra.mxu0 %v1260
      %1298 = vmatmul.f32.gmra.mxu0 %v1256
      %v1299 = vpop.f32.mrf.mxu0
      %v1300 = vadd.f32 0.0, %v1299
      %1301 = vdwg.mxu0
      %v1302 = vadd.f32 %v1236, %v1280
      %v1303 = vadd.f32 %v1237, %v1300
      %v1304 = vmul.f32 %v1238, %v717
      %v1305 = vmul.f32 %v1239, %v720
      %v1306 = vmul.f32 %v1240, %v719
      %1310 = vrot.lane.b32.xlu0 %v1304, 113
      %v1311 = vpop.permute.xlu0 %1310
      %1312 = vrot.lane.b32.xlu0 %v1305, 113
      %v1313 = vpop.permute.xlu0 %1312
      %1314 = vrot.lane.b32.xlu0 %v1306, 113
      %v1315 = vpop.permute.xlu0 %1314
      %v1316 = vsel %vm449, %v1311, %v1313
      %v1317 = vsel %vm449, %v1313, %v1315
      %v1319 = vsel %vm952, %v932, 0
      %v1321 = vsel %vm956, %v1316, 0
      %v1323 = vsel %vm956, %v1317, 0
      %1325 = vmatpush.msra.mxu0 0.0
      %1326 = vmatpush.msra.mxu0 0.0
      %1327 = vmatpush.msra.mxu0 0.0
      %1328 = vmatpush.msra.mxu0 0.0
      %1329 = vmatpush.msra.mxu0 0.0
      %1330 = vmatpush.msra.mxu0 0.0
      %1331 = vmatpush.msra.mxu0 0.0
      %1332 = vmatpush.msra.mxu0 0.0
      %1333 = vmatpush.msra.mxu0 0.0
      %1334 = vmatpush.msra.mxu0 0.0
      %1335 = vmatpush.msra.mxu0 0.0
      %1336 = vmatpush.msra.mxu0 0.0
      %1337 = vmatpush.msra.mxu0 0.0
      %1338 = vmatpush.msra.mxu0 0.0
      %1339 = vmatpush.msra.mxu0 0.0
      %1340 = vmatpush.msra.mxu0 %v1321
      %1341 = vmatmul.f32.gmra.mxu0 %v1319
      %v1342 = vpop.f32.mrf.mxu0
      %v1343 = vadd.f32 0.0, %v1342
      %1344 = vdwg.mxu0
      %1345 = vmatpush.msra.mxu0 0.0
      %1346 = vmatpush.msra.mxu0 0.0
      %1347 = vmatpush.msra.mxu0 0.0
      %1348 = vmatpush.msra.mxu0 0.0
      %1349 = vmatpush.msra.mxu0 0.0
      %1350 = vmatpush.msra.mxu0 0.0
      %1351 = vmatpush.msra.mxu0 0.0
      %1352 = vmatpush.msra.mxu0 0.0
      %1353 = vmatpush.msra.mxu0 0.0
      %1354 = vmatpush.msra.mxu0 0.0
      %1355 = vmatpush.msra.mxu0 0.0
      %1356 = vmatpush.msra.mxu0 0.0
      %1357 = vmatpush.msra.mxu0 0.0
      %1358 = vmatpush.msra.mxu0 0.0
      %1359 = vmatpush.msra.mxu0 0.0
      %1360 = vmatpush.msra.mxu0 %v1323
      %1361 = vmatmul.f32.gmra.mxu0 %v1319
      %v1362 = vpop.f32.mrf.mxu0
      %v1363 = vadd.f32 0.0, %v1362
      %1364 = vdwg.mxu0
      %v1365 = vadd.f32 %v1302, %v1343
      %v1366 = vadd.f32 %v1303, %v1363
      %1370 = vrot.lane.b32.xlu0 %v1238, 112
      %v1371 = vpop.permute.xlu0 %1370
      %1372 = vrot.lane.b32.xlu0 %v1239, 112
      %v1373 = vpop.permute.xlu0 %1372
      %1374 = vrot.lane.b32.xlu0 %v1240, 112
      %v1375 = vpop.permute.xlu0 %1374
      %v1376 = vsel %vm794, %v1371, %v1373
      %v1377 = vsel %vm794, %v1373, %v1375
      %v1379 = vsel %vm952, %v933, 0
      %v1381 = vsel %vm956, %v1376, 0
      %v1383 = vsel %vm956, %v1377, 0
      %1385 = vmatpush.msra.mxu0 0.0
      %1386 = vmatpush.msra.mxu0 0.0
      %1387 = vmatpush.msra.mxu0 0.0
      %1388 = vmatpush.msra.mxu0 0.0
      %1389 = vmatpush.msra.mxu0 0.0
      %1390 = vmatpush.msra.mxu0 0.0
      %1391 = vmatpush.msra.mxu0 0.0
      %1392 = vmatpush.msra.mxu0 0.0
      %1393 = vmatpush.msra.mxu0 0.0
      %1394 = vmatpush.msra.mxu0 0.0
      %1395 = vmatpush.msra.mxu0 0.0
      %1396 = vmatpush.msra.mxu0 0.0
      %1397 = vmatpush.msra.mxu0 0.0
      %1398 = vmatpush.msra.mxu0 0.0
      %1399 = vmatpush.msra.mxu0 0.0
      %1400 = vmatpush.msra.mxu0 %v1381
      %1401 = vmatmul.f32.gmra.mxu0 %v1379
      %v1402 = vpop.f32.mrf.mxu0
      %v1403 = vadd.f32 0.0, %v1402
      %1404 = vdwg.mxu0
      %1405 = vmatpush.msra.mxu0 0.0
      %1406 = vmatpush.msra.mxu0 0.0
      %1407 = vmatpush.msra.mxu0 0.0
      %1408 = vmatpush.msra.mxu0 0.0
      %1409 = vmatpush.msra.mxu0 0.0
      %1410 = vmatpush.msra.mxu0 0.0
      %1411 = vmatpush.msra.mxu0 0.0
      %1412 = vmatpush.msra.mxu0 0.0
      %1413 = vmatpush.msra.mxu0 0.0
      %1414 = vmatpush.msra.mxu0 0.0
      %1415 = vmatpush.msra.mxu0 0.0
      %1416 = vmatpush.msra.mxu0 0.0
      %1417 = vmatpush.msra.mxu0 0.0
      %1418 = vmatpush.msra.mxu0 0.0
      %1419 = vmatpush.msra.mxu0 0.0
      %1420 = vmatpush.msra.mxu0 %v1383
      %1421 = vmatmul.f32.gmra.mxu0 %v1379
      %v1422 = vpop.f32.mrf.mxu0
      %v1423 = vadd.f32 0.0, %v1422
      %1424 = vdwg.mxu0
      %v1425 = vadd.f32 %v1365, %v1403
      %v1426 = vadd.f32 %v1366, %v1423
      %v1427 = vmul.f32 %v1238, %v849
      %v1428 = vmul.f32 %v1239, %v852
      %v1429 = vmul.f32 %v1240, %v851
      %1433 = vrot.lane.b32.xlu0 %v1427, 111
      %v1434 = vpop.permute.xlu0 %1433
      %1435 = vrot.lane.b32.xlu0 %v1428, 111
      %v1436 = vpop.permute.xlu0 %1435
      %1437 = vrot.lane.b32.xlu0 %v1429, 111
      %v1438 = vpop.permute.xlu0 %1437
      %v1439 = vsel %vm314, %v1434, %v1436
      %v1440 = vsel %vm314, %v1436, %v1438
      %v1442 = vsel %vm952, %v934, 0
      %v1444 = vsel %vm956, %v1439, 0
      %v1446 = vsel %vm956, %v1440, 0
      %1448 = vmatpush.msra.mxu0 0.0
      %1449 = vmatpush.msra.mxu0 0.0
      %1450 = vmatpush.msra.mxu0 0.0
      %1451 = vmatpush.msra.mxu0 0.0
      %1452 = vmatpush.msra.mxu0 0.0
      %1453 = vmatpush.msra.mxu0 0.0
      %1454 = vmatpush.msra.mxu0 0.0
      %1455 = vmatpush.msra.mxu0 0.0
      %1456 = vmatpush.msra.mxu0 0.0
      %1457 = vmatpush.msra.mxu0 0.0
      %1458 = vmatpush.msra.mxu0 0.0
      %1459 = vmatpush.msra.mxu0 0.0
      %1460 = vmatpush.msra.mxu0 0.0
      %1461 = vmatpush.msra.mxu0 0.0
      %1462 = vmatpush.msra.mxu0 0.0
      %1463 = vmatpush.msra.mxu0 %v1444
      %1464 = vmatmul.f32.gmra.mxu0 %v1442
      %v1465 = vpop.f32.mrf.mxu0
      %v1466 = vadd.f32 0.0, %v1465
      %1467 = vdwg.mxu0
      %1468 = vmatpush.msra.mxu0 0.0
      %1469 = vmatpush.msra.mxu0 0.0
      %1470 = vmatpush.msra.mxu0 0.0
      %1471 = vmatpush.msra.mxu0 0.0
      %1472 = vmatpush.msra.mxu0 0.0
      %1473 = vmatpush.msra.mxu0 0.0
      %1474 = vmatpush.msra.mxu0 0.0
      %1475 = vmatpush.msra.mxu0 0.0
      %1476 = vmatpush.msra.mxu0 0.0
      %1477 = vmatpush.msra.mxu0 0.0
      %1478 = vmatpush.msra.mxu0 0.0
      %1479 = vmatpush.msra.mxu0 0.0
      %1480 = vmatpush.msra.mxu0 0.0
      %1481 = vmatpush.msra.mxu0 0.0
      %1482 = vmatpush.msra.mxu0 0.0
      %1483 = vmatpush.msra.mxu0 %v1446
      %1484 = vmatmul.f32.gmra.mxu0 %v1442
      %v1485 = vpop.f32.mrf.mxu0
      %v1486 = vadd.f32 0.0, %v1485
      %1487 = vdwg.mxu0
      %v1488 = vadd.f32 %v1425, %v1466
      %v1489 = vadd.f32 %v1426, %v1486
      %v1490 = vmax.f32 %v1488, 0.0
      %v1491 = vmax.f32 %v1489, 0.0
      %1492 = vst [vmem:[%s271] sm:$0xff] %v1490
      %1493 = vst [vmem:[%s271 + $0x8] sm:$0xff] %v1491
      %p1494 = scmp.lt.s32.totalorder %s17, 1
      %s1495 = scalar_select %p1494, %s17, 1
      %s1496 = smul.addr %s1495, 2
      %s1497 = smul.addr %s1496, 8
      %s1498 = scalar_lea.vmem %s6, %s1497
      // Predicated region
      $region49: #{neck_forward.13} parent=43 // pred_check
        %p1499 = pneg %p171
      $region50: #{neck_forward.13} parent=43 // pred_check_branch
        %1501 = sbr.rel (%p1499) target = $region52
      $region51: #{neck_forward.13} parent=43 // pred_region
        _
      $region52: #{neck_forward.13} parent=43 // pred_fallthru
        _
    $region44: #{neck_forward.13} parent=5 // pred_fallthru
      _
    %p1502 = scmp.le.s32.totalorder 2, %s12
    // Predicated region
    $region53: #{neck_forward.13} parent=5 // pred_check
      %p1503 = pneg %p1502
    $region54: #{neck_forward.13} parent=5 // pred_check_branch
      %1505 = sbr.rel (%p1503) target = $region56
    $region55: #{neck_forward.13} parent=5 // pred_region
      %s1506 = ssub.s32 %s12, 2
      // Predicated region
      $region57: #{neck_forward.13} parent=55 // pred_check
        %p1507 = pneg %p177
      $region58: #{neck_forward.13} parent=55 // pred_check_branch
        %1509 = sbr.rel (%p1507) target = $region60
      $region59: #{neck_forward.13} parent=55 // pred_region
        %p1510 = scmp.lt.s32.totalorder %s18, 1
        %s1511 = scalar_select %p1510, %s18, 1
        %s1512 = smul.addr %s1511, 2
        %s1513 = smul.addr %s1512, 8
        %s1514 = scalar_lea.vmem %s6, %s1513
      $region60: #{neck_forward.13} parent=55 // pred_fallthru
        _
    $region56: #{neck_forward.13} parent=5 // pred_fallthru
      _
  $region6: #{neck_forward.13} parent=0 // loop_footer
    %s16 = sadd.s32 1, %s12
  $region7: #{neck_forward.13} parent=0 // loop_footer_branch
    %11 = sbr.rel target = $region3
  $region8: #{neck_forward.13} parent=0 // loop_exit
    _

</llo_original>
